<compile_context>
chip_gen: v5e
topology: v5e:2x2
jax: 0.10.0
libtpu: 0.0.40
codegen_flags: <defaults>
</compile_context>

<pallas_src>
import jax
import jax.numpy as jnp
from jax.experimental import pallas as pl
from jax.experimental.pallas import tpu as pltpu

KER = 3
LRELU_SLOPE = 0.2
BN_EPS = 1e-5


# ----------------------------- fused Pallas kernel --------------------------

def make_fused_kernel(batch, num_blocks):
    """Whole Generator forward inside one kernel. Activations stay in VMEM.

    Per layer the activation is a (batch, H, W*C) slab; the 3x3 conv is
    out[b, ho, wo*Cout+co] = sum_kh  x[b, ho+kh, :] @ band_kh
    where band_kh is the block-banded (W*Cin, Wo*Cout) matrix built outside.
    """

    def conv3x3(src_ref, band_ref, b, h_out):
        acc = jnp.dot(src_ref[b, 0:h_out, :], band_ref[0],
                      preferred_element_type=jnp.float32)
        for kh in range(1, KER):
            acc = acc + jnp.dot(src_ref[b, kh:kh + h_out, :], band_ref[kh],
                                preferred_element_type=jnp.float32)
        return acc

    def kernel(*refs):
        x_ref, ycrop_ref = refs[0], refs[1]
        pos = 2
        block_refs = []
        for _ in range(num_blocks):
            block_refs.append(refs[pos:pos + 6])
            pos += 6
        band_t_ref, bias_t_ref = refs[pos], refs[pos + 1]
        pos += 2
        o_ref = refs[pos]
        act_refs = refs[pos + 1:pos + 1 + num_blocks]

        src = x_ref
        for (band_ref, bias_ref, gamma_ref, beta_ref, g_ref, gt_ref), dst in zip(
                block_refs, act_refs):
            h_out = dst.shape[1]              # output height
            n_out = dst.shape[2]              # w_out * c_out  (lane axis)
            c_out = gamma_ref.shape[1]
            w_out = n_out // c_out
            inv_m = 1.0 / float(batch * h_out * w_out)

            accs = []
            col_sum = jnp.zeros((1, n_out), jnp.float32)
            col_sq = jnp.zeros((1, n_out), jnp.float32)
            for b in range(batch):
                acc = conv3x3(src, band_ref, b, h_out) + bias_ref[...]
                accs.append(acc)
                col_sum = col_sum + jnp.sum(acc, axis=0, keepdims=True)
                col_sq = col_sq + jnp.sum(acc * acc, axis=0, keepdims=True)

            # Per-channel batch stats: lane reduction with stride c_out done as
            # a tiny 0/1 gather matmul (MXU), single pass sum / sum-of-squares.
            ch_sum = jnp.dot(col_sum, g_ref[...], preferred_element_type=jnp.float32)
            ch_sq = jnp.dot(col_sq, g_ref[...], preferred_element_type=jnp.float32)
            mean = ch_sum * inv_m
            var = ch_sq * inv_m - mean * mean            # biased, training-mode
            scale_c = gamma_ref[...] * jax.lax.rsqrt(var + BN_EPS)
            shift_c = beta_ref[...] - mean * scale_c
            # Broadcast per-channel affine back to the (w_out*c_out) lane layout.
            scale_col = jnp.dot(scale_c, gt_ref[...], preferred_element_type=jnp.float32)
            shift_col = jnp.dot(shift_c, gt_ref[...], preferred_element_type=jnp.float32)

            for b in range(batch):
                y = accs[b] * scale_col + shift_col
                dst[b] = jnp.where(y >= 0, y, LRELU_SLOPE * y)     # LeakyReLU(0.2)
            src = dst

        # Tail: conv + bias + tanh + residual add of center-cropped y.
        h_out = o_ref.shape[1]
        for b in range(batch):
            acc = conv3x3(src, band_t_ref, b, h_out) + bias_t_ref[...]
            o_ref[b] = jnp.tanh(acc) + ycrop_ref[b]

    return kernel


# ------------------------------- JAX wrapper --------------------------------

def band_matrices(w, w_in, w_out):
    """w: (3,3,Cin,Cout) HWIO -> 3 block-banded matrices (w_in*Cin, w_out*Cout).

    band_kh[wv*Cin+ci, wo*Cout+co] = w[kh, wv-wo, ci, co] for 0 <= wv-wo < 3.
    """
    k, _, cin, cout = w.shape
    rows = jnp.arange(w_out)
    mats = []
    for kh in range(k):
        m = jnp.zeros((w_in, cin, w_out, cout), jnp.float32)
        for kw in range(k):
            eye = jnp.zeros((w_in, w_out), jnp.float32).at[rows + kw, rows].set(1.0)
            m = m + eye[:, None, :, None] * w[kh, kw][None, :, None, :]
        mats.append(m.reshape(w_in * cin, w_out * cout))
    return mats


def generator_forward(params, x_nchw, y_nchw):
    batch = x_nchw.shape[0]
    x = jnp.transpose(x_nchw, (0, 2, 3, 1)).astype(jnp.float32)   # NHWC
    y = jnp.transpose(y_nchw, (0, 2, 3, 1)).astype(jnp.float32)
    h, w, c = x.shape[1], x.shape[2], x.shape[3]

    call_args = [x.reshape(batch, h, w * c), None]   # slot [1] <- cropped y
    scratch = []
    flops = 0
    for (wk, bk, gk, betak) in params["blocks"]:
        cin, cout = wk.shape[2], wk.shape[3]
        ho, wo = h - KER + 1, w - KER + 1
        band = jnp.stack(band_matrices(wk, w, wo), axis=0)        # (3, w*cin, wo*cout)
        bias_col = jnp.tile(bk, wo).reshape(1, wo * cout)
        j = jnp.arange(wo * cout)
        gmat = (j[:, None] % cout == jnp.arange(cout)[None, :]).astype(jnp.float32)
        call_args += [band, bias_col, gk.reshape(1, cout), betak.reshape(1, cout),
                      gmat, gmat.T]
        scratch.append(pltpu.VMEM((batch, ho, wo * cout), jnp.float32))
        flops += 2 * batch * KER * ho * (w * cin) * (wo * cout)
        h, w, c = ho, wo, cout

    wt, bt = params["tail"]
    ho, wo = h - KER + 1, w - KER + 1
    band_t = jnp.stack(band_matrices(wt, w, wo), axis=0)          # (3, w*c, wo*3)
    bias_t = jnp.tile(bt, wo).reshape(1, wo * 3)
    call_args += [band_t, bias_t]
    flops += 2 * batch * KER * ho * (w * c) * (wo * 3)

    hy, wy = y.shape[1], y.shape[2]
    hcut, wcut = int((hy - ho) / 2), int((wy - wo) / 2)
    ycrop = y[:, hcut:hy - hcut, wcut:wy - wcut, :]
    call_args[1] = ycrop.reshape(batch, ho, wo * 3)

    bytes_acc = sum(int(a.size) * 4 for a in call_args) + batch * ho * wo * 3 * 4

    out = pl.pallas_call(
        make_fused_kernel(batch, len(params["blocks"])),
        out_shape=jax.ShapeDtypeStruct((batch, ho, wo * 3), jnp.float32),
        in_specs=[pl.BlockSpec(memory_space=pltpu.MemorySpace.VMEM)] * len(call_args),
        out_specs=pl.BlockSpec(memory_space=pltpu.MemorySpace.VMEM),
        scratch_shapes=scratch,
        compiler_params=pltpu.CompilerParams(vmem_limit_bytes=32 * 1024 * 1024),
        cost_estimate=pl.CostEstimate(flops=int(flops),
                                      transcendentals=int(batch * ho * wo * 3 + 256),
                                      bytes_accessed=int(bytes_acc)),
    )(*call_args)

    out = out.reshape(batch, ho, wo, 3)
    return jnp.transpose(out, (0, 3, 1, 2))       # NHWC -> NCHW


# ----------------------------- params & reference ---------------------------

def init_params(key, nfc=32, min_nfc=8, num_layer=5, ker=KER):
    """Deterministic synthetic init (PyTorch-style uniform bounds)."""
    chans = [(3, nfc)]                       # head
    N = nfc
    for i in range(num_layer - 2):           # body
        N = int(nfc / pow(2, i + 1))
        chans.append((max(2 * N, min_nfc), max(N, min_nfc)))
    tail_in = max(N, min_nfc)

    blocks = []
    for (cin, cout) in chans:
        key, k1, k2 = jax.random.split(key, 3)
        bound = 1.0 / (cin * ker * ker) ** 0.5
        w = jax.random.uniform(k1, (ker, ker, cin, cout), jnp.float32, -bound, bound)
        b = jax.random.uniform(k2, (cout,), jnp.float32, -bound, bound)
        gamma = jnp.ones((cout,), jnp.float32)      # BatchNorm default init
        beta = jnp.zeros((cout,), jnp.float32)
        blocks.append((w, b, gamma, beta))

    key, k1, k2 = jax.random.split(key, 3)
    bound = 1.0 / (tail_in * ker * ker) ** 0.5
    wt = jax.random.uniform(k1, (ker, ker, tail_in, 3), jnp.float32, -bound, bound)
    bt = jax.random.uniform(k2, (3,), jnp.float32, -bound, bound)
    return {"blocks": blocks, "tail": (wt, bt)}


def reference_forward(params, x_nchw, y_nchw):
    """Pure-JAX reference (correctness only)."""
    dn = ("NHWC", "HWIO", "NHWC")
    hp = jax.lax.Precision.HIGHEST
    x = jnp.transpose(x_nchw, (0, 2, 3, 1)).astype(jnp.float32)
    y = jnp.transpose(y_nchw, (0, 2, 3, 1)).astype(jnp.float32)
    for (w, b, gamma, beta) in params["blocks"]:
        x = jax.lax.conv_general_dilated(x, w, (1, 1), "VALID",
                                         dimension_numbers=dn, precision=hp) + b
        mean = jnp.mean(x, axis=(0, 1, 2), keepdims=True)
        var = jnp.mean((x - mean) ** 2, axis=(0, 1, 2), keepdims=True)
        x = (x - mean) / jnp.sqrt(var + BN_EPS) * gamma + beta
        x = jnp.where(x >= 0, x, LRELU_SLOPE * x)
    wt, bt = params["tail"]
    x = jnp.tanh(jax.lax.conv_general_dilated(x, wt, (1, 1), "VALID",
                                              dimension_numbers=dn, precision=hp) + bt)
    ho, wo = x.shape[1], x.shape[2]
    hcut = int((y.shape[1] - ho) / 2)
    wcut = int((y.shape[2] - wo) / 2)
    ycrop = y[:, hcut:y.shape[1] - hcut, wcut:y.shape[2] - wcut, :]
    return jnp.transpose(x + ycrop, (0, 3, 1, 2))


if __name__ == "__main__":
    key = jax.random.PRNGKey(0)
    kp, kx, ky = jax.random.split(key, 3)
    params = init_params(kp)

    # x: generator noise input, y: previous-scale image (same spatial size)
    x = jax.random.normal(kx, (2, 3, 16, 16), jnp.float32)
    y = jax.random.normal(ky, (2, 3, 16, 16), jnp.float32)

    fwd = jax.jit(generator_forward)
    out = jax.block_until_ready(fwd(params, x, y))

    assert out.shape == (2, 3, 6, 6), out.shape      # 16 - 5*(3-1) = 6
    ref = reference_forward(params, x, y)
    max_err = float(jnp.max(jnp.abs(out - ref)))
    assert max_err < 2e-4, f"mismatch vs reference: {max_err}"

    print("KERNEL_OK")
</pallas_src>

<mosaic_0001>
module attributes {stable_mosaic.version = 11 : i64} {
  func.func @kernel(%arg0: memref<2x16x48xf32, #tpu.memory_space<vmem>>, %arg1: memref<2x6x18xf32, #tpu.memory_space<vmem>>, %arg2: memref<3x48x448xf32, #tpu.memory_space<vmem>>, %arg3: memref<1x448xf32, #tpu.memory_space<vmem>>, %arg4: memref<1x32xf32, #tpu.memory_space<vmem>>, %arg5: memref<1x32xf32, #tpu.memory_space<vmem>>, %arg6: memref<448x32xf32, #tpu.memory_space<vmem>>, %arg7: memref<32x448xf32, #tpu.memory_space<vmem>>, %arg8: memref<3x448x192xf32, #tpu.memory_space<vmem>>, %arg9: memref<1x192xf32, #tpu.memory_space<vmem>>, %arg10: memref<1x16xf32, #tpu.memory_space<vmem>>, %arg11: memref<1x16xf32, #tpu.memory_space<vmem>>, %arg12: memref<192x16xf32, #tpu.memory_space<vmem>>, %arg13: memref<16x192xf32, #tpu.memory_space<vmem>>, %arg14: memref<3x192x80xf32, #tpu.memory_space<vmem>>, %arg15: memref<1x80xf32, #tpu.memory_space<vmem>>, %arg16: memref<1x8xf32, #tpu.memory_space<vmem>>, %arg17: memref<1x8xf32, #tpu.memory_space<vmem>>, %arg18: memref<80x8xf32, #tpu.memory_space<vmem>>, %arg19: memref<8x80xf32, #tpu.memory_space<vmem>>, %arg20: memref<3x80x64xf32, #tpu.memory_space<vmem>>, %arg21: memref<1x64xf32, #tpu.memory_space<vmem>>, %arg22: memref<1x8xf32, #tpu.memory_space<vmem>>, %arg23: memref<1x8xf32, #tpu.memory_space<vmem>>, %arg24: memref<64x8xf32, #tpu.memory_space<vmem>>, %arg25: memref<8x64xf32, #tpu.memory_space<vmem>>, %arg26: memref<3x64x18xf32, #tpu.memory_space<vmem>>, %arg27: memref<1x18xf32, #tpu.memory_space<vmem>>, %arg28: memref<2x6x18xf32, #tpu.memory_space<vmem>>, %arg29: memref<2x14x448xf32, #tpu.memory_space<vmem>>, %arg30: memref<2x12x192xf32, #tpu.memory_space<vmem>>, %arg31: memref<2x10x80xf32, #tpu.memory_space<vmem>>, %arg32: memref<2x8x64xf32, #tpu.memory_space<vmem>>) attributes {dimension_semantics = [], scalar_prefetch = 0 : i64, scratch_operands = 4 : i64, tpu.core_type = #tpu.core_type<tc>} {
    %cst = arith.constant 0.000000e+00 : f32
    %0 = vector.broadcast %cst : f32 to vector<1x448xf32>
    %cst_0 = arith.constant 0.000000e+00 : f32
    %1 = vector.broadcast %cst_0 : f32 to vector<1x448xf32>
    %c0 = arith.constant 0 : index
    %c0_1 = arith.constant 0 : index
    %c0_2 = arith.constant 0 : index
    %2 = vector.load %arg0[%c0, %c0_1, %c0_2] : memref<2x16x48xf32, #tpu.memory_space<vmem>>, vector<1x14x48xf32>
    %3 = vector.shape_cast %2 : vector<1x14x48xf32> to vector<14x48xf32>
    %c0_3 = arith.constant 0 : index
    %c0_4 = arith.constant 0 : index
    %c0_5 = arith.constant 0 : index
    %4 = vector.load %arg2[%c0_3, %c0_4, %c0_5] : memref<3x48x448xf32, #tpu.memory_space<vmem>>, vector<1x48x448xf32>
    %5 = vector.shape_cast %4 : vector<1x48x448xf32> to vector<48x448xf32>
    %cst_6 = arith.constant dense<0.000000e+00> : vector<14x448xf32>
    %6 = tpu.matmul %3, %5, %cst_6 {dimension_numbers = #tpu.dot_dimension_numbers<[1], [0], [0], [1], [0, 0, 1, 1], [], []>} : vector<14x48xf32>, vector<48x448xf32>, vector<14x448xf32> -> vector<14x448xf32>
    %c0_7 = arith.constant 0 : index
    %c1 = arith.constant 1 : index
    %c0_8 = arith.constant 0 : index
    %7 = vector.load %arg0[%c0_7, %c1, %c0_8] : memref<2x16x48xf32, #tpu.memory_space<vmem>>, vector<1x14x48xf32>
    %8 = vector.shape_cast %7 : vector<1x14x48xf32> to vector<14x48xf32>
    %c1_9 = arith.constant 1 : index
    %c0_10 = arith.constant 0 : index
    %c0_11 = arith.constant 0 : index
    %9 = vector.load %arg2[%c1_9, %c0_10, %c0_11] : memref<3x48x448xf32, #tpu.memory_space<vmem>>, vector<1x48x448xf32>
    %10 = vector.shape_cast %9 : vector<1x48x448xf32> to vector<48x448xf32>
    %cst_12 = arith.constant dense<0.000000e+00> : vector<14x448xf32>
    %11 = tpu.matmul %8, %10, %cst_12 {dimension_numbers = #tpu.dot_dimension_numbers<[1], [0], [0], [1], [0, 0, 1, 1], [], []>} : vector<14x48xf32>, vector<48x448xf32>, vector<14x448xf32> -> vector<14x448xf32>
    %12 = arith.addf %6, %11 : vector<14x448xf32>
    %c0_13 = arith.constant 0 : index
    %c2 = arith.constant 2 : index
    %c0_14 = arith.constant 0 : index
    %13 = vector.load %arg0[%c0_13, %c2, %c0_14] : memref<2x16x48xf32, #tpu.memory_space<vmem>>, vector<1x14x48xf32>
    %14 = vector.shape_cast %13 : vector<1x14x48xf32> to vector<14x48xf32>
    %c2_15 = arith.constant 2 : index
    %c0_16 = arith.constant 0 : index
    %c0_17 = arith.constant 0 : index
    %15 = vector.load %arg2[%c2_15, %c0_16, %c0_17] : memref<3x48x448xf32, #tpu.memory_space<vmem>>, vector<1x48x448xf32>
    %16 = vector.shape_cast %15 : vector<1x48x448xf32> to vector<48x448xf32>
    %cst_18 = arith.constant dense<0.000000e+00> : vector<14x448xf32>
    %17 = tpu.matmul %14, %16, %cst_18 {dimension_numbers = #tpu.dot_dimension_numbers<[1], [0], [0], [1], [0, 0, 1, 1], [], []>} : vector<14x48xf32>, vector<48x448xf32>, vector<14x448xf32> -> vector<14x448xf32>
    %18 = arith.addf %12, %17 : vector<14x448xf32>
    %c0_19 = arith.constant 0 : index
    %c0_20 = arith.constant 0 : index
    %19 = vector.load %arg3[%c0_19, %c0_20] : memref<1x448xf32, #tpu.memory_space<vmem>>, vector<1x448xf32>
    %20 = vector.broadcast %19 : vector<1x448xf32> to vector<14x448xf32>
    %21 = arith.addf %18, %20 : vector<14x448xf32>
    %cst_21 = arith.constant dense<0.000000e+00> : vector<448xf32>
    %22 = vector.multi_reduction <add>, %21, %cst_21 [0] : vector<14x448xf32> to vector<448xf32>
    %23 = vector.shape_cast %22 : vector<448xf32> to vector<1x448xf32>
    %24 = arith.addf %0, %23 : vector<1x448xf32>
    %25 = arith.mulf %21, %21 : vector<14x448xf32>
    %cst_22 = arith.constant dense<0.000000e+00> : vector<448xf32>
    %26 = vector.multi_reduction <add>, %25, %cst_22 [0] : vector<14x448xf32> to vector<448xf32>
    %27 = vector.shape_cast %26 : vector<448xf32> to vector<1x448xf32>
    %28 = arith.addf %1, %27 : vector<1x448xf32>
    %c1_23 = arith.constant 1 : index
    %c0_24 = arith.constant 0 : index
    %c0_25 = arith.constant 0 : index
    %29 = vector.load %arg0[%c1_23, %c0_24, %c0_25] : memref<2x16x48xf32, #tpu.memory_space<vmem>>, vector<1x14x48xf32>
    %30 = vector.shape_cast %29 : vector<1x14x48xf32> to vector<14x48xf32>
    %c0_26 = arith.constant 0 : index
    %c0_27 = arith.constant 0 : index
    %c0_28 = arith.constant 0 : index
    %31 = vector.load %arg2[%c0_26, %c0_27, %c0_28] : memref<3x48x448xf32, #tpu.memory_space<vmem>>, vector<1x48x448xf32>
    %32 = vector.shape_cast %31 : vector<1x48x448xf32> to vector<48x448xf32>
    %cst_29 = arith.constant dense<0.000000e+00> : vector<14x448xf32>
    %33 = tpu.matmul %30, %32, %cst_29 {dimension_numbers = #tpu.dot_dimension_numbers<[1], [0], [0], [1], [0, 0, 1, 1], [], []>} : vector<14x48xf32>, vector<48x448xf32>, vector<14x448xf32> -> vector<14x448xf32>
    %c1_30 = arith.constant 1 : index
    %c1_31 = arith.constant 1 : index
    %c0_32 = arith.constant 0 : index
    %34 = vector.load %arg0[%c1_30, %c1_31, %c0_32] : memref<2x16x48xf32, #tpu.memory_space<vmem>>, vector<1x14x48xf32>
    %35 = vector.shape_cast %34 : vector<1x14x48xf32> to vector<14x48xf32>
    %c1_33 = arith.constant 1 : index
    %c0_34 = arith.constant 0 : index
    %c0_35 = arith.constant 0 : index
    %36 = vector.load %arg2[%c1_33, %c0_34, %c0_35] : memref<3x48x448xf32, #tpu.memory_space<vmem>>, vector<1x48x448xf32>
    %37 = vector.shape_cast %36 : vector<1x48x448xf32> to vector<48x448xf32>
    %cst_36 = arith.constant dense<0.000000e+00> : vector<14x448xf32>
    %38 = tpu.matmul %35, %37, %cst_36 {dimension_numbers = #tpu.dot_dimension_numbers<[1], [0], [0], [1], [0, 0, 1, 1], [], []>} : vector<14x48xf32>, vector<48x448xf32>, vector<14x448xf32> -> vector<14x448xf32>
    %39 = arith.addf %33, %38 : vector<14x448xf32>
    %c1_37 = arith.constant 1 : index
    %c2_38 = arith.constant 2 : index
    %c0_39 = arith.constant 0 : index
    %40 = vector.load %arg0[%c1_37, %c2_38, %c0_39] : memref<2x16x48xf32, #tpu.memory_space<vmem>>, vector<1x14x48xf32>
    %41 = vector.shape_cast %40 : vector<1x14x48xf32> to vector<14x48xf32>
    %c2_40 = arith.constant 2 : index
    %c0_41 = arith.constant 0 : index
    %c0_42 = arith.constant 0 : index
    %42 = vector.load %arg2[%c2_40, %c0_41, %c0_42] : memref<3x48x448xf32, #tpu.memory_space<vmem>>, vector<1x48x448xf32>
    %43 = vector.shape_cast %42 : vector<1x48x448xf32> to vector<48x448xf32>
    %cst_43 = arith.constant dense<0.000000e+00> : vector<14x448xf32>
    %44 = tpu.matmul %41, %43, %cst_43 {dimension_numbers = #tpu.dot_dimension_numbers<[1], [0], [0], [1], [0, 0, 1, 1], [], []>} : vector<14x48xf32>, vector<48x448xf32>, vector<14x448xf32> -> vector<14x448xf32>
    %45 = arith.addf %39, %44 : vector<14x448xf32>
    %c0_44 = arith.constant 0 : index
    %c0_45 = arith.constant 0 : index
    %46 = vector.load %arg3[%c0_44, %c0_45] : memref<1x448xf32, #tpu.memory_space<vmem>>, vector<1x448xf32>
    %47 = vector.broadcast %46 : vector<1x448xf32> to vector<14x448xf32>
    %48 = arith.addf %45, %47 : vector<14x448xf32>
    %cst_46 = arith.constant dense<0.000000e+00> : vector<448xf32>
    %49 = vector.multi_reduction <add>, %48, %cst_46 [0] : vector<14x448xf32> to vector<448xf32>
    %50 = vector.shape_cast %49 : vector<448xf32> to vector<1x448xf32>
    %51 = arith.addf %24, %50 : vector<1x448xf32>
    %52 = arith.mulf %48, %48 : vector<14x448xf32>
    %cst_47 = arith.constant dense<0.000000e+00> : vector<448xf32>
    %53 = vector.multi_reduction <add>, %52, %cst_47 [0] : vector<14x448xf32> to vector<448xf32>
    %54 = vector.shape_cast %53 : vector<448xf32> to vector<1x448xf32>
    %55 = arith.addf %28, %54 : vector<1x448xf32>
    %c0_48 = arith.constant 0 : index
    %c0_49 = arith.constant 0 : index
    %56 = vector.load %arg6[%c0_48, %c0_49] : memref<448x32xf32, #tpu.memory_space<vmem>>, vector<448x32xf32>
    %cst_50 = arith.constant dense<0.000000e+00> : vector<1x32xf32>
    %57 = tpu.matmul %51, %56, %cst_50 {dimension_numbers = #tpu.dot_dimension_numbers<[1], [0], [0], [1], [0, 0, 1, 1], [], []>} : vector<1x448xf32>, vector<448x32xf32>, vector<1x32xf32> -> vector<1x32xf32>
    %c0_51 = arith.constant 0 : index
    %c0_52 = arith.constant 0 : index
    %58 = vector.load %arg6[%c0_51, %c0_52] : memref<448x32xf32, #tpu.memory_space<vmem>>, vector<448x32xf32>
    %cst_53 = arith.constant dense<0.000000e+00> : vector<1x32xf32>
    %59 = tpu.matmul %55, %58, %cst_53 {dimension_numbers = #tpu.dot_dimension_numbers<[1], [0], [0], [1], [0, 0, 1, 1], [], []>} : vector<1x448xf32>, vector<448x32xf32>, vector<1x32xf32> -> vector<1x32xf32>
    %cst_54 = arith.constant 0.00255102036 : f32
    %60 = vector.broadcast %cst_54 : f32 to vector<1x32xf32>
    %61 = arith.mulf %57, %60 : vector<1x32xf32>
    %cst_55 = arith.constant 0.00255102036 : f32
    %62 = vector.broadcast %cst_55 : f32 to vector<1x32xf32>
    %63 = arith.mulf %59, %62 : vector<1x32xf32>
    %64 = arith.mulf %61, %61 : vector<1x32xf32>
    %65 = arith.subf %63, %64 : vector<1x32xf32>
    %c0_56 = arith.constant 0 : index
    %c0_57 = arith.constant 0 : index
    %66 = vector.load %arg4[%c0_56, %c0_57] : memref<1x32xf32, #tpu.memory_space<vmem>>, vector<1x32xf32>
    %cst_58 = arith.constant 9.99999974E-6 : f32
    %67 = vector.broadcast %cst_58 : f32 to vector<1x32xf32>
    %68 = arith.addf %65, %67 : vector<1x32xf32>
    %69 = math.rsqrt %68 : vector<1x32xf32>
    %70 = arith.mulf %66, %69 : vector<1x32xf32>
    %c0_59 = arith.constant 0 : index
    %c0_60 = arith.constant 0 : index
    %71 = vector.load %arg5[%c0_59, %c0_60] : memref<1x32xf32, #tpu.memory_space<vmem>>, vector<1x32xf32>
    %72 = arith.mulf %61, %70 : vector<1x32xf32>
    %73 = arith.subf %71, %72 : vector<1x32xf32>
    %c0_61 = arith.constant 0 : index
    %c0_62 = arith.constant 0 : index
    %74 = vector.load %arg7[%c0_61, %c0_62] : memref<32x448xf32, #tpu.memory_space<vmem>>, vector<32x448xf32>
    %cst_63 = arith.constant dense<0.000000e+00> : vector<1x448xf32>
    %75 = tpu.matmul %70, %74, %cst_63 {dimension_numbers = #tpu.dot_dimension_numbers<[1], [0], [0], [1], [0, 0, 1, 1], [], []>} : vector<1x32xf32>, vector<32x448xf32>, vector<1x448xf32> -> vector<1x448xf32>
    %c0_64 = arith.constant 0 : index
    %c0_65 = arith.constant 0 : index
    %76 = vector.load %arg7[%c0_64, %c0_65] : memref<32x448xf32, #tpu.memory_space<vmem>>, vector<32x448xf32>
    %cst_66 = arith.constant dense<0.000000e+00> : vector<1x448xf32>
    %77 = tpu.matmul %73, %76, %cst_66 {dimension_numbers = #tpu.dot_dimension_numbers<[1], [0], [0], [1], [0, 0, 1, 1], [], []>} : vector<1x32xf32>, vector<32x448xf32>, vector<1x448xf32> -> vector<1x448xf32>
    %78 = vector.broadcast %75 : vector<1x448xf32> to vector<14x448xf32>
    %79 = arith.mulf %21, %78 : vector<14x448xf32>
    %80 = vector.broadcast %77 : vector<1x448xf32> to vector<14x448xf32>
    %81 = arith.addf %79, %80 : vector<14x448xf32>
    %cst_67 = arith.constant 0.000000e+00 : f32
    %82 = vector.broadcast %cst_67 : f32 to vector<14x448xf32>
    %83 = arith.cmpf oge, %81, %82 : vector<14x448xf32>
    %cst_68 = arith.constant 2.000000e-01 : f32
    %84 = vector.broadcast %cst_68 : f32 to vector<14x448xf32>
    %85 = arith.mulf %84, %81 : vector<14x448xf32>
    %86 = arith.select %83, %81, %85 : vector<14x448xi1>, vector<14x448xf32>
    %c0_69 = arith.constant 0 : index
    %c0_70 = arith.constant 0 : index
    %c0_71 = arith.constant 0 : index
    %87 = vector.load %arg29[%c0_69, %c0_70, %c0_71] : memref<2x14x448xf32, #tpu.memory_space<vmem>>, vector<1x14x448xf32>
    %88 = vector.shape_cast %87 : vector<1x14x448xf32> to vector<14x448xf32>
    %89 = vector.shape_cast %86 : vector<14x448xf32> to vector<1x14x448xf32>
    tpu.vector_store %arg29[%c0_69, %c0_70, %c0_71], %89 {strides = array<i32>} : memref<2x14x448xf32, #tpu.memory_space<vmem>>, vector<1x14x448xf32>,
    %90 = vector.broadcast %75 : vector<1x448xf32> to vector<14x448xf32>
    %91 = arith.mulf %48, %90 : vector<14x448xf32>
    %92 = vector.broadcast %77 : vector<1x448xf32> to vector<14x448xf32>
    %93 = arith.addf %91, %92 : vector<14x448xf32>
    %cst_72 = arith.constant 0.000000e+00 : f32
    %94 = vector.broadcast %cst_72 : f32 to vector<14x448xf32>
    %95 = arith.cmpf oge, %93, %94 : vector<14x448xf32>
    %cst_73 = arith.constant 2.000000e-01 : f32
    %96 = vector.broadcast %cst_73 : f32 to vector<14x448xf32>
    %97 = arith.mulf %96, %93 : vector<14x448xf32>
    %98 = arith.select %95, %93, %97 : vector<14x448xi1>, vector<14x448xf32>
    %c1_74 = arith.constant 1 : index
    %c0_75 = arith.constant 0 : index
    %c0_76 = arith.constant 0 : index
    %99 = vector.load %arg29[%c1_74, %c0_75, %c0_76] : memref<2x14x448xf32, #tpu.memory_space<vmem>>, vector<1x14x448xf32>
    %100 = vector.shape_cast %99 : vector<1x14x448xf32> to vector<14x448xf32>
    %101 = vector.shape_cast %98 : vector<14x448xf32> to vector<1x14x448xf32>
    tpu.vector_store %arg29[%c1_74, %c0_75, %c0_76], %101 {strides = array<i32>} : memref<2x14x448xf32, #tpu.memory_space<vmem>>, vector<1x14x448xf32>,
    %cst_77 = arith.constant 0.000000e+00 : f32
    %102 = vector.broadcast %cst_77 : f32 to vector<1x192xf32>
    %cst_78 = arith.constant 0.000000e+00 : f32
    %103 = vector.broadcast %cst_78 : f32 to vector<1x192xf32>
    %c0_79 = arith.constant 0 : index
    %c0_80 = arith.constant 0 : index
    %c0_81 = arith.constant 0 : index
    %104 = vector.load %arg29[%c0_79, %c0_80, %c0_81] : memref<2x14x448xf32, #tpu.memory_space<vmem>>, vector<1x12x448xf32>
    %105 = vector.shape_cast %104 : vector<1x12x448xf32> to vector<12x448xf32>
    %c0_82 = arith.constant 0 : index
    %c0_83 = arith.constant 0 : index
    %c0_84 = arith.constant 0 : index
    %106 = vector.load %arg8[%c0_82, %c0_83, %c0_84] : memref<3x448x192xf32, #tpu.memory_space<vmem>>, vector<1x448x192xf32>
    %107 = vector.shape_cast %106 : vector<1x448x192xf32> to vector<448x192xf32>
    %cst_85 = arith.constant dense<0.000000e+00> : vector<12x192xf32>
    %108 = tpu.matmul %105, %107, %cst_85 {dimension_numbers = #tpu.dot_dimension_numbers<[1], [0], [0], [1], [0, 0, 1, 1], [], []>} : vector<12x448xf32>, vector<448x192xf32>, vector<12x192xf32> -> vector<12x192xf32>
    %c0_86 = arith.constant 0 : index
    %c1_87 = arith.constant 1 : index
    %c0_88 = arith.constant 0 : index
    %109 = vector.load %arg29[%c0_86, %c1_87, %c0_88] : memref<2x14x448xf32, #tpu.memory_space<vmem>>, vector<1x12x448xf32>
    %110 = vector.shape_cast %109 : vector<1x12x448xf32> to vector<12x448xf32>
    %c1_89 = arith.constant 1 : index
    %c0_90 = arith.constant 0 : index
    %c0_91 = arith.constant 0 : index
    %111 = vector.load %arg8[%c1_89, %c0_90, %c0_91] : memref<3x448x192xf32, #tpu.memory_space<vmem>>, vector<1x448x192xf32>
    %112 = vector.shape_cast %111 : vector<1x448x192xf32> to vector<448x192xf32>
    %cst_92 = arith.constant dense<0.000000e+00> : vector<12x192xf32>
    %113 = tpu.matmul %110, %112, %cst_92 {dimension_numbers = #tpu.dot_dimension_numbers<[1], [0], [0], [1], [0, 0, 1, 1], [], []>} : vector<12x448xf32>, vector<448x192xf32>, vector<12x192xf32> -> vector<12x192xf32>
    %114 = arith.addf %108, %113 : vector<12x192xf32>
    %c0_93 = arith.constant 0 : index
    %c2_94 = arith.constant 2 : index
    %c0_95 = arith.constant 0 : index
    %115 = vector.load %arg29[%c0_93, %c2_94, %c0_95] : memref<2x14x448xf32, #tpu.memory_space<vmem>>, vector<1x12x448xf32>
    %116 = vector.shape_cast %115 : vector<1x12x448xf32> to vector<12x448xf32>
    %c2_96 = arith.constant 2 : index
    %c0_97 = arith.constant 0 : index
    %c0_98 = arith.constant 0 : index
    %117 = vector.load %arg8[%c2_96, %c0_97, %c0_98] : memref<3x448x192xf32, #tpu.memory_space<vmem>>, vector<1x448x192xf32>
    %118 = vector.shape_cast %117 : vector<1x448x192xf32> to vector<448x192xf32>
    %cst_99 = arith.constant dense<0.000000e+00> : vector<12x192xf32>
    %119 = tpu.matmul %116, %118, %cst_99 {dimension_numbers = #tpu.dot_dimension_numbers<[1], [0], [0], [1], [0, 0, 1, 1], [], []>} : vector<12x448xf32>, vector<448x192xf32>, vector<12x192xf32> -> vector<12x192xf32>
    %120 = arith.addf %114, %119 : vector<12x192xf32>
    %c0_100 = arith.constant 0 : index
    %c0_101 = arith.constant 0 : index
    %121 = vector.load %arg9[%c0_100, %c0_101] : memref<1x192xf32, #tpu.memory_space<vmem>>, vector<1x192xf32>
    %122 = vector.broadcast %121 : vector<1x192xf32> to vector<12x192xf32>
    %123 = arith.addf %120, %122 : vector<12x192xf32>
    %cst_102 = arith.constant dense<0.000000e+00> : vector<192xf32>
    %124 = vector.multi_reduction <add>, %123, %cst_102 [0] : vector<12x192xf32> to vector<192xf32>
    %125 = vector.shape_cast %124 : vector<192xf32> to vector<1x192xf32>
    %126 = arith.addf %102, %125 : vector<1x192xf32>
    %127 = arith.mulf %123, %123 : vector<12x192xf32>
    %cst_103 = arith.constant dense<0.000000e+00> : vector<192xf32>
    %128 = vector.multi_reduction <add>, %127, %cst_103 [0] : vector<12x192xf32> to vector<192xf32>
    %129 = vector.shape_cast %128 : vector<192xf32> to vector<1x192xf32>
    %130 = arith.addf %103, %129 : vector<1x192xf32>
    %c1_104 = arith.constant 1 : index
    %c0_105 = arith.constant 0 : index
    %c0_106 = arith.constant 0 : index
    %131 = vector.load %arg29[%c1_104, %c0_105, %c0_106] : memref<2x14x448xf32, #tpu.memory_space<vmem>>, vector<1x12x448xf32>
    %132 = vector.shape_cast %131 : vector<1x12x448xf32> to vector<12x448xf32>
    %c0_107 = arith.constant 0 : index
    %c0_108 = arith.constant 0 : index
    %c0_109 = arith.constant 0 : index
    %133 = vector.load %arg8[%c0_107, %c0_108, %c0_109] : memref<3x448x192xf32, #tpu.memory_space<vmem>>, vector<1x448x192xf32>
    %134 = vector.shape_cast %133 : vector<1x448x192xf32> to vector<448x192xf32>
    %cst_110 = arith.constant dense<0.000000e+00> : vector<12x192xf32>
    %135 = tpu.matmul %132, %134, %cst_110 {dimension_numbers = #tpu.dot_dimension_numbers<[1], [0], [0], [1], [0, 0, 1, 1], [], []>} : vector<12x448xf32>, vector<448x192xf32>, vector<12x192xf32> -> vector<12x192xf32>
    %c1_111 = arith.constant 1 : index
    %c1_112 = arith.constant 1 : index
    %c0_113 = arith.constant 0 : index
    %136 = vector.load %arg29[%c1_111, %c1_112, %c0_113] : memref<2x14x448xf32, #tpu.memory_space<vmem>>, vector<1x12x448xf32>
    %137 = vector.shape_cast %136 : vector<1x12x448xf32> to vector<12x448xf32>
    %c1_114 = arith.constant 1 : index
    %c0_115 = arith.constant 0 : index
    %c0_116 = arith.constant 0 : index
    %138 = vector.load %arg8[%c1_114, %c0_115, %c0_116] : memref<3x448x192xf32, #tpu.memory_space<vmem>>, vector<1x448x192xf32>
    %139 = vector.shape_cast %138 : vector<1x448x192xf32> to vector<448x192xf32>
    %cst_117 = arith.constant dense<0.000000e+00> : vector<12x192xf32>
    %140 = tpu.matmul %137, %139, %cst_117 {dimension_numbers = #tpu.dot_dimension_numbers<[1], [0], [0], [1], [0, 0, 1, 1], [], []>} : vector<12x448xf32>, vector<448x192xf32>, vector<12x192xf32> -> vector<12x192xf32>
    %141 = arith.addf %135, %140 : vector<12x192xf32>
    %c1_118 = arith.constant 1 : index
    %c2_119 = arith.constant 2 : index
    %c0_120 = arith.constant 0 : index
    %142 = vector.load %arg29[%c1_118, %c2_119, %c0_120] : memref<2x14x448xf32, #tpu.memory_space<vmem>>, vector<1x12x448xf32>
    %143 = vector.shape_cast %142 : vector<1x12x448xf32> to vector<12x448xf32>
    %c2_121 = arith.constant 2 : index
    %c0_122 = arith.constant 0 : index
    %c0_123 = arith.constant 0 : index
    %144 = vector.load %arg8[%c2_121, %c0_122, %c0_123] : memref<3x448x192xf32, #tpu.memory_space<vmem>>, vector<1x448x192xf32>
    %145 = vector.shape_cast %144 : vector<1x448x192xf32> to vector<448x192xf32>
    %cst_124 = arith.constant dense<0.000000e+00> : vector<12x192xf32>
    %146 = tpu.matmul %143, %145, %cst_124 {dimension_numbers = #tpu.dot_dimension_numbers<[1], [0], [0], [1], [0, 0, 1, 1], [], []>} : vector<12x448xf32>, vector<448x192xf32>, vector<12x192xf32> -> vector<12x192xf32>
    %147 = arith.addf %141, %146 : vector<12x192xf32>
    %c0_125 = arith.constant 0 : index
    %c0_126 = arith.constant 0 : index
    %148 = vector.load %arg9[%c0_125, %c0_126] : memref<1x192xf32, #tpu.memory_space<vmem>>, vector<1x192xf32>
    %149 = vector.broadcast %148 : vector<1x192xf32> to vector<12x192xf32>
    %150 = arith.addf %147, %149 : vector<12x192xf32>
    %cst_127 = arith.constant dense<0.000000e+00> : vector<192xf32>
    %151 = vector.multi_reduction <add>, %150, %cst_127 [0] : vector<12x192xf32> to vector<192xf32>
    %152 = vector.shape_cast %151 : vector<192xf32> to vector<1x192xf32>
    %153 = arith.addf %126, %152 : vector<1x192xf32>
    %154 = arith.mulf %150, %150 : vector<12x192xf32>
    %cst_128 = arith.constant dense<0.000000e+00> : vector<192xf32>
    %155 = vector.multi_reduction <add>, %154, %cst_128 [0] : vector<12x192xf32> to vector<192xf32>
    %156 = vector.shape_cast %155 : vector<192xf32> to vector<1x192xf32>
    %157 = arith.addf %130, %156 : vector<1x192xf32>
    %c0_129 = arith.constant 0 : index
    %c0_130 = arith.constant 0 : index
    %158 = vector.load %arg12[%c0_129, %c0_130] : memref<192x16xf32, #tpu.memory_space<vmem>>, vector<192x16xf32>
    %cst_131 = arith.constant dense<0.000000e+00> : vector<1x16xf32>
    %159 = tpu.matmul %153, %158, %cst_131 {dimension_numbers = #tpu.dot_dimension_numbers<[1], [0], [0], [1], [0, 0, 1, 1], [], []>} : vector<1x192xf32>, vector<192x16xf32>, vector<1x16xf32> -> vector<1x16xf32>
    %c0_132 = arith.constant 0 : index
    %c0_133 = arith.constant 0 : index
    %160 = vector.load %arg12[%c0_132, %c0_133] : memref<192x16xf32, #tpu.memory_space<vmem>>, vector<192x16xf32>
    %cst_134 = arith.constant dense<0.000000e+00> : vector<1x16xf32>
    %161 = tpu.matmul %157, %160, %cst_134 {dimension_numbers = #tpu.dot_dimension_numbers<[1], [0], [0], [1], [0, 0, 1, 1], [], []>} : vector<1x192xf32>, vector<192x16xf32>, vector<1x16xf32> -> vector<1x16xf32>
    %cst_135 = arith.constant 0.00347222225 : f32
    %162 = vector.broadcast %cst_135 : f32 to vector<1x16xf32>
    %163 = arith.mulf %159, %162 : vector<1x16xf32>
    %cst_136 = arith.constant 0.00347222225 : f32
    %164 = vector.broadcast %cst_136 : f32 to vector<1x16xf32>
    %165 = arith.mulf %161, %164 : vector<1x16xf32>
    %166 = arith.mulf %163, %163 : vector<1x16xf32>
    %167 = arith.subf %165, %166 : vector<1x16xf32>
    %c0_137 = arith.constant 0 : index
    %c0_138 = arith.constant 0 : index
    %168 = vector.load %arg10[%c0_137, %c0_138] : memref<1x16xf32, #tpu.memory_space<vmem>>, vector<1x16xf32>
    %cst_139 = arith.constant 9.99999974E-6 : f32
    %169 = vector.broadcast %cst_139 : f32 to vector<1x16xf32>
    %170 = arith.addf %167, %169 : vector<1x16xf32>
    %171 = math.rsqrt %170 : vector<1x16xf32>
    %172 = arith.mulf %168, %171 : vector<1x16xf32>
    %c0_140 = arith.constant 0 : index
    %c0_141 = arith.constant 0 : index
    %173 = vector.load %arg11[%c0_140, %c0_141] : memref<1x16xf32, #tpu.memory_space<vmem>>, vector<1x16xf32>
    %174 = arith.mulf %163, %172 : vector<1x16xf32>
    %175 = arith.subf %173, %174 : vector<1x16xf32>
    %c0_142 = arith.constant 0 : index
    %c0_143 = arith.constant 0 : index
    %176 = vector.load %arg13[%c0_142, %c0_143] : memref<16x192xf32, #tpu.memory_space<vmem>>, vector<16x192xf32>
    %cst_144 = arith.constant dense<0.000000e+00> : vector<1x192xf32>
    %177 = tpu.matmul %172, %176, %cst_144 {dimension_numbers = #tpu.dot_dimension_numbers<[1], [0], [0], [1], [0, 0, 1, 1], [], []>} : vector<1x16xf32>, vector<16x192xf32>, vector<1x192xf32> -> vector<1x192xf32>
    %c0_145 = arith.constant 0 : index
    %c0_146 = arith.constant 0 : index
    %178 = vector.load %arg13[%c0_145, %c0_146] : memref<16x192xf32, #tpu.memory_space<vmem>>, vector<16x192xf32>
    %cst_147 = arith.constant dense<0.000000e+00> : vector<1x192xf32>
    %179 = tpu.matmul %175, %178, %cst_147 {dimension_numbers = #tpu.dot_dimension_numbers<[1], [0], [0], [1], [0, 0, 1, 1], [], []>} : vector<1x16xf32>, vector<16x192xf32>, vector<1x192xf32> -> vector<1x192xf32>
    %180 = vector.broadcast %177 : vector<1x192xf32> to vector<12x192xf32>
    %181 = arith.mulf %123, %180 : vector<12x192xf32>
    %182 = vector.broadcast %179 : vector<1x192xf32> to vector<12x192xf32>
    %183 = arith.addf %181, %182 : vector<12x192xf32>
    %cst_148 = arith.constant 0.000000e+00 : f32
    %184 = vector.broadcast %cst_148 : f32 to vector<12x192xf32>
    %185 = arith.cmpf oge, %183, %184 : vector<12x192xf32>
    %cst_149 = arith.constant 2.000000e-01 : f32
    %186 = vector.broadcast %cst_149 : f32 to vector<12x192xf32>
    %187 = arith.mulf %186, %183 : vector<12x192xf32>
    %188 = arith.select %185, %183, %187 : vector<12x192xi1>, vector<12x192xf32>
    %c0_150 = arith.constant 0 : index
    %c0_151 = arith.constant 0 : index
    %c0_152 = arith.constant 0 : index
    %189 = vector.load %arg30[%c0_150, %c0_151, %c0_152] : memref<2x12x192xf32, #tpu.memory_space<vmem>>, vector<1x12x192xf32>
    %190 = vector.shape_cast %189 : vector<1x12x192xf32> to vector<12x192xf32>
    %191 = vector.shape_cast %188 : vector<12x192xf32> to vector<1x12x192xf32>
    tpu.vector_store %arg30[%c0_150, %c0_151, %c0_152], %191 {strides = array<i32>} : memref<2x12x192xf32, #tpu.memory_space<vmem>>, vector<1x12x192xf32>,
    %192 = vector.broadcast %177 : vector<1x192xf32> to vector<12x192xf32>
    %193 = arith.mulf %150, %192 : vector<12x192xf32>
    %194 = vector.broadcast %179 : vector<1x192xf32> to vector<12x192xf32>
    %195 = arith.addf %193, %194 : vector<12x192xf32>
    %cst_153 = arith.constant 0.000000e+00 : f32
    %196 = vector.broadcast %cst_153 : f32 to vector<12x192xf32>
    %197 = arith.cmpf oge, %195, %196 : vector<12x192xf32>
    %cst_154 = arith.constant 2.000000e-01 : f32
    %198 = vector.broadcast %cst_154 : f32 to vector<12x192xf32>
    %199 = arith.mulf %198, %195 : vector<12x192xf32>
    %200 = arith.select %197, %195, %199 : vector<12x192xi1>, vector<12x192xf32>
    %c1_155 = arith.constant 1 : index
    %c0_156 = arith.constant 0 : index
    %c0_157 = arith.constant 0 : index
    %201 = vector.load %arg30[%c1_155, %c0_156, %c0_157] : memref<2x12x192xf32, #tpu.memory_space<vmem>>, vector<1x12x192xf32>
    %202 = vector.shape_cast %201 : vector<1x12x192xf32> to vector<12x192xf32>
    %203 = vector.shape_cast %200 : vector<12x192xf32> to vector<1x12x192xf32>
    tpu.vector_store %arg30[%c1_155, %c0_156, %c0_157], %203 {strides = array<i32>} : memref<2x12x192xf32, #tpu.memory_space<vmem>>, vector<1x12x192xf32>,
    %cst_158 = arith.constant 0.000000e+00 : f32
    %204 = vector.broadcast %cst_158 : f32 to vector<1x80xf32>
    %cst_159 = arith.constant 0.000000e+00 : f32
    %205 = vector.broadcast %cst_159 : f32 to vector<1x80xf32>
    %c0_160 = arith.constant 0 : index
    %c0_161 = arith.constant 0 : index
    %c0_162 = arith.constant 0 : index
    %206 = vector.load %arg30[%c0_160, %c0_161, %c0_162] : memref<2x12x192xf32, #tpu.memory_space<vmem>>, vector<1x10x192xf32>
    %207 = vector.shape_cast %206 : vector<1x10x192xf32> to vector<10x192xf32>
    %c0_163 = arith.constant 0 : index
    %c0_164 = arith.constant 0 : index
    %c0_165 = arith.constant 0 : index
    %208 = vector.load %arg14[%c0_163, %c0_164, %c0_165] : memref<3x192x80xf32, #tpu.memory_space<vmem>>, vector<1x192x80xf32>
    %209 = vector.shape_cast %208 : vector<1x192x80xf32> to vector<192x80xf32>
    %cst_166 = arith.constant dense<0.000000e+00> : vector<10x80xf32>
    %210 = tpu.matmul %207, %209, %cst_166 {dimension_numbers = #tpu.dot_dimension_numbers<[1], [0], [0], [1], [0, 0, 1, 1], [], []>} : vector<10x192xf32>, vector<192x80xf32>, vector<10x80xf32> -> vector<10x80xf32>
    %c0_167 = arith.constant 0 : index
    %c1_168 = arith.constant 1 : index
    %c0_169 = arith.constant 0 : index
    %211 = vector.load %arg30[%c0_167, %c1_168, %c0_169] : memref<2x12x192xf32, #tpu.memory_space<vmem>>, vector<1x10x192xf32>
    %212 = vector.shape_cast %211 : vector<1x10x192xf32> to vector<10x192xf32>
    %c1_170 = arith.constant 1 : index
    %c0_171 = arith.constant 0 : index
    %c0_172 = arith.constant 0 : index
    %213 = vector.load %arg14[%c1_170, %c0_171, %c0_172] : memref<3x192x80xf32, #tpu.memory_space<vmem>>, vector<1x192x80xf32>
    %214 = vector.shape_cast %213 : vector<1x192x80xf32> to vector<192x80xf32>
    %cst_173 = arith.constant dense<0.000000e+00> : vector<10x80xf32>
    %215 = tpu.matmul %212, %214, %cst_173 {dimension_numbers = #tpu.dot_dimension_numbers<[1], [0], [0], [1], [0, 0, 1, 1], [], []>} : vector<10x192xf32>, vector<192x80xf32>, vector<10x80xf32> -> vector<10x80xf32>
    %216 = arith.addf %210, %215 : vector<10x80xf32>
    %c0_174 = arith.constant 0 : index
    %c2_175 = arith.constant 2 : index
    %c0_176 = arith.constant 0 : index
    %217 = vector.load %arg30[%c0_174, %c2_175, %c0_176] : memref<2x12x192xf32, #tpu.memory_space<vmem>>, vector<1x10x192xf32>
    %218 = vector.shape_cast %217 : vector<1x10x192xf32> to vector<10x192xf32>
    %c2_177 = arith.constant 2 : index
    %c0_178 = arith.constant 0 : index
    %c0_179 = arith.constant 0 : index
    %219 = vector.load %arg14[%c2_177, %c0_178, %c0_179] : memref<3x192x80xf32, #tpu.memory_space<vmem>>, vector<1x192x80xf32>
    %220 = vector.shape_cast %219 : vector<1x192x80xf32> to vector<192x80xf32>
    %cst_180 = arith.constant dense<0.000000e+00> : vector<10x80xf32>
    %221 = tpu.matmul %218, %220, %cst_180 {dimension_numbers = #tpu.dot_dimension_numbers<[1], [0], [0], [1], [0, 0, 1, 1], [], []>} : vector<10x192xf32>, vector<192x80xf32>, vector<10x80xf32> -> vector<10x80xf32>
    %222 = arith.addf %216, %221 : vector<10x80xf32>
    %c0_181 = arith.constant 0 : index
    %c0_182 = arith.constant 0 : index
    %223 = vector.load %arg15[%c0_181, %c0_182] : memref<1x80xf32, #tpu.memory_space<vmem>>, vector<1x80xf32>
    %224 = vector.broadcast %223 : vector<1x80xf32> to vector<10x80xf32>
    %225 = arith.addf %222, %224 : vector<10x80xf32>
    %cst_183 = arith.constant dense<0.000000e+00> : vector<80xf32>
    %226 = vector.multi_reduction <add>, %225, %cst_183 [0] : vector<10x80xf32> to vector<80xf32>
    %227 = vector.shape_cast %226 : vector<80xf32> to vector<1x80xf32>
    %228 = arith.addf %204, %227 : vector<1x80xf32>
    %229 = arith.mulf %225, %225 : vector<10x80xf32>
    %cst_184 = arith.constant dense<0.000000e+00> : vector<80xf32>
    %230 = vector.multi_reduction <add>, %229, %cst_184 [0] : vector<10x80xf32> to vector<80xf32>
    %231 = vector.shape_cast %230 : vector<80xf32> to vector<1x80xf32>
    %232 = arith.addf %205, %231 : vector<1x80xf32>
    %c1_185 = arith.constant 1 : index
    %c0_186 = arith.constant 0 : index
    %c0_187 = arith.constant 0 : index
    %233 = vector.load %arg30[%c1_185, %c0_186, %c0_187] : memref<2x12x192xf32, #tpu.memory_space<vmem>>, vector<1x10x192xf32>
    %234 = vector.shape_cast %233 : vector<1x10x192xf32> to vector<10x192xf32>
    %c0_188 = arith.constant 0 : index
    %c0_189 = arith.constant 0 : index
    %c0_190 = arith.constant 0 : index
    %235 = vector.load %arg14[%c0_188, %c0_189, %c0_190] : memref<3x192x80xf32, #tpu.memory_space<vmem>>, vector<1x192x80xf32>
    %236 = vector.shape_cast %235 : vector<1x192x80xf32> to vector<192x80xf32>
    %cst_191 = arith.constant dense<0.000000e+00> : vector<10x80xf32>
    %237 = tpu.matmul %234, %236, %cst_191 {dimension_numbers = #tpu.dot_dimension_numbers<[1], [0], [0], [1], [0, 0, 1, 1], [], []>} : vector<10x192xf32>, vector<192x80xf32>, vector<10x80xf32> -> vector<10x80xf32>
    %c1_192 = arith.constant 1 : index
    %c1_193 = arith.constant 1 : index
    %c0_194 = arith.constant 0 : index
    %238 = vector.load %arg30[%c1_192, %c1_193, %c0_194] : memref<2x12x192xf32, #tpu.memory_space<vmem>>, vector<1x10x192xf32>
    %239 = vector.shape_cast %238 : vector<1x10x192xf32> to vector<10x192xf32>
    %c1_195 = arith.constant 1 : index
    %c0_196 = arith.constant 0 : index
    %c0_197 = arith.constant 0 : index
    %240 = vector.load %arg14[%c1_195, %c0_196, %c0_197] : memref<3x192x80xf32, #tpu.memory_space<vmem>>, vector<1x192x80xf32>
    %241 = vector.shape_cast %240 : vector<1x192x80xf32> to vector<192x80xf32>
    %cst_198 = arith.constant dense<0.000000e+00> : vector<10x80xf32>
    %242 = tpu.matmul %239, %241, %cst_198 {dimension_numbers = #tpu.dot_dimension_numbers<[1], [0], [0], [1], [0, 0, 1, 1], [], []>} : vector<10x192xf32>, vector<192x80xf32>, vector<10x80xf32> -> vector<10x80xf32>
    %243 = arith.addf %237, %242 : vector<10x80xf32>
    %c1_199 = arith.constant 1 : index
    %c2_200 = arith.constant 2 : index
    %c0_201 = arith.constant 0 : index
    %244 = vector.load %arg30[%c1_199, %c2_200, %c0_201] : memref<2x12x192xf32, #tpu.memory_space<vmem>>, vector<1x10x192xf32>
    %245 = vector.shape_cast %244 : vector<1x10x192xf32> to vector<10x192xf32>
    %c2_202 = arith.constant 2 : index
    %c0_203 = arith.constant 0 : index
    %c0_204 = arith.constant 0 : index
    %246 = vector.load %arg14[%c2_202, %c0_203, %c0_204] : memref<3x192x80xf32, #tpu.memory_space<vmem>>, vector<1x192x80xf32>
    %247 = vector.shape_cast %246 : vector<1x192x80xf32> to vector<192x80xf32>
    %cst_205 = arith.constant dense<0.000000e+00> : vector<10x80xf32>
    %248 = tpu.matmul %245, %247, %cst_205 {dimension_numbers = #tpu.dot_dimension_numbers<[1], [0], [0], [1], [0, 0, 1, 1], [], []>} : vector<10x192xf32>, vector<192x80xf32>, vector<10x80xf32> -> vector<10x80xf32>
    %249 = arith.addf %243, %248 : vector<10x80xf32>
    %c0_206 = arith.constant 0 : index
    %c0_207 = arith.constant 0 : index
    %250 = vector.load %arg15[%c0_206, %c0_207] : memref<1x80xf32, #tpu.memory_space<vmem>>, vector<1x80xf32>
    %251 = vector.broadcast %250 : vector<1x80xf32> to vector<10x80xf32>
    %252 = arith.addf %249, %251 : vector<10x80xf32>
    %cst_208 = arith.constant dense<0.000000e+00> : vector<80xf32>
    %253 = vector.multi_reduction <add>, %252, %cst_208 [0] : vector<10x80xf32> to vector<80xf32>
    %254 = vector.shape_cast %253 : vector<80xf32> to vector<1x80xf32>
    %255 = arith.addf %228, %254 : vector<1x80xf32>
    %256 = arith.mulf %252, %252 : vector<10x80xf32>
    %cst_209 = arith.constant dense<0.000000e+00> : vector<80xf32>
    %257 = vector.multi_reduction <add>, %256, %cst_209 [0] : vector<10x80xf32> to vector<80xf32>
    %258 = vector.shape_cast %257 : vector<80xf32> to vector<1x80xf32>
    %259 = arith.addf %232, %258 : vector<1x80xf32>
    %c0_210 = arith.constant 0 : index
    %c0_211 = arith.constant 0 : index
    %260 = vector.load %arg18[%c0_210, %c0_211] : memref<80x8xf32, #tpu.memory_space<vmem>>, vector<80x8xf32>
    %cst_212 = arith.constant dense<0.000000e+00> : vector<1x8xf32>
    %261 = tpu.matmul %255, %260, %cst_212 {dimension_numbers = #tpu.dot_dimension_numbers<[1], [0], [0], [1], [0, 0, 1, 1], [], []>} : vector<1x80xf32>, vector<80x8xf32>, vector<1x8xf32> -> vector<1x8xf32>
    %c0_213 = arith.constant 0 : index
    %c0_214 = arith.constant 0 : index
    %262 = vector.load %arg18[%c0_213, %c0_214] : memref<80x8xf32, #tpu.memory_space<vmem>>, vector<80x8xf32>
    %cst_215 = arith.constant dense<0.000000e+00> : vector<1x8xf32>
    %263 = tpu.matmul %259, %262, %cst_215 {dimension_numbers = #tpu.dot_dimension_numbers<[1], [0], [0], [1], [0, 0, 1, 1], [], []>} : vector<1x80xf32>, vector<80x8xf32>, vector<1x8xf32> -> vector<1x8xf32>
    %cst_216 = arith.constant 5.000000e-03 : f32
    %264 = vector.broadcast %cst_216 : f32 to vector<1x8xf32>
    %265 = arith.mulf %261, %264 : vector<1x8xf32>
    %cst_217 = arith.constant 5.000000e-03 : f32
    %266 = vector.broadcast %cst_217 : f32 to vector<1x8xf32>
    %267 = arith.mulf %263, %266 : vector<1x8xf32>
    %268 = arith.mulf %265, %265 : vector<1x8xf32>
    %269 = arith.subf %267, %268 : vector<1x8xf32>
    %c0_218 = arith.constant 0 : index
    %c0_219 = arith.constant 0 : index
    %270 = vector.load %arg16[%c0_218, %c0_219] : memref<1x8xf32, #tpu.memory_space<vmem>>, vector<1x8xf32>
    %cst_220 = arith.constant 9.99999974E-6 : f32
    %271 = vector.broadcast %cst_220 : f32 to vector<1x8xf32>
    %272 = arith.addf %269, %271 : vector<1x8xf32>
    %273 = math.rsqrt %272 : vector<1x8xf32>
    %274 = arith.mulf %270, %273 : vector<1x8xf32>
    %c0_221 = arith.constant 0 : index
    %c0_222 = arith.constant 0 : index
    %275 = vector.load %arg17[%c0_221, %c0_222] : memref<1x8xf32, #tpu.memory_space<vmem>>, vector<1x8xf32>
    %276 = arith.mulf %265, %274 : vector<1x8xf32>
    %277 = arith.subf %275, %276 : vector<1x8xf32>
    %c0_223 = arith.constant 0 : index
    %c0_224 = arith.constant 0 : index
    %278 = vector.load %arg19[%c0_223, %c0_224] : memref<8x80xf32, #tpu.memory_space<vmem>>, vector<8x80xf32>
    %cst_225 = arith.constant dense<0.000000e+00> : vector<1x80xf32>
    %279 = tpu.matmul %274, %278, %cst_225 {dimension_numbers = #tpu.dot_dimension_numbers<[1], [0], [0], [1], [0, 0, 1, 1], [], []>} : vector<1x8xf32>, vector<8x80xf32>, vector<1x80xf32> -> vector<1x80xf32>
    %c0_226 = arith.constant 0 : index
    %c0_227 = arith.constant 0 : index
    %280 = vector.load %arg19[%c0_226, %c0_227] : memref<8x80xf32, #tpu.memory_space<vmem>>, vector<8x80xf32>
    %cst_228 = arith.constant dense<0.000000e+00> : vector<1x80xf32>
    %281 = tpu.matmul %277, %280, %cst_228 {dimension_numbers = #tpu.dot_dimension_numbers<[1], [0], [0], [1], [0, 0, 1, 1], [], []>} : vector<1x8xf32>, vector<8x80xf32>, vector<1x80xf32> -> vector<1x80xf32>
    %282 = vector.broadcast %279 : vector<1x80xf32> to vector<10x80xf32>
    %283 = arith.mulf %225, %282 : vector<10x80xf32>
    %284 = vector.broadcast %281 : vector<1x80xf32> to vector<10x80xf32>
    %285 = arith.addf %283, %284 : vector<10x80xf32>
    %cst_229 = arith.constant 0.000000e+00 : f32
    %286 = vector.broadcast %cst_229 : f32 to vector<10x80xf32>
    %287 = arith.cmpf oge, %285, %286 : vector<10x80xf32>
    %cst_230 = arith.constant 2.000000e-01 : f32
    %288 = vector.broadcast %cst_230 : f32 to vector<10x80xf32>
    %289 = arith.mulf %288, %285 : vector<10x80xf32>
    %290 = arith.select %287, %285, %289 : vector<10x80xi1>, vector<10x80xf32>
    %c0_231 = arith.constant 0 : index
    %c0_232 = arith.constant 0 : index
    %c0_233 = arith.constant 0 : index
    %291 = vector.load %arg31[%c0_231, %c0_232, %c0_233] : memref<2x10x80xf32, #tpu.memory_space<vmem>>, vector<1x10x80xf32>
    %292 = vector.shape_cast %291 : vector<1x10x80xf32> to vector<10x80xf32>
    %293 = vector.shape_cast %290 : vector<10x80xf32> to vector<1x10x80xf32>
    tpu.vector_store %arg31[%c0_231, %c0_232, %c0_233], %293 {strides = array<i32>} : memref<2x10x80xf32, #tpu.memory_space<vmem>>, vector<1x10x80xf32>,
    %294 = vector.broadcast %279 : vector<1x80xf32> to vector<10x80xf32>
    %295 = arith.mulf %252, %294 : vector<10x80xf32>
    %296 = vector.broadcast %281 : vector<1x80xf32> to vector<10x80xf32>
    %297 = arith.addf %295, %296 : vector<10x80xf32>
    %cst_234 = arith.constant 0.000000e+00 : f32
    %298 = vector.broadcast %cst_234 : f32 to vector<10x80xf32>
    %299 = arith.cmpf oge, %297, %298 : vector<10x80xf32>
    %cst_235 = arith.constant 2.000000e-01 : f32
    %300 = vector.broadcast %cst_235 : f32 to vector<10x80xf32>
    %301 = arith.mulf %300, %297 : vector<10x80xf32>
    %302 = arith.select %299, %297, %301 : vector<10x80xi1>, vector<10x80xf32>
    %c1_236 = arith.constant 1 : index
    %c0_237 = arith.constant 0 : index
    %c0_238 = arith.constant 0 : index
    %303 = vector.load %arg31[%c1_236, %c0_237, %c0_238] : memref<2x10x80xf32, #tpu.memory_space<vmem>>, vector<1x10x80xf32>
    %304 = vector.shape_cast %303 : vector<1x10x80xf32> to vector<10x80xf32>
    %305 = vector.shape_cast %302 : vector<10x80xf32> to vector<1x10x80xf32>
    tpu.vector_store %arg31[%c1_236, %c0_237, %c0_238], %305 {strides = array<i32>} : memref<2x10x80xf32, #tpu.memory_space<vmem>>, vector<1x10x80xf32>,
    %cst_239 = arith.constant 0.000000e+00 : f32
    %306 = vector.broadcast %cst_239 : f32 to vector<1x64xf32>
    %cst_240 = arith.constant 0.000000e+00 : f32
    %307 = vector.broadcast %cst_240 : f32 to vector<1x64xf32>
    %c0_241 = arith.constant 0 : index
    %c0_242 = arith.constant 0 : index
    %c0_243 = arith.constant 0 : index
    %308 = vector.load %arg31[%c0_241, %c0_242, %c0_243] : memref<2x10x80xf32, #tpu.memory_space<vmem>>, vector<1x8x80xf32>
    %309 = vector.shape_cast %308 : vector<1x8x80xf32> to vector<8x80xf32>
    %c0_244 = arith.constant 0 : index
    %c0_245 = arith.constant 0 : index
    %c0_246 = arith.constant 0 : index
    %310 = vector.load %arg20[%c0_244, %c0_245, %c0_246] : memref<3x80x64xf32, #tpu.memory_space<vmem>>, vector<1x80x64xf32>
    %311 = vector.shape_cast %310 : vector<1x80x64xf32> to vector<80x64xf32>
    %cst_247 = arith.constant dense<0.000000e+00> : vector<8x64xf32>
    %312 = tpu.matmul %309, %311, %cst_247 {dimension_numbers = #tpu.dot_dimension_numbers<[1], [0], [0], [1], [0, 0, 1, 1], [], []>} : vector<8x80xf32>, vector<80x64xf32>, vector<8x64xf32> -> vector<8x64xf32>
    %c0_248 = arith.constant 0 : index
    %c1_249 = arith.constant 1 : index
    %c0_250 = arith.constant 0 : index
    %313 = vector.load %arg31[%c0_248, %c1_249, %c0_250] : memref<2x10x80xf32, #tpu.memory_space<vmem>>, vector<1x8x80xf32>
    %314 = vector.shape_cast %313 : vector<1x8x80xf32> to vector<8x80xf32>
    %c1_251 = arith.constant 1 : index
    %c0_252 = arith.constant 0 : index
    %c0_253 = arith.constant 0 : index
    %315 = vector.load %arg20[%c1_251, %c0_252, %c0_253] : memref<3x80x64xf32, #tpu.memory_space<vmem>>, vector<1x80x64xf32>
    %316 = vector.shape_cast %315 : vector<1x80x64xf32> to vector<80x64xf32>
    %cst_254 = arith.constant dense<0.000000e+00> : vector<8x64xf32>
    %317 = tpu.matmul %314, %316, %cst_254 {dimension_numbers = #tpu.dot_dimension_numbers<[1], [0], [0], [1], [0, 0, 1, 1], [], []>} : vector<8x80xf32>, vector<80x64xf32>, vector<8x64xf32> -> vector<8x64xf32>
    %318 = arith.addf %312, %317 : vector<8x64xf32>
    %c0_255 = arith.constant 0 : index
    %c2_256 = arith.constant 2 : index
    %c0_257 = arith.constant 0 : index
    %319 = vector.load %arg31[%c0_255, %c2_256, %c0_257] : memref<2x10x80xf32, #tpu.memory_space<vmem>>, vector<1x8x80xf32>
    %320 = vector.shape_cast %319 : vector<1x8x80xf32> to vector<8x80xf32>
    %c2_258 = arith.constant 2 : index
    %c0_259 = arith.constant 0 : index
    %c0_260 = arith.constant 0 : index
    %321 = vector.load %arg20[%c2_258, %c0_259, %c0_260] : memref<3x80x64xf32, #tpu.memory_space<vmem>>, vector<1x80x64xf32>
    %322 = vector.shape_cast %321 : vector<1x80x64xf32> to vector<80x64xf32>
    %cst_261 = arith.constant dense<0.000000e+00> : vector<8x64xf32>
    %323 = tpu.matmul %320, %322, %cst_261 {dimension_numbers = #tpu.dot_dimension_numbers<[1], [0], [0], [1], [0, 0, 1, 1], [], []>} : vector<8x80xf32>, vector<80x64xf32>, vector<8x64xf32> -> vector<8x64xf32>
    %324 = arith.addf %318, %323 : vector<8x64xf32>
    %c0_262 = arith.constant 0 : index
    %c0_263 = arith.constant 0 : index
    %325 = vector.load %arg21[%c0_262, %c0_263] : memref<1x64xf32, #tpu.memory_space<vmem>>, vector<1x64xf32>
    %326 = vector.broadcast %325 : vector<1x64xf32> to vector<8x64xf32>
    %327 = arith.addf %324, %326 : vector<8x64xf32>
    %cst_264 = arith.constant dense<0.000000e+00> : vector<64xf32>
    %328 = vector.multi_reduction <add>, %327, %cst_264 [0] : vector<8x64xf32> to vector<64xf32>
    %329 = vector.shape_cast %328 : vector<64xf32> to vector<1x64xf32>
    %330 = arith.addf %306, %329 : vector<1x64xf32>
    %331 = arith.mulf %327, %327 : vector<8x64xf32>
    %cst_265 = arith.constant dense<0.000000e+00> : vector<64xf32>
    %332 = vector.multi_reduction <add>, %331, %cst_265 [0] : vector<8x64xf32> to vector<64xf32>
    %333 = vector.shape_cast %332 : vector<64xf32> to vector<1x64xf32>
    %334 = arith.addf %307, %333 : vector<1x64xf32>
    %c1_266 = arith.constant 1 : index
    %c0_267 = arith.constant 0 : index
    %c0_268 = arith.constant 0 : index
    %335 = vector.load %arg31[%c1_266, %c0_267, %c0_268] : memref<2x10x80xf32, #tpu.memory_space<vmem>>, vector<1x8x80xf32>
    %336 = vector.shape_cast %335 : vector<1x8x80xf32> to vector<8x80xf32>
    %c0_269 = arith.constant 0 : index
    %c0_270 = arith.constant 0 : index
    %c0_271 = arith.constant 0 : index
    %337 = vector.load %arg20[%c0_269, %c0_270, %c0_271] : memref<3x80x64xf32, #tpu.memory_space<vmem>>, vector<1x80x64xf32>
    %338 = vector.shape_cast %337 : vector<1x80x64xf32> to vector<80x64xf32>
    %cst_272 = arith.constant dense<0.000000e+00> : vector<8x64xf32>
    %339 = tpu.matmul %336, %338, %cst_272 {dimension_numbers = #tpu.dot_dimension_numbers<[1], [0], [0], [1], [0, 0, 1, 1], [], []>} : vector<8x80xf32>, vector<80x64xf32>, vector<8x64xf32> -> vector<8x64xf32>
    %c1_273 = arith.constant 1 : index
    %c1_274 = arith.constant 1 : index
    %c0_275 = arith.constant 0 : index
    %340 = vector.load %arg31[%c1_273, %c1_274, %c0_275] : memref<2x10x80xf32, #tpu.memory_space<vmem>>, vector<1x8x80xf32>
    %341 = vector.shape_cast %340 : vector<1x8x80xf32> to vector<8x80xf32>
    %c1_276 = arith.constant 1 : index
    %c0_277 = arith.constant 0 : index
    %c0_278 = arith.constant 0 : index
    %342 = vector.load %arg20[%c1_276, %c0_277, %c0_278] : memref<3x80x64xf32, #tpu.memory_space<vmem>>, vector<1x80x64xf32>
    %343 = vector.shape_cast %342 : vector<1x80x64xf32> to vector<80x64xf32>
    %cst_279 = arith.constant dense<0.000000e+00> : vector<8x64xf32>
    %344 = tpu.matmul %341, %343, %cst_279 {dimension_numbers = #tpu.dot_dimension_numbers<[1], [0], [0], [1], [0, 0, 1, 1], [], []>} : vector<8x80xf32>, vector<80x64xf32>, vector<8x64xf32> -> vector<8x64xf32>
    %345 = arith.addf %339, %344 : vector<8x64xf32>
    %c1_280 = arith.constant 1 : index
    %c2_281 = arith.constant 2 : index
    %c0_282 = arith.constant 0 : index
    %346 = vector.load %arg31[%c1_280, %c2_281, %c0_282] : memref<2x10x80xf32, #tpu.memory_space<vmem>>, vector<1x8x80xf32>
    %347 = vector.shape_cast %346 : vector<1x8x80xf32> to vector<8x80xf32>
    %c2_283 = arith.constant 2 : index
    %c0_284 = arith.constant 0 : index
    %c0_285 = arith.constant 0 : index
    %348 = vector.load %arg20[%c2_283, %c0_284, %c0_285] : memref<3x80x64xf32, #tpu.memory_space<vmem>>, vector<1x80x64xf32>
    %349 = vector.shape_cast %348 : vector<1x80x64xf32> to vector<80x64xf32>
    %cst_286 = arith.constant dense<0.000000e+00> : vector<8x64xf32>
    %350 = tpu.matmul %347, %349, %cst_286 {dimension_numbers = #tpu.dot_dimension_numbers<[1], [0], [0], [1], [0, 0, 1, 1], [], []>} : vector<8x80xf32>, vector<80x64xf32>, vector<8x64xf32> -> vector<8x64xf32>
    %351 = arith.addf %345, %350 : vector<8x64xf32>
    %c0_287 = arith.constant 0 : index
    %c0_288 = arith.constant 0 : index
    %352 = vector.load %arg21[%c0_287, %c0_288] : memref<1x64xf32, #tpu.memory_space<vmem>>, vector<1x64xf32>
    %353 = vector.broadcast %352 : vector<1x64xf32> to vector<8x64xf32>
    %354 = arith.addf %351, %353 : vector<8x64xf32>
    %cst_289 = arith.constant dense<0.000000e+00> : vector<64xf32>
    %355 = vector.multi_reduction <add>, %354, %cst_289 [0] : vector<8x64xf32> to vector<64xf32>
    %356 = vector.shape_cast %355 : vector<64xf32> to vector<1x64xf32>
    %357 = arith.addf %330, %356 : vector<1x64xf32>
    %358 = arith.mulf %354, %354 : vector<8x64xf32>
    %cst_290 = arith.constant dense<0.000000e+00> : vector<64xf32>
    %359 = vector.multi_reduction <add>, %358, %cst_290 [0] : vector<8x64xf32> to vector<64xf32>
    %360 = vector.shape_cast %359 : vector<64xf32> to vector<1x64xf32>
    %361 = arith.addf %334, %360 : vector<1x64xf32>
    %c0_291 = arith.constant 0 : index
    %c0_292 = arith.constant 0 : index
    %362 = vector.load %arg24[%c0_291, %c0_292] : memref<64x8xf32, #tpu.memory_space<vmem>>, vector<64x8xf32>
    %cst_293 = arith.constant dense<0.000000e+00> : vector<1x8xf32>
    %363 = tpu.matmul %357, %362, %cst_293 {dimension_numbers = #tpu.dot_dimension_numbers<[1], [0], [0], [1], [0, 0, 1, 1], [], []>} : vector<1x64xf32>, vector<64x8xf32>, vector<1x8xf32> -> vector<1x8xf32>
    %c0_294 = arith.constant 0 : index
    %c0_295 = arith.constant 0 : index
    %364 = vector.load %arg24[%c0_294, %c0_295] : memref<64x8xf32, #tpu.memory_space<vmem>>, vector<64x8xf32>
    %cst_296 = arith.constant dense<0.000000e+00> : vector<1x8xf32>
    %365 = tpu.matmul %361, %364, %cst_296 {dimension_numbers = #tpu.dot_dimension_numbers<[1], [0], [0], [1], [0, 0, 1, 1], [], []>} : vector<1x64xf32>, vector<64x8xf32>, vector<1x8xf32> -> vector<1x8xf32>
    %cst_297 = arith.constant 7.812500e-03 : f32
    %366 = vector.broadcast %cst_297 : f32 to vector<1x8xf32>
    %367 = arith.mulf %363, %366 : vector<1x8xf32>
    %cst_298 = arith.constant 7.812500e-03 : f32
    %368 = vector.broadcast %cst_298 : f32 to vector<1x8xf32>
    %369 = arith.mulf %365, %368 : vector<1x8xf32>
    %370 = arith.mulf %367, %367 : vector<1x8xf32>
    %371 = arith.subf %369, %370 : vector<1x8xf32>
    %c0_299 = arith.constant 0 : index
    %c0_300 = arith.constant 0 : index
    %372 = vector.load %arg22[%c0_299, %c0_300] : memref<1x8xf32, #tpu.memory_space<vmem>>, vector<1x8xf32>
    %cst_301 = arith.constant 9.99999974E-6 : f32
    %373 = vector.broadcast %cst_301 : f32 to vector<1x8xf32>
    %374 = arith.addf %371, %373 : vector<1x8xf32>
    %375 = math.rsqrt %374 : vector<1x8xf32>
    %376 = arith.mulf %372, %375 : vector<1x8xf32>
    %c0_302 = arith.constant 0 : index
    %c0_303 = arith.constant 0 : index
    %377 = vector.load %arg23[%c0_302, %c0_303] : memref<1x8xf32, #tpu.memory_space<vmem>>, vector<1x8xf32>
    %378 = arith.mulf %367, %376 : vector<1x8xf32>
    %379 = arith.subf %377, %378 : vector<1x8xf32>
    %c0_304 = arith.constant 0 : index
    %c0_305 = arith.constant 0 : index
    %380 = vector.load %arg25[%c0_304, %c0_305] : memref<8x64xf32, #tpu.memory_space<vmem>>, vector<8x64xf32>
    %cst_306 = arith.constant dense<0.000000e+00> : vector<1x64xf32>
    %381 = tpu.matmul %376, %380, %cst_306 {dimension_numbers = #tpu.dot_dimension_numbers<[1], [0], [0], [1], [0, 0, 1, 1], [], []>} : vector<1x8xf32>, vector<8x64xf32>, vector<1x64xf32> -> vector<1x64xf32>
    %c0_307 = arith.constant 0 : index
    %c0_308 = arith.constant 0 : index
    %382 = vector.load %arg25[%c0_307, %c0_308] : memref<8x64xf32, #tpu.memory_space<vmem>>, vector<8x64xf32>
    %cst_309 = arith.constant dense<0.000000e+00> : vector<1x64xf32>
    %383 = tpu.matmul %379, %382, %cst_309 {dimension_numbers = #tpu.dot_dimension_numbers<[1], [0], [0], [1], [0, 0, 1, 1], [], []>} : vector<1x8xf32>, vector<8x64xf32>, vector<1x64xf32> -> vector<1x64xf32>
    %384 = vector.broadcast %381 : vector<1x64xf32> to vector<8x64xf32>
    %385 = arith.mulf %327, %384 : vector<8x64xf32>
    %386 = vector.broadcast %383 : vector<1x64xf32> to vector<8x64xf32>
    %387 = arith.addf %385, %386 : vector<8x64xf32>
    %cst_310 = arith.constant 0.000000e+00 : f32
    %388 = vector.broadcast %cst_310 : f32 to vector<8x64xf32>
    %389 = arith.cmpf oge, %387, %388 : vector<8x64xf32>
    %cst_311 = arith.constant 2.000000e-01 : f32
    %390 = vector.broadcast %cst_311 : f32 to vector<8x64xf32>
    %391 = arith.mulf %390, %387 : vector<8x64xf32>
    %392 = arith.select %389, %387, %391 : vector<8x64xi1>, vector<8x64xf32>
    %c0_312 = arith.constant 0 : index
    %c0_313 = arith.constant 0 : index
    %c0_314 = arith.constant 0 : index
    %393 = vector.load %arg32[%c0_312, %c0_313, %c0_314] : memref<2x8x64xf32, #tpu.memory_space<vmem>>, vector<1x8x64xf32>
    %394 = vector.shape_cast %393 : vector<1x8x64xf32> to vector<8x64xf32>
    %395 = vector.shape_cast %392 : vector<8x64xf32> to vector<1x8x64xf32>
    tpu.vector_store %arg32[%c0_312, %c0_313, %c0_314], %395 {strides = array<i32>} : memref<2x8x64xf32, #tpu.memory_space<vmem>>, vector<1x8x64xf32>,
    %396 = vector.broadcast %381 : vector<1x64xf32> to vector<8x64xf32>
    %397 = arith.mulf %354, %396 : vector<8x64xf32>
    %398 = vector.broadcast %383 : vector<1x64xf32> to vector<8x64xf32>
    %399 = arith.addf %397, %398 : vector<8x64xf32>
    %cst_315 = arith.constant 0.000000e+00 : f32
    %400 = vector.broadcast %cst_315 : f32 to vector<8x64xf32>
    %401 = arith.cmpf oge, %399, %400 : vector<8x64xf32>
    %cst_316 = arith.constant 2.000000e-01 : f32
    %402 = vector.broadcast %cst_316 : f32 to vector<8x64xf32>
    %403 = arith.mulf %402, %399 : vector<8x64xf32>
    %404 = arith.select %401, %399, %403 : vector<8x64xi1>, vector<8x64xf32>
    %c1_317 = arith.constant 1 : index
    %c0_318 = arith.constant 0 : index
    %c0_319 = arith.constant 0 : index
    %405 = vector.load %arg32[%c1_317, %c0_318, %c0_319] : memref<2x8x64xf32, #tpu.memory_space<vmem>>, vector<1x8x64xf32>
    %406 = vector.shape_cast %405 : vector<1x8x64xf32> to vector<8x64xf32>
    %407 = vector.shape_cast %404 : vector<8x64xf32> to vector<1x8x64xf32>
    tpu.vector_store %arg32[%c1_317, %c0_318, %c0_319], %407 {strides = array<i32>} : memref<2x8x64xf32, #tpu.memory_space<vmem>>, vector<1x8x64xf32>,
    %c0_320 = arith.constant 0 : index
    %c0_321 = arith.constant 0 : index
    %c0_322 = arith.constant 0 : index
    %408 = vector.load %arg32[%c0_320, %c0_321, %c0_322] : memref<2x8x64xf32, #tpu.memory_space<vmem>>, vector<1x6x64xf32>
    %409 = vector.shape_cast %408 : vector<1x6x64xf32> to vector<6x64xf32>
    %c0_323 = arith.constant 0 : index
    %c0_324 = arith.constant 0 : index
    %c0_325 = arith.constant 0 : index
    %410 = vector.load %arg26[%c0_323, %c0_324, %c0_325] : memref<3x64x18xf32, #tpu.memory_space<vmem>>, vector<1x64x18xf32>
    %411 = vector.shape_cast %410 : vector<1x64x18xf32> to vector<64x18xf32>
    %cst_326 = arith.constant dense<0.000000e+00> : vector<6x18xf32>
    %412 = tpu.matmul %409, %411, %cst_326 {dimension_numbers = #tpu.dot_dimension_numbers<[1], [0], [0], [1], [0, 0, 1, 1], [], []>} : vector<6x64xf32>, vector<64x18xf32>, vector<6x18xf32> -> vector<6x18xf32>
    %c0_327 = arith.constant 0 : index
    %c1_328 = arith.constant 1 : index
    %c0_329 = arith.constant 0 : index
    %413 = vector.load %arg32[%c0_327, %c1_328, %c0_329] : memref<2x8x64xf32, #tpu.memory_space<vmem>>, vector<1x6x64xf32>
    %414 = vector.shape_cast %413 : vector<1x6x64xf32> to vector<6x64xf32>
    %c1_330 = arith.constant 1 : index
    %c0_331 = arith.constant 0 : index
    %c0_332 = arith.constant 0 : index
    %415 = vector.load %arg26[%c1_330, %c0_331, %c0_332] : memref<3x64x18xf32, #tpu.memory_space<vmem>>, vector<1x64x18xf32>
    %416 = vector.shape_cast %415 : vector<1x64x18xf32> to vector<64x18xf32>
    %cst_333 = arith.constant dense<0.000000e+00> : vector<6x18xf32>
    %417 = tpu.matmul %414, %416, %cst_333 {dimension_numbers = #tpu.dot_dimension_numbers<[1], [0], [0], [1], [0, 0, 1, 1], [], []>} : vector<6x64xf32>, vector<64x18xf32>, vector<6x18xf32> -> vector<6x18xf32>
    %418 = arith.addf %412, %417 : vector<6x18xf32>
    %c0_334 = arith.constant 0 : index
    %c2_335 = arith.constant 2 : index
    %c0_336 = arith.constant 0 : index
    %419 = vector.load %arg32[%c0_334, %c2_335, %c0_336] : memref<2x8x64xf32, #tpu.memory_space<vmem>>, vector<1x6x64xf32>
    %420 = vector.shape_cast %419 : vector<1x6x64xf32> to vector<6x64xf32>
    %c2_337 = arith.constant 2 : index
    %c0_338 = arith.constant 0 : index
    %c0_339 = arith.constant 0 : index
    %421 = vector.load %arg26[%c2_337, %c0_338, %c0_339] : memref<3x64x18xf32, #tpu.memory_space<vmem>>, vector<1x64x18xf32>
    %422 = vector.shape_cast %421 : vector<1x64x18xf32> to vector<64x18xf32>
    %cst_340 = arith.constant dense<0.000000e+00> : vector<6x18xf32>
    %423 = tpu.matmul %420, %422, %cst_340 {dimension_numbers = #tpu.dot_dimension_numbers<[1], [0], [0], [1], [0, 0, 1, 1], [], []>} : vector<6x64xf32>, vector<64x18xf32>, vector<6x18xf32> -> vector<6x18xf32>
    %424 = arith.addf %418, %423 : vector<6x18xf32>
    %c0_341 = arith.constant 0 : index
    %c0_342 = arith.constant 0 : index
    %425 = vector.load %arg27[%c0_341, %c0_342] : memref<1x18xf32, #tpu.memory_space<vmem>>, vector<1x18xf32>
    %426 = vector.broadcast %425 : vector<1x18xf32> to vector<6x18xf32>
    %427 = arith.addf %424, %426 : vector<6x18xf32>
    %428 = math.tanh %427 : vector<6x18xf32>
    %c0_343 = arith.constant 0 : index
    %c0_344 = arith.constant 0 : index
    %c0_345 = arith.constant 0 : index
    %429 = vector.load %arg1[%c0_343, %c0_344, %c0_345] : memref<2x6x18xf32, #tpu.memory_space<vmem>>, vector<1x6x18xf32>
    %430 = vector.shape_cast %429 : vector<1x6x18xf32> to vector<6x18xf32>
    %431 = arith.addf %428, %430 : vector<6x18xf32>
    %c0_346 = arith.constant 0 : index
    %c0_347 = arith.constant 0 : index
    %c0_348 = arith.constant 0 : index
    %432 = vector.load %arg28[%c0_346, %c0_347, %c0_348] : memref<2x6x18xf32, #tpu.memory_space<vmem>>, vector<1x6x18xf32>
    %433 = vector.shape_cast %432 : vector<1x6x18xf32> to vector<6x18xf32>
    %434 = vector.shape_cast %431 : vector<6x18xf32> to vector<1x6x18xf32>
    tpu.vector_store %arg28[%c0_346, %c0_347, %c0_348], %434 {strides = array<i32>} : memref<2x6x18xf32, #tpu.memory_space<vmem>>, vector<1x6x18xf32>,
    %c1_349 = arith.constant 1 : index
    %c0_350 = arith.constant 0 : index
    %c0_351 = arith.constant 0 : index
    %435 = vector.load %arg32[%c1_349, %c0_350, %c0_351] : memref<2x8x64xf32, #tpu.memory_space<vmem>>, vector<1x6x64xf32>
    %436 = vector.shape_cast %435 : vector<1x6x64xf32> to vector<6x64xf32>
    %c0_352 = arith.constant 0 : index
    %c0_353 = arith.constant 0 : index
    %c0_354 = arith.constant 0 : index
    %437 = vector.load %arg26[%c0_352, %c0_353, %c0_354] : memref<3x64x18xf32, #tpu.memory_space<vmem>>, vector<1x64x18xf32>
    %438 = vector.shape_cast %437 : vector<1x64x18xf32> to vector<64x18xf32>
    %cst_355 = arith.constant dense<0.000000e+00> : vector<6x18xf32>
    %439 = tpu.matmul %436, %438, %cst_355 {dimension_numbers = #tpu.dot_dimension_numbers<[1], [0], [0], [1], [0, 0, 1, 1], [], []>} : vector<6x64xf32>, vector<64x18xf32>, vector<6x18xf32> -> vector<6x18xf32>
    %c1_356 = arith.constant 1 : index
    %c1_357 = arith.constant 1 : index
    %c0_358 = arith.constant 0 : index
    %440 = vector.load %arg32[%c1_356, %c1_357, %c0_358] : memref<2x8x64xf32, #tpu.memory_space<vmem>>, vector<1x6x64xf32>
    %441 = vector.shape_cast %440 : vector<1x6x64xf32> to vector<6x64xf32>
    %c1_359 = arith.constant 1 : index
    %c0_360 = arith.constant 0 : index
    %c0_361 = arith.constant 0 : index
    %442 = vector.load %arg26[%c1_359, %c0_360, %c0_361] : memref<3x64x18xf32, #tpu.memory_space<vmem>>, vector<1x64x18xf32>
    %443 = vector.shape_cast %442 : vector<1x64x18xf32> to vector<64x18xf32>
    %cst_362 = arith.constant dense<0.000000e+00> : vector<6x18xf32>
    %444 = tpu.matmul %441, %443, %cst_362 {dimension_numbers = #tpu.dot_dimension_numbers<[1], [0], [0], [1], [0, 0, 1, 1], [], []>} : vector<6x64xf32>, vector<64x18xf32>, vector<6x18xf32> -> vector<6x18xf32>
    %445 = arith.addf %439, %444 : vector<6x18xf32>
    %c1_363 = arith.constant 1 : index
    %c2_364 = arith.constant 2 : index
    %c0_365 = arith.constant 0 : index
    %446 = vector.load %arg32[%c1_363, %c2_364, %c0_365] : memref<2x8x64xf32, #tpu.memory_space<vmem>>, vector<1x6x64xf32>
    %447 = vector.shape_cast %446 : vector<1x6x64xf32> to vector<6x64xf32>
    %c2_366 = arith.constant 2 : index
    %c0_367 = arith.constant 0 : index
    %c0_368 = arith.constant 0 : index
    %448 = vector.load %arg26[%c2_366, %c0_367, %c0_368] : memref<3x64x18xf32, #tpu.memory_space<vmem>>, vector<1x64x18xf32>
    %449 = vector.shape_cast %448 : vector<1x64x18xf32> to vector<64x18xf32>
    %cst_369 = arith.constant dense<0.000000e+00> : vector<6x18xf32>
    %450 = tpu.matmul %447, %449, %cst_369 {dimension_numbers = #tpu.dot_dimension_numbers<[1], [0], [0], [1], [0, 0, 1, 1], [], []>} : vector<6x64xf32>, vector<64x18xf32>, vector<6x18xf32> -> vector<6x18xf32>
    %451 = arith.addf %445, %450 : vector<6x18xf32>
    %c0_370 = arith.constant 0 : index
    %c0_371 = arith.constant 0 : index
    %452 = vector.load %arg27[%c0_370, %c0_371] : memref<1x18xf32, #tpu.memory_space<vmem>>, vector<1x18xf32>
    %453 = vector.broadcast %452 : vector<1x18xf32> to vector<6x18xf32>
    %454 = arith.addf %451, %453 : vector<6x18xf32>
    %455 = math.tanh %454 : vector<6x18xf32>
    %c1_372 = arith.constant 1 : index
    %c0_373 = arith.constant 0 : index
    %c0_374 = arith.constant 0 : index
    %456 = vector.load %arg1[%c1_372, %c0_373, %c0_374] : memref<2x6x18xf32, #tpu.memory_space<vmem>>, vector<1x6x18xf32>
    %457 = vector.shape_cast %456 : vector<1x6x18xf32> to vector<6x18xf32>
    %458 = arith.addf %455, %457 : vector<6x18xf32>
    %c1_375 = arith.constant 1 : index
    %c0_376 = arith.constant 0 : index
    %c0_377 = arith.constant 0 : index
    %459 = vector.load %arg28[%c1_375, %c0_376, %c0_377] : memref<2x6x18xf32, #tpu.memory_space<vmem>>, vector<1x6x18xf32>
    %460 = vector.shape_cast %459 : vector<1x6x18xf32> to vector<6x18xf32>
    %461 = vector.shape_cast %458 : vector<6x18xf32> to vector<1x6x18xf32>
    tpu.vector_store %arg28[%c1_375, %c0_376, %c0_377], %461 {strides = array<i32>} : memref<2x6x18xf32, #tpu.memory_space<vmem>>, vector<1x6x18xf32>,
    return
  }
}

</mosaic_0001>

<llo_original>
// kernel: tile.28
$region0: #{tile.28}
  #allocation0 [shape = 's32[1]{0}', space=sflag, size = 0x4, scoped, tag = 'scoped memory for tile.28']
  %s0 = inlined_call_operand.vmem [shape: f32[32], index: 0, kind: input, shape index: {}]
  %s1 = inlined_call_operand.vmem [shape: f32[14,32], index: 1, kind: output, shape index: {}]
  // Predicated region
  $region2: #{tile.28} parent=0 // pred_check
    _
  $region3: #{tile.28} parent=0 // pred_check_branch
    %3 = sbr.rel (0) target = $region5
  $region4: #{tile.28} parent=0 // pred_region
    _
  $region5: #{tile.28} parent=0 // pred_fallthru
    _
  %v4 = vld [vmem:[%s0] ss:$0 sm:$0xff]
  %5 = vst [vmem:[%s1] sm:$0xff] %v4
  %s6 = scalar_lea.vmem %s1, 8
  %7 = vst [vmem:[%s6] sm:$0xff] %v4

// kernel: tile.29
$region0: #{tile.29}
  %s0 = inlined_call_operand.vmem [shape: f32[14,32], index: 0, kind: input, shape index: {}]
  %s1 = inlined_call_operand.vmem [shape: f32[1,448], index: 1, kind: output, shape index: {}]
  $region1: #{tile.29} parent=0
    #allocation0 [shape = 'u8[16384]{0}', space=vmem, size = 0x4000, scoped, tag = 'scoped mem for output reshape']
    %v2 = vld [vmem:[%s0] ss:$4 sm:$0xf]
    %vm3 = vcmask 261120
    %4 = vst.msk [vmem:[#allocation0] ss:$8 sm:$0xf] %vm3, %v2
    %s5 = scalar_lea.vmem %s0, 3
    %v6 = vld [vmem:[%s5] ss:$4 sm:$0x7]
    %7 = vrot.lane.b32.xlu0 %v6, 96
    %v8 = vpop.permute.xlu0 %7
    %vm9 = vcmask 1048320
    %10 = vst.msk [vmem:[#allocation0] ss:$8 sm:$0x7] %vm9, %v8
    %s11 = scalar_lea.vmem %s0, 2
    %v12 = vld [vmem:[%s11] ss:$4 sm:$0x7]
    %13 = vrot.lane.b32.xlu0 %v12, 64
    %v14 = vpop.permute.xlu0 %13
    %vm15 = vcmask 785920
    %16 = vst.msk [vmem:[#allocation0] ss:$8 sm:$0x7] %vm15, %v14
    %s17 = scalar_lea.vmem %s0, 1
    %v18 = vld [vmem:[%s17] ss:$4 sm:$0xf]
    %19 = vrot.lane.b32.xlu0 %v18, 32
    %v20 = vpop.permute.xlu0 %19
    %vm21 = vcmask 523520
    %22 = vst.msk [vmem:[#allocation0] ss:$8 sm:$0xf] %vm21, %v20
    %s24 = ssub.s32 2, 1
    %v25 = vld [vmem:[#allocation0] sm:%s24]
    %s27 = ssub.s32 2, 1
    %28 = vst [vmem:[%s1] sm:%s27] %v25
    %s29 = scalar_lea.vmem [#allocation0], 8
    %v30 = vld [vmem:[%s29] sm:%s24]
    %s32 = ssub.s32 2, 1
    %s33 = scalar_lea.vmem %s1, 1
    %34 = vst [vmem:[%s33] sm:%s32] %v30
    %s35 = scalar_lea.vmem [#allocation0], 16
    %v36 = vld [vmem:[%s35] sm:%s24]
    %s38 = ssub.s32 2, 1
    %s39 = scalar_lea.vmem %s1, 2
    %40 = vst [vmem:[%s39] sm:%s38] %v36
    %s41 = scalar_lea.vmem [#allocation0], 24
    %v42 = vld [vmem:[%s41] sm:%s24]
    %s44 = ssub.s32 2, 1
    %s45 = scalar_lea.vmem %s1, 3
    %46 = vst [vmem:[%s45] sm:%s44] %v42

// kernel: tile.34
$region0: #{tile.34}
  %s0 = inlined_call_operand.vmem [shape: f32[12,16], index: 0, kind: input, shape index: {}]
  %s1 = inlined_call_operand.vmem [shape: f32[1,192], index: 1, kind: output, shape index: {}]
  $region1: #{tile.34} parent=0
    #allocation0 [shape = 'u8[8192]{0}', space=vmem, size = 0x2000, scoped, tag = 'scoped mem for output reshape']
    %s2 = smov 3
    %v3 = vld [vmem:[%s0] ss:$8 sm:%s2]
    %vm4 = vcmask 130048
    %5 = vst.msk [vmem:[#allocation0] ss:$8 sm:$0x3] %vm4, %v3
    %s6 = scalar_lea.vmem %s0, 7
    %v7 = vld [vmem:[%s6] sm:$0x1]
    %8 = vrot.lane.b32.xlu0 %v7, 112
    %v9 = vpop.permute.xlu0 %8
    %vm10 = vcmask 1048448
    %11 = vst.msk [vmem:[#allocation0] sm:$0x1] %vm10, %v9
    %s12 = scalar_lea.vmem %s0, 6
    %v13 = vld [vmem:[%s12] sm:$0x1]
    %14 = vrot.lane.b32.xlu0 %v13, 96
    %v15 = vpop.permute.xlu0 %14
    %vm16 = vcmask 917248
    %17 = vst.msk [vmem:[#allocation0] sm:$0x1] %vm16, %v15
    %s18 = scalar_lea.vmem %s0, 5
    %v19 = vld [vmem:[%s18] sm:$0x1]
    %20 = vrot.lane.b32.xlu0 %v19, 80
    %v21 = vpop.permute.xlu0 %20
    %vm22 = vcmask 786048
    %23 = vst.msk [vmem:[#allocation0] sm:$0x1] %vm22, %v21
    %s24 = scalar_lea.vmem %s0, 4
    %v25 = vld [vmem:[%s24] sm:$0x1]
    %26 = vrot.lane.b32.xlu0 %v25, 64
    %v27 = vpop.permute.xlu0 %26
    %vm28 = vcmask 654848
    %29 = vst.msk [vmem:[#allocation0] sm:$0x1] %vm28, %v27
    %s30 = scalar_lea.vmem %s0, 3
    %s31 = smov 3
    %v32 = vld [vmem:[%s30] ss:$8 sm:%s31]
    %33 = vrot.lane.b32.xlu0 %v32, 48
    %v34 = vpop.permute.xlu0 %33
    %vm35 = vcmask 523648
    %36 = vst.msk [vmem:[#allocation0] ss:$8 sm:$0x3] %vm35, %v34
    %s37 = scalar_lea.vmem %s0, 2
    %s38 = smov 3
    %v39 = vld [vmem:[%s37] ss:$8 sm:%s38]
    %40 = vrot.lane.b32.xlu0 %v39, 32
    %v41 = vpop.permute.xlu0 %40
    %vm42 = vcmask 392448
    %43 = vst.msk [vmem:[#allocation0] ss:$8 sm:$0x3] %vm42, %v41
    %s44 = scalar_lea.vmem %s0, 1
    %s45 = smov 3
    %v46 = vld [vmem:[%s44] ss:$8 sm:%s45]
    %47 = vrot.lane.b32.xlu0 %v46, 16
    %v48 = vpop.permute.xlu0 %47
    %vm49 = vcmask 261248
    %50 = vst.msk [vmem:[#allocation0] ss:$8 sm:$0x3] %vm49, %v48
    %s52 = ssub.s32 2, 1
    %v53 = vld [vmem:[#allocation0] sm:%s52]
    %s55 = ssub.s32 2, 1
    %56 = vst [vmem:[%s1] sm:%s55] %v53
    %s57 = scalar_lea.vmem [#allocation0], 8
    %v58 = vld [vmem:[%s57] sm:%s52]
    %s60 = ssub.s32 2, 1
    %s61 = scalar_lea.vmem %s1, 1
    %62 = vst [vmem:[%s61] sm:%s60] %v58

// kernel: tile.33
$region0: #{tile.33}
  #allocation0 [shape = 's32[1]{0}', space=sflag, size = 0x4, scoped, tag = 'scoped memory for tile.33']
  %s0 = inlined_call_operand.vmem [shape: f32[16], index: 0, kind: input, shape index: {}]
  %s1 = inlined_call_operand.vmem [shape: f32[12,16], index: 1, kind: output, shape index: {}]
  // Predicated region
  $region2: #{tile.33} parent=0 // pred_check
    _
  $region3: #{tile.33} parent=0 // pred_check_branch
    %3 = sbr.rel (0) target = $region5
  $region4: #{tile.33} parent=0 // pred_region
    _
  $region5: #{tile.33} parent=0 // pred_fallthru
    _
  %v4 = vld [vmem:[%s0] ss:$0 sm:$0xff]
  %5 = vst [vmem:[%s1] sm:$0xff] %v4
  %s6 = scalar_lea.vmem %s1, 8
  %7 = vst [vmem:[%s6] sm:$0xff] %v4

// kernel: tile.38
$region0: #{tile.38}
  #allocation0 [shape = 's32[1]{0}', space=sflag, size = 0x4, scoped, tag = 'scoped memory for tile.38']
  %s0 = inlined_call_operand.vmem [shape: f32[8], index: 0, kind: input, shape index: {}]
  %s1 = inlined_call_operand.vmem [shape: f32[10,8], index: 1, kind: output, shape index: {}]
  // Predicated region
  $region2: #{tile.38} parent=0 // pred_check
    _
  $region3: #{tile.38} parent=0 // pred_check_branch
    %3 = sbr.rel (0) target = $region5
  $region4: #{tile.38} parent=0 // pred_region
    _
  $region5: #{tile.38} parent=0 // pred_fallthru
    _
  %v4 = vld [vmem:[%s0] ss:$0 sm:$0xff]
  %5 = vst [vmem:[%s1] sm:$0xff] %v4
  %s6 = scalar_lea.vmem %s1, 8
  %7 = vst [vmem:[%s6] sm:$0xff] %v4

// kernel: tile.39
$region0: #{tile.39}
  %s0 = inlined_call_operand.vmem [shape: f32[10,8], index: 0, kind: input, shape index: {}]
  %s1 = inlined_call_operand.vmem [shape: f32[1,80], index: 1, kind: output, shape index: {}]
  $region1: #{tile.39} parent=0
    #allocation0 [shape = 'u8[4096]{0}', space=vmem, size = 0x1000, scoped, tag = 'scoped mem for output reshape']
    %v2 = vld [vmem:[%s0] sm:$0x1]
    %vm3 = vcmask 64512
    %4 = vst.msk [vmem:[#allocation0] sm:$0x1] %vm3, %v2
    %s5 = scalar_lea.vmem %s0, 9
    %v6 = vld [vmem:[%s5] sm:$0x1]
    %7 = vrot.lane.b32.xlu0 %v6, 72
    %v8 = vpop.permute.xlu0 %7
    %vm9 = vcmask 654912
    %10 = vst.msk [vmem:[#allocation0] sm:$0x1] %vm9, %v8
    %s11 = scalar_lea.vmem %s0, 8
    %v12 = vld [vmem:[%s11] sm:$0x1]
    %13 = vrot.lane.b32.xlu0 %v12, 64
    %v14 = vpop.permute.xlu0 %13
    %vm15 = vcmask 589312
    %16 = vst.msk [vmem:[#allocation0] sm:$0x1] %vm15, %v14
    %s17 = scalar_lea.vmem %s0, 7
    %v18 = vld [vmem:[%s17] sm:$0x1]
    %19 = vrot.lane.b32.xlu0 %v18, 56
    %v20 = vpop.permute.xlu0 %19
    %vm21 = vcmask 523712
    %22 = vst.msk [vmem:[#allocation0] sm:$0x1] %vm21, %v20
    %s23 = scalar_lea.vmem %s0, 6
    %v24 = vld [vmem:[%s23] sm:$0x1]
    %25 = vrot.lane.b32.xlu0 %v24, 48
    %v26 = vpop.permute.xlu0 %25
    %vm27 = vcmask 458112
    %28 = vst.msk [vmem:[#allocation0] sm:$0x1] %vm27, %v26
    %s29 = scalar_lea.vmem %s0, 5
    %v30 = vld [vmem:[%s29] sm:$0x1]
    %31 = vrot.lane.b32.xlu0 %v30, 40
    %v32 = vpop.permute.xlu0 %31
    %vm33 = vcmask 392512
    %34 = vst.msk [vmem:[#allocation0] sm:$0x1] %vm33, %v32
    %s35 = scalar_lea.vmem %s0, 4
    %v36 = vld [vmem:[%s35] sm:$0x1]
    %37 = vrot.lane.b32.xlu0 %v36, 32
    %v38 = vpop.permute.xlu0 %37
    %vm39 = vcmask 326912
    %40 = vst.msk [vmem:[#allocation0] sm:$0x1] %vm39, %v38
    %s41 = scalar_lea.vmem %s0, 3
    %v42 = vld [vmem:[%s41] sm:$0x1]
    %43 = vrot.lane.b32.xlu0 %v42, 24
    %v44 = vpop.permute.xlu0 %43
    %vm45 = vcmask 261312
    %46 = vst.msk [vmem:[#allocation0] sm:$0x1] %vm45, %v44
    %s47 = scalar_lea.vmem %s0, 2
    %v48 = vld [vmem:[%s47] sm:$0x1]
    %49 = vrot.lane.b32.xlu0 %v48, 16
    %v50 = vpop.permute.xlu0 %49
    %vm51 = vcmask 195712
    %52 = vst.msk [vmem:[#allocation0] sm:$0x1] %vm51, %v50
    %s53 = scalar_lea.vmem %s0, 1
    %v54 = vld [vmem:[%s53] sm:$0x1]
    %55 = vrot.lane.b32.xlu0 %v54, 8
    %v56 = vpop.permute.xlu0 %55
    %vm57 = vcmask 130112
    %58 = vst.msk [vmem:[#allocation0] sm:$0x1] %vm57, %v56
    %s60 = ssub.s32 2, 1
    %v61 = vld [vmem:[#allocation0] sm:%s60]
    %s63 = ssub.s32 2, 1
    %64 = vst [vmem:[%s1] sm:%s63] %v61

// kernel: tile.43
$region0: #{tile.43}
  #allocation0 [shape = 's32[1]{0}', space=sflag, size = 0x4, scoped, tag = 'scoped memory for tile.43']
  %s0 = inlined_call_operand.vmem [shape: f32[8], index: 0, kind: input, shape index: {}]
  %s1 = inlined_call_operand.vmem [shape: f32[8,8], index: 1, kind: output, shape index: {}]
  // Predicated region
  $region2: #{tile.43} parent=0 // pred_check
    _
  $region3: #{tile.43} parent=0 // pred_check_branch
    %3 = sbr.rel (0) target = $region5
  $region4: #{tile.43} parent=0 // pred_region
    _
  $region5: #{tile.43} parent=0 // pred_fallthru
    _
  %v4 = vld [vmem:[%s0] ss:$0 sm:$0xff]
  %5 = vst [vmem:[%s1] sm:$0xff] %v4

// kernel: tile.44
$region0: #{tile.44}
  %s0 = inlined_call_operand.vmem [shape: f32[8,8], index: 0, kind: input, shape index: {}]
  %s1 = inlined_call_operand.vmem [shape: f32[1,64], index: 1, kind: output, shape index: {}]
  $region1: #{tile.44} parent=0
    #allocation0 [shape = 'u8[4096]{0}', space=vmem, size = 0x1000, scoped, tag = 'scoped mem for output reshape']
    %v2 = vld [vmem:[%s0] sm:$0x1]
    %vm3 = vcmask 64512
    %4 = vst.msk [vmem:[#allocation0] sm:$0x1] %vm3, %v2
    %s5 = scalar_lea.vmem %s0, 7
    %v6 = vld [vmem:[%s5] sm:$0x1]
    %7 = vrot.lane.b32.xlu0 %v6, 56
    %v8 = vpop.permute.xlu0 %7
    %vm9 = vcmask 523712
    %10 = vst.msk [vmem:[#allocation0] sm:$0x1] %vm9, %v8
    %s11 = scalar_lea.vmem %s0, 6
    %v12 = vld [vmem:[%s11] sm:$0x1]
    %13 = vrot.lane.b32.xlu0 %v12, 48
    %v14 = vpop.permute.xlu0 %13
    %vm15 = vcmask 458112
    %16 = vst.msk [vmem:[#allocation0] sm:$0x1] %vm15, %v14
    %s17 = scalar_lea.vmem %s0, 5
    %v18 = vld [vmem:[%s17] sm:$0x1]
    %19 = vrot.lane.b32.xlu0 %v18, 40
    %v20 = vpop.permute.xlu0 %19
    %vm21 = vcmask 392512
    %22 = vst.msk [vmem:[#allocation0] sm:$0x1] %vm21, %v20
    %s23 = scalar_lea.vmem %s0, 4
    %v24 = vld [vmem:[%s23] sm:$0x1]
    %25 = vrot.lane.b32.xlu0 %v24, 32
    %v26 = vpop.permute.xlu0 %25
    %vm27 = vcmask 326912
    %28 = vst.msk [vmem:[#allocation0] sm:$0x1] %vm27, %v26
    %s29 = scalar_lea.vmem %s0, 3
    %v30 = vld [vmem:[%s29] sm:$0x1]
    %31 = vrot.lane.b32.xlu0 %v30, 24
    %v32 = vpop.permute.xlu0 %31
    %vm33 = vcmask 261312
    %34 = vst.msk [vmem:[#allocation0] sm:$0x1] %vm33, %v32
    %s35 = scalar_lea.vmem %s0, 2
    %v36 = vld [vmem:[%s35] sm:$0x1]
    %37 = vrot.lane.b32.xlu0 %v36, 16
    %v38 = vpop.permute.xlu0 %37
    %vm39 = vcmask 195712
    %40 = vst.msk [vmem:[#allocation0] sm:$0x1] %vm39, %v38
    %s41 = scalar_lea.vmem %s0, 1
    %v42 = vld [vmem:[%s41] sm:$0x1]
    %43 = vrot.lane.b32.xlu0 %v42, 8
    %v44 = vpop.permute.xlu0 %43
    %vm45 = vcmask 130112
    %46 = vst.msk [vmem:[#allocation0] sm:$0x1] %vm45, %v44
    %s48 = ssub.s32 2, 1
    %v49 = vld [vmem:[#allocation0] sm:%s48]
    %s51 = ssub.s32 2, 1
    %52 = vst [vmem:[%s1] sm:%s51] %v49

// kernel: tile.48
$region0: #{tile.48}
  #allocation0 [shape = 's32[1]{0}', space=sflag, size = 0x4, scoped, tag = 'scoped memory for tile.48']
  %s0 = inlined_call_operand.vmem [shape: f32[3], index: 0, kind: input, shape index: {}]
  %s1 = inlined_call_operand.vmem [shape: f32[6,3], index: 1, kind: output, shape index: {}]
  // Predicated region
  $region2: #{tile.48} parent=0 // pred_check
    _
  $region3: #{tile.48} parent=0 // pred_check_branch
    %3 = sbr.rel (0) target = $region5
  $region4: #{tile.48} parent=0 // pred_region
    _
  $region5: #{tile.48} parent=0 // pred_fallthru
    _
  %v4 = vld [vmem:[%s0] ss:$0 sm:$0xff]
  %5 = vst [vmem:[%s1] sm:$0xff] %v4

// kernel: tile.49
$region0: #{tile.49}
  %s0 = inlined_call_operand.vmem [shape: f32[6,3], index: 0, kind: input, shape index: {}]
  %s1 = inlined_call_operand.vmem [shape: f32[1,18], index: 1, kind: output, shape index: {}]
  $region1: #{tile.49} parent=0
    #allocation0 [shape = 'u8[4096]{0}', space=vmem, size = 0x1000, scoped, tag = 'scoped mem for output reshape']
    %v2 = vld [vmem:[%s0] sm:$0x1]
    %vm3 = vcmask 23552
    %4 = vst.msk [vmem:[#allocation0] sm:$0x1] %vm3, %v2
    %s5 = scalar_lea.vmem %s0, 5
    %v6 = vld [vmem:[%s5] sm:$0x1]
    %7 = vrot.lane.b32.xlu0 %v6, 15
    %v8 = vpop.permute.xlu0 %7
    %vm9 = vcmask 146552
    %10 = vst.msk [vmem:[#allocation0] sm:$0x1] %vm9, %v8
    %s11 = scalar_lea.vmem %s0, 4
    %v12 = vld [vmem:[%s11] sm:$0x1]
    %13 = vrot.lane.b32.xlu0 %v12, 12
    %v14 = vpop.permute.xlu0 %13
    %vm15 = vcmask 121952
    %16 = vst.msk [vmem:[#allocation0] sm:$0x1] %vm15, %v14
    %s17 = scalar_lea.vmem %s0, 3
    %v18 = vld [vmem:[%s17] sm:$0x1]
    %19 = vrot.lane.b32.xlu0 %v18, 9
    %v20 = vpop.permute.xlu0 %19
    %vm21 = vcmask 97352
    %22 = vst.msk [vmem:[#allocation0] sm:$0x1] %vm21, %v20
    %s23 = scalar_lea.vmem %s0, 2
    %v24 = vld [vmem:[%s23] sm:$0x1]
    %25 = vrot.lane.b32.xlu0 %v24, 6
    %v26 = vpop.permute.xlu0 %25
    %vm27 = vcmask 72752
    %28 = vst.msk [vmem:[#allocation0] sm:$0x1] %vm27, %v26
    %s29 = scalar_lea.vmem %s0, 1
    %v30 = vld [vmem:[%s29] sm:$0x1]
    %31 = vrot.lane.b32.xlu0 %v30, 3
    %v32 = vpop.permute.xlu0 %31
    %vm33 = vcmask 48152
    %34 = vst.msk [vmem:[#allocation0] sm:$0x1] %vm33, %v32
    %s36 = ssub.s32 2, 1
    %v37 = vld [vmem:[#allocation0] sm:%s36]
    %s39 = ssub.s32 2, 1
    %40 = vst [vmem:[%s1] sm:%s39] %v37

// kernel: generator_forward.1
$region0: #{generator_forward.1}
  #allocation0 [shape = 'u32[]', space=smem, size = 0x4, offset = 0x4, fixed_abs, tag = 'smem constant byte address 0x4 - core index']
  #allocation1 [shape = 'u32[72,128]{1,0:T(1,128)}', space=vmem, size = 0x9000, scoped, tag = 'internal scratch']
  #allocation2 [shape = 'f32[2,14,448]{2,1,0:T(8,128)}', space=vmem, size = 0x10000, scoped, tag = 'scratch operand']
  #allocation3 [shape = 'f32[2,12,192]{2,1,0:T(8,128)}', space=vmem, size = 0x8000, scoped, tag = 'scratch operand']
  #allocation4 [shape = 'f32[2,10,80]{2,1,0:T(8,128)}', space=vmem, size = 0x4000, scoped, tag = 'scratch operand']
  #allocation5 [shape = 'f32[2,8,64]{2,1,0:T(8,128)}', space=vmem, size = 0x2000, scoped, tag = 'scratch operand']
  %s0 = inlined_call_operand.vmem [shape: f32[2,16,48], index: 0, kind: input, shape index: {}]
  %s1 = inlined_call_operand.vmem [shape: f32[2,6,18], index: 1, kind: input, shape index: {}]
  %s2 = inlined_call_operand.vmem [shape: f32[3,48,448], index: 2, kind: input, shape index: {}]
  %s3 = inlined_call_operand.vmem [shape: f32[1,448], index: 3, kind: input, shape index: {}]
  %s4 = inlined_call_operand.vmem [shape: f32[1,32], index: 4, kind: input, shape index: {}]
  %s5 = inlined_call_operand.vmem [shape: f32[1,32], index: 5, kind: input, shape index: {}]
  %s6 = inlined_call_operand.vmem [shape: f32[448,32], index: 6, kind: input, shape index: {}]
  %s7 = inlined_call_operand.vmem [shape: f32[32,448], index: 7, kind: input, shape index: {}]
  %s8 = inlined_call_operand.vmem [shape: f32[3,448,192], index: 8, kind: input, shape index: {}]
  %s9 = inlined_call_operand.vmem [shape: f32[1,192], index: 9, kind: input, shape index: {}]
  %s10 = inlined_call_operand.vmem [shape: f32[1,16], index: 10, kind: input, shape index: {}]
  %s11 = inlined_call_operand.vmem [shape: f32[1,16], index: 11, kind: input, shape index: {}]
  %s12 = inlined_call_operand.vmem [shape: f32[192,16], index: 12, kind: input, shape index: {}]
  %s13 = inlined_call_operand.vmem [shape: f32[16,192], index: 13, kind: input, shape index: {}]
  %s14 = inlined_call_operand.vmem [shape: f32[3,192,80], index: 14, kind: input, shape index: {}]
  %s15 = inlined_call_operand.vmem [shape: f32[1,80], index: 15, kind: input, shape index: {}]
  %s16 = inlined_call_operand.vmem [shape: f32[1,8], index: 16, kind: input, shape index: {}]
  %s17 = inlined_call_operand.vmem [shape: f32[1,8], index: 17, kind: input, shape index: {}]
  %s18 = inlined_call_operand.vmem [shape: f32[80,8], index: 18, kind: input, shape index: {}]
  %s19 = inlined_call_operand.vmem [shape: f32[8,80], index: 19, kind: input, shape index: {}]
  %s20 = inlined_call_operand.vmem [shape: f32[3,80,64], index: 20, kind: input, shape index: {}]
  %s21 = inlined_call_operand.vmem [shape: f32[1,64], index: 21, kind: input, shape index: {}]
  %s22 = inlined_call_operand.vmem [shape: f32[1,8], index: 22, kind: input, shape index: {}]
  %s23 = inlined_call_operand.vmem [shape: f32[1,8], index: 23, kind: input, shape index: {}]
  %s24 = inlined_call_operand.vmem [shape: f32[64,8], index: 24, kind: input, shape index: {}]
  %s25 = inlined_call_operand.vmem [shape: f32[8,64], index: 25, kind: input, shape index: {}]
  %s26 = inlined_call_operand.vmem [shape: f32[3,64,18], index: 26, kind: input, shape index: {}]
  %s27 = inlined_call_operand.vmem [shape: f32[1,18], index: 27, kind: input, shape index: {}]
  %s28 = inlined_call_operand.vmem [shape: f32[2,6,18], index: 28, kind: output, shape index: {}]
  %s29 = sld [smem:[#allocation0]]
  $region122: #{generator_forward.1} parent=0
    _
  %s31 = ssub.s32 1, %s29
  %s32 = scalar_select 0, %s31, %s29
  // Predicated region
  $region2: #{generator_forward.1} parent=0 // pred_check
    _
  $region3: #{generator_forward.1} parent=0 // pred_check_branch
    %34 = sbr.rel (0) target = $region5
  $region4: #{generator_forward.1} parent=0 // pred_region
    _
  $region5: #{generator_forward.1} parent=0 // pred_fallthru
    _
  // Predicated region
  $region6: #{generator_forward.1} parent=0 // pred_check
    _
  $region7: #{generator_forward.1} parent=0 // pred_check_branch
    %36 = sbr.rel (0) target = $region9
  $region8: #{generator_forward.1} parent=0 // pred_region
    _
  $region9: #{generator_forward.1} parent=0 // pred_fallthru
    _
  // Predicated region
  $region10: #{generator_forward.1} parent=0 // pred_check
    _
  $region11: #{generator_forward.1} parent=0 // pred_check_branch
    %38 = sbr.rel (0) target = $region13
  $region12: #{generator_forward.1} parent=0 // pred_region
    _
  $region13: #{generator_forward.1} parent=0 // pred_fallthru
    _
  // Predicated region
  $region14: #{generator_forward.1} parent=0 // pred_check
    _
  $region15: #{generator_forward.1} parent=0 // pred_check_branch
    %40 = sbr.rel (0) target = $region17
  $region16: #{generator_forward.1} parent=0 // pred_region
    _
  $region17: #{generator_forward.1} parent=0 // pred_fallthru
    _
  // Predicated region
  $region18: #{generator_forward.1} parent=0 // pred_check
    _
  $region19: #{generator_forward.1} parent=0 // pred_check_branch
    %42 = sbr.rel (0) target = $region21
  $region20: #{generator_forward.1} parent=0 // pred_region
    _
  $region21: #{generator_forward.1} parent=0 // pred_fallthru
    _
  // Predicated region
  $region22: #{generator_forward.1} parent=0 // pred_check
    _
  $region23: #{generator_forward.1} parent=0 // pred_check_branch
    %44 = sbr.rel (0) target = $region25
  $region24: #{generator_forward.1} parent=0 // pred_region
    _
  $region25: #{generator_forward.1} parent=0 // pred_fallthru
    _
  // Predicated region
  $region26: #{generator_forward.1} parent=0 // pred_check
    _
  $region27: #{generator_forward.1} parent=0 // pred_check_branch
    %46 = sbr.rel (0) target = $region29
  $region28: #{generator_forward.1} parent=0 // pred_region
    _
  $region29: #{generator_forward.1} parent=0 // pred_fallthru
    _
  // Predicated region
  $region30: #{generator_forward.1} parent=0 // pred_check
    _
  $region31: #{generator_forward.1} parent=0 // pred_check_branch
    %48 = sbr.rel (0) target = $region33
  $region32: #{generator_forward.1} parent=0 // pred_region
    _
  $region33: #{generator_forward.1} parent=0 // pred_fallthru
    _
  // Predicated region
  $region34: #{generator_forward.1} parent=0 // pred_check
    _
  $region35: #{generator_forward.1} parent=0 // pred_check_branch
    %50 = sbr.rel (0) target = $region37
  $region36: #{generator_forward.1} parent=0 // pred_region
    _
  $region37: #{generator_forward.1} parent=0 // pred_fallthru
    _
  // Predicated region
  $region38: #{generator_forward.1} parent=0 // pred_check
    _
  $region39: #{generator_forward.1} parent=0 // pred_check_branch
    %52 = sbr.rel (0) target = $region41
  $region40: #{generator_forward.1} parent=0 // pred_region
    _
  $region41: #{generator_forward.1} parent=0 // pred_fallthru
    _
  // Predicated region
  $region42: #{generator_forward.1} parent=0 // pred_check
    _
  $region43: #{generator_forward.1} parent=0 // pred_check_branch
    %54 = sbr.rel (0) target = $region45
  $region44: #{generator_forward.1} parent=0 // pred_region
    _
  $region45: #{generator_forward.1} parent=0 // pred_fallthru
    _
  // Predicated region
  $region46: #{generator_forward.1} parent=0 // pred_check
    _
  $region47: #{generator_forward.1} parent=0 // pred_check_branch
    %56 = sbr.rel (0) target = $region49
  $region48: #{generator_forward.1} parent=0 // pred_region
    _
  $region49: #{generator_forward.1} parent=0 // pred_fallthru
    _
  // Predicated region
  $region50: #{generator_forward.1} parent=0 // pred_check
    _
  $region51: #{generator_forward.1} parent=0 // pred_check_branch
    %58 = sbr.rel (0) target = $region53
  $region52: #{generator_forward.1} parent=0 // pred_region
    _
  $region53: #{generator_forward.1} parent=0 // pred_fallthru
    _
  // Predicated region
  $region54: #{generator_forward.1} parent=0 // pred_check
    _
  $region55: #{generator_forward.1} parent=0 // pred_check_branch
    %60 = sbr.rel (0) target = $region57
  $region56: #{generator_forward.1} parent=0 // pred_region
    _
  $region57: #{generator_forward.1} parent=0 // pred_fallthru
    _
  // Predicated region
  $region58: #{generator_forward.1} parent=0 // pred_check
    _
  $region59: #{generator_forward.1} parent=0 // pred_check_branch
    %62 = sbr.rel (0) target = $region61
  $region60: #{generator_forward.1} parent=0 // pred_region
    _
  $region61: #{generator_forward.1} parent=0 // pred_fallthru
    _
  // Predicated region
  $region62: #{generator_forward.1} parent=0 // pred_check
    _
  $region63: #{generator_forward.1} parent=0 // pred_check_branch
    %64 = sbr.rel (0) target = $region65
  $region64: #{generator_forward.1} parent=0 // pred_region
    _
  $region65: #{generator_forward.1} parent=0 // pred_fallthru
    _
  // Predicated region
  $region66: #{generator_forward.1} parent=0 // pred_check
    _
  $region67: #{generator_forward.1} parent=0 // pred_check_branch
    %66 = sbr.rel (0) target = $region69
  $region68: #{generator_forward.1} parent=0 // pred_region
    _
  $region69: #{generator_forward.1} parent=0 // pred_fallthru
    _
  // Predicated region
  $region70: #{generator_forward.1} parent=0 // pred_check
    _
  $region71: #{generator_forward.1} parent=0 // pred_check_branch
    %68 = sbr.rel (0) target = $region73
  $region72: #{generator_forward.1} parent=0 // pred_region
    _
  $region73: #{generator_forward.1} parent=0 // pred_fallthru
    _
  // Predicated region
  $region74: #{generator_forward.1} parent=0 // pred_check
    _
  $region75: #{generator_forward.1} parent=0 // pred_check_branch
    %70 = sbr.rel (0) target = $region77
  $region76: #{generator_forward.1} parent=0 // pred_region
    _
  $region77: #{generator_forward.1} parent=0 // pred_fallthru
    _
  // Predicated region
  $region78: #{generator_forward.1} parent=0 // pred_check
    _
  $region79: #{generator_forward.1} parent=0 // pred_check_branch
    %72 = sbr.rel (0) target = $region81
  $region80: #{generator_forward.1} parent=0 // pred_region
    _
  $region81: #{generator_forward.1} parent=0 // pred_fallthru
    _
  // Predicated region
  $region82: #{generator_forward.1} parent=0 // pred_check
    _
  $region83: #{generator_forward.1} parent=0 // pred_check_branch
    %74 = sbr.rel (0) target = $region85
  $region84: #{generator_forward.1} parent=0 // pred_region
    _
  $region85: #{generator_forward.1} parent=0 // pred_fallthru
    _
  // Predicated region
  $region86: #{generator_forward.1} parent=0 // pred_check
    _
  $region87: #{generator_forward.1} parent=0 // pred_check_branch
    %76 = sbr.rel (0) target = $region89
  $region88: #{generator_forward.1} parent=0 // pred_region
    _
  $region89: #{generator_forward.1} parent=0 // pred_fallthru
    _
  // Predicated region
  $region90: #{generator_forward.1} parent=0 // pred_check
    _
  $region91: #{generator_forward.1} parent=0 // pred_check_branch
    %78 = sbr.rel (0) target = $region93
  $region92: #{generator_forward.1} parent=0 // pred_region
    _
  $region93: #{generator_forward.1} parent=0 // pred_fallthru
    _
  // Predicated region
  $region94: #{generator_forward.1} parent=0 // pred_check
    _
  $region95: #{generator_forward.1} parent=0 // pred_check_branch
    %80 = sbr.rel (0) target = $region97
  $region96: #{generator_forward.1} parent=0 // pred_region
    _
  $region97: #{generator_forward.1} parent=0 // pred_fallthru
    _
  // Predicated region
  $region98: #{generator_forward.1} parent=0 // pred_check
    _
  $region99: #{generator_forward.1} parent=0 // pred_check_branch
    %82 = sbr.rel (0) target = $region101
  $region100: #{generator_forward.1} parent=0 // pred_region
    _
  $region101: #{generator_forward.1} parent=0 // pred_fallthru
    _
  // Predicated region
  $region102: #{generator_forward.1} parent=0 // pred_check
    _
  $region103: #{generator_forward.1} parent=0 // pred_check_branch
    %84 = sbr.rel (0) target = $region105
  $region104: #{generator_forward.1} parent=0 // pred_region
    _
  $region105: #{generator_forward.1} parent=0 // pred_fallthru
    _
  // Predicated region
  $region106: #{generator_forward.1} parent=0 // pred_check
    _
  $region107: #{generator_forward.1} parent=0 // pred_check_branch
    %86 = sbr.rel (0) target = $region109
  $region108: #{generator_forward.1} parent=0 // pred_region
    _
  $region109: #{generator_forward.1} parent=0 // pred_fallthru
    _
  // Predicated region
  $region110: #{generator_forward.1} parent=0 // pred_check
    _
  $region111: #{generator_forward.1} parent=0 // pred_check_branch
    %88 = sbr.rel (0) target = $region113
  $region112: #{generator_forward.1} parent=0 // pred_region
    _
  $region113: #{generator_forward.1} parent=0 // pred_fallthru
    _
  %v89 = vld [vmem:[%s0] sm:$0xff]
  %v90 = vld [vmem:[%s0 + $0x8] sm:$0x3f]
  %v91 = vld [vmem:[%s2] sm:$0xff]
  %v92 = vld [vmem:[%s2 + $0x8] sm:$0xff]
  %v93 = vld [vmem:[%s2 + $0x10] sm:$0xff]
  %v94 = vld [vmem:[%s2 + $0x18] sm:$0xff]
  %v95 = vld [vmem:[%s2 + $0x20] sm:$0xff]
  %v96 = vld [vmem:[%s2 + $0x28] sm:$0xff]
  %v97 = vld [vmem:[%s2 + $0x30] sm:$0xff]
  %v98 = vld [vmem:[%s2 + $0x38] sm:$0xff]
  %v99 = vld [vmem:[%s2 + $0x40] sm:$0xff]
  %v100 = vld [vmem:[%s2 + $0x48] sm:$0xff]
  %v101 = vld [vmem:[%s2 + $0x50] sm:$0xff]
  %v102 = vld [vmem:[%s2 + $0x58] sm:$0xff]
  %v103 = vld [vmem:[%s2 + $0x60] sm:$0xff]
  %v104 = vld [vmem:[%s2 + $0x68] sm:$0xff]
  %v105 = vld [vmem:[%s2 + $0x70] sm:$0xff]
  %v106 = vld [vmem:[%s2 + $0x78] sm:$0xff]
  %v107 = vld [vmem:[%s2 + $0x80] sm:$0xff]
  %v108 = vld [vmem:[%s2 + $0x88] sm:$0xff]
  %v109 = vld [vmem:[%s2 + $0x90] sm:$0xff]
  %v110 = vld [vmem:[%s2 + $0x98] sm:$0xff]
  %v111 = vld [vmem:[%s2 + $0xa0] sm:$0xff]
  %v112 = vld [vmem:[%s2 + $0xa8] sm:$0xff]
  %v113 = vld [vmem:[%s2 + $0xb0] sm:$0xff]
  %v114 = vld [vmem:[%s2 + $0xb8] sm:$0xff]
  %v115 = vld [vmem:[%s0 + $0x1] sm:$0xff]
  %v116 = vld [vmem:[%s0 + $0x9] sm:$0x3f]
  %s117 = scalar_lea.vmem %s2, 192
  %v118 = vld [vmem:[%s117] sm:$0xff]
  %v119 = vld [vmem:[%s117 + $0x8] sm:$0xff]
  %v120 = vld [vmem:[%s117 + $0x10] sm:$0xff]
  %v121 = vld [vmem:[%s117 + $0x18] sm:$0xff]
  %v122 = vld [vmem:[%s117 + $0x20] sm:$0xff]
  %v123 = vld [vmem:[%s117 + $0x28] sm:$0xff]
  %v124 = vld [vmem:[%s117 + $0x30] sm:$0xff]
  %v125 = vld [vmem:[%s117 + $0x38] sm:$0xff]
  %v126 = vld [vmem:[%s117 + $0x40] sm:$0xff]
  %v127 = vld [vmem:[%s117 + $0x48] sm:$0xff]
  %v128 = vld [vmem:[%s117 + $0x50] sm:$0xff]
  %v129 = vld [vmem:[%s117 + $0x58] sm:$0xff]
  %v130 = vld [vmem:[%s117 + $0x60] sm:$0xff]
  %v131 = vld [vmem:[%s117 + $0x68] sm:$0xff]
  %v132 = vld [vmem:[%s117 + $0x70] sm:$0xff]
  %v133 = vld [vmem:[%s117 + $0x78] sm:$0xff]
  %v134 = vld [vmem:[%s117 + $0x80] sm:$0xff]
  %v135 = vld [vmem:[%s117 + $0x88] sm:$0xff]
  %v136 = vld [vmem:[%s117 + $0x90] sm:$0xff]
  %v137 = vld [vmem:[%s117 + $0x98] sm:$0xff]
  %v138 = vld [vmem:[%s117 + $0xa0] sm:$0xff]
  %v139 = vld [vmem:[%s117 + $0xa8] sm:$0xff]
  %v140 = vld [vmem:[%s117 + $0xb0] sm:$0xff]
  %v141 = vld [vmem:[%s117 + $0xb8] sm:$0xff]
  %vm142 = vcmask 392192
  %v144 = vsel %vm142, %v115, 0
  %v147 = vsel %vm142, %v116, 0
  %149 = vmatpush.msra.mxu0 0.0
  %150 = vmatpush.msra.mxu0 0.0
  %151 = vmatpush.msra.mxu0 0.0
  %152 = vmatpush.msra.mxu0 0.0
  %153 = vmatpush.msra.mxu0 0.0
  %154 = vmatpush.msra.mxu0 0.0
  %155 = vmatpush.msra.mxu0 0.0
  %156 = vmatpush.msra.mxu0 0.0
  %157 = vmatpush.msra.mxu0 0.0
  %158 = vmatpush.msra.mxu0 0.0
  %159 = vmatpush.msra.mxu0 %v138
  %160 = vmatpush.msra.mxu0 %v134
  %161 = vmatpush.msra.mxu0 %v130
  %162 = vmatpush.msra.mxu0 %v126
  %163 = vmatpush.msra.mxu0 %v122
  %164 = vmatpush.msra.mxu0 %v118
  %165 = vmatmul.f32.gmra.mxu0 %v144
  %v166 = vpop.f32.mrf.mxu0
  %v167 = vadd.f32 0.0, %v166
  %168 = vmatmul.f32.gmra.mxu0 %v147
  %v169 = vpop.f32.mrf.mxu0
  %v170 = vadd.f32 0.0, %v169
  %171 = vdwg.mxu0
  %172 = vmatpush.msra.mxu0 0.0
  %173 = vmatpush.msra.mxu0 0.0
  %174 = vmatpush.msra.mxu0 0.0
  %175 = vmatpush.msra.mxu0 0.0
  %176 = vmatpush.msra.mxu0 0.0
  %177 = vmatpush.msra.mxu0 0.0
  %178 = vmatpush.msra.mxu0 0.0
  %179 = vmatpush.msra.mxu0 0.0
  %180 = vmatpush.msra.mxu0 0.0
  %181 = vmatpush.msra.mxu0 0.0
  %182 = vmatpush.msra.mxu0 %v139
  %183 = vmatpush.msra.mxu0 %v135
  %184 = vmatpush.msra.mxu0 %v131
  %185 = vmatpush.msra.mxu0 %v127
  %186 = vmatpush.msra.mxu0 %v123
  %187 = vmatpush.msra.mxu0 %v119
  %188 = vmatmul.f32.gmra.mxu0 %v144
  %v189 = vpop.f32.mrf.mxu0
  %v190 = vadd.f32 0.0, %v189
  %191 = vmatmul.f32.gmra.mxu0 %v147
  %v192 = vpop.f32.mrf.mxu0
  %v193 = vadd.f32 0.0, %v192
  %194 = vdwg.mxu0
  %195 = vmatpush.msra.mxu0 0.0
  %196 = vmatpush.msra.mxu0 0.0
  %197 = vmatpush.msra.mxu0 0.0
  %198 = vmatpush.msra.mxu0 0.0
  %199 = vmatpush.msra.mxu0 0.0
  %200 = vmatpush.msra.mxu0 0.0
  %201 = vmatpush.msra.mxu0 0.0
  %202 = vmatpush.msra.mxu0 0.0
  %203 = vmatpush.msra.mxu0 0.0
  %204 = vmatpush.msra.mxu0 0.0
  %205 = vmatpush.msra.mxu0 %v140
  %206 = vmatpush.msra.mxu0 %v136
  %207 = vmatpush.msra.mxu0 %v132
  %208 = vmatpush.msra.mxu0 %v128
  %209 = vmatpush.msra.mxu0 %v124
  %210 = vmatpush.msra.mxu0 %v120
  %211 = vmatmul.f32.gmra.mxu0 %v144
  %v212 = vpop.f32.mrf.mxu0
  %v213 = vadd.f32 0.0, %v212
  %214 = vmatmul.f32.gmra.mxu0 %v147
  %v215 = vpop.f32.mrf.mxu0
  %v216 = vadd.f32 0.0, %v215
  %217 = vdwg.mxu0
  %218 = vmatpush.msra.mxu0 0.0
  %219 = vmatpush.msra.mxu0 0.0
  %220 = vmatpush.msra.mxu0 0.0
  %221 = vmatpush.msra.mxu0 0.0
  %222 = vmatpush.msra.mxu0 0.0
  %223 = vmatpush.msra.mxu0 0.0
  %224 = vmatpush.msra.mxu0 0.0
  %225 = vmatpush.msra.mxu0 0.0
  %226 = vmatpush.msra.mxu0 0.0
  %227 = vmatpush.msra.mxu0 0.0
  %228 = vmatpush.msra.mxu0 %v141
  %229 = vmatpush.msra.mxu0 %v137
  %230 = vmatpush.msra.mxu0 %v133
  %231 = vmatpush.msra.mxu0 %v129
  %232 = vmatpush.msra.mxu0 %v125
  %233 = vmatpush.msra.mxu0 %v121
  %234 = vmatmul.f32.gmra.mxu0 %v144
  %v235 = vpop.f32.mrf.mxu0
  %v236 = vadd.f32 0.0, %v235
  %237 = vmatmul.f32.gmra.mxu0 %v147
  %v238 = vpop.f32.mrf.mxu0
  %v239 = vadd.f32 0.0, %v238
  %240 = vdwg.mxu0
  %v242 = vsel %vm142, %v89, 0
  %v245 = vsel %vm142, %v90, 0
  %247 = vmatpush.msra.mxu0 0.0
  %248 = vmatpush.msra.mxu0 0.0
  %249 = vmatpush.msra.mxu0 0.0
  %250 = vmatpush.msra.mxu0 0.0
  %251 = vmatpush.msra.mxu0 0.0
  %252 = vmatpush.msra.mxu0 0.0
  %253 = vmatpush.msra.mxu0 0.0
  %254 = vmatpush.msra.mxu0 0.0
  %255 = vmatpush.msra.mxu0 0.0
  %256 = vmatpush.msra.mxu0 0.0
  %257 = vmatpush.msra.mxu0 %v111
  %258 = vmatpush.msra.mxu0 %v107
  %259 = vmatpush.msra.mxu0 %v103
  %260 = vmatpush.msra.mxu0 %v99
  %261 = vmatpush.msra.mxu0 %v95
  %262 = vmatpush.msra.mxu0 %v91
  %263 = vmatmul.f32.gmra.mxu0 %v242
  %v264 = vpop.f32.mrf.mxu0
  %v265 = vadd.f32 %v167, %v264
  %266 = vmatmul.f32.gmra.mxu0 %v245
  %v267 = vpop.f32.mrf.mxu0
  %v268 = vadd.f32 %v170, %v267
  %269 = vdwg.mxu0
  %270 = vmatpush.msra.mxu0 0.0
  %271 = vmatpush.msra.mxu0 0.0
  %272 = vmatpush.msra.mxu0 0.0
  %273 = vmatpush.msra.mxu0 0.0
  %274 = vmatpush.msra.mxu0 0.0
  %275 = vmatpush.msra.mxu0 0.0
  %276 = vmatpush.msra.mxu0 0.0
  %277 = vmatpush.msra.mxu0 0.0
  %278 = vmatpush.msra.mxu0 0.0
  %279 = vmatpush.msra.mxu0 0.0
  %280 = vmatpush.msra.mxu0 %v112
  %281 = vmatpush.msra.mxu0 %v108
  %282 = vmatpush.msra.mxu0 %v104
  %283 = vmatpush.msra.mxu0 %v100
  %284 = vmatpush.msra.mxu0 %v96
  %285 = vmatpush.msra.mxu0 %v92
  %286 = vmatmul.f32.gmra.mxu0 %v242
  %v287 = vpop.f32.mrf.mxu0
  %v288 = vadd.f32 %v190, %v287
  %289 = vmatmul.f32.gmra.mxu0 %v245
  %v290 = vpop.f32.mrf.mxu0
  %v291 = vadd.f32 %v193, %v290
  %292 = vdwg.mxu0
  %293 = vmatpush.msra.mxu0 0.0
  %294 = vmatpush.msra.mxu0 0.0
  %295 = vmatpush.msra.mxu0 0.0
  %296 = vmatpush.msra.mxu0 0.0
  %297 = vmatpush.msra.mxu0 0.0
  %298 = vmatpush.msra.mxu0 0.0
  %299 = vmatpush.msra.mxu0 0.0
  %300 = vmatpush.msra.mxu0 0.0
  %301 = vmatpush.msra.mxu0 0.0
  %302 = vmatpush.msra.mxu0 0.0
  %303 = vmatpush.msra.mxu0 %v113
  %304 = vmatpush.msra.mxu0 %v109
  %305 = vmatpush.msra.mxu0 %v105
  %306 = vmatpush.msra.mxu0 %v101
  %307 = vmatpush.msra.mxu0 %v97
  %308 = vmatpush.msra.mxu0 %v93
  %309 = vmatmul.f32.gmra.mxu0 %v242
  %v310 = vpop.f32.mrf.mxu0
  %v311 = vadd.f32 %v213, %v310
  %312 = vmatmul.f32.gmra.mxu0 %v245
  %v313 = vpop.f32.mrf.mxu0
  %v314 = vadd.f32 %v216, %v313
  %315 = vdwg.mxu0
  %316 = vmatpush.msra.mxu0 0.0
  %317 = vmatpush.msra.mxu0 0.0
  %318 = vmatpush.msra.mxu0 0.0
  %319 = vmatpush.msra.mxu0 0.0
  %320 = vmatpush.msra.mxu0 0.0
  %321 = vmatpush.msra.mxu0 0.0
  %322 = vmatpush.msra.mxu0 0.0
  %323 = vmatpush.msra.mxu0 0.0
  %324 = vmatpush.msra.mxu0 0.0
  %325 = vmatpush.msra.mxu0 0.0
  %326 = vmatpush.msra.mxu0 %v114
  %327 = vmatpush.msra.mxu0 %v110
  %328 = vmatpush.msra.mxu0 %v106
  %329 = vmatpush.msra.mxu0 %v102
  %330 = vmatpush.msra.mxu0 %v98
  %331 = vmatpush.msra.mxu0 %v94
  %332 = vmatmul.f32.gmra.mxu0 %v242
  %v333 = vpop.f32.mrf.mxu0
  %v334 = vadd.f32 %v236, %v333
  %335 = vmatmul.f32.gmra.mxu0 %v245
  %v336 = vpop.f32.mrf.mxu0
  %v337 = vadd.f32 %v239, %v336
  %338 = vdwg.mxu0
  %v339 = vld [vmem:[%s0 + $0x2] sm:$0xff]
  %v340 = vld [vmem:[%s0 + $0xa] sm:$0x3f]
  %s341 = scalar_lea.vmem %s2, 384
  %v342 = vld [vmem:[%s341] sm:$0xff]
  %v343 = vld [vmem:[%s341 + $0x8] sm:$0xff]
  %v344 = vld [vmem:[%s341 + $0x10] sm:$0xff]
  %v345 = vld [vmem:[%s341 + $0x18] sm:$0xff]
  %v346 = vld [vmem:[%s341 + $0x20] sm:$0xff]
  %v347 = vld [vmem:[%s341 + $0x28] sm:$0xff]
  %v348 = vld [vmem:[%s341 + $0x30] sm:$0xff]
  %v349 = vld [vmem:[%s341 + $0x38] sm:$0xff]
  %v350 = vld [vmem:[%s341 + $0x40] sm:$0xff]
  %v351 = vld [vmem:[%s341 + $0x48] sm:$0xff]
  %v352 = vld [vmem:[%s341 + $0x50] sm:$0xff]
  %v353 = vld [vmem:[%s341 + $0x58] sm:$0xff]
  %v354 = vld [vmem:[%s341 + $0x60] sm:$0xff]
  %v355 = vld [vmem:[%s341 + $0x68] sm:$0xff]
  %v356 = vld [vmem:[%s341 + $0x70] sm:$0xff]
  %v357 = vld [vmem:[%s341 + $0x78] sm:$0xff]
  %v358 = vld [vmem:[%s341 + $0x80] sm:$0xff]
  %v359 = vld [vmem:[%s341 + $0x88] sm:$0xff]
  %v360 = vld [vmem:[%s341 + $0x90] sm:$0xff]
  %v361 = vld [vmem:[%s341 + $0x98] sm:$0xff]
  %v362 = vld [vmem:[%s341 + $0xa0] sm:$0xff]
  %v363 = vld [vmem:[%s341 + $0xa8] sm:$0xff]
  %v364 = vld [vmem:[%s341 + $0xb0] sm:$0xff]
  %v365 = vld [vmem:[%s341 + $0xb8] sm:$0xff]
  %v367 = vsel %vm142, %v339, 0
  %v370 = vsel %vm142, %v340, 0
  %372 = vmatpush.msra.mxu0 0.0
  %373 = vmatpush.msra.mxu0 0.0
  %374 = vmatpush.msra.mxu0 0.0
  %375 = vmatpush.msra.mxu0 0.0
  %376 = vmatpush.msra.mxu0 0.0
  %377 = vmatpush.msra.mxu0 0.0
  %378 = vmatpush.msra.mxu0 0.0
  %379 = vmatpush.msra.mxu0 0.0
  %380 = vmatpush.msra.mxu0 0.0
  %381 = vmatpush.msra.mxu0 0.0
  %382 = vmatpush.msra.mxu0 %v362
  %383 = vmatpush.msra.mxu0 %v358
  %384 = vmatpush.msra.mxu0 %v354
  %385 = vmatpush.msra.mxu0 %v350
  %386 = vmatpush.msra.mxu0 %v346
  %387 = vmatpush.msra.mxu0 %v342
  %388 = vmatmul.f32.gmra.mxu0 %v367
  %v389 = vpop.f32.mrf.mxu0
  %v390 = vadd.f32 0.0, %v389
  %391 = vmatmul.f32.gmra.mxu0 %v370
  %v392 = vpop.f32.mrf.mxu0
  %v393 = vadd.f32 0.0, %v392
  %394 = vdwg.mxu0
  %395 = vmatpush.msra.mxu0 0.0
  %396 = vmatpush.msra.mxu0 0.0
  %397 = vmatpush.msra.mxu0 0.0
  %398 = vmatpush.msra.mxu0 0.0
  %399 = vmatpush.msra.mxu0 0.0
  %400 = vmatpush.msra.mxu0 0.0
  %401 = vmatpush.msra.mxu0 0.0
  %402 = vmatpush.msra.mxu0 0.0
  %403 = vmatpush.msra.mxu0 0.0
  %404 = vmatpush.msra.mxu0 0.0
  %405 = vmatpush.msra.mxu0 %v363
  %406 = vmatpush.msra.mxu0 %v359
  %407 = vmatpush.msra.mxu0 %v355
  %408 = vmatpush.msra.mxu0 %v351
  %409 = vmatpush.msra.mxu0 %v347
  %410 = vmatpush.msra.mxu0 %v343
  %411 = vmatmul.f32.gmra.mxu0 %v367
  %v412 = vpop.f32.mrf.mxu0
  %v413 = vadd.f32 0.0, %v412
  %414 = vmatmul.f32.gmra.mxu0 %v370
  %v415 = vpop.f32.mrf.mxu0
  %v416 = vadd.f32 0.0, %v415
  %417 = vdwg.mxu0
  %418 = vmatpush.msra.mxu0 0.0
  %419 = vmatpush.msra.mxu0 0.0
  %420 = vmatpush.msra.mxu0 0.0
  %421 = vmatpush.msra.mxu0 0.0
  %422 = vmatpush.msra.mxu0 0.0
  %423 = vmatpush.msra.mxu0 0.0
  %424 = vmatpush.msra.mxu0 0.0
  %425 = vmatpush.msra.mxu0 0.0
  %426 = vmatpush.msra.mxu0 0.0
  %427 = vmatpush.msra.mxu0 0.0
  %428 = vmatpush.msra.mxu0 %v364
  %429 = vmatpush.msra.mxu0 %v360
  %430 = vmatpush.msra.mxu0 %v356
  %431 = vmatpush.msra.mxu0 %v352
  %432 = vmatpush.msra.mxu0 %v348
  %433 = vmatpush.msra.mxu0 %v344
  %434 = vmatmul.f32.gmra.mxu0 %v367
  %v435 = vpop.f32.mrf.mxu0
  %v436 = vadd.f32 0.0, %v435
  %437 = vmatmul.f32.gmra.mxu0 %v370
  %v438 = vpop.f32.mrf.mxu0
  %v439 = vadd.f32 0.0, %v438
  %440 = vdwg.mxu0
  %441 = vmatpush.msra.mxu0 0.0
  %442 = vmatpush.msra.mxu0 0.0
  %443 = vmatpush.msra.mxu0 0.0
  %444 = vmatpush.msra.mxu0 0.0
  %445 = vmatpush.msra.mxu0 0.0
  %446 = vmatpush.msra.mxu0 0.0
  %447 = vmatpush.msra.mxu0 0.0
  %448 = vmatpush.msra.mxu0 0.0
  %449 = vmatpush.msra.mxu0 0.0
  %450 = vmatpush.msra.mxu0 0.0
  %451 = vmatpush.msra.mxu0 %v365
  %452 = vmatpush.msra.mxu0 %v361
  %453 = vmatpush.msra.mxu0 %v357
  %454 = vmatpush.msra.mxu0 %v353
  %455 = vmatpush.msra.mxu0 %v349
  %456 = vmatpush.msra.mxu0 %v345
  %457 = vmatmul.f32.gmra.mxu0 %v367
  %v458 = vpop.f32.mrf.mxu0
  %v459 = vadd.f32 0.0, %v458
  %460 = vmatmul.f32.gmra.mxu0 %v370
  %v461 = vpop.f32.mrf.mxu0
  %v462 = vadd.f32 0.0, %v461
  %463 = vdwg.mxu0
  %v464 = vadd.f32 %v265, %v390
  %v465 = vadd.f32 %v288, %v413
  %v466 = vadd.f32 %v311, %v436
  %v467 = vadd.f32 %v334, %v459
  %v468 = vadd.f32 %v268, %v393
  %v469 = vadd.f32 %v291, %v416
  %v470 = vadd.f32 %v314, %v439
  %v471 = vadd.f32 %v337, %v462
  %v472 = vld [vmem:[%s3] sm:$0xf]
  %v474 = vperm.slane %v472, 0
  %v475 = vperm.slane %v472, 1
  %v476 = vperm.slane %v472, 2
  %v477 = vperm.slane %v472, 3
  %v482 = vadd.f32 %v464, %v474
  %v483 = vadd.f32 %v465, %v475
  %v484 = vadd.f32 %v466, %v476
  %v485 = vadd.f32 %v467, %v477
  %v486 = vadd.f32 %v468, %v474
  %v487 = vadd.f32 %v469, %v475
  %v488 = vadd.f32 %v470, %v476
  %v489 = vadd.f32 %v471, %v477
  %vm490 = vcmask 1045504
  %v491 = vsel %vm490, %v486, 0.0
  %v492 = vadd.f32 %v482, %v491
  %v493 = vrot.slane %v492, 4
  %v494 = vadd.f32 %v492, %v493
  %v495 = vrot.slane %v494, 2
  %v496 = vadd.f32 %v494, %v495
  %v497 = vrot.slane %v496, 1
  %v498 = vadd.f32 %v496, %v497
  %v499 = vsel %vm490, %v487, 0.0
  %v500 = vadd.f32 %v483, %v499
  %v501 = vrot.slane %v500, 4
  %v502 = vadd.f32 %v500, %v501
  %v503 = vrot.slane %v502, 2
  %v504 = vadd.f32 %v502, %v503
  %v505 = vrot.slane %v504, 1
  %v506 = vadd.f32 %v504, %v505
  %v507 = vsel %vm490, %v488, 0.0
  %v508 = vadd.f32 %v484, %v507
  %v509 = vrot.slane %v508, 4
  %v510 = vadd.f32 %v508, %v509
  %v511 = vrot.slane %v510, 2
  %v512 = vadd.f32 %v510, %v511
  %v513 = vrot.slane %v512, 1
  %v514 = vadd.f32 %v512, %v513
  %vm515 = vcmask 523264
  %v516 = vsel %vm515, %v485, 0.0
  %vm517 = vcmask 521216
  %v518 = vsel %vm517, %v489, 0.0
  %v519 = vadd.f32 %v516, %v518
  %v520 = vrot.slane %v519, 4
  %v521 = vadd.f32 %v519, %v520
  %v522 = vrot.slane %v521, 2
  %v523 = vadd.f32 %v521, %v522
  %v524 = vrot.slane %v523, 1
  %v525 = vadd.f32 %v523, %v524
  %v526 = vadd.f32 %v498, 0.0
  %v527 = vadd.f32 %v506, 0.0
  %v528 = vadd.f32 %v514, 0.0
  %v529 = vadd.f32 %v525, 0.0
  %v530 = vmul.f32 %v482, %v482
  %v531 = vmul.f32 %v483, %v483
  %v532 = vmul.f32 %v484, %v484
  %v533 = vmul.f32 %v485, %v485
  %v534 = vmul.f32 %v486, %v486
  %v535 = vmul.f32 %v487, %v487
  %v536 = vmul.f32 %v488, %v488
  %v537 = vmul.f32 %v489, %v489
  %v538 = vsel %vm490, %v534, 0.0
  %v539 = vadd.f32 %v530, %v538
  %v540 = vrot.slane %v539, 4
  %v541 = vadd.f32 %v539, %v540
  %v542 = vrot.slane %v541, 2
  %v543 = vadd.f32 %v541, %v542
  %v544 = vrot.slane %v543, 1
  %v545 = vadd.f32 %v543, %v544
  %v546 = vsel %vm490, %v535, 0.0
  %v547 = vadd.f32 %v531, %v546
  %v548 = vrot.slane %v547, 4
  %v549 = vadd.f32 %v547, %v548
  %v550 = vrot.slane %v549, 2
  %v551 = vadd.f32 %v549, %v550
  %v552 = vrot.slane %v551, 1
  %v553 = vadd.f32 %v551, %v552
  %v554 = vsel %vm490, %v536, 0.0
  %v555 = vadd.f32 %v532, %v554
  %v556 = vrot.slane %v555, 4
  %v557 = vadd.f32 %v555, %v556
  %v558 = vrot.slane %v557, 2
  %v559 = vadd.f32 %v557, %v558
  %v560 = vrot.slane %v559, 1
  %v561 = vadd.f32 %v559, %v560
  %v562 = vsel %vm515, %v533, 0.0
  %v563 = vsel %vm517, %v537, 0.0
  %v564 = vadd.f32 %v562, %v563
  %v565 = vrot.slane %v564, 4
  %v566 = vadd.f32 %v564, %v565
  %v567 = vrot.slane %v566, 2
  %v568 = vadd.f32 %v566, %v567
  %v569 = vrot.slane %v568, 1
  %v570 = vadd.f32 %v568, %v569
  %v571 = vadd.f32 %v545, 0.0
  %v572 = vadd.f32 %v553, 0.0
  %v573 = vadd.f32 %v561, 0.0
  %v574 = vadd.f32 %v570, 0.0
  %s575 = scalar_lea.vmem %s0, 16
  %v576 = vld [vmem:[%s575] sm:$0xff]
  %v577 = vld [vmem:[%s575 + $0x8] sm:$0x3f]
  %v578 = vld [vmem:[%s575 + $0x1] sm:$0xff]
  %v579 = vld [vmem:[%s575 + $0x9] sm:$0x3f]
  %v581 = vsel %vm142, %v578, 0
  %v584 = vsel %vm142, %v579, 0
  %586 = vmatpush.msra.mxu0 0.0
  %587 = vmatpush.msra.mxu0 0.0
  %588 = vmatpush.msra.mxu0 0.0
  %589 = vmatpush.msra.mxu0 0.0
  %590 = vmatpush.msra.mxu0 0.0
  %591 = vmatpush.msra.mxu0 0.0
  %592 = vmatpush.msra.mxu0 0.0
  %593 = vmatpush.msra.mxu0 0.0
  %594 = vmatpush.msra.mxu0 0.0
  %595 = vmatpush.msra.mxu0 0.0
  %596 = vmatpush.msra.mxu0 %v138
  %597 = vmatpush.msra.mxu0 %v134
  %598 = vmatpush.msra.mxu0 %v130
  %599 = vmatpush.msra.mxu0 %v126
  %600 = vmatpush.msra.mxu0 %v122
  %601 = vmatpush.msra.mxu0 %v118
  %602 = vmatmul.f32.gmra.mxu0 %v581
  %v603 = vpop.f32.mrf.mxu0
  %v604 = vadd.f32 0.0, %v603
  %605 = vmatmul.f32.gmra.mxu0 %v584
  %v606 = vpop.f32.mrf.mxu0
  %v607 = vadd.f32 0.0, %v606
  %608 = vdwg.mxu0
  %609 = vmatpush.msra.mxu0 0.0
  %610 = vmatpush.msra.mxu0 0.0
  %611 = vmatpush.msra.mxu0 0.0
  %612 = vmatpush.msra.mxu0 0.0
  %613 = vmatpush.msra.mxu0 0.0
  %614 = vmatpush.msra.mxu0 0.0
  %615 = vmatpush.msra.mxu0 0.0
  %616 = vmatpush.msra.mxu0 0.0
  %617 = vmatpush.msra.mxu0 0.0
  %618 = vmatpush.msra.mxu0 0.0
  %619 = vmatpush.msra.mxu0 %v139
  %620 = vmatpush.msra.mxu0 %v135
  %621 = vmatpush.msra.mxu0 %v131
  %622 = vmatpush.msra.mxu0 %v127
  %623 = vmatpush.msra.mxu0 %v123
  %624 = vmatpush.msra.mxu0 %v119
  %625 = vmatmul.f32.gmra.mxu0 %v581
  %v626 = vpop.f32.mrf.mxu0
  %v627 = vadd.f32 0.0, %v626
  %628 = vmatmul.f32.gmra.mxu0 %v584
  %v629 = vpop.f32.mrf.mxu0
  %v630 = vadd.f32 0.0, %v629
  %631 = vdwg.mxu0
  %632 = vmatpush.msra.mxu0 0.0
  %633 = vmatpush.msra.mxu0 0.0
  %634 = vmatpush.msra.mxu0 0.0
  %635 = vmatpush.msra.mxu0 0.0
  %636 = vmatpush.msra.mxu0 0.0
  %637 = vmatpush.msra.mxu0 0.0
  %638 = vmatpush.msra.mxu0 0.0
  %639 = vmatpush.msra.mxu0 0.0
  %640 = vmatpush.msra.mxu0 0.0
  %641 = vmatpush.msra.mxu0 0.0
  %642 = vmatpush.msra.mxu0 %v140
  %643 = vmatpush.msra.mxu0 %v136
  %644 = vmatpush.msra.mxu0 %v132
  %645 = vmatpush.msra.mxu0 %v128
  %646 = vmatpush.msra.mxu0 %v124
  %647 = vmatpush.msra.mxu0 %v120
  %648 = vmatmul.f32.gmra.mxu0 %v581
  %v649 = vpop.f32.mrf.mxu0
  %v650 = vadd.f32 0.0, %v649
  %651 = vmatmul.f32.gmra.mxu0 %v584
  %v652 = vpop.f32.mrf.mxu0
  %v653 = vadd.f32 0.0, %v652
  %654 = vdwg.mxu0
  %655 = vmatpush.msra.mxu0 0.0
  %656 = vmatpush.msra.mxu0 0.0
  %657 = vmatpush.msra.mxu0 0.0
  %658 = vmatpush.msra.mxu0 0.0
  %659 = vmatpush.msra.mxu0 0.0
  %660 = vmatpush.msra.mxu0 0.0
  %661 = vmatpush.msra.mxu0 0.0
  %662 = vmatpush.msra.mxu0 0.0
  %663 = vmatpush.msra.mxu0 0.0
  %664 = vmatpush.msra.mxu0 0.0
  %665 = vmatpush.msra.mxu0 %v141
  %666 = vmatpush.msra.mxu0 %v137
  %667 = vmatpush.msra.mxu0 %v133
  %668 = vmatpush.msra.mxu0 %v129
  %669 = vmatpush.msra.mxu0 %v125
  %670 = vmatpush.msra.mxu0 %v121
  %671 = vmatmul.f32.gmra.mxu0 %v581
  %v672 = vpop.f32.mrf.mxu0
  %v673 = vadd.f32 0.0, %v672
  %674 = vmatmul.f32.gmra.mxu0 %v584
  %v675 = vpop.f32.mrf.mxu0
  %v676 = vadd.f32 0.0, %v675
  %677 = vdwg.mxu0
  %v679 = vsel %vm142, %v576, 0
  %v682 = vsel %vm142, %v577, 0
  %684 = vmatpush.msra.mxu0 0.0
  %685 = vmatpush.msra.mxu0 0.0
  %686 = vmatpush.msra.mxu0 0.0
  %687 = vmatpush.msra.mxu0 0.0
  %688 = vmatpush.msra.mxu0 0.0
  %689 = vmatpush.msra.mxu0 0.0
  %690 = vmatpush.msra.mxu0 0.0
  %691 = vmatpush.msra.mxu0 0.0
  %692 = vmatpush.msra.mxu0 0.0
  %693 = vmatpush.msra.mxu0 0.0
  %694 = vmatpush.msra.mxu0 %v111
  %695 = vmatpush.msra.mxu0 %v107
  %696 = vmatpush.msra.mxu0 %v103
  %697 = vmatpush.msra.mxu0 %v99
  %698 = vmatpush.msra.mxu0 %v95
  %699 = vmatpush.msra.mxu0 %v91
  %700 = vmatmul.f32.gmra.mxu0 %v679
  %v701 = vpop.f32.mrf.mxu0
  %v702 = vadd.f32 %v604, %v701
  %703 = vmatmul.f32.gmra.mxu0 %v682
  %v704 = vpop.f32.mrf.mxu0
  %v705 = vadd.f32 %v607, %v704
  %706 = vdwg.mxu0
  %707 = vmatpush.msra.mxu0 0.0
  %708 = vmatpush.msra.mxu0 0.0
  %709 = vmatpush.msra.mxu0 0.0
  %710 = vmatpush.msra.mxu0 0.0
  %711 = vmatpush.msra.mxu0 0.0
  %712 = vmatpush.msra.mxu0 0.0
  %713 = vmatpush.msra.mxu0 0.0
  %714 = vmatpush.msra.mxu0 0.0
  %715 = vmatpush.msra.mxu0 0.0
  %716 = vmatpush.msra.mxu0 0.0
  %717 = vmatpush.msra.mxu0 %v112
  %718 = vmatpush.msra.mxu0 %v108
  %719 = vmatpush.msra.mxu0 %v104
  %720 = vmatpush.msra.mxu0 %v100
  %721 = vmatpush.msra.mxu0 %v96
  %722 = vmatpush.msra.mxu0 %v92
  %723 = vmatmul.f32.gmra.mxu0 %v679
  %v724 = vpop.f32.mrf.mxu0
  %v725 = vadd.f32 %v627, %v724
  %726 = vmatmul.f32.gmra.mxu0 %v682
  %v727 = vpop.f32.mrf.mxu0
  %v728 = vadd.f32 %v630, %v727
  %729 = vdwg.mxu0
  %730 = vmatpush.msra.mxu0 0.0
  %731 = vmatpush.msra.mxu0 0.0
  %732 = vmatpush.msra.mxu0 0.0
  %733 = vmatpush.msra.mxu0 0.0
  %734 = vmatpush.msra.mxu0 0.0
  %735 = vmatpush.msra.mxu0 0.0
  %736 = vmatpush.msra.mxu0 0.0
  %737 = vmatpush.msra.mxu0 0.0
  %738 = vmatpush.msra.mxu0 0.0
  %739 = vmatpush.msra.mxu0 0.0
  %740 = vmatpush.msra.mxu0 %v113
  %741 = vmatpush.msra.mxu0 %v109
  %742 = vmatpush.msra.mxu0 %v105
  %743 = vmatpush.msra.mxu0 %v101
  %744 = vmatpush.msra.mxu0 %v97
  %745 = vmatpush.msra.mxu0 %v93
  %746 = vmatmul.f32.gmra.mxu0 %v679
  %v747 = vpop.f32.mrf.mxu0
  %v748 = vadd.f32 %v650, %v747
  %749 = vmatmul.f32.gmra.mxu0 %v682
  %v750 = vpop.f32.mrf.mxu0
  %v751 = vadd.f32 %v653, %v750
  %752 = vdwg.mxu0
  %753 = vmatpush.msra.mxu0 0.0
  %754 = vmatpush.msra.mxu0 0.0
  %755 = vmatpush.msra.mxu0 0.0
  %756 = vmatpush.msra.mxu0 0.0
  %757 = vmatpush.msra.mxu0 0.0
  %758 = vmatpush.msra.mxu0 0.0
  %759 = vmatpush.msra.mxu0 0.0
  %760 = vmatpush.msra.mxu0 0.0
  %761 = vmatpush.msra.mxu0 0.0
  %762 = vmatpush.msra.mxu0 0.0
  %763 = vmatpush.msra.mxu0 %v114
  %764 = vmatpush.msra.mxu0 %v110
  %765 = vmatpush.msra.mxu0 %v106
  %766 = vmatpush.msra.mxu0 %v102
  %767 = vmatpush.msra.mxu0 %v98
  %768 = vmatpush.msra.mxu0 %v94
  %769 = vmatmul.f32.gmra.mxu0 %v679
  %v770 = vpop.f32.mrf.mxu0
  %v771 = vadd.f32 %v673, %v770
  %772 = vmatmul.f32.gmra.mxu0 %v682
  %v773 = vpop.f32.mrf.mxu0
  %v774 = vadd.f32 %v676, %v773
  %775 = vdwg.mxu0
  %v776 = vld [vmem:[%s575 + $0x2] sm:$0xff]
  %v777 = vld [vmem:[%s575 + $0xa] sm:$0x3f]
  %v779 = vsel %vm142, %v776, 0
  %v782 = vsel %vm142, %v777, 0
  %784 = vmatpush.msra.mxu0 0.0
  %785 = vmatpush.msra.mxu0 0.0
  %786 = vmatpush.msra.mxu0 0.0
  %787 = vmatpush.msra.mxu0 0.0
  %788 = vmatpush.msra.mxu0 0.0
  %789 = vmatpush.msra.mxu0 0.0
  %790 = vmatpush.msra.mxu0 0.0
  %791 = vmatpush.msra.mxu0 0.0
  %792 = vmatpush.msra.mxu0 0.0
  %793 = vmatpush.msra.mxu0 0.0
  %794 = vmatpush.msra.mxu0 %v362
  %795 = vmatpush.msra.mxu0 %v358
  %796 = vmatpush.msra.mxu0 %v354
  %797 = vmatpush.msra.mxu0 %v350
  %798 = vmatpush.msra.mxu0 %v346
  %799 = vmatpush.msra.mxu0 %v342
  %800 = vmatmul.f32.gmra.mxu0 %v779
  %v801 = vpop.f32.mrf.mxu0
  %v802 = vadd.f32 0.0, %v801
  %803 = vmatmul.f32.gmra.mxu0 %v782
  %v804 = vpop.f32.mrf.mxu0
  %v805 = vadd.f32 0.0, %v804
  %806 = vdwg.mxu0
  %807 = vmatpush.msra.mxu0 0.0
  %808 = vmatpush.msra.mxu0 0.0
  %809 = vmatpush.msra.mxu0 0.0
  %810 = vmatpush.msra.mxu0 0.0
  %811 = vmatpush.msra.mxu0 0.0
  %812 = vmatpush.msra.mxu0 0.0
  %813 = vmatpush.msra.mxu0 0.0
  %814 = vmatpush.msra.mxu0 0.0
  %815 = vmatpush.msra.mxu0 0.0
  %816 = vmatpush.msra.mxu0 0.0
  %817 = vmatpush.msra.mxu0 %v363
  %818 = vmatpush.msra.mxu0 %v359
  %819 = vmatpush.msra.mxu0 %v355
  %820 = vmatpush.msra.mxu0 %v351
  %821 = vmatpush.msra.mxu0 %v347
  %822 = vmatpush.msra.mxu0 %v343
  %823 = vmatmul.f32.gmra.mxu0 %v779
  %v824 = vpop.f32.mrf.mxu0
  %v825 = vadd.f32 0.0, %v824
  %826 = vmatmul.f32.gmra.mxu0 %v782
  %v827 = vpop.f32.mrf.mxu0
  %v828 = vadd.f32 0.0, %v827
  %829 = vdwg.mxu0
  %830 = vmatpush.msra.mxu0 0.0
  %831 = vmatpush.msra.mxu0 0.0
  %832 = vmatpush.msra.mxu0 0.0
  %833 = vmatpush.msra.mxu0 0.0
  %834 = vmatpush.msra.mxu0 0.0
  %835 = vmatpush.msra.mxu0 0.0
  %836 = vmatpush.msra.mxu0 0.0
  %837 = vmatpush.msra.mxu0 0.0
  %838 = vmatpush.msra.mxu0 0.0
  %839 = vmatpush.msra.mxu0 0.0
  %840 = vmatpush.msra.mxu0 %v364
  %841 = vmatpush.msra.mxu0 %v360
  %842 = vmatpush.msra.mxu0 %v356
  %843 = vmatpush.msra.mxu0 %v352
  %844 = vmatpush.msra.mxu0 %v348
  %845 = vmatpush.msra.mxu0 %v344
  %846 = vmatmul.f32.gmra.mxu0 %v779
  %v847 = vpop.f32.mrf.mxu0
  %v848 = vadd.f32 0.0, %v847
  %849 = vmatmul.f32.gmra.mxu0 %v782
  %v850 = vpop.f32.mrf.mxu0
  %v851 = vadd.f32 0.0, %v850
  %852 = vdwg.mxu0
  %853 = vmatpush.msra.mxu0 0.0
  %854 = vmatpush.msra.mxu0 0.0
  %855 = vmatpush.msra.mxu0 0.0
  %856 = vmatpush.msra.mxu0 0.0
  %857 = vmatpush.msra.mxu0 0.0
  %858 = vmatpush.msra.mxu0 0.0
  %859 = vmatpush.msra.mxu0 0.0
  %860 = vmatpush.msra.mxu0 0.0
  %861 = vmatpush.msra.mxu0 0.0
  %862 = vmatpush.msra.mxu0 0.0
  %863 = vmatpush.msra.mxu0 %v365
  %864 = vmatpush.msra.mxu0 %v361
  %865 = vmatpush.msra.mxu0 %v357
  %866 = vmatpush.msra.mxu0 %v353
  %867 = vmatpush.msra.mxu0 %v349
  %868 = vmatpush.msra.mxu0 %v345
  %869 = vmatmul.f32.gmra.mxu0 %v779
  %v870 = vpop.f32.mrf.mxu0
  %v871 = vadd.f32 0.0, %v870
  %872 = vmatmul.f32.gmra.mxu0 %v782
  %v873 = vpop.f32.mrf.mxu0
  %v874 = vadd.f32 0.0, %v873
  %875 = vdwg.mxu0
  %v876 = vadd.f32 %v702, %v802
  %v877 = vadd.f32 %v725, %v825
  %v878 = vadd.f32 %v748, %v848
  %v879 = vadd.f32 %v771, %v871
  %v880 = vadd.f32 %v705, %v805
  %v881 = vadd.f32 %v728, %v828
  %v882 = vadd.f32 %v751, %v851
  %v883 = vadd.f32 %v774, %v874
  %v884 = vadd.f32 %v876, %v474
  %v885 = vadd.f32 %v877, %v475
  %v886 = vadd.f32 %v878, %v476
  %v887 = vadd.f32 %v879, %v477
  %v888 = vadd.f32 %v880, %v474
  %v889 = vadd.f32 %v881, %v475
  %v890 = vadd.f32 %v882, %v476
  %v891 = vadd.f32 %v883, %v477
  %v892 = vsel %vm490, %v888, 0.0
  %v893 = vadd.f32 %v884, %v892
  %v894 = vrot.slane %v893, 4
  %v895 = vadd.f32 %v893, %v894
  %v896 = vrot.slane %v895, 2
  %v897 = vadd.f32 %v895, %v896
  %v898 = vrot.slane %v897, 1
  %v899 = vadd.f32 %v897, %v898
  %v900 = vsel %vm490, %v889, 0.0
  %v901 = vadd.f32 %v885, %v900
  %v902 = vrot.slane %v901, 4
  %v903 = vadd.f32 %v901, %v902
  %v904 = vrot.slane %v903, 2
  %v905 = vadd.f32 %v903, %v904
  %v906 = vrot.slane %v905, 1
  %v907 = vadd.f32 %v905, %v906
  %v908 = vsel %vm490, %v890, 0.0
  %v909 = vadd.f32 %v886, %v908
  %v910 = vrot.slane %v909, 4
  %v911 = vadd.f32 %v909, %v910
  %v912 = vrot.slane %v911, 2
  %v913 = vadd.f32 %v911, %v912
  %v914 = vrot.slane %v913, 1
  %v915 = vadd.f32 %v913, %v914
  %v916 = vsel %vm515, %v887, 0.0
  %v917 = vsel %vm517, %v891, 0.0
  %v918 = vadd.f32 %v916, %v917
  %v919 = vrot.slane %v918, 4
  %v920 = vadd.f32 %v918, %v919
  %v921 = vrot.slane %v920, 2
  %v922 = vadd.f32 %v920, %v921
  %v923 = vrot.slane %v922, 1
  %v924 = vadd.f32 %v922, %v923
  %v925 = vadd.f32 %v526, %v899
  %v926 = vadd.f32 %v527, %v907
  %v927 = vadd.f32 %v528, %v915
  %v928 = vadd.f32 %v529, %v924
  %v929 = vmul.f32 %v884, %v884
  %v930 = vmul.f32 %v885, %v885
  %v931 = vmul.f32 %v886, %v886
  %v932 = vmul.f32 %v887, %v887
  %v933 = vmul.f32 %v888, %v888
  %v934 = vmul.f32 %v889, %v889
  %v935 = vmul.f32 %v890, %v890
  %v936 = vmul.f32 %v891, %v891
  %v937 = vsel %vm490, %v933, 0.0
  %v938 = vadd.f32 %v929, %v937
  %v939 = vrot.slane %v938, 4
  %v940 = vadd.f32 %v938, %v939
  %v941 = vrot.slane %v940, 2
  %v942 = vadd.f32 %v940, %v941
  %v943 = vrot.slane %v942, 1
  %v944 = vadd.f32 %v942, %v943
  %v945 = vsel %vm490, %v934, 0.0
  %v946 = vadd.f32 %v930, %v945
  %v947 = vrot.slane %v946, 4
  %v948 = vadd.f32 %v946, %v947
  %v949 = vrot.slane %v948, 2
  %v950 = vadd.f32 %v948, %v949
  %v951 = vrot.slane %v950, 1
  %v952 = vadd.f32 %v950, %v951
  %v953 = vsel %vm490, %v935, 0.0
  %v954 = vadd.f32 %v931, %v953
  %v955 = vrot.slane %v954, 4
  %v956 = vadd.f32 %v954, %v955
  %v957 = vrot.slane %v956, 2
  %v958 = vadd.f32 %v956, %v957
  %v959 = vrot.slane %v958, 1
  %v960 = vadd.f32 %v958, %v959
  %v961 = vsel %vm515, %v932, 0.0
  %v962 = vsel %vm517, %v936, 0.0
  %v963 = vadd.f32 %v961, %v962
  %v964 = vrot.slane %v963, 4
  %v965 = vadd.f32 %v963, %v964
  %v966 = vrot.slane %v965, 2
  %v967 = vadd.f32 %v965, %v966
  %v968 = vrot.slane %v967, 1
  %v969 = vadd.f32 %v967, %v968
  %v970 = vadd.f32 %v571, %v944
  %v971 = vadd.f32 %v572, %v952
  %v972 = vadd.f32 %v573, %v960
  %v973 = vadd.f32 %v574, %v969
  %v974 = vld [vmem:[%s6] sm:$0xff]
  %v975 = vld [vmem:[%s6 + $0x8] sm:$0xff]
  %v976 = vld [vmem:[%s6 + $0x10] sm:$0xff]
  %v977 = vld [vmem:[%s6 + $0x18] sm:$0xff]
  %v978 = vld [vmem:[%s6 + $0x20] sm:$0xff]
  %v979 = vld [vmem:[%s6 + $0x28] sm:$0xff]
  %v980 = vld [vmem:[%s6 + $0x30] sm:$0xff]
  %v981 = vld [vmem:[%s6 + $0x38] sm:$0xff]
  %v982 = vld [vmem:[%s6 + $0x40] sm:$0xff]
  %v983 = vld [vmem:[%s6 + $0x48] sm:$0xff]
  %v984 = vld [vmem:[%s6 + $0x50] sm:$0xff]
  %v985 = vld [vmem:[%s6 + $0x58] sm:$0xff]
  %v986 = vld [vmem:[%s6 + $0x60] sm:$0xff]
  %v987 = vld [vmem:[%s6 + $0x68] sm:$0xff]
  %v988 = vld [vmem:[%s6 + $0x70] sm:$0xff]
  %v989 = vld [vmem:[%s6 + $0x78] sm:$0xff]
  %v990 = vld [vmem:[%s6 + $0x80] sm:$0xff]
  %v991 = vld [vmem:[%s6 + $0x88] sm:$0xff]
  %v992 = vld [vmem:[%s6 + $0x90] sm:$0xff]
  %v993 = vld [vmem:[%s6 + $0x98] sm:$0xff]
  %v994 = vld [vmem:[%s6 + $0xa0] sm:$0xff]
  %v995 = vld [vmem:[%s6 + $0xa8] sm:$0xff]
  %v996 = vld [vmem:[%s6 + $0xb0] sm:$0xff]
  %v997 = vld [vmem:[%s6 + $0xb8] sm:$0xff]
  %v998 = vld [vmem:[%s6 + $0xc0] sm:$0xff]
  %v999 = vld [vmem:[%s6 + $0xc8] sm:$0xff]
  %v1000 = vld [vmem:[%s6 + $0xd0] sm:$0xff]
  %v1001 = vld [vmem:[%s6 + $0xd8] sm:$0xff]
  %v1002 = vld [vmem:[%s6 + $0xe0] sm:$0xff]
  %v1003 = vld [vmem:[%s6 + $0xe8] sm:$0xff]
  %v1004 = vld [vmem:[%s6 + $0xf0] sm:$0xff]
  %v1005 = vld [vmem:[%s6 + $0xf8] sm:$0xff]
  %v1006 = vld [vmem:[%s6 + $0x100] sm:$0xff]
  %v1007 = vld [vmem:[%s6 + $0x108] sm:$0xff]
  %v1008 = vld [vmem:[%s6 + $0x110] sm:$0xff]
  %v1009 = vld [vmem:[%s6 + $0x118] sm:$0xff]
  %v1010 = vld [vmem:[%s6 + $0x120] sm:$0xff]
  %v1011 = vld [vmem:[%s6 + $0x128] sm:$0xff]
  %v1012 = vld [vmem:[%s6 + $0x130] sm:$0xff]
  %v1013 = vld [vmem:[%s6 + $0x138] sm:$0xff]
  %v1014 = vld [vmem:[%s6 + $0x140] sm:$0xff]
  %v1015 = vld [vmem:[%s6 + $0x148] sm:$0xff]
  %v1016 = vld [vmem:[%s6 + $0x150] sm:$0xff]
  %v1017 = vld [vmem:[%s6 + $0x158] sm:$0xff]
  %v1018 = vld [vmem:[%s6 + $0x160] sm:$0xff]
  %v1019 = vld [vmem:[%s6 + $0x168] sm:$0xff]
  %v1020 = vld [vmem:[%s6 + $0x170] sm:$0xff]
  %v1021 = vld [vmem:[%s6 + $0x178] sm:$0xff]
  %v1022 = vld [vmem:[%s6 + $0x180] sm:$0xff]
  %v1023 = vld [vmem:[%s6 + $0x188] sm:$0xff]
  %v1024 = vld [vmem:[%s6 + $0x190] sm:$0xff]
  %v1025 = vld [vmem:[%s6 + $0x198] sm:$0xff]
  %v1026 = vld [vmem:[%s6 + $0x1a0] sm:$0xff]
  %v1027 = vld [vmem:[%s6 + $0x1a8] sm:$0xff]
  %v1028 = vld [vmem:[%s6 + $0x1b0] sm:$0xff]
  %v1029 = vld [vmem:[%s6 + $0x1b8] sm:$0xff]
  %v1031 = vsel %vm515, %v928, 0
  %1033 = vmatpush.msra.mxu0 %v989
  %1034 = vmatpush.msra.mxu0 %v988
  %1035 = vmatpush.msra.mxu0 %v987
  %1036 = vmatpush.msra.mxu0 %v986
  %1037 = vmatpush.msra.mxu0 %v985
  %1038 = vmatpush.msra.mxu0 %v984
  %1039 = vmatpush.msra.mxu0 %v983
  %1040 = vmatpush.msra.mxu0 %v982
  %1041 = vmatpush.msra.mxu0 %v981
  %1042 = vmatpush.msra.mxu0 %v980
  %1043 = vmatpush.msra.mxu0 %v979
  %1044 = vmatpush.msra.mxu0 %v978
  %1045 = vmatpush.msra.mxu0 %v977
  %1046 = vmatpush.msra.mxu0 %v976
  %1047 = vmatpush.msra.mxu0 %v975
  %1048 = vmatpush.msra.mxu0 %v974
  %1049 = vmatmul.f32.gmra.mxu0 %v925
  %v1050 = vpop.f32.mrf.mxu0
  %v1051 = vadd.f32 0.0, %v1050
  %1052 = vdwg.mxu0
  %1053 = vmatpush.msra.mxu0 %v1005
  %1054 = vmatpush.msra.mxu0 %v1004
  %1055 = vmatpush.msra.mxu0 %v1003
  %1056 = vmatpush.msra.mxu0 %v1002
  %1057 = vmatpush.msra.mxu0 %v1001
  %1058 = vmatpush.msra.mxu0 %v1000
  %1059 = vmatpush.msra.mxu0 %v999
  %1060 = vmatpush.msra.mxu0 %v998
  %1061 = vmatpush.msra.mxu0 %v997
  %1062 = vmatpush.msra.mxu0 %v996
  %1063 = vmatpush.msra.mxu0 %v995
  %1064 = vmatpush.msra.mxu0 %v994
  %1065 = vmatpush.msra.mxu0 %v993
  %1066 = vmatpush.msra.mxu0 %v992
  %1067 = vmatpush.msra.mxu0 %v991
  %1068 = vmatpush.msra.mxu0 %v990
  %1069 = vmatmul.f32.gmra.mxu0 %v926
  %v1070 = vpop.f32.mrf.mxu0
  %v1071 = vadd.f32 %v1051, %v1070
  %1072 = vdwg.mxu0
  %1073 = vmatpush.msra.mxu0 %v1021
  %1074 = vmatpush.msra.mxu0 %v1020
  %1075 = vmatpush.msra.mxu0 %v1019
  %1076 = vmatpush.msra.mxu0 %v1018
  %1077 = vmatpush.msra.mxu0 %v1017
  %1078 = vmatpush.msra.mxu0 %v1016
  %1079 = vmatpush.msra.mxu0 %v1015
  %1080 = vmatpush.msra.mxu0 %v1014
  %1081 = vmatpush.msra.mxu0 %v1013
  %1082 = vmatpush.msra.mxu0 %v1012
  %1083 = vmatpush.msra.mxu0 %v1011
  %1084 = vmatpush.msra.mxu0 %v1010
  %1085 = vmatpush.msra.mxu0 %v1009
  %1086 = vmatpush.msra.mxu0 %v1008
  %1087 = vmatpush.msra.mxu0 %v1007
  %1088 = vmatpush.msra.mxu0 %v1006
  %1089 = vmatmul.f32.gmra.mxu0 %v927
  %v1090 = vpop.f32.mrf.mxu0
  %v1091 = vadd.f32 %v1071, %v1090
  %1092 = vdwg.mxu0
  %1093 = vmatpush.msra.mxu0 0.0
  %1094 = vmatpush.msra.mxu0 0.0
  %1095 = vmatpush.msra.mxu0 0.0
  %1096 = vmatpush.msra.mxu0 0.0
  %1097 = vmatpush.msra.mxu0 0.0
  %1098 = vmatpush.msra.mxu0 0.0
  %1099 = vmatpush.msra.mxu0 0.0
  %1100 = vmatpush.msra.mxu0 0.0
  %1101 = vmatpush.msra.mxu0 %v1029
  %1102 = vmatpush.msra.mxu0 %v1028
  %1103 = vmatpush.msra.mxu0 %v1027
  %1104 = vmatpush.msra.mxu0 %v1026
  %1105 = vmatpush.msra.mxu0 %v1025
  %1106 = vmatpush.msra.mxu0 %v1024
  %1107 = vmatpush.msra.mxu0 %v1023
  %1108 = vmatpush.msra.mxu0 %v1022
  %1109 = vmatmul.f32.gmra.mxu0 %v1031
  %v1110 = vpop.f32.mrf.mxu0
  %v1111 = vadd.f32 %v1091, %v1110
  %1112 = vdwg.mxu0
  %v1114 = vsel %vm515, %v973, 0
  %1116 = vmatpush.msra.mxu0 %v989
  %1117 = vmatpush.msra.mxu0 %v988
  %1118 = vmatpush.msra.mxu0 %v987
  %1119 = vmatpush.msra.mxu0 %v986
  %1120 = vmatpush.msra.mxu0 %v985
  %1121 = vmatpush.msra.mxu0 %v984
  %1122 = vmatpush.msra.mxu0 %v983
  %1123 = vmatpush.msra.mxu0 %v982
  %1124 = vmatpush.msra.mxu0 %v981
  %1125 = vmatpush.msra.mxu0 %v980
  %1126 = vmatpush.msra.mxu0 %v979
  %1127 = vmatpush.msra.mxu0 %v978
  %1128 = vmatpush.msra.mxu0 %v977
  %1129 = vmatpush.msra.mxu0 %v976
  %1130 = vmatpush.msra.mxu0 %v975
  %1131 = vmatpush.msra.mxu0 %v974
  %1132 = vmatmul.f32.gmra.mxu0 %v970
  %v1133 = vpop.f32.mrf.mxu0
  %v1134 = vadd.f32 0.0, %v1133
  %1135 = vdwg.mxu0
  %1136 = vmatpush.msra.mxu0 %v1005
  %1137 = vmatpush.msra.mxu0 %v1004
  %1138 = vmatpush.msra.mxu0 %v1003
  %1139 = vmatpush.msra.mxu0 %v1002
  %1140 = vmatpush.msra.mxu0 %v1001
  %1141 = vmatpush.msra.mxu0 %v1000
  %1142 = vmatpush.msra.mxu0 %v999
  %1143 = vmatpush.msra.mxu0 %v998
  %1144 = vmatpush.msra.mxu0 %v997
  %1145 = vmatpush.msra.mxu0 %v996
  %1146 = vmatpush.msra.mxu0 %v995
  %1147 = vmatpush.msra.mxu0 %v994
  %1148 = vmatpush.msra.mxu0 %v993
  %1149 = vmatpush.msra.mxu0 %v992
  %1150 = vmatpush.msra.mxu0 %v991
  %1151 = vmatpush.msra.mxu0 %v990
  %1152 = vmatmul.f32.gmra.mxu0 %v971
  %v1153 = vpop.f32.mrf.mxu0
  %v1154 = vadd.f32 %v1134, %v1153
  %1155 = vdwg.mxu0
  %1156 = vmatpush.msra.mxu0 %v1021
  %1157 = vmatpush.msra.mxu0 %v1020
  %1158 = vmatpush.msra.mxu0 %v1019
  %1159 = vmatpush.msra.mxu0 %v1018
  %1160 = vmatpush.msra.mxu0 %v1017
  %1161 = vmatpush.msra.mxu0 %v1016
  %1162 = vmatpush.msra.mxu0 %v1015
  %1163 = vmatpush.msra.mxu0 %v1014
  %1164 = vmatpush.msra.mxu0 %v1013
  %1165 = vmatpush.msra.mxu0 %v1012
  %1166 = vmatpush.msra.mxu0 %v1011
  %1167 = vmatpush.msra.mxu0 %v1010
  %1168 = vmatpush.msra.mxu0 %v1009
  %1169 = vmatpush.msra.mxu0 %v1008
  %1170 = vmatpush.msra.mxu0 %v1007
  %1171 = vmatpush.msra.mxu0 %v1006
  %1172 = vmatmul.f32.gmra.mxu0 %v972
  %v1173 = vpop.f32.mrf.mxu0
  %v1174 = vadd.f32 %v1154, %v1173
  %1175 = vdwg.mxu0
  %1176 = vmatpush.msra.mxu0 0.0
  %1177 = vmatpush.msra.mxu0 0.0
  %1178 = vmatpush.msra.mxu0 0.0
  %1179 = vmatpush.msra.mxu0 0.0
  %1180 = vmatpush.msra.mxu0 0.0
  %1181 = vmatpush.msra.mxu0 0.0
  %1182 = vmatpush.msra.mxu0 0.0
  %1183 = vmatpush.msra.mxu0 0.0
  %1184 = vmatpush.msra.mxu0 %v1029
  %1185 = vmatpush.msra.mxu0 %v1028
  %1186 = vmatpush.msra.mxu0 %v1027
  %1187 = vmatpush.msra.mxu0 %v1026
  %1188 = vmatpush.msra.mxu0 %v1025
  %1189 = vmatpush.msra.mxu0 %v1024
  %1190 = vmatpush.msra.mxu0 %v1023
  %1191 = vmatpush.msra.mxu0 %v1022
  %1192 = vmatmul.f32.gmra.mxu0 %v1114
  %v1193 = vpop.f32.mrf.mxu0
  %v1194 = vadd.f32 %v1174, %v1193
  %1195 = vdwg.mxu0
  %v1196 = vmul.f32 %v1111, 0.0025510204
  %v1197 = vmul.f32 %v1194, 0.0025510204
  %v1198 = vmul.f32 %v1196, %v1196
  %v1199 = vsub.f32 %v1197, %v1198
  %v1200 = vld [vmem:[%s4] sm:$0x1]
  %v1201 = vadd.f32 %v1199, 1e-05
  %v1202 = vrsqrt.pop %v1201
  %v1203 = vmul.f32 %v1202, %v1201
  %v1204 = vmul.f32 %v1203, %v1202
  %v1205 = vmul.f32 0.5, %v1204
  %v1206 = vsub.f32 1.5, %v1205
  %v1207 = vmul.f32 %v1202, %v1206
  %vm1208 = vweird.f32 %v1201
  %vm1209 = vweird.f32 %v1202
  %vm1210 = vmor %vm1208, %vm1209
  %v1211 = vsel %vm1210, %v1202, %v1207
  %v1212 = vmul.f32 %v1200, %v1211
  %v1213 = vld [vmem:[%s5] sm:$0x1]
  %v1214 = vmul.f32 %v1196, %v1212
  %v1215 = vsub.f32 %v1213, %v1214
  %v1216 = vld [vmem:[%s7] sm:$0xff]
  %v1217 = vld [vmem:[%s7 + $0x8] sm:$0xff]
  %v1218 = vld [vmem:[%s7 + $0x10] sm:$0xff]
  %v1219 = vld [vmem:[%s7 + $0x18] sm:$0xff]
  %v1220 = vld [vmem:[%s7 + $0x20] sm:$0xff]
  %v1221 = vld [vmem:[%s7 + $0x28] sm:$0xff]
  %v1222 = vld [vmem:[%s7 + $0x30] sm:$0xff]
  %v1223 = vld [vmem:[%s7 + $0x38] sm:$0xff]
  %v1224 = vld [vmem:[%s7 + $0x40] sm:$0xff]
  %v1225 = vld [vmem:[%s7 + $0x48] sm:$0xff]
  %v1226 = vld [vmem:[%s7 + $0x50] sm:$0xff]
  %v1227 = vld [vmem:[%s7 + $0x58] sm:$0xff]
  %v1228 = vld [vmem:[%s7 + $0x60] sm:$0xff]
  %v1229 = vld [vmem:[%s7 + $0x68] sm:$0xff]
  %v1230 = vld [vmem:[%s7 + $0x70] sm:$0xff]
  %v1231 = vld [vmem:[%s7 + $0x78] sm:$0xff]
  %vm1232 = vcmask 261120
  %v1234 = vsel %vm1232, %v1212, 0
  %1236 = vmatpush.msra.mxu0 0.0
  %1237 = vmatpush.msra.mxu0 0.0
  %1238 = vmatpush.msra.mxu0 0.0
  %1239 = vmatpush.msra.mxu0 0.0
  %1240 = vmatpush.msra.mxu0 0.0
  %1241 = vmatpush.msra.mxu0 0.0
  %1242 = vmatpush.msra.mxu0 0.0
  %1243 = vmatpush.msra.mxu0 0.0
  %1244 = vmatpush.msra.mxu0 0.0
  %1245 = vmatpush.msra.mxu0 0.0
  %1246 = vmatpush.msra.mxu0 0.0
  %1247 = vmatpush.msra.mxu0 0.0
  %1248 = vmatpush.msra.mxu0 %v1228
  %1249 = vmatpush.msra.mxu0 %v1224
  %1250 = vmatpush.msra.mxu0 %v1220
  %1251 = vmatpush.msra.mxu0 %v1216
  %1252 = vmatmul.f32.gmra.mxu0 %v1234
  %v1253 = vpop.f32.mrf.mxu0
  %v1254 = vadd.f32 0.0, %v1253
  %1255 = vdwg.mxu0
  %1256 = vmatpush.msra.mxu0 0.0
  %1257 = vmatpush.msra.mxu0 0.0
  %1258 = vmatpush.msra.mxu0 0.0
  %1259 = vmatpush.msra.mxu0 0.0
  %1260 = vmatpush.msra.mxu0 0.0
  %1261 = vmatpush.msra.mxu0 0.0
  %1262 = vmatpush.msra.mxu0 0.0
  %1263 = vmatpush.msra.mxu0 0.0
  %1264 = vmatpush.msra.mxu0 0.0
  %1265 = vmatpush.msra.mxu0 0.0
  %1266 = vmatpush.msra.mxu0 0.0
  %1267 = vmatpush.msra.mxu0 0.0
  %1268 = vmatpush.msra.mxu0 %v1229
  %1269 = vmatpush.msra.mxu0 %v1225
  %1270 = vmatpush.msra.mxu0 %v1221
  %1271 = vmatpush.msra.mxu0 %v1217
  %1272 = vmatmul.f32.gmra.mxu0 %v1234
  %v1273 = vpop.f32.mrf.mxu0
  %v1274 = vadd.f32 0.0, %v1273
  %1275 = vdwg.mxu0
  %1276 = vmatpush.msra.mxu0 0.0
  %1277 = vmatpush.msra.mxu0 0.0
  %1278 = vmatpush.msra.mxu0 0.0
  %1279 = vmatpush.msra.mxu0 0.0
  %1280 = vmatpush.msra.mxu0 0.0
  %1281 = vmatpush.msra.mxu0 0.0
  %1282 = vmatpush.msra.mxu0 0.0
  %1283 = vmatpush.msra.mxu0 0.0
  %1284 = vmatpush.msra.mxu0 0.0
  %1285 = vmatpush.msra.mxu0 0.0
  %1286 = vmatpush.msra.mxu0 0.0
  %1287 = vmatpush.msra.mxu0 0.0
  %1288 = vmatpush.msra.mxu0 %v1230
  %1289 = vmatpush.msra.mxu0 %v1226
  %1290 = vmatpush.msra.mxu0 %v1222
  %1291 = vmatpush.msra.mxu0 %v1218
  %1292 = vmatmul.f32.gmra.mxu0 %v1234
  %v1293 = vpop.f32.mrf.mxu0
  %v1294 = vadd.f32 0.0, %v1293
  %1295 = vdwg.mxu0
  %1296 = vmatpush.msra.mxu0 0.0
  %1297 = vmatpush.msra.mxu0 0.0
  %1298 = vmatpush.msra.mxu0 0.0
  %1299 = vmatpush.msra.mxu0 0.0
  %1300 = vmatpush.msra.mxu0 0.0
  %1301 = vmatpush.msra.mxu0 0.0
  %1302 = vmatpush.msra.mxu0 0.0
  %1303 = vmatpush.msra.mxu0 0.0
  %1304 = vmatpush.msra.mxu0 0.0
  %1305 = vmatpush.msra.mxu0 0.0
  %1306 = vmatpush.msra.mxu0 0.0
  %1307 = vmatpush.msra.mxu0 0.0
  %1308 = vmatpush.msra.mxu0 %v1231
  %1309 = vmatpush.msra.mxu0 %v1227
  %1310 = vmatpush.msra.mxu0 %v1223
  %1311 = vmatpush.msra.mxu0 %v1219
  %1312 = vmatmul.f32.gmra.mxu0 %v1234
  %v1313 = vpop.f32.mrf.mxu0
  %v1314 = vadd.f32 0.0, %v1313
  %1315 = vdwg.mxu0
  %v1317 = vsel %vm1232, %v1215, 0
  %1319 = vmatpush.msra.mxu0 0.0
  %1320 = vmatpush.msra.mxu0 0.0
  %1321 = vmatpush.msra.mxu0 0.0
  %1322 = vmatpush.msra.mxu0 0.0
  %1323 = vmatpush.msra.mxu0 0.0
  %1324 = vmatpush.msra.mxu0 0.0
  %1325 = vmatpush.msra.mxu0 0.0
  %1326 = vmatpush.msra.mxu0 0.0
  %1327 = vmatpush.msra.mxu0 0.0
  %1328 = vmatpush.msra.mxu0 0.0
  %1329 = vmatpush.msra.mxu0 0.0
  %1330 = vmatpush.msra.mxu0 0.0
  %1331 = vmatpush.msra.mxu0 %v1228
  %1332 = vmatpush.msra.mxu0 %v1224
  %1333 = vmatpush.msra.mxu0 %v1220
  %1334 = vmatpush.msra.mxu0 %v1216
  %1335 = vmatmul.f32.gmra.mxu0 %v1317
  %v1336 = vpop.f32.mrf.mxu0
  %v1337 = vadd.f32 0.0, %v1336
  %1338 = vdwg.mxu0
  %1339 = vmatpush.msra.mxu0 0.0
  %1340 = vmatpush.msra.mxu0 0.0
  %1341 = vmatpush.msra.mxu0 0.0
  %1342 = vmatpush.msra.mxu0 0.0
  %1343 = vmatpush.msra.mxu0 0.0
  %1344 = vmatpush.msra.mxu0 0.0
  %1345 = vmatpush.msra.mxu0 0.0
  %1346 = vmatpush.msra.mxu0 0.0
  %1347 = vmatpush.msra.mxu0 0.0
  %1348 = vmatpush.msra.mxu0 0.0
  %1349 = vmatpush.msra.mxu0 0.0
  %1350 = vmatpush.msra.mxu0 0.0
  %1351 = vmatpush.msra.mxu0 %v1229
  %1352 = vmatpush.msra.mxu0 %v1225
  %1353 = vmatpush.msra.mxu0 %v1221
  %1354 = vmatpush.msra.mxu0 %v1217
  %1355 = vmatmul.f32.gmra.mxu0 %v1317
  %v1356 = vpop.f32.mrf.mxu0
  %v1357 = vadd.f32 0.0, %v1356
  %1358 = vdwg.mxu0
  %1359 = vmatpush.msra.mxu0 0.0
  %1360 = vmatpush.msra.mxu0 0.0
  %1361 = vmatpush.msra.mxu0 0.0
  %1362 = vmatpush.msra.mxu0 0.0
  %1363 = vmatpush.msra.mxu0 0.0
  %1364 = vmatpush.msra.mxu0 0.0
  %1365 = vmatpush.msra.mxu0 0.0
  %1366 = vmatpush.msra.mxu0 0.0
  %1367 = vmatpush.msra.mxu0 0.0
  %1368 = vmatpush.msra.mxu0 0.0
  %1369 = vmatpush.msra.mxu0 0.0
  %1370 = vmatpush.msra.mxu0 0.0
  %1371 = vmatpush.msra.mxu0 %v1230
  %1372 = vmatpush.msra.mxu0 %v1226
  %1373 = vmatpush.msra.mxu0 %v1222
  %1374 = vmatpush.msra.mxu0 %v1218
  %1375 = vmatmul.f32.gmra.mxu0 %v1317
  %v1376 = vpop.f32.mrf.mxu0
  %v1377 = vadd.f32 0.0, %v1376
  %1378 = vdwg.mxu0
  %1379 = vmatpush.msra.mxu0 0.0
  %1380 = vmatpush.msra.mxu0 0.0
  %1381 = vmatpush.msra.mxu0 0.0
  %1382 = vmatpush.msra.mxu0 0.0
  %1383 = vmatpush.msra.mxu0 0.0
  %1384 = vmatpush.msra.mxu0 0.0
  %1385 = vmatpush.msra.mxu0 0.0
  %1386 = vmatpush.msra.mxu0 0.0
  %1387 = vmatpush.msra.mxu0 0.0
  %1388 = vmatpush.msra.mxu0 0.0
  %1389 = vmatpush.msra.mxu0 0.0
  %1390 = vmatpush.msra.mxu0 0.0
  %1391 = vmatpush.msra.mxu0 %v1231
  %1392 = vmatpush.msra.mxu0 %v1227
  %1393 = vmatpush.msra.mxu0 %v1223
  %1394 = vmatpush.msra.mxu0 %v1219
  %1395 = vmatmul.f32.gmra.mxu0 %v1317
  %v1396 = vpop.f32.mrf.mxu0
  %v1397 = vadd.f32 0.0, %v1396
  %1398 = vdwg.mxu0
  %v1399 = vperm.slane %v1254, 0
  %v1400 = vperm.slane %v1274, 0
  %v1401 = vperm.slane %v1294, 0
  %v1402 = vperm.slane %v1314, 0
  %v1403 = vmul.f32 %v482, %v1399
  %v1404 = vmul.f32 %v483, %v1400
  %v1405 = vmul.f32 %v484, %v1401
  %v1406 = vmul.f32 %v485, %v1402
  %v1407 = vmul.f32 %v486, %v1399
  %v1408 = vmul.f32 %v487, %v1400
  %v1409 = vmul.f32 %v488, %v1401
  %v1410 = vmul.f32 %v489, %v1402
  %v1411 = vperm.slane %v1337, 0
  %v1412 = vperm.slane %v1357, 0
  %v1413 = vperm.slane %v1377, 0
  %v1414 = vperm.slane %v1397, 0
  %v1415 = vadd.f32 %v1403, %v1411
  %v1416 = vadd.f32 %v1404, %v1412
  %v1417 = vadd.f32 %v1405, %v1413
  %v1418 = vadd.f32 %v1406, %v1414
  %v1419 = vadd.f32 %v1407, %v1411
  %v1420 = vadd.f32 %v1408, %v1412
  %v1421 = vadd.f32 %v1409, %v1413
  %v1422 = vadd.f32 %v1410, %v1414
  %vm1423 = vcmp.ge.f32.partialorder %v1415, 0.0
  %vm1424 = vcmp.ge.f32.partialorder %v1416, 0.0
  %vm1425 = vcmp.ge.f32.partialorder %v1417, 0.0
  %vm1426 = vcmp.ge.f32.partialorder %v1418, 0.0
  %vm1427 = vcmp.ge.f32.partialorder %v1419, 0.0
  %vm1428 = vcmp.ge.f32.partialorder %v1420, 0.0
  %vm1429 = vcmp.ge.f32.partialorder %v1421, 0.0
  %vm1430 = vcmp.ge.f32.partialorder %v1422, 0.0
  %v1431 = vmul.f32 %v1415, 0.2
  %v1432 = vmul.f32 %v1416, 0.2
  %v1433 = vmul.f32 %v1417, 0.2
  %v1434 = vmul.f32 %v1418, 0.2
  %v1435 = vmul.f32 %v1419, 0.2
  %v1436 = vmul.f32 %v1420, 0.2
  %v1437 = vmul.f32 %v1421, 0.2
  %v1438 = vmul.f32 %v1422, 0.2
  %v1439 = vsel %vm1423, %v1415, %v1431
  %v1440 = vsel %vm1424, %v1416, %v1432
  %v1441 = vsel %vm1425, %v1417, %v1433
  %v1442 = vsel %vm1426, %v1418, %v1434
  %v1443 = vsel %vm1427, %v1419, %v1435
  %v1444 = vsel %vm1428, %v1420, %v1436
  %v1445 = vsel %vm1429, %v1421, %v1437
  %v1446 = vsel %vm1430, %v1422, %v1438
  %1447 = vst [vmem:[#allocation2] sm:$0xff] %v1439
  %1448 = vst [vmem:[#allocation2 + $0x8] sm:$0xff] %v1440
  %1449 = vst [vmem:[#allocation2 + $0x10] sm:$0xff] %v1441
  %1450 = vst.msk [vmem:[#allocation2 + $0x18] sm:$0xff] %vm515, %v1442
  %1451 = vst [vmem:[#allocation2 + $0x20] sm:$0x3f] %v1443
  %1452 = vst [vmem:[#allocation2 + $0x28] sm:$0x3f] %v1444
  %1453 = vst [vmem:[#allocation2 + $0x30] sm:$0x3f] %v1445
  %1454 = vst.msk [vmem:[#allocation2 + $0x38] sm:$0x3f] %vm517, %v1446
  %v1455 = vmul.f32 %v884, %v1399
  %v1456 = vmul.f32 %v885, %v1400
  %v1457 = vmul.f32 %v886, %v1401
  %v1458 = vmul.f32 %v887, %v1402
  %v1459 = vmul.f32 %v888, %v1399
  %v1460 = vmul.f32 %v889, %v1400
  %v1461 = vmul.f32 %v890, %v1401
  %v1462 = vmul.f32 %v891, %v1402
  %v1463 = vadd.f32 %v1455, %v1411
  %v1464 = vadd.f32 %v1456, %v1412
  %v1465 = vadd.f32 %v1457, %v1413
  %v1466 = vadd.f32 %v1458, %v1414
  %v1467 = vadd.f32 %v1459, %v1411
  %v1468 = vadd.f32 %v1460, %v1412
  %v1469 = vadd.f32 %v1461, %v1413
  %v1470 = vadd.f32 %v1462, %v1414
  %vm1471 = vcmp.ge.f32.partialorder %v1463, 0.0
  %vm1472 = vcmp.ge.f32.partialorder %v1464, 0.0
  %vm1473 = vcmp.ge.f32.partialorder %v1465, 0.0
  %vm1474 = vcmp.ge.f32.partialorder %v1466, 0.0
  %vm1475 = vcmp.ge.f32.partialorder %v1467, 0.0
  %vm1476 = vcmp.ge.f32.partialorder %v1468, 0.0
  %vm1477 = vcmp.ge.f32.partialorder %v1469, 0.0
  %vm1478 = vcmp.ge.f32.partialorder %v1470, 0.0
  %v1479 = vmul.f32 %v1463, 0.2
  %v1480 = vmul.f32 %v1464, 0.2
  %v1481 = vmul.f32 %v1465, 0.2
  %v1482 = vmul.f32 %v1466, 0.2
  %v1483 = vmul.f32 %v1467, 0.2
  %v1484 = vmul.f32 %v1468, 0.2
  %v1485 = vmul.f32 %v1469, 0.2
  %v1486 = vmul.f32 %v1470, 0.2
  %v1487 = vsel %vm1471, %v1463, %v1479
  %v1488 = vsel %vm1472, %v1464, %v1480
  %v1489 = vsel %vm1473, %v1465, %v1481
  %v1490 = vsel %vm1474, %v1466, %v1482
  %v1491 = vsel %vm1475, %v1467, %v1483
  %v1492 = vsel %vm1476, %v1468, %v1484
  %v1493 = vsel %vm1477, %v1469, %v1485
  %v1494 = vsel %vm1478, %v1470, %v1486
  %s1495 = scalar_lea.vmem [#allocation2], 64
  %1496 = vst [vmem:[%s1495] sm:$0xff] %v1487
  %1497 = vst [vmem:[%s1495 + $0x8] sm:$0xff] %v1488
  %1498 = vst [vmem:[%s1495 + $0x10] sm:$0xff] %v1489
  %1499 = vst.msk [vmem:[%s1495 + $0x18] sm:$0xff] %vm515, %v1490
  %1500 = vst [vmem:[%s1495 + $0x20] sm:$0x3f] %v1491
  %1501 = vst [vmem:[%s1495 + $0x28] sm:$0x3f] %v1492
  %1502 = vst [vmem:[%s1495 + $0x30] sm:$0x3f] %v1493
  %1503 = vst.msk [vmem:[%s1495 + $0x38] sm:$0x3f] %vm517, %v1494
  %v1504 = vld [vmem:[#allocation2] sm:$0xff]
  %v1505 = vld [vmem:[#allocation2 + $0x8] sm:$0xff]
  %v1506 = vld [vmem:[#allocation2 + $0x10] sm:$0xff]
  %v1507 = vld [vmem:[#allocation2 + $0x18] sm:$0xff]
  %v1508 = vld [vmem:[#allocation2 + $0x20] sm:$0xf]
  %v1509 = vld [vmem:[#allocation2 + $0x28] sm:$0xf]
  %v1510 = vld [vmem:[#allocation2 + $0x30] sm:$0xf]
  %v1511 = vld [vmem:[#allocation2 + $0x38] sm:$0xf]
  %v1512 = vld [vmem:[%s8] sm:$0xff]
  %v1513 = vld [vmem:[%s8 + $0x8] sm:$0xff]
  %v1514 = vld [vmem:[%s8 + $0x10] sm:$0xff]
  %v1515 = vld [vmem:[%s8 + $0x18] sm:$0xff]
  %v1516 = vld [vmem:[%s8 + $0x20] sm:$0xff]
  %v1517 = vld [vmem:[%s8 + $0x28] sm:$0xff]
  %v1518 = vld [vmem:[%s8 + $0x30] sm:$0xff]
  %v1519 = vld [vmem:[%s8 + $0x38] sm:$0xff]
  %v1520 = vld [vmem:[%s8 + $0x40] sm:$0xff]
  %v1521 = vld [vmem:[%s8 + $0x48] sm:$0xff]
  %v1522 = vld [vmem:[%s8 + $0x50] sm:$0xff]
  %v1523 = vld [vmem:[%s8 + $0x58] sm:$0xff]
  %v1524 = vld [vmem:[%s8 + $0x60] sm:$0xff]
  %v1525 = vld [vmem:[%s8 + $0x68] sm:$0xff]
  %v1526 = vld [vmem:[%s8 + $0x70] sm:$0xff]
  %v1527 = vld [vmem:[%s8 + $0x78] sm:$0xff]
  %v1528 = vld [vmem:[%s8 + $0x80] sm:$0xff]
  %v1529 = vld [vmem:[%s8 + $0x88] sm:$0xff]
  %v1530 = vld [vmem:[%s8 + $0x90] sm:$0xff]
  %v1531 = vld [vmem:[%s8 + $0x98] sm:$0xff]
  %v1532 = vld [vmem:[%s8 + $0xa0] sm:$0xff]
  %v1533 = vld [vmem:[%s8 + $0xa8] sm:$0xff]
  %v1534 = vld [vmem:[%s8 + $0xb0] sm:$0xff]
  %v1535 = vld [vmem:[%s8 + $0xb8] sm:$0xff]
  %v1536 = vld [vmem:[%s8 + $0xc0] sm:$0xff]
  %v1537 = vld [vmem:[%s8 + $0xc8] sm:$0xff]
  %v1538 = vld [vmem:[%s8 + $0xd0] sm:$0xff]
  %v1539 = vld [vmem:[%s8 + $0xd8] sm:$0xff]
  %v1540 = vld [vmem:[%s8 + $0xe0] sm:$0xff]
  %v1541 = vld [vmem:[%s8 + $0xe8] sm:$0xff]
  %v1542 = vld [vmem:[%s8 + $0xf0] sm:$0xff]
  %v1543 = vld [vmem:[%s8 + $0xf8] sm:$0xff]
  %v1544 = vld [vmem:[%s8 + $0x100] sm:$0xff]
  %v1545 = vld [vmem:[%s8 + $0x108] sm:$0xff]
  %v1546 = vld [vmem:[%s8 + $0x110] sm:$0xff]
  %v1547 = vld [vmem:[%s8 + $0x118] sm:$0xff]
  %v1548 = vld [vmem:[%s8 + $0x120] sm:$0xff]
  %v1549 = vld [vmem:[%s8 + $0x128] sm:$0xff]
  %v1550 = vld [vmem:[%s8 + $0x130] sm:$0xff]
  %v1551 = vld [vmem:[%s8 + $0x138] sm:$0xff]
  %v1552 = vld [vmem:[%s8 + $0x140] sm:$0xff]
  %v1553 = vld [vmem:[%s8 + $0x148] sm:$0xff]
  %v1554 = vld [vmem:[%s8 + $0x150] sm:$0xff]
  %v1555 = vld [vmem:[%s8 + $0x158] sm:$0xff]
  %v1556 = vld [vmem:[%s8 + $0x160] sm:$0xff]
  %v1557 = vld [vmem:[%s8 + $0x168] sm:$0xff]
  %v1558 = vld [vmem:[%s8 + $0x170] sm:$0xff]
  %v1559 = vld [vmem:[%s8 + $0x178] sm:$0xff]
  %v1560 = vld [vmem:[%s8 + $0x180] sm:$0xff]
  %v1561 = vld [vmem:[%s8 + $0x188] sm:$0xff]
  %v1562 = vld [vmem:[%s8 + $0x190] sm:$0xff]
  %v1563 = vld [vmem:[%s8 + $0x198] sm:$0xff]
  %v1564 = vld [vmem:[%s8 + $0x1a0] sm:$0xff]
  %v1565 = vld [vmem:[%s8 + $0x1a8] sm:$0xff]
  %v1566 = vld [vmem:[%s8 + $0x1b0] sm:$0xff]
  %v1567 = vld [vmem:[%s8 + $0x1b8] sm:$0xff]
  %v1568 = vld [vmem:[%s8 + $0x1c0] sm:$0xff]
  %v1569 = vld [vmem:[%s8 + $0x1c8] sm:$0xff]
  %v1570 = vld [vmem:[%s8 + $0x1d0] sm:$0xff]
  %v1571 = vld [vmem:[%s8 + $0x1d8] sm:$0xff]
  %v1572 = vld [vmem:[%s8 + $0x1e0] sm:$0xff]
  %v1573 = vld [vmem:[%s8 + $0x1e8] sm:$0xff]
  %v1574 = vld [vmem:[%s8 + $0x1f0] sm:$0xff]
  %v1575 = vld [vmem:[%s8 + $0x1f8] sm:$0xff]
  %v1576 = vld [vmem:[%s8 + $0x200] sm:$0xff]
  %v1577 = vld [vmem:[%s8 + $0x208] sm:$0xff]
  %v1578 = vld [vmem:[%s8 + $0x210] sm:$0xff]
  %v1579 = vld [vmem:[%s8 + $0x218] sm:$0xff]
  %v1580 = vld [vmem:[%s8 + $0x220] sm:$0xff]
  %v1581 = vld [vmem:[%s8 + $0x228] sm:$0xff]
  %v1582 = vld [vmem:[%s8 + $0x230] sm:$0xff]
  %v1583 = vld [vmem:[%s8 + $0x238] sm:$0xff]
  %v1584 = vld [vmem:[%s8 + $0x240] sm:$0xff]
  %v1585 = vld [vmem:[%s8 + $0x248] sm:$0xff]
  %v1586 = vld [vmem:[%s8 + $0x250] sm:$0xff]
  %v1587 = vld [vmem:[%s8 + $0x258] sm:$0xff]
  %v1588 = vld [vmem:[%s8 + $0x260] sm:$0xff]
  %v1589 = vld [vmem:[%s8 + $0x268] sm:$0xff]
  %v1590 = vld [vmem:[%s8 + $0x270] sm:$0xff]
  %v1591 = vld [vmem:[%s8 + $0x278] sm:$0xff]
  %v1592 = vld [vmem:[%s8 + $0x280] sm:$0xff]
  %v1593 = vld [vmem:[%s8 + $0x288] sm:$0xff]
  %v1594 = vld [vmem:[%s8 + $0x290] sm:$0xff]
  %v1595 = vld [vmem:[%s8 + $0x298] sm:$0xff]
  %v1596 = vld [vmem:[%s8 + $0x2a0] sm:$0xff]
  %v1597 = vld [vmem:[%s8 + $0x2a8] sm:$0xff]
  %v1598 = vld [vmem:[%s8 + $0x2b0] sm:$0xff]
  %v1599 = vld [vmem:[%s8 + $0x2b8] sm:$0xff]
  %v1600 = vld [vmem:[%s8 + $0x2c0] sm:$0xff]
  %v1601 = vld [vmem:[%s8 + $0x2c8] sm:$0xff]
  %v1602 = vld [vmem:[%s8 + $0x2d0] sm:$0xff]
  %v1603 = vld [vmem:[%s8 + $0x2d8] sm:$0xff]
  %v1604 = vld [vmem:[%s8 + $0x2e0] sm:$0xff]
  %v1605 = vld [vmem:[%s8 + $0x2e8] sm:$0xff]
  %v1606 = vld [vmem:[%s8 + $0x2f0] sm:$0xff]
  %v1607 = vld [vmem:[%s8 + $0x2f8] sm:$0xff]
  %v1608 = vld [vmem:[%s8 + $0x300] sm:$0xff]
  %v1609 = vld [vmem:[%s8 + $0x308] sm:$0xff]
  %v1610 = vld [vmem:[%s8 + $0x310] sm:$0xff]
  %v1611 = vld [vmem:[%s8 + $0x318] sm:$0xff]
  %v1612 = vld [vmem:[%s8 + $0x320] sm:$0xff]
  %v1613 = vld [vmem:[%s8 + $0x328] sm:$0xff]
  %v1614 = vld [vmem:[%s8 + $0x330] sm:$0xff]
  %v1615 = vld [vmem:[%s8 + $0x338] sm:$0xff]
  %v1616 = vld [vmem:[%s8 + $0x340] sm:$0xff]
  %v1617 = vld [vmem:[%s8 + $0x348] sm:$0xff]
  %v1618 = vld [vmem:[%s8 + $0x350] sm:$0xff]
  %v1619 = vld [vmem:[%s8 + $0x358] sm:$0xff]
  %v1620 = vld [vmem:[%s8 + $0x360] sm:$0xff]
  %v1621 = vld [vmem:[%s8 + $0x368] sm:$0xff]
  %v1622 = vld [vmem:[%s8 + $0x370] sm:$0xff]
  %v1623 = vld [vmem:[%s8 + $0x378] sm:$0xff]
  %v1624 = vld [vmem:[#allocation2] sm:$0xfe]
  %v1625 = vld [vmem:[#allocation2 + $0x8] sm:$0xfe]
  %v1626 = vld [vmem:[#allocation2 + $0x10] sm:$0xfe]
  %v1627 = vld [vmem:[#allocation2 + $0x18] sm:$0xfe]
  %v1628 = vld [vmem:[#allocation2 + $0x20] sm:$0x1f]
  %v1629 = vld [vmem:[#allocation2 + $0x28] sm:$0x1f]
  %v1630 = vld [vmem:[#allocation2 + $0x30] sm:$0x1f]
  %v1631 = vld [vmem:[#allocation2 + $0x38] sm:$0x1f]
  %s1632 = scalar_lea.vmem %s8, 896
  %v1633 = vld [vmem:[%s1632] sm:$0xff]
  %v1634 = vld [vmem:[%s1632 + $0x8] sm:$0xff]
  %v1635 = vld [vmem:[%s1632 + $0x10] sm:$0xff]
  %v1636 = vld [vmem:[%s1632 + $0x18] sm:$0xff]
  %v1637 = vld [vmem:[%s1632 + $0x20] sm:$0xff]
  %v1638 = vld [vmem:[%s1632 + $0x28] sm:$0xff]
  %v1639 = vld [vmem:[%s1632 + $0x30] sm:$0xff]
  %v1640 = vld [vmem:[%s1632 + $0x38] sm:$0xff]
  %v1641 = vld [vmem:[%s1632 + $0x40] sm:$0xff]
  %v1642 = vld [vmem:[%s1632 + $0x48] sm:$0xff]
  %v1643 = vld [vmem:[%s1632 + $0x50] sm:$0xff]
  %v1644 = vld [vmem:[%s1632 + $0x58] sm:$0xff]
  %v1645 = vld [vmem:[%s1632 + $0x60] sm:$0xff]
  %v1646 = vld [vmem:[%s1632 + $0x68] sm:$0xff]
  %v1647 = vld [vmem:[%s1632 + $0x70] sm:$0xff]
  %v1648 = vld [vmem:[%s1632 + $0x78] sm:$0xff]
  %v1649 = vld [vmem:[%s1632 + $0x80] sm:$0xff]
  %v1650 = vld [vmem:[%s1632 + $0x88] sm:$0xff]
  %v1651 = vld [vmem:[%s1632 + $0x90] sm:$0xff]
  %v1652 = vld [vmem:[%s1632 + $0x98] sm:$0xff]
  %v1653 = vld [vmem:[%s1632 + $0xa0] sm:$0xff]
  %v1654 = vld [vmem:[%s1632 + $0xa8] sm:$0xff]
  %v1655 = vld [vmem:[%s1632 + $0xb0] sm:$0xff]
  %v1656 = vld [vmem:[%s1632 + $0xb8] sm:$0xff]
  %v1657 = vld [vmem:[%s1632 + $0xc0] sm:$0xff]
  %v1658 = vld [vmem:[%s1632 + $0xc8] sm:$0xff]
  %v1659 = vld [vmem:[%s1632 + $0xd0] sm:$0xff]
  %v1660 = vld [vmem:[%s1632 + $0xd8] sm:$0xff]
  %v1661 = vld [vmem:[%s1632 + $0xe0] sm:$0xff]
  %v1662 = vld [vmem:[%s1632 + $0xe8] sm:$0xff]
  %v1663 = vld [vmem:[%s1632 + $0xf0] sm:$0xff]
  %v1664 = vld [vmem:[%s1632 + $0xf8] sm:$0xff]
  %v1665 = vld [vmem:[%s1632 + $0x100] sm:$0xff]
  %v1666 = vld [vmem:[%s1632 + $0x108] sm:$0xff]
  %v1667 = vld [vmem:[%s1632 + $0x110] sm:$0xff]
  %v1668 = vld [vmem:[%s1632 + $0x118] sm:$0xff]
  %v1669 = vld [vmem:[%s1632 + $0x120] sm:$0xff]
  %v1670 = vld [vmem:[%s1632 + $0x128] sm:$0xff]
  %v1671 = vld [vmem:[%s1632 + $0x130] sm:$0xff]
  %v1672 = vld [vmem:[%s1632 + $0x138] sm:$0xff]
  %v1673 = vld [vmem:[%s1632 + $0x140] sm:$0xff]
  %v1674 = vld [vmem:[%s1632 + $0x148] sm:$0xff]
  %v1675 = vld [vmem:[%s1632 + $0x150] sm:$0xff]
  %v1676 = vld [vmem:[%s1632 + $0x158] sm:$0xff]
  %v1677 = vld [vmem:[%s1632 + $0x160] sm:$0xff]
  %v1678 = vld [vmem:[%s1632 + $0x168] sm:$0xff]
  %v1679 = vld [vmem:[%s1632 + $0x170] sm:$0xff]
  %v1680 = vld [vmem:[%s1632 + $0x178] sm:$0xff]
  %v1681 = vld [vmem:[%s1632 + $0x180] sm:$0xff]
  %v1682 = vld [vmem:[%s1632 + $0x188] sm:$0xff]
  %v1683 = vld [vmem:[%s1632 + $0x190] sm:$0xff]
  %v1684 = vld [vmem:[%s1632 + $0x198] sm:$0xff]
  %v1685 = vld [vmem:[%s1632 + $0x1a0] sm:$0xff]
  %v1686 = vld [vmem:[%s1632 + $0x1a8] sm:$0xff]
  %v1687 = vld [vmem:[%s1632 + $0x1b0] sm:$0xff]
  %v1688 = vld [vmem:[%s1632 + $0x1b8] sm:$0xff]
  %v1689 = vld [vmem:[%s1632 + $0x1c0] sm:$0xff]
  %v1690 = vld [vmem:[%s1632 + $0x1c8] sm:$0xff]
  %v1691 = vld [vmem:[%s1632 + $0x1d0] sm:$0xff]
  %v1692 = vld [vmem:[%s1632 + $0x1d8] sm:$0xff]
  %v1693 = vld [vmem:[%s1632 + $0x1e0] sm:$0xff]
  %v1694 = vld [vmem:[%s1632 + $0x1e8] sm:$0xff]
  %v1695 = vld [vmem:[%s1632 + $0x1f0] sm:$0xff]
  %v1696 = vld [vmem:[%s1632 + $0x1f8] sm:$0xff]
  %v1697 = vld [vmem:[%s1632 + $0x200] sm:$0xff]
  %v1698 = vld [vmem:[%s1632 + $0x208] sm:$0xff]
  %v1699 = vld [vmem:[%s1632 + $0x210] sm:$0xff]
  %v1700 = vld [vmem:[%s1632 + $0x218] sm:$0xff]
  %v1701 = vld [vmem:[%s1632 + $0x220] sm:$0xff]
  %v1702 = vld [vmem:[%s1632 + $0x228] sm:$0xff]
  %v1703 = vld [vmem:[%s1632 + $0x230] sm:$0xff]
  %v1704 = vld [vmem:[%s1632 + $0x238] sm:$0xff]
  %v1705 = vld [vmem:[%s1632 + $0x240] sm:$0xff]
  %v1706 = vld [vmem:[%s1632 + $0x248] sm:$0xff]
  %v1707 = vld [vmem:[%s1632 + $0x250] sm:$0xff]
  %v1708 = vld [vmem:[%s1632 + $0x258] sm:$0xff]
  %v1709 = vld [vmem:[%s1632 + $0x260] sm:$0xff]
  %v1710 = vld [vmem:[%s1632 + $0x268] sm:$0xff]
  %v1711 = vld [vmem:[%s1632 + $0x270] sm:$0xff]
  %v1712 = vld [vmem:[%s1632 + $0x278] sm:$0xff]
  %v1713 = vld [vmem:[%s1632 + $0x280] sm:$0xff]
  %v1714 = vld [vmem:[%s1632 + $0x288] sm:$0xff]
  %v1715 = vld [vmem:[%s1632 + $0x290] sm:$0xff]
  %v1716 = vld [vmem:[%s1632 + $0x298] sm:$0xff]
  %v1717 = vld [vmem:[%s1632 + $0x2a0] sm:$0xff]
  %v1718 = vld [vmem:[%s1632 + $0x2a8] sm:$0xff]
  %v1719 = vld [vmem:[%s1632 + $0x2b0] sm:$0xff]
  %v1720 = vld [vmem:[%s1632 + $0x2b8] sm:$0xff]
  %v1721 = vld [vmem:[%s1632 + $0x2c0] sm:$0xff]
  %v1722 = vld [vmem:[%s1632 + $0x2c8] sm:$0xff]
  %v1723 = vld [vmem:[%s1632 + $0x2d0] sm:$0xff]
  %v1724 = vld [vmem:[%s1632 + $0x2d8] sm:$0xff]
  %v1725 = vld [vmem:[%s1632 + $0x2e0] sm:$0xff]
  %v1726 = vld [vmem:[%s1632 + $0x2e8] sm:$0xff]
  %v1727 = vld [vmem:[%s1632 + $0x2f0] sm:$0xff]
  %v1728 = vld [vmem:[%s1632 + $0x2f8] sm:$0xff]
  %v1729 = vld [vmem:[%s1632 + $0x300] sm:$0xff]
  %v1730 = vld [vmem:[%s1632 + $0x308] sm:$0xff]
  %v1731 = vld [vmem:[%s1632 + $0x310] sm:$0xff]
  %v1732 = vld [vmem:[%s1632 + $0x318] sm:$0xff]
  %v1733 = vld [vmem:[%s1632 + $0x320] sm:$0xff]
  %v1734 = vld [vmem:[%s1632 + $0x328] sm:$0xff]
  %v1735 = vld [vmem:[%s1632 + $0x330] sm:$0xff]
  %v1736 = vld [vmem:[%s1632 + $0x338] sm:$0xff]
  %v1737 = vld [vmem:[%s1632 + $0x340] sm:$0xff]
  %v1738 = vld [vmem:[%s1632 + $0x348] sm:$0xff]
  %v1739 = vld [vmem:[%s1632 + $0x350] sm:$0xff]
  %v1740 = vld [vmem:[%s1632 + $0x358] sm:$0xff]
  %v1741 = vld [vmem:[%s1632 + $0x360] sm:$0xff]
  %v1742 = vld [vmem:[%s1632 + $0x368] sm:$0xff]
  %v1743 = vld [vmem:[%s1632 + $0x370] sm:$0xff]
  %v1744 = vld [vmem:[%s1632 + $0x378] sm:$0xff]
  %vm1753 = vcmask 1046528
  %v1754 = vrot.slane %v1624, 1
  %v1755 = vrot.slane %v1628, 1
  %v1756 = vsel %vm1753, %v1754, %v1755
  %v1757 = vrot.slane %v1625, 1
  %v1758 = vrot.slane %v1629, 1
  %v1759 = vsel %vm1753, %v1757, %v1758
  %v1760 = vrot.slane %v1626, 1
  %v1761 = vrot.slane %v1630, 1
  %v1762 = vsel %vm1753, %v1760, %v1761
  %v1763 = vrot.slane %v1627, 1
  %v1764 = vrot.slane %v1631, 1
  %v1765 = vsel %vm1753, %v1763, %v1764
  %v1772 = vsel %vm515, %v1765, 0
  %v1774 = vsel %vm515, %v1764, 0
  %1776 = vmatpush.msra.mxu0 %v1663
  %1777 = vmatpush.msra.mxu0 %v1661
  %1778 = vmatpush.msra.mxu0 %v1659
  %1779 = vmatpush.msra.mxu0 %v1657
  %1780 = vmatpush.msra.mxu0 %v1655
  %1781 = vmatpush.msra.mxu0 %v1653
  %1782 = vmatpush.msra.mxu0 %v1651
  %1783 = vmatpush.msra.mxu0 %v1649
  %1784 = vmatpush.msra.mxu0 %v1647
  %1785 = vmatpush.msra.mxu0 %v1645
  %1786 = vmatpush.msra.mxu0 %v1643
  %1787 = vmatpush.msra.mxu0 %v1641
  %1788 = vmatpush.msra.mxu0 %v1639
  %1789 = vmatpush.msra.mxu0 %v1637
  %1790 = vmatpush.msra.mxu0 %v1635
  %1791 = vmatpush.msra.mxu0 %v1633
  %1792 = vmatmul.f32.gmra.mxu0 %v1756
  %v1793 = vpop.f32.mrf.mxu0
  %v1794 = vadd.f32 0.0, %v1793
  %1795 = vmatmul.f32.gmra.mxu0 %v1755
  %v1796 = vpop.f32.mrf.mxu0
  %v1797 = vadd.f32 0.0, %v1796
  %1798 = vdwg.mxu0
  %1799 = vmatpush.msra.mxu0 %v1695
  %1800 = vmatpush.msra.mxu0 %v1693
  %1801 = vmatpush.msra.mxu0 %v1691
  %1802 = vmatpush.msra.mxu0 %v1689
  %1803 = vmatpush.msra.mxu0 %v1687
  %1804 = vmatpush.msra.mxu0 %v1685
  %1805 = vmatpush.msra.mxu0 %v1683
  %1806 = vmatpush.msra.mxu0 %v1681
  %1807 = vmatpush.msra.mxu0 %v1679
  %1808 = vmatpush.msra.mxu0 %v1677
  %1809 = vmatpush.msra.mxu0 %v1675
  %1810 = vmatpush.msra.mxu0 %v1673
  %1811 = vmatpush.msra.mxu0 %v1671
  %1812 = vmatpush.msra.mxu0 %v1669
  %1813 = vmatpush.msra.mxu0 %v1667
  %1814 = vmatpush.msra.mxu0 %v1665
  %1815 = vmatmul.f32.gmra.mxu0 %v1759
  %v1816 = vpop.f32.mrf.mxu0
  %v1817 = vadd.f32 %v1794, %v1816
  %1818 = vmatmul.f32.gmra.mxu0 %v1758
  %v1819 = vpop.f32.mrf.mxu0
  %v1820 = vadd.f32 %v1797, %v1819
  %1821 = vdwg.mxu0
  %1822 = vmatpush.msra.mxu0 %v1727
  %1823 = vmatpush.msra.mxu0 %v1725
  %1824 = vmatpush.msra.mxu0 %v1723
  %1825 = vmatpush.msra.mxu0 %v1721
  %1826 = vmatpush.msra.mxu0 %v1719
  %1827 = vmatpush.msra.mxu0 %v1717
  %1828 = vmatpush.msra.mxu0 %v1715
  %1829 = vmatpush.msra.mxu0 %v1713
  %1830 = vmatpush.msra.mxu0 %v1711
  %1831 = vmatpush.msra.mxu0 %v1709
  %1832 = vmatpush.msra.mxu0 %v1707
  %1833 = vmatpush.msra.mxu0 %v1705
  %1834 = vmatpush.msra.mxu0 %v1703
  %1835 = vmatpush.msra.mxu0 %v1701
  %1836 = vmatpush.msra.mxu0 %v1699
  %1837 = vmatpush.msra.mxu0 %v1697
  %1838 = vmatmul.f32.gmra.mxu0 %v1762
  %v1839 = vpop.f32.mrf.mxu0
  %v1840 = vadd.f32 %v1817, %v1839
  %1841 = vmatmul.f32.gmra.mxu0 %v1761
  %v1842 = vpop.f32.mrf.mxu0
  %v1843 = vadd.f32 %v1820, %v1842
  %1844 = vdwg.mxu0
  %1845 = vmatpush.msra.mxu0 0.0
  %1846 = vmatpush.msra.mxu0 0.0
  %1847 = vmatpush.msra.mxu0 0.0
  %1848 = vmatpush.msra.mxu0 0.0
  %1849 = vmatpush.msra.mxu0 0.0
  %1850 = vmatpush.msra.mxu0 0.0
  %1851 = vmatpush.msra.mxu0 0.0
  %1852 = vmatpush.msra.mxu0 0.0
  %1853 = vmatpush.msra.mxu0 %v1743
  %1854 = vmatpush.msra.mxu0 %v1741
  %1855 = vmatpush.msra.mxu0 %v1739
  %1856 = vmatpush.msra.mxu0 %v1737
  %1857 = vmatpush.msra.mxu0 %v1735
  %1858 = vmatpush.msra.mxu0 %v1733
  %1859 = vmatpush.msra.mxu0 %v1731
  %1860 = vmatpush.msra.mxu0 %v1729
  %1861 = vmatmul.f32.gmra.mxu0 %v1772
  %v1862 = vpop.f32.mrf.mxu0
  %v1863 = vadd.f32 %v1840, %v1862
  %1864 = vmatmul.f32.gmra.mxu0 %v1774
  %v1865 = vpop.f32.mrf.mxu0
  %v1866 = vadd.f32 %v1843, %v1865
  %1867 = vdwg.mxu0
  %1868 = vmatpush.msra.mxu0 %v1664
  %1869 = vmatpush.msra.mxu0 %v1662
  %1870 = vmatpush.msra.mxu0 %v1660
  %1871 = vmatpush.msra.mxu0 %v1658
  %1872 = vmatpush.msra.mxu0 %v1656
  %1873 = vmatpush.msra.mxu0 %v1654
  %1874 = vmatpush.msra.mxu0 %v1652
  %1875 = vmatpush.msra.mxu0 %v1650
  %1876 = vmatpush.msra.mxu0 %v1648
  %1877 = vmatpush.msra.mxu0 %v1646
  %1878 = vmatpush.msra.mxu0 %v1644
  %1879 = vmatpush.msra.mxu0 %v1642
  %1880 = vmatpush.msra.mxu0 %v1640
  %1881 = vmatpush.msra.mxu0 %v1638
  %1882 = vmatpush.msra.mxu0 %v1636
  %1883 = vmatpush.msra.mxu0 %v1634
  %1884 = vmatmul.f32.gmra.mxu0 %v1756
  %v1885 = vpop.f32.mrf.mxu0
  %v1886 = vadd.f32 0.0, %v1885
  %1887 = vmatmul.f32.gmra.mxu0 %v1755
  %v1888 = vpop.f32.mrf.mxu0
  %v1889 = vadd.f32 0.0, %v1888
  %1890 = vdwg.mxu0
  %1891 = vmatpush.msra.mxu0 %v1696
  %1892 = vmatpush.msra.mxu0 %v1694
  %1893 = vmatpush.msra.mxu0 %v1692
  %1894 = vmatpush.msra.mxu0 %v1690
  %1895 = vmatpush.msra.mxu0 %v1688
  %1896 = vmatpush.msra.mxu0 %v1686
  %1897 = vmatpush.msra.mxu0 %v1684
  %1898 = vmatpush.msra.mxu0 %v1682
  %1899 = vmatpush.msra.mxu0 %v1680
  %1900 = vmatpush.msra.mxu0 %v1678
  %1901 = vmatpush.msra.mxu0 %v1676
  %1902 = vmatpush.msra.mxu0 %v1674
  %1903 = vmatpush.msra.mxu0 %v1672
  %1904 = vmatpush.msra.mxu0 %v1670
  %1905 = vmatpush.msra.mxu0 %v1668
  %1906 = vmatpush.msra.mxu0 %v1666
  %1907 = vmatmul.f32.gmra.mxu0 %v1759
  %v1908 = vpop.f32.mrf.mxu0
  %v1909 = vadd.f32 %v1886, %v1908
  %1910 = vmatmul.f32.gmra.mxu0 %v1758
  %v1911 = vpop.f32.mrf.mxu0
  %v1912 = vadd.f32 %v1889, %v1911
  %1913 = vdwg.mxu0
  %1914 = vmatpush.msra.mxu0 %v1728
  %1915 = vmatpush.msra.mxu0 %v1726
  %1916 = vmatpush.msra.mxu0 %v1724
  %1917 = vmatpush.msra.mxu0 %v1722
  %1918 = vmatpush.msra.mxu0 %v1720
  %1919 = vmatpush.msra.mxu0 %v1718
  %1920 = vmatpush.msra.mxu0 %v1716
  %1921 = vmatpush.msra.mxu0 %v1714
  %1922 = vmatpush.msra.mxu0 %v1712
  %1923 = vmatpush.msra.mxu0 %v1710
  %1924 = vmatpush.msra.mxu0 %v1708
  %1925 = vmatpush.msra.mxu0 %v1706
  %1926 = vmatpush.msra.mxu0 %v1704
  %1927 = vmatpush.msra.mxu0 %v1702
  %1928 = vmatpush.msra.mxu0 %v1700
  %1929 = vmatpush.msra.mxu0 %v1698
  %1930 = vmatmul.f32.gmra.mxu0 %v1762
  %v1931 = vpop.f32.mrf.mxu0
  %v1932 = vadd.f32 %v1909, %v1931
  %1933 = vmatmul.f32.gmra.mxu0 %v1761
  %v1934 = vpop.f32.mrf.mxu0
  %v1935 = vadd.f32 %v1912, %v1934
  %1936 = vdwg.mxu0
  %1937 = vmatpush.msra.mxu0 0.0
  %1938 = vmatpush.msra.mxu0 0.0
  %1939 = vmatpush.msra.mxu0 0.0
  %1940 = vmatpush.msra.mxu0 0.0
  %1941 = vmatpush.msra.mxu0 0.0
  %1942 = vmatpush.msra.mxu0 0.0
  %1943 = vmatpush.msra.mxu0 0.0
  %1944 = vmatpush.msra.mxu0 0.0
  %1945 = vmatpush.msra.mxu0 %v1744
  %1946 = vmatpush.msra.mxu0 %v1742
  %1947 = vmatpush.msra.mxu0 %v1740
  %1948 = vmatpush.msra.mxu0 %v1738
  %1949 = vmatpush.msra.mxu0 %v1736
  %1950 = vmatpush.msra.mxu0 %v1734
  %1951 = vmatpush.msra.mxu0 %v1732
  %1952 = vmatpush.msra.mxu0 %v1730
  %1953 = vmatmul.f32.gmra.mxu0 %v1772
  %v1954 = vpop.f32.mrf.mxu0
  %v1955 = vadd.f32 %v1932, %v1954
  %1956 = vmatmul.f32.gmra.mxu0 %v1774
  %v1957 = vpop.f32.mrf.mxu0
  %v1958 = vadd.f32 %v1935, %v1957
  %1959 = vdwg.mxu0
  %v1961 = vsel %vm515, %v1507, 0
  %v1964 = vsel %vm515, %v1511, 0
  %1966 = vmatpush.msra.mxu0 %v1542
  %1967 = vmatpush.msra.mxu0 %v1540
  %1968 = vmatpush.msra.mxu0 %v1538
  %1969 = vmatpush.msra.mxu0 %v1536
  %1970 = vmatpush.msra.mxu0 %v1534
  %1971 = vmatpush.msra.mxu0 %v1532
  %1972 = vmatpush.msra.mxu0 %v1530
  %1973 = vmatpush.msra.mxu0 %v1528
  %1974 = vmatpush.msra.mxu0 %v1526
  %1975 = vmatpush.msra.mxu0 %v1524
  %1976 = vmatpush.msra.mxu0 %v1522
  %1977 = vmatpush.msra.mxu0 %v1520
  %1978 = vmatpush.msra.mxu0 %v1518
  %1979 = vmatpush.msra.mxu0 %v1516
  %1980 = vmatpush.msra.mxu0 %v1514
  %1981 = vmatpush.msra.mxu0 %v1512
  %1982 = vmatmul.f32.gmra.mxu0 %v1504
  %v1983 = vpop.f32.mrf.mxu0
  %v1984 = vadd.f32 %v1863, %v1983
  %1985 = vmatmul.f32.gmra.mxu0 %v1508
  %v1986 = vpop.f32.mrf.mxu0
  %v1987 = vadd.f32 %v1866, %v1986
  %1988 = vdwg.mxu0
  %1989 = vmatpush.msra.mxu0 %v1574
  %1990 = vmatpush.msra.mxu0 %v1572
  %1991 = vmatpush.msra.mxu0 %v1570
  %1992 = vmatpush.msra.mxu0 %v1568
  %1993 = vmatpush.msra.mxu0 %v1566
  %1994 = vmatpush.msra.mxu0 %v1564
  %1995 = vmatpush.msra.mxu0 %v1562
  %1996 = vmatpush.msra.mxu0 %v1560
  %1997 = vmatpush.msra.mxu0 %v1558
  %1998 = vmatpush.msra.mxu0 %v1556
  %1999 = vmatpush.msra.mxu0 %v1554
  %2000 = vmatpush.msra.mxu0 %v1552
  %2001 = vmatpush.msra.mxu0 %v1550
  %2002 = vmatpush.msra.mxu0 %v1548
  %2003 = vmatpush.msra.mxu0 %v1546
  %2004 = vmatpush.msra.mxu0 %v1544
  %2005 = vmatmul.f32.gmra.mxu0 %v1505
  %v2006 = vpop.f32.mrf.mxu0
  %v2007 = vadd.f32 %v1984, %v2006
  %2008 = vmatmul.f32.gmra.mxu0 %v1509
  %v2009 = vpop.f32.mrf.mxu0
  %v2010 = vadd.f32 %v1987, %v2009
  %2011 = vdwg.mxu0
  %2012 = vmatpush.msra.mxu0 %v1606
  %2013 = vmatpush.msra.mxu0 %v1604
  %2014 = vmatpush.msra.mxu0 %v1602
  %2015 = vmatpush.msra.mxu0 %v1600
  %2016 = vmatpush.msra.mxu0 %v1598
  %2017 = vmatpush.msra.mxu0 %v1596
  %2018 = vmatpush.msra.mxu0 %v1594
  %2019 = vmatpush.msra.mxu0 %v1592
  %2020 = vmatpush.msra.mxu0 %v1590
  %2021 = vmatpush.msra.mxu0 %v1588
  %2022 = vmatpush.msra.mxu0 %v1586
  %2023 = vmatpush.msra.mxu0 %v1584
  %2024 = vmatpush.msra.mxu0 %v1582
  %2025 = vmatpush.msra.mxu0 %v1580
  %2026 = vmatpush.msra.mxu0 %v1578
  %2027 = vmatpush.msra.mxu0 %v1576
  %2028 = vmatmul.f32.gmra.mxu0 %v1506
  %v2029 = vpop.f32.mrf.mxu0
  %v2030 = vadd.f32 %v2007, %v2029
  %2031 = vmatmul.f32.gmra.mxu0 %v1510
  %v2032 = vpop.f32.mrf.mxu0
  %v2033 = vadd.f32 %v2010, %v2032
  %2034 = vdwg.mxu0
  %2035 = vmatpush.msra.mxu0 0.0
  %2036 = vmatpush.msra.mxu0 0.0
  %2037 = vmatpush.msra.mxu0 0.0
  %2038 = vmatpush.msra.mxu0 0.0
  %2039 = vmatpush.msra.mxu0 0.0
  %2040 = vmatpush.msra.mxu0 0.0
  %2041 = vmatpush.msra.mxu0 0.0
  %2042 = vmatpush.msra.mxu0 0.0
  %2043 = vmatpush.msra.mxu0 %v1622
  %2044 = vmatpush.msra.mxu0 %v1620
  %2045 = vmatpush.msra.mxu0 %v1618
  %2046 = vmatpush.msra.mxu0 %v1616
  %2047 = vmatpush.msra.mxu0 %v1614
  %2048 = vmatpush.msra.mxu0 %v1612
  %2049 = vmatpush.msra.mxu0 %v1610
  %2050 = vmatpush.msra.mxu0 %v1608
  %2051 = vmatmul.f32.gmra.mxu0 %v1961
  %v2052 = vpop.f32.mrf.mxu0
  %v2053 = vadd.f32 %v2030, %v2052
  %2054 = vmatmul.f32.gmra.mxu0 %v1964
  %v2055 = vpop.f32.mrf.mxu0
  %v2056 = vadd.f32 %v2033, %v2055
  %2057 = vdwg.mxu0
  %2058 = vmatpush.msra.mxu0 %v1543
  %2059 = vmatpush.msra.mxu0 %v1541
  %2060 = vmatpush.msra.mxu0 %v1539
  %2061 = vmatpush.msra.mxu0 %v1537
  %2062 = vmatpush.msra.mxu0 %v1535
  %2063 = vmatpush.msra.mxu0 %v1533
  %2064 = vmatpush.msra.mxu0 %v1531
  %2065 = vmatpush.msra.mxu0 %v1529
  %2066 = vmatpush.msra.mxu0 %v1527
  %2067 = vmatpush.msra.mxu0 %v1525
  %2068 = vmatpush.msra.mxu0 %v1523
  %2069 = vmatpush.msra.mxu0 %v1521
  %2070 = vmatpush.msra.mxu0 %v1519
  %2071 = vmatpush.msra.mxu0 %v1517
  %2072 = vmatpush.msra.mxu0 %v1515
  %2073 = vmatpush.msra.mxu0 %v1513
  %2074 = vmatmul.f32.gmra.mxu0 %v1504
  %v2075 = vpop.f32.mrf.mxu0
  %v2076 = vadd.f32 %v1955, %v2075
  %2077 = vmatmul.f32.gmra.mxu0 %v1508
  %v2078 = vpop.f32.mrf.mxu0
  %v2079 = vadd.f32 %v1958, %v2078
  %2080 = vdwg.mxu0
  %2081 = vmatpush.msra.mxu0 %v1575
  %2082 = vmatpush.msra.mxu0 %v1573
  %2083 = vmatpush.msra.mxu0 %v1571
  %2084 = vmatpush.msra.mxu0 %v1569
  %2085 = vmatpush.msra.mxu0 %v1567
  %2086 = vmatpush.msra.mxu0 %v1565
  %2087 = vmatpush.msra.mxu0 %v1563
  %2088 = vmatpush.msra.mxu0 %v1561
  %2089 = vmatpush.msra.mxu0 %v1559
  %2090 = vmatpush.msra.mxu0 %v1557
  %2091 = vmatpush.msra.mxu0 %v1555
  %2092 = vmatpush.msra.mxu0 %v1553
  %2093 = vmatpush.msra.mxu0 %v1551
  %2094 = vmatpush.msra.mxu0 %v1549
  %2095 = vmatpush.msra.mxu0 %v1547
  %2096 = vmatpush.msra.mxu0 %v1545
  %2097 = vmatmul.f32.gmra.mxu0 %v1505
  %v2098 = vpop.f32.mrf.mxu0
  %v2099 = vadd.f32 %v2076, %v2098
  %2100 = vmatmul.f32.gmra.mxu0 %v1509
  %v2101 = vpop.f32.mrf.mxu0
  %v2102 = vadd.f32 %v2079, %v2101
  %2103 = vdwg.mxu0
  %2104 = vmatpush.msra.mxu0 %v1607
  %2105 = vmatpush.msra.mxu0 %v1605
  %2106 = vmatpush.msra.mxu0 %v1603
  %2107 = vmatpush.msra.mxu0 %v1601
  %2108 = vmatpush.msra.mxu0 %v1599
  %2109 = vmatpush.msra.mxu0 %v1597
  %2110 = vmatpush.msra.mxu0 %v1595
  %2111 = vmatpush.msra.mxu0 %v1593
  %2112 = vmatpush.msra.mxu0 %v1591
  %2113 = vmatpush.msra.mxu0 %v1589
  %2114 = vmatpush.msra.mxu0 %v1587
  %2115 = vmatpush.msra.mxu0 %v1585
  %2116 = vmatpush.msra.mxu0 %v1583
  %2117 = vmatpush.msra.mxu0 %v1581
  %2118 = vmatpush.msra.mxu0 %v1579
  %2119 = vmatpush.msra.mxu0 %v1577
  %2120 = vmatmul.f32.gmra.mxu0 %v1506
  %v2121 = vpop.f32.mrf.mxu0
  %v2122 = vadd.f32 %v2099, %v2121
  %2123 = vmatmul.f32.gmra.mxu0 %v1510
  %v2124 = vpop.f32.mrf.mxu0
  %v2125 = vadd.f32 %v2102, %v2124
  %2126 = vdwg.mxu0
  %2127 = vmatpush.msra.mxu0 0.0
  %2128 = vmatpush.msra.mxu0 0.0
  %2129 = vmatpush.msra.mxu0 0.0
  %2130 = vmatpush.msra.mxu0 0.0
  %2131 = vmatpush.msra.mxu0 0.0
  %2132 = vmatpush.msra.mxu0 0.0
  %2133 = vmatpush.msra.mxu0 0.0
  %2134 = vmatpush.msra.mxu0 0.0
  %2135 = vmatpush.msra.mxu0 %v1623
  %2136 = vmatpush.msra.mxu0 %v1621
  %2137 = vmatpush.msra.mxu0 %v1619
  %2138 = vmatpush.msra.mxu0 %v1617
  %2139 = vmatpush.msra.mxu0 %v1615
  %2140 = vmatpush.msra.mxu0 %v1613
  %2141 = vmatpush.msra.mxu0 %v1611
  %2142 = vmatpush.msra.mxu0 %v1609
  %2143 = vmatmul.f32.gmra.mxu0 %v1961
  %v2144 = vpop.f32.mrf.mxu0
  %v2145 = vadd.f32 %v2122, %v2144
  %2146 = vmatmul.f32.gmra.mxu0 %v1964
  %v2147 = vpop.f32.mrf.mxu0
  %v2148 = vadd.f32 %v2125, %v2147
  %2149 = vdwg.mxu0
  %v2150 = vld [vmem:[#allocation2] sm:$0xfc]
  %v2151 = vld [vmem:[#allocation2 + $0x8] sm:$0xfc]
  %v2152 = vld [vmem:[#allocation2 + $0x10] sm:$0xfc]
  %v2153 = vld [vmem:[#allocation2 + $0x18] sm:$0xfc]
  %v2154 = vld [vmem:[#allocation2 + $0x20] sm:$0x3f]
  %v2155 = vld [vmem:[#allocation2 + $0x28] sm:$0x3f]
  %v2156 = vld [vmem:[#allocation2 + $0x30] sm:$0x3f]
  %v2157 = vld [vmem:[#allocation2 + $0x38] sm:$0x3f]
  %s2158 = scalar_lea.vmem %s8, 1792
  %v2159 = vld [vmem:[%s2158] sm:$0xff]
  %v2160 = vld [vmem:[%s2158 + $0x8] sm:$0xff]
  %v2161 = vld [vmem:[%s2158 + $0x10] sm:$0xff]
  %v2162 = vld [vmem:[%s2158 + $0x18] sm:$0xff]
  %v2163 = vld [vmem:[%s2158 + $0x20] sm:$0xff]
  %v2164 = vld [vmem:[%s2158 + $0x28] sm:$0xff]
  %v2165 = vld [vmem:[%s2158 + $0x30] sm:$0xff]
  %v2166 = vld [vmem:[%s2158 + $0x38] sm:$0xff]
  %v2167 = vld [vmem:[%s2158 + $0x40] sm:$0xff]
  %v2168 = vld [vmem:[%s2158 + $0x48] sm:$0xff]
  %v2169 = vld [vmem:[%s2158 + $0x50] sm:$0xff]
  %v2170 = vld [vmem:[%s2158 + $0x58] sm:$0xff]
  %v2171 = vld [vmem:[%s2158 + $0x60] sm:$0xff]
  %v2172 = vld [vmem:[%s2158 + $0x68] sm:$0xff]
  %v2173 = vld [vmem:[%s2158 + $0x70] sm:$0xff]
  %v2174 = vld [vmem:[%s2158 + $0x78] sm:$0xff]
  %v2175 = vld [vmem:[%s2158 + $0x80] sm:$0xff]
  %v2176 = vld [vmem:[%s2158 + $0x88] sm:$0xff]
  %v2177 = vld [vmem:[%s2158 + $0x90] sm:$0xff]
  %v2178 = vld [vmem:[%s2158 + $0x98] sm:$0xff]
  %v2179 = vld [vmem:[%s2158 + $0xa0] sm:$0xff]
  %v2180 = vld [vmem:[%s2158 + $0xa8] sm:$0xff]
  %v2181 = vld [vmem:[%s2158 + $0xb0] sm:$0xff]
  %v2182 = vld [vmem:[%s2158 + $0xb8] sm:$0xff]
  %v2183 = vld [vmem:[%s2158 + $0xc0] sm:$0xff]
  %v2184 = vld [vmem:[%s2158 + $0xc8] sm:$0xff]
  %v2185 = vld [vmem:[%s2158 + $0xd0] sm:$0xff]
  %v2186 = vld [vmem:[%s2158 + $0xd8] sm:$0xff]
  %v2187 = vld [vmem:[%s2158 + $0xe0] sm:$0xff]
  %v2188 = vld [vmem:[%s2158 + $0xe8] sm:$0xff]
  %v2189 = vld [vmem:[%s2158 + $0xf0] sm:$0xff]
  %v2190 = vld [vmem:[%s2158 + $0xf8] sm:$0xff]
  %v2191 = vld [vmem:[%s2158 + $0x100] sm:$0xff]
  %v2192 = vld [vmem:[%s2158 + $0x108] sm:$0xff]
  %v2193 = vld [vmem:[%s2158 + $0x110] sm:$0xff]
  %v2194 = vld [vmem:[%s2158 + $0x118] sm:$0xff]
  %v2195 = vld [vmem:[%s2158 + $0x120] sm:$0xff]
  %v2196 = vld [vmem:[%s2158 + $0x128] sm:$0xff]
  %v2197 = vld [vmem:[%s2158 + $0x130] sm:$0xff]
  %v2198 = vld [vmem:[%s2158 + $0x138] sm:$0xff]
  %v2199 = vld [vmem:[%s2158 + $0x140] sm:$0xff]
  %v2200 = vld [vmem:[%s2158 + $0x148] sm:$0xff]
  %v2201 = vld [vmem:[%s2158 + $0x150] sm:$0xff]
  %v2202 = vld [vmem:[%s2158 + $0x158] sm:$0xff]
  %v2203 = vld [vmem:[%s2158 + $0x160] sm:$0xff]
  %v2204 = vld [vmem:[%s2158 + $0x168] sm:$0xff]
  %v2205 = vld [vmem:[%s2158 + $0x170] sm:$0xff]
  %v2206 = vld [vmem:[%s2158 + $0x178] sm:$0xff]
  %v2207 = vld [vmem:[%s2158 + $0x180] sm:$0xff]
  %v2208 = vld [vmem:[%s2158 + $0x188] sm:$0xff]
  %v2209 = vld [vmem:[%s2158 + $0x190] sm:$0xff]
  %v2210 = vld [vmem:[%s2158 + $0x198] sm:$0xff]
  %v2211 = vld [vmem:[%s2158 + $0x1a0] sm:$0xff]
  %v2212 = vld [vmem:[%s2158 + $0x1a8] sm:$0xff]
  %v2213 = vld [vmem:[%s2158 + $0x1b0] sm:$0xff]
  %v2214 = vld [vmem:[%s2158 + $0x1b8] sm:$0xff]
  %v2215 = vld [vmem:[%s2158 + $0x1c0] sm:$0xff]
  %v2216 = vld [vmem:[%s2158 + $0x1c8] sm:$0xff]
  %v2217 = vld [vmem:[%s2158 + $0x1d0] sm:$0xff]
  %v2218 = vld [vmem:[%s2158 + $0x1d8] sm:$0xff]
  %v2219 = vld [vmem:[%s2158 + $0x1e0] sm:$0xff]
  %v2220 = vld [vmem:[%s2158 + $0x1e8] sm:$0xff]
  %v2221 = vld [vmem:[%s2158 + $0x1f0] sm:$0xff]
  %v2222 = vld [vmem:[%s2158 + $0x1f8] sm:$0xff]
  %v2223 = vld [vmem:[%s2158 + $0x200] sm:$0xff]
  %v2224 = vld [vmem:[%s2158 + $0x208] sm:$0xff]
  %v2225 = vld [vmem:[%s2158 + $0x210] sm:$0xff]
  %v2226 = vld [vmem:[%s2158 + $0x218] sm:$0xff]
  %v2227 = vld [vmem:[%s2158 + $0x220] sm:$0xff]
  %v2228 = vld [vmem:[%s2158 + $0x228] sm:$0xff]
  %v2229 = vld [vmem:[%s2158 + $0x230] sm:$0xff]
  %v2230 = vld [vmem:[%s2158 + $0x238] sm:$0xff]
  %v2231 = vld [vmem:[%s2158 + $0x240] sm:$0xff]
  %v2232 = vld [vmem:[%s2158 + $0x248] sm:$0xff]
  %v2233 = vld [vmem:[%s2158 + $0x250] sm:$0xff]
  %v2234 = vld [vmem:[%s2158 + $0x258] sm:$0xff]
  %v2235 = vld [vmem:[%s2158 + $0x260] sm:$0xff]
  %v2236 = vld [vmem:[%s2158 + $0x268] sm:$0xff]
  %v2237 = vld [vmem:[%s2158 + $0x270] sm:$0xff]
  %v2238 = vld [vmem:[%s2158 + $0x278] sm:$0xff]
  %v2239 = vld [vmem:[%s2158 + $0x280] sm:$0xff]
  %v2240 = vld [vmem:[%s2158 + $0x288] sm:$0xff]
  %v2241 = vld [vmem:[%s2158 + $0x290] sm:$0xff]
  %v2242 = vld [vmem:[%s2158 + $0x298] sm:$0xff]
  %v2243 = vld [vmem:[%s2158 + $0x2a0] sm:$0xff]
  %v2244 = vld [vmem:[%s2158 + $0x2a8] sm:$0xff]
  %v2245 = vld [vmem:[%s2158 + $0x2b0] sm:$0xff]
  %v2246 = vld [vmem:[%s2158 + $0x2b8] sm:$0xff]
  %v2247 = vld [vmem:[%s2158 + $0x2c0] sm:$0xff]
  %v2248 = vld [vmem:[%s2158 + $0x2c8] sm:$0xff]
  %v2249 = vld [vmem:[%s2158 + $0x2d0] sm:$0xff]
  %v2250 = vld [vmem:[%s2158 + $0x2d8] sm:$0xff]
  %v2251 = vld [vmem:[%s2158 + $0x2e0] sm:$0xff]
  %v2252 = vld [vmem:[%s2158 + $0x2e8] sm:$0xff]
  %v2253 = vld [vmem:[%s2158 + $0x2f0] sm:$0xff]
  %v2254 = vld [vmem:[%s2158 + $0x2f8] sm:$0xff]
  %v2255 = vld [vmem:[%s2158 + $0x300] sm:$0xff]
  %v2256 = vld [vmem:[%s2158 + $0x308] sm:$0xff]
  %v2257 = vld [vmem:[%s2158 + $0x310] sm:$0xff]
  %v2258 = vld [vmem:[%s2158 + $0x318] sm:$0xff]
  %v2259 = vld [vmem:[%s2158 + $0x320] sm:$0xff]
  %v2260 = vld [vmem:[%s2158 + $0x328] sm:$0xff]
  %v2261 = vld [vmem:[%s2158 + $0x330] sm:$0xff]
  %v2262 = vld [vmem:[%s2158 + $0x338] sm:$0xff]
  %v2263 = vld [vmem:[%s2158 + $0x340] sm:$0xff]
  %v2264 = vld [vmem:[%s2158 + $0x348] sm:$0xff]
  %v2265 = vld [vmem:[%s2158 + $0x350] sm:$0xff]
  %v2266 = vld [vmem:[%s2158 + $0x358] sm:$0xff]
  %v2267 = vld [vmem:[%s2158 + $0x360] sm:$0xff]
  %v2268 = vld [vmem:[%s2158 + $0x368] sm:$0xff]
  %v2269 = vld [vmem:[%s2158 + $0x370] sm:$0xff]
  %v2270 = vld [vmem:[%s2158 + $0x378] sm:$0xff]
  %v2279 = vrot.slane %v2150, 2
  %v2280 = vrot.slane %v2154, 2
  %v2281 = vsel %vm490, %v2279, %v2280
  %v2282 = vrot.slane %v2151, 2
  %v2283 = vrot.slane %v2155, 2
  %v2284 = vsel %vm490, %v2282, %v2283
  %v2285 = vrot.slane %v2152, 2
  %v2286 = vrot.slane %v2156, 2
  %v2287 = vsel %vm490, %v2285, %v2286
  %v2288 = vrot.slane %v2153, 2
  %v2289 = vrot.slane %v2157, 2
  %v2290 = vsel %vm490, %v2288, %v2289
  %v2297 = vsel %vm515, %v2290, 0
  %v2299 = vsel %vm515, %v2289, 0
  %2301 = vmatpush.msra.mxu0 %v2189
  %2302 = vmatpush.msra.mxu0 %v2187
  %2303 = vmatpush.msra.mxu0 %v2185
  %2304 = vmatpush.msra.mxu0 %v2183
  %2305 = vmatpush.msra.mxu0 %v2181
  %2306 = vmatpush.msra.mxu0 %v2179
  %2307 = vmatpush.msra.mxu0 %v2177
  %2308 = vmatpush.msra.mxu0 %v2175
  %2309 = vmatpush.msra.mxu0 %v2173
  %2310 = vmatpush.msra.mxu0 %v2171
  %2311 = vmatpush.msra.mxu0 %v2169
  %2312 = vmatpush.msra.mxu0 %v2167
  %2313 = vmatpush.msra.mxu0 %v2165
  %2314 = vmatpush.msra.mxu0 %v2163
  %2315 = vmatpush.msra.mxu0 %v2161
  %2316 = vmatpush.msra.mxu0 %v2159
  %2317 = vmatmul.f32.gmra.mxu0 %v2281
  %v2318 = vpop.f32.mrf.mxu0
  %v2319 = vadd.f32 0.0, %v2318
  %2320 = vmatmul.f32.gmra.mxu0 %v2280
  %v2321 = vpop.f32.mrf.mxu0
  %v2322 = vadd.f32 0.0, %v2321
  %2323 = vdwg.mxu0
  %2324 = vmatpush.msra.mxu0 %v2221
  %2325 = vmatpush.msra.mxu0 %v2219
  %2326 = vmatpush.msra.mxu0 %v2217
  %2327 = vmatpush.msra.mxu0 %v2215
  %2328 = vmatpush.msra.mxu0 %v2213
  %2329 = vmatpush.msra.mxu0 %v2211
  %2330 = vmatpush.msra.mxu0 %v2209
  %2331 = vmatpush.msra.mxu0 %v2207
  %2332 = vmatpush.msra.mxu0 %v2205
  %2333 = vmatpush.msra.mxu0 %v2203
  %2334 = vmatpush.msra.mxu0 %v2201
  %2335 = vmatpush.msra.mxu0 %v2199
  %2336 = vmatpush.msra.mxu0 %v2197
  %2337 = vmatpush.msra.mxu0 %v2195
  %2338 = vmatpush.msra.mxu0 %v2193
  %2339 = vmatpush.msra.mxu0 %v2191
  %2340 = vmatmul.f32.gmra.mxu0 %v2284
  %v2341 = vpop.f32.mrf.mxu0
  %v2342 = vadd.f32 %v2319, %v2341
  %2343 = vmatmul.f32.gmra.mxu0 %v2283
  %v2344 = vpop.f32.mrf.mxu0
  %v2345 = vadd.f32 %v2322, %v2344
  %2346 = vdwg.mxu0
  %2347 = vmatpush.msra.mxu0 %v2253
  %2348 = vmatpush.msra.mxu0 %v2251
  %2349 = vmatpush.msra.mxu0 %v2249
  %2350 = vmatpush.msra.mxu0 %v2247
  %2351 = vmatpush.msra.mxu0 %v2245
  %2352 = vmatpush.msra.mxu0 %v2243
  %2353 = vmatpush.msra.mxu0 %v2241
  %2354 = vmatpush.msra.mxu0 %v2239
  %2355 = vmatpush.msra.mxu0 %v2237
  %2356 = vmatpush.msra.mxu0 %v2235
  %2357 = vmatpush.msra.mxu0 %v2233
  %2358 = vmatpush.msra.mxu0 %v2231
  %2359 = vmatpush.msra.mxu0 %v2229
  %2360 = vmatpush.msra.mxu0 %v2227
  %2361 = vmatpush.msra.mxu0 %v2225
  %2362 = vmatpush.msra.mxu0 %v2223
  %2363 = vmatmul.f32.gmra.mxu0 %v2287
  %v2364 = vpop.f32.mrf.mxu0
  %v2365 = vadd.f32 %v2342, %v2364
  %2366 = vmatmul.f32.gmra.mxu0 %v2286
  %v2367 = vpop.f32.mrf.mxu0
  %v2368 = vadd.f32 %v2345, %v2367
  %2369 = vdwg.mxu0
  %2370 = vmatpush.msra.mxu0 0.0
  %2371 = vmatpush.msra.mxu0 0.0
  %2372 = vmatpush.msra.mxu0 0.0
  %2373 = vmatpush.msra.mxu0 0.0
  %2374 = vmatpush.msra.mxu0 0.0
  %2375 = vmatpush.msra.mxu0 0.0
  %2376 = vmatpush.msra.mxu0 0.0
  %2377 = vmatpush.msra.mxu0 0.0
  %2378 = vmatpush.msra.mxu0 %v2269
  %2379 = vmatpush.msra.mxu0 %v2267
  %2380 = vmatpush.msra.mxu0 %v2265
  %2381 = vmatpush.msra.mxu0 %v2263
  %2382 = vmatpush.msra.mxu0 %v2261
  %2383 = vmatpush.msra.mxu0 %v2259
  %2384 = vmatpush.msra.mxu0 %v2257
  %2385 = vmatpush.msra.mxu0 %v2255
  %2386 = vmatmul.f32.gmra.mxu0 %v2297
  %v2387 = vpop.f32.mrf.mxu0
  %v2388 = vadd.f32 %v2365, %v2387
  %2389 = vmatmul.f32.gmra.mxu0 %v2299
  %v2390 = vpop.f32.mrf.mxu0
  %v2391 = vadd.f32 %v2368, %v2390
  %2392 = vdwg.mxu0
  %2393 = vmatpush.msra.mxu0 %v2190
  %2394 = vmatpush.msra.mxu0 %v2188
  %2395 = vmatpush.msra.mxu0 %v2186
  %2396 = vmatpush.msra.mxu0 %v2184
  %2397 = vmatpush.msra.mxu0 %v2182
  %2398 = vmatpush.msra.mxu0 %v2180
  %2399 = vmatpush.msra.mxu0 %v2178
  %2400 = vmatpush.msra.mxu0 %v2176
  %2401 = vmatpush.msra.mxu0 %v2174
  %2402 = vmatpush.msra.mxu0 %v2172
  %2403 = vmatpush.msra.mxu0 %v2170
  %2404 = vmatpush.msra.mxu0 %v2168
  %2405 = vmatpush.msra.mxu0 %v2166
  %2406 = vmatpush.msra.mxu0 %v2164
  %2407 = vmatpush.msra.mxu0 %v2162
  %2408 = vmatpush.msra.mxu0 %v2160
  %2409 = vmatmul.f32.gmra.mxu0 %v2281
  %v2410 = vpop.f32.mrf.mxu0
  %v2411 = vadd.f32 0.0, %v2410
  %2412 = vmatmul.f32.gmra.mxu0 %v2280
  %v2413 = vpop.f32.mrf.mxu0
  %v2414 = vadd.f32 0.0, %v2413
  %2415 = vdwg.mxu0
  %2416 = vmatpush.msra.mxu0 %v2222
  %2417 = vmatpush.msra.mxu0 %v2220
  %2418 = vmatpush.msra.mxu0 %v2218
  %2419 = vmatpush.msra.mxu0 %v2216
  %2420 = vmatpush.msra.mxu0 %v2214
  %2421 = vmatpush.msra.mxu0 %v2212
  %2422 = vmatpush.msra.mxu0 %v2210
  %2423 = vmatpush.msra.mxu0 %v2208
  %2424 = vmatpush.msra.mxu0 %v2206
  %2425 = vmatpush.msra.mxu0 %v2204
  %2426 = vmatpush.msra.mxu0 %v2202
  %2427 = vmatpush.msra.mxu0 %v2200
  %2428 = vmatpush.msra.mxu0 %v2198
  %2429 = vmatpush.msra.mxu0 %v2196
  %2430 = vmatpush.msra.mxu0 %v2194
  %2431 = vmatpush.msra.mxu0 %v2192
  %2432 = vmatmul.f32.gmra.mxu0 %v2284
  %v2433 = vpop.f32.mrf.mxu0
  %v2434 = vadd.f32 %v2411, %v2433
  %2435 = vmatmul.f32.gmra.mxu0 %v2283
  %v2436 = vpop.f32.mrf.mxu0
  %v2437 = vadd.f32 %v2414, %v2436
  %2438 = vdwg.mxu0
  %2439 = vmatpush.msra.mxu0 %v2254
  %2440 = vmatpush.msra.mxu0 %v2252
  %2441 = vmatpush.msra.mxu0 %v2250
  %2442 = vmatpush.msra.mxu0 %v2248
  %2443 = vmatpush.msra.mxu0 %v2246
  %2444 = vmatpush.msra.mxu0 %v2244
  %2445 = vmatpush.msra.mxu0 %v2242
  %2446 = vmatpush.msra.mxu0 %v2240
  %2447 = vmatpush.msra.mxu0 %v2238
  %2448 = vmatpush.msra.mxu0 %v2236
  %2449 = vmatpush.msra.mxu0 %v2234
  %2450 = vmatpush.msra.mxu0 %v2232
  %2451 = vmatpush.msra.mxu0 %v2230
  %2452 = vmatpush.msra.mxu0 %v2228
  %2453 = vmatpush.msra.mxu0 %v2226
  %2454 = vmatpush.msra.mxu0 %v2224
  %2455 = vmatmul.f32.gmra.mxu0 %v2287
  %v2456 = vpop.f32.mrf.mxu0
  %v2457 = vadd.f32 %v2434, %v2456
  %2458 = vmatmul.f32.gmra.mxu0 %v2286
  %v2459 = vpop.f32.mrf.mxu0
  %v2460 = vadd.f32 %v2437, %v2459
  %2461 = vdwg.mxu0
  %2462 = vmatpush.msra.mxu0 0.0
  %2463 = vmatpush.msra.mxu0 0.0
  %2464 = vmatpush.msra.mxu0 0.0
  %2465 = vmatpush.msra.mxu0 0.0
  %2466 = vmatpush.msra.mxu0 0.0
  %2467 = vmatpush.msra.mxu0 0.0
  %2468 = vmatpush.msra.mxu0 0.0
  %2469 = vmatpush.msra.mxu0 0.0
  %2470 = vmatpush.msra.mxu0 %v2270
  %2471 = vmatpush.msra.mxu0 %v2268
  %2472 = vmatpush.msra.mxu0 %v2266
  %2473 = vmatpush.msra.mxu0 %v2264
  %2474 = vmatpush.msra.mxu0 %v2262
  %2475 = vmatpush.msra.mxu0 %v2260
  %2476 = vmatpush.msra.mxu0 %v2258
  %2477 = vmatpush.msra.mxu0 %v2256
  %2478 = vmatmul.f32.gmra.mxu0 %v2297
  %v2479 = vpop.f32.mrf.mxu0
  %v2480 = vadd.f32 %v2457, %v2479
  %2481 = vmatmul.f32.gmra.mxu0 %v2299
  %v2482 = vpop.f32.mrf.mxu0
  %v2483 = vadd.f32 %v2460, %v2482
  %2484 = vdwg.mxu0
  %v2485 = vadd.f32 %v2053, %v2388
  %v2486 = vadd.f32 %v2145, %v2480
  %v2487 = vadd.f32 %v2056, %v2391
  %v2488 = vadd.f32 %v2148, %v2483
  %v2489 = vld [vmem:[%s9] sm:$0x3]
  %v2491 = vperm.slane %v2489, 0
  %v2492 = vperm.slane %v2489, 1
  %v2495 = vadd.f32 %v2485, %v2491
  %v2496 = vadd.f32 %v2486, %v2492
  %v2497 = vadd.f32 %v2487, %v2491
  %v2498 = vadd.f32 %v2488, %v2492
  %vm2499 = vcmask 1043456
  %v2500 = vsel %vm2499, %v2497, 0.0
  %v2501 = vadd.f32 %v2495, %v2500
  %v2502 = vrot.slane %v2501, 4
  %v2503 = vadd.f32 %v2501, %v2502
  %v2504 = vrot.slane %v2503, 2
  %v2505 = vadd.f32 %v2503, %v2504
  %v2506 = vrot.slane %v2505, 1
  %v2507 = vadd.f32 %v2505, %v2506
  %v2508 = vsel %vm515, %v2496, 0.0
  %vm2509 = vcmask 519168
  %v2510 = vsel %vm2509, %v2498, 0.0
  %v2511 = vadd.f32 %v2508, %v2510
  %v2512 = vrot.slane %v2511, 4
  %v2513 = vadd.f32 %v2511, %v2512
  %v2514 = vrot.slane %v2513, 2
  %v2515 = vadd.f32 %v2513, %v2514
  %v2516 = vrot.slane %v2515, 1
  %v2517 = vadd.f32 %v2515, %v2516
  %v2518 = vadd.f32 %v2507, 0.0
  %v2519 = vadd.f32 %v2517, 0.0
  %v2520 = vmul.f32 %v2495, %v2495
  %v2521 = vmul.f32 %v2496, %v2496
  %v2522 = vmul.f32 %v2497, %v2497
  %v2523 = vmul.f32 %v2498, %v2498
  %v2524 = vsel %vm2499, %v2522, 0.0
  %v2525 = vadd.f32 %v2520, %v2524
  %v2526 = vrot.slane %v2525, 4
  %v2527 = vadd.f32 %v2525, %v2526
  %v2528 = vrot.slane %v2527, 2
  %v2529 = vadd.f32 %v2527, %v2528
  %v2530 = vrot.slane %v2529, 1
  %v2531 = vadd.f32 %v2529, %v2530
  %v2532 = vsel %vm515, %v2521, 0.0
  %v2533 = vsel %vm2509, %v2523, 0.0
  %v2534 = vadd.f32 %v2532, %v2533
  %v2535 = vrot.slane %v2534, 4
  %v2536 = vadd.f32 %v2534, %v2535
  %v2537 = vrot.slane %v2536, 2
  %v2538 = vadd.f32 %v2536, %v2537
  %v2539 = vrot.slane %v2538, 1
  %v2540 = vadd.f32 %v2538, %v2539
  %v2541 = vadd.f32 %v2531, 0.0
  %v2542 = vadd.f32 %v2540, 0.0
  %v2543 = vld [vmem:[%s1495] sm:$0xff]
  %v2544 = vld [vmem:[%s1495 + $0x8] sm:$0xff]
  %v2545 = vld [vmem:[%s1495 + $0x10] sm:$0xff]
  %v2546 = vld [vmem:[%s1495 + $0x18] sm:$0xff]
  %v2547 = vld [vmem:[%s1495 + $0x20] sm:$0xf]
  %v2548 = vld [vmem:[%s1495 + $0x28] sm:$0xf]
  %v2549 = vld [vmem:[%s1495 + $0x30] sm:$0xf]
  %v2550 = vld [vmem:[%s1495 + $0x38] sm:$0xf]
  %v2551 = vld [vmem:[%s1495] sm:$0xfe]
  %v2552 = vld [vmem:[%s1495 + $0x8] sm:$0xfe]
  %v2553 = vld [vmem:[%s1495 + $0x10] sm:$0xfe]
  %v2554 = vld [vmem:[%s1495 + $0x18] sm:$0xfe]
  %v2555 = vld [vmem:[%s1495 + $0x20] sm:$0x1f]
  %v2556 = vld [vmem:[%s1495 + $0x28] sm:$0x1f]
  %v2557 = vld [vmem:[%s1495 + $0x30] sm:$0x1f]
  %v2558 = vld [vmem:[%s1495 + $0x38] sm:$0x1f]
  %v2567 = vrot.slane %v2551, 1
  %v2568 = vrot.slane %v2555, 1
  %v2569 = vsel %vm1753, %v2567, %v2568
  %v2570 = vrot.slane %v2552, 1
  %v2571 = vrot.slane %v2556, 1
  %v2572 = vsel %vm1753, %v2570, %v2571
  %v2573 = vrot.slane %v2553, 1
  %v2574 = vrot.slane %v2557, 1
  %v2575 = vsel %vm1753, %v2573, %v2574
  %v2576 = vrot.slane %v2554, 1
  %v2577 = vrot.slane %v2558, 1
  %v2578 = vsel %vm1753, %v2576, %v2577
  %v2585 = vsel %vm515, %v2578, 0
  %v2587 = vsel %vm515, %v2577, 0
  %2589 = vmatpush.msra.mxu0 %v1663
  %2590 = vmatpush.msra.mxu0 %v1661
  %2591 = vmatpush.msra.mxu0 %v1659
  %2592 = vmatpush.msra.mxu0 %v1657
  %2593 = vmatpush.msra.mxu0 %v1655
  %2594 = vmatpush.msra.mxu0 %v1653
  %2595 = vmatpush.msra.mxu0 %v1651
  %2596 = vmatpush.msra.mxu0 %v1649
  %2597 = vmatpush.msra.mxu0 %v1647
  %2598 = vmatpush.msra.mxu0 %v1645
  %2599 = vmatpush.msra.mxu0 %v1643
  %2600 = vmatpush.msra.mxu0 %v1641
  %2601 = vmatpush.msra.mxu0 %v1639
  %2602 = vmatpush.msra.mxu0 %v1637
  %2603 = vmatpush.msra.mxu0 %v1635
  %2604 = vmatpush.msra.mxu0 %v1633
  %2605 = vmatmul.f32.gmra.mxu0 %v2569
  %v2606 = vpop.f32.mrf.mxu0
  %v2607 = vadd.f32 0.0, %v2606
  %2608 = vmatmul.f32.gmra.mxu0 %v2568
  %v2609 = vpop.f32.mrf.mxu0
  %v2610 = vadd.f32 0.0, %v2609
  %2611 = vdwg.mxu0
  %2612 = vmatpush.msra.mxu0 %v1695
  %2613 = vmatpush.msra.mxu0 %v1693
  %2614 = vmatpush.msra.mxu0 %v1691
  %2615 = vmatpush.msra.mxu0 %v1689
  %2616 = vmatpush.msra.mxu0 %v1687
  %2617 = vmatpush.msra.mxu0 %v1685
  %2618 = vmatpush.msra.mxu0 %v1683
  %2619 = vmatpush.msra.mxu0 %v1681
  %2620 = vmatpush.msra.mxu0 %v1679
  %2621 = vmatpush.msra.mxu0 %v1677
  %2622 = vmatpush.msra.mxu0 %v1675
  %2623 = vmatpush.msra.mxu0 %v1673
  %2624 = vmatpush.msra.mxu0 %v1671
  %2625 = vmatpush.msra.mxu0 %v1669
  %2626 = vmatpush.msra.mxu0 %v1667
  %2627 = vmatpush.msra.mxu0 %v1665
  %2628 = vmatmul.f32.gmra.mxu0 %v2572
  %v2629 = vpop.f32.mrf.mxu0
  %v2630 = vadd.f32 %v2607, %v2629
  %2631 = vmatmul.f32.gmra.mxu0 %v2571
  %v2632 = vpop.f32.mrf.mxu0
  %v2633 = vadd.f32 %v2610, %v2632
  %2634 = vdwg.mxu0
  %2635 = vmatpush.msra.mxu0 %v1727
  %2636 = vmatpush.msra.mxu0 %v1725
  %2637 = vmatpush.msra.mxu0 %v1723
  %2638 = vmatpush.msra.mxu0 %v1721
  %2639 = vmatpush.msra.mxu0 %v1719
  %2640 = vmatpush.msra.mxu0 %v1717
  %2641 = vmatpush.msra.mxu0 %v1715
  %2642 = vmatpush.msra.mxu0 %v1713
  %2643 = vmatpush.msra.mxu0 %v1711
  %2644 = vmatpush.msra.mxu0 %v1709
  %2645 = vmatpush.msra.mxu0 %v1707
  %2646 = vmatpush.msra.mxu0 %v1705
  %2647 = vmatpush.msra.mxu0 %v1703
  %2648 = vmatpush.msra.mxu0 %v1701
  %2649 = vmatpush.msra.mxu0 %v1699
  %2650 = vmatpush.msra.mxu0 %v1697
  %2651 = vmatmul.f32.gmra.mxu0 %v2575
  %v2652 = vpop.f32.mrf.mxu0
  %v2653 = vadd.f32 %v2630, %v2652
  %2654 = vmatmul.f32.gmra.mxu0 %v2574
  %v2655 = vpop.f32.mrf.mxu0
  %v2656 = vadd.f32 %v2633, %v2655
  %2657 = vdwg.mxu0
  %2658 = vmatpush.msra.mxu0 0.0
  %2659 = vmatpush.msra.mxu0 0.0
  %2660 = vmatpush.msra.mxu0 0.0
  %2661 = vmatpush.msra.mxu0 0.0
  %2662 = vmatpush.msra.mxu0 0.0
  %2663 = vmatpush.msra.mxu0 0.0
  %2664 = vmatpush.msra.mxu0 0.0
  %2665 = vmatpush.msra.mxu0 0.0
  %2666 = vmatpush.msra.mxu0 %v1743
  %2667 = vmatpush.msra.mxu0 %v1741
  %2668 = vmatpush.msra.mxu0 %v1739
  %2669 = vmatpush.msra.mxu0 %v1737
  %2670 = vmatpush.msra.mxu0 %v1735
  %2671 = vmatpush.msra.mxu0 %v1733
  %2672 = vmatpush.msra.mxu0 %v1731
  %2673 = vmatpush.msra.mxu0 %v1729
  %2674 = vmatmul.f32.gmra.mxu0 %v2585
  %v2675 = vpop.f32.mrf.mxu0
  %v2676 = vadd.f32 %v2653, %v2675
  %2677 = vmatmul.f32.gmra.mxu0 %v2587
  %v2678 = vpop.f32.mrf.mxu0
  %v2679 = vadd.f32 %v2656, %v2678
  %2680 = vdwg.mxu0
  %2681 = vmatpush.msra.mxu0 %v1664
  %2682 = vmatpush.msra.mxu0 %v1662
  %2683 = vmatpush.msra.mxu0 %v1660
  %2684 = vmatpush.msra.mxu0 %v1658
  %2685 = vmatpush.msra.mxu0 %v1656
  %2686 = vmatpush.msra.mxu0 %v1654
  %2687 = vmatpush.msra.mxu0 %v1652
  %2688 = vmatpush.msra.mxu0 %v1650
  %2689 = vmatpush.msra.mxu0 %v1648
  %2690 = vmatpush.msra.mxu0 %v1646
  %2691 = vmatpush.msra.mxu0 %v1644
  %2692 = vmatpush.msra.mxu0 %v1642
  %2693 = vmatpush.msra.mxu0 %v1640
  %2694 = vmatpush.msra.mxu0 %v1638
  %2695 = vmatpush.msra.mxu0 %v1636
  %2696 = vmatpush.msra.mxu0 %v1634
  %2697 = vmatmul.f32.gmra.mxu0 %v2569
  %v2698 = vpop.f32.mrf.mxu0
  %v2699 = vadd.f32 0.0, %v2698
  %2700 = vmatmul.f32.gmra.mxu0 %v2568
  %v2701 = vpop.f32.mrf.mxu0
  %v2702 = vadd.f32 0.0, %v2701
  %2703 = vdwg.mxu0
  %2704 = vmatpush.msra.mxu0 %v1696
  %2705 = vmatpush.msra.mxu0 %v1694
  %2706 = vmatpush.msra.mxu0 %v1692
  %2707 = vmatpush.msra.mxu0 %v1690
  %2708 = vmatpush.msra.mxu0 %v1688
  %2709 = vmatpush.msra.mxu0 %v1686
  %2710 = vmatpush.msra.mxu0 %v1684
  %2711 = vmatpush.msra.mxu0 %v1682
  %2712 = vmatpush.msra.mxu0 %v1680
  %2713 = vmatpush.msra.mxu0 %v1678
  %2714 = vmatpush.msra.mxu0 %v1676
  %2715 = vmatpush.msra.mxu0 %v1674
  %2716 = vmatpush.msra.mxu0 %v1672
  %2717 = vmatpush.msra.mxu0 %v1670
  %2718 = vmatpush.msra.mxu0 %v1668
  %2719 = vmatpush.msra.mxu0 %v1666
  %2720 = vmatmul.f32.gmra.mxu0 %v2572
  %v2721 = vpop.f32.mrf.mxu0
  %v2722 = vadd.f32 %v2699, %v2721
  %2723 = vmatmul.f32.gmra.mxu0 %v2571
  %v2724 = vpop.f32.mrf.mxu0
  %v2725 = vadd.f32 %v2702, %v2724
  %2726 = vdwg.mxu0
  %2727 = vmatpush.msra.mxu0 %v1728
  %2728 = vmatpush.msra.mxu0 %v1726
  %2729 = vmatpush.msra.mxu0 %v1724
  %2730 = vmatpush.msra.mxu0 %v1722
  %2731 = vmatpush.msra.mxu0 %v1720
  %2732 = vmatpush.msra.mxu0 %v1718
  %2733 = vmatpush.msra.mxu0 %v1716
  %2734 = vmatpush.msra.mxu0 %v1714
  %2735 = vmatpush.msra.mxu0 %v1712
  %2736 = vmatpush.msra.mxu0 %v1710
  %2737 = vmatpush.msra.mxu0 %v1708
  %2738 = vmatpush.msra.mxu0 %v1706
  %2739 = vmatpush.msra.mxu0 %v1704
  %2740 = vmatpush.msra.mxu0 %v1702
  %2741 = vmatpush.msra.mxu0 %v1700
  %2742 = vmatpush.msra.mxu0 %v1698
  %2743 = vmatmul.f32.gmra.mxu0 %v2575
  %v2744 = vpop.f32.mrf.mxu0
  %v2745 = vadd.f32 %v2722, %v2744
  %2746 = vmatmul.f32.gmra.mxu0 %v2574
  %v2747 = vpop.f32.mrf.mxu0
  %v2748 = vadd.f32 %v2725, %v2747
  %2749 = vdwg.mxu0
  %2750 = vmatpush.msra.mxu0 0.0
  %2751 = vmatpush.msra.mxu0 0.0
  %2752 = vmatpush.msra.mxu0 0.0
  %2753 = vmatpush.msra.mxu0 0.0
  %2754 = vmatpush.msra.mxu0 0.0
  %2755 = vmatpush.msra.mxu0 0.0
  %2756 = vmatpush.msra.mxu0 0.0
  %2757 = vmatpush.msra.mxu0 0.0
  %2758 = vmatpush.msra.mxu0 %v1744
  %2759 = vmatpush.msra.mxu0 %v1742
  %2760 = vmatpush.msra.mxu0 %v1740
  %2761 = vmatpush.msra.mxu0 %v1738
  %2762 = vmatpush.msra.mxu0 %v1736
  %2763 = vmatpush.msra.mxu0 %v1734
  %2764 = vmatpush.msra.mxu0 %v1732
  %2765 = vmatpush.msra.mxu0 %v1730
  %2766 = vmatmul.f32.gmra.mxu0 %v2585
  %v2767 = vpop.f32.mrf.mxu0
  %v2768 = vadd.f32 %v2745, %v2767
  %2769 = vmatmul.f32.gmra.mxu0 %v2587
  %v2770 = vpop.f32.mrf.mxu0
  %v2771 = vadd.f32 %v2748, %v2770
  %2772 = vdwg.mxu0
  %v2774 = vsel %vm515, %v2546, 0
  %v2777 = vsel %vm515, %v2550, 0
  %2779 = vmatpush.msra.mxu0 %v1542
  %2780 = vmatpush.msra.mxu0 %v1540
  %2781 = vmatpush.msra.mxu0 %v1538
  %2782 = vmatpush.msra.mxu0 %v1536
  %2783 = vmatpush.msra.mxu0 %v1534
  %2784 = vmatpush.msra.mxu0 %v1532
  %2785 = vmatpush.msra.mxu0 %v1530
  %2786 = vmatpush.msra.mxu0 %v1528
  %2787 = vmatpush.msra.mxu0 %v1526
  %2788 = vmatpush.msra.mxu0 %v1524
  %2789 = vmatpush.msra.mxu0 %v1522
  %2790 = vmatpush.msra.mxu0 %v1520
  %2791 = vmatpush.msra.mxu0 %v1518
  %2792 = vmatpush.msra.mxu0 %v1516
  %2793 = vmatpush.msra.mxu0 %v1514
  %2794 = vmatpush.msra.mxu0 %v1512
  %2795 = vmatmul.f32.gmra.mxu0 %v2543
  %v2796 = vpop.f32.mrf.mxu0
  %v2797 = vadd.f32 %v2676, %v2796
  %2798 = vmatmul.f32.gmra.mxu0 %v2547
  %v2799 = vpop.f32.mrf.mxu0
  %v2800 = vadd.f32 %v2679, %v2799
  %2801 = vdwg.mxu0
  %2802 = vmatpush.msra.mxu0 %v1574
  %2803 = vmatpush.msra.mxu0 %v1572
  %2804 = vmatpush.msra.mxu0 %v1570
  %2805 = vmatpush.msra.mxu0 %v1568
  %2806 = vmatpush.msra.mxu0 %v1566
  %2807 = vmatpush.msra.mxu0 %v1564
  %2808 = vmatpush.msra.mxu0 %v1562
  %2809 = vmatpush.msra.mxu0 %v1560
  %2810 = vmatpush.msra.mxu0 %v1558
  %2811 = vmatpush.msra.mxu0 %v1556
  %2812 = vmatpush.msra.mxu0 %v1554
  %2813 = vmatpush.msra.mxu0 %v1552
  %2814 = vmatpush.msra.mxu0 %v1550
  %2815 = vmatpush.msra.mxu0 %v1548
  %2816 = vmatpush.msra.mxu0 %v1546
  %2817 = vmatpush.msra.mxu0 %v1544
  %2818 = vmatmul.f32.gmra.mxu0 %v2544
  %v2819 = vpop.f32.mrf.mxu0
  %v2820 = vadd.f32 %v2797, %v2819
  %2821 = vmatmul.f32.gmra.mxu0 %v2548
  %v2822 = vpop.f32.mrf.mxu0
  %v2823 = vadd.f32 %v2800, %v2822
  %2824 = vdwg.mxu0
  %2825 = vmatpush.msra.mxu0 %v1606
  %2826 = vmatpush.msra.mxu0 %v1604
  %2827 = vmatpush.msra.mxu0 %v1602
  %2828 = vmatpush.msra.mxu0 %v1600
  %2829 = vmatpush.msra.mxu0 %v1598
  %2830 = vmatpush.msra.mxu0 %v1596
  %2831 = vmatpush.msra.mxu0 %v1594
  %2832 = vmatpush.msra.mxu0 %v1592
  %2833 = vmatpush.msra.mxu0 %v1590
  %2834 = vmatpush.msra.mxu0 %v1588
  %2835 = vmatpush.msra.mxu0 %v1586
  %2836 = vmatpush.msra.mxu0 %v1584
  %2837 = vmatpush.msra.mxu0 %v1582
  %2838 = vmatpush.msra.mxu0 %v1580
  %2839 = vmatpush.msra.mxu0 %v1578
  %2840 = vmatpush.msra.mxu0 %v1576
  %2841 = vmatmul.f32.gmra.mxu0 %v2545
  %v2842 = vpop.f32.mrf.mxu0
  %v2843 = vadd.f32 %v2820, %v2842
  %2844 = vmatmul.f32.gmra.mxu0 %v2549
  %v2845 = vpop.f32.mrf.mxu0
  %v2846 = vadd.f32 %v2823, %v2845
  %2847 = vdwg.mxu0
  %2848 = vmatpush.msra.mxu0 0.0
  %2849 = vmatpush.msra.mxu0 0.0
  %2850 = vmatpush.msra.mxu0 0.0
  %2851 = vmatpush.msra.mxu0 0.0
  %2852 = vmatpush.msra.mxu0 0.0
  %2853 = vmatpush.msra.mxu0 0.0
  %2854 = vmatpush.msra.mxu0 0.0
  %2855 = vmatpush.msra.mxu0 0.0
  %2856 = vmatpush.msra.mxu0 %v1622
  %2857 = vmatpush.msra.mxu0 %v1620
  %2858 = vmatpush.msra.mxu0 %v1618
  %2859 = vmatpush.msra.mxu0 %v1616
  %2860 = vmatpush.msra.mxu0 %v1614
  %2861 = vmatpush.msra.mxu0 %v1612
  %2862 = vmatpush.msra.mxu0 %v1610
  %2863 = vmatpush.msra.mxu0 %v1608
  %2864 = vmatmul.f32.gmra.mxu0 %v2774
  %v2865 = vpop.f32.mrf.mxu0
  %v2866 = vadd.f32 %v2843, %v2865
  %2867 = vmatmul.f32.gmra.mxu0 %v2777
  %v2868 = vpop.f32.mrf.mxu0
  %v2869 = vadd.f32 %v2846, %v2868
  %2870 = vdwg.mxu0
  %2871 = vmatpush.msra.mxu0 %v1543
  %2872 = vmatpush.msra.mxu0 %v1541
  %2873 = vmatpush.msra.mxu0 %v1539
  %2874 = vmatpush.msra.mxu0 %v1537
  %2875 = vmatpush.msra.mxu0 %v1535
  %2876 = vmatpush.msra.mxu0 %v1533
  %2877 = vmatpush.msra.mxu0 %v1531
  %2878 = vmatpush.msra.mxu0 %v1529
  %2879 = vmatpush.msra.mxu0 %v1527
  %2880 = vmatpush.msra.mxu0 %v1525
  %2881 = vmatpush.msra.mxu0 %v1523
  %2882 = vmatpush.msra.mxu0 %v1521
  %2883 = vmatpush.msra.mxu0 %v1519
  %2884 = vmatpush.msra.mxu0 %v1517
  %2885 = vmatpush.msra.mxu0 %v1515
  %2886 = vmatpush.msra.mxu0 %v1513
  %2887 = vmatmul.f32.gmra.mxu0 %v2543
  %v2888 = vpop.f32.mrf.mxu0
  %v2889 = vadd.f32 %v2768, %v2888
  %2890 = vmatmul.f32.gmra.mxu0 %v2547
  %v2891 = vpop.f32.mrf.mxu0
  %v2892 = vadd.f32 %v2771, %v2891
  %2893 = vdwg.mxu0
  %2894 = vmatpush.msra.mxu0 %v1575
  %2895 = vmatpush.msra.mxu0 %v1573
  %2896 = vmatpush.msra.mxu0 %v1571
  %2897 = vmatpush.msra.mxu0 %v1569
  %2898 = vmatpush.msra.mxu0 %v1567
  %2899 = vmatpush.msra.mxu0 %v1565
  %2900 = vmatpush.msra.mxu0 %v1563
  %2901 = vmatpush.msra.mxu0 %v1561
  %2902 = vmatpush.msra.mxu0 %v1559
  %2903 = vmatpush.msra.mxu0 %v1557
  %2904 = vmatpush.msra.mxu0 %v1555
  %2905 = vmatpush.msra.mxu0 %v1553
  %2906 = vmatpush.msra.mxu0 %v1551
  %2907 = vmatpush.msra.mxu0 %v1549
  %2908 = vmatpush.msra.mxu0 %v1547
  %2909 = vmatpush.msra.mxu0 %v1545
  %2910 = vmatmul.f32.gmra.mxu0 %v2544
  %v2911 = vpop.f32.mrf.mxu0
  %v2912 = vadd.f32 %v2889, %v2911
  %2913 = vmatmul.f32.gmra.mxu0 %v2548
  %v2914 = vpop.f32.mrf.mxu0
  %v2915 = vadd.f32 %v2892, %v2914
  %2916 = vdwg.mxu0
  %2917 = vmatpush.msra.mxu0 %v1607
  %2918 = vmatpush.msra.mxu0 %v1605
  %2919 = vmatpush.msra.mxu0 %v1603
  %2920 = vmatpush.msra.mxu0 %v1601
  %2921 = vmatpush.msra.mxu0 %v1599
  %2922 = vmatpush.msra.mxu0 %v1597
  %2923 = vmatpush.msra.mxu0 %v1595
  %2924 = vmatpush.msra.mxu0 %v1593
  %2925 = vmatpush.msra.mxu0 %v1591
  %2926 = vmatpush.msra.mxu0 %v1589
  %2927 = vmatpush.msra.mxu0 %v1587
  %2928 = vmatpush.msra.mxu0 %v1585
  %2929 = vmatpush.msra.mxu0 %v1583
  %2930 = vmatpush.msra.mxu0 %v1581
  %2931 = vmatpush.msra.mxu0 %v1579
  %2932 = vmatpush.msra.mxu0 %v1577
  %2933 = vmatmul.f32.gmra.mxu0 %v2545
  %v2934 = vpop.f32.mrf.mxu0
  %v2935 = vadd.f32 %v2912, %v2934
  %2936 = vmatmul.f32.gmra.mxu0 %v2549
  %v2937 = vpop.f32.mrf.mxu0
  %v2938 = vadd.f32 %v2915, %v2937
  %2939 = vdwg.mxu0
  %2940 = vmatpush.msra.mxu0 0.0
  %2941 = vmatpush.msra.mxu0 0.0
  %2942 = vmatpush.msra.mxu0 0.0
  %2943 = vmatpush.msra.mxu0 0.0
  %2944 = vmatpush.msra.mxu0 0.0
  %2945 = vmatpush.msra.mxu0 0.0
  %2946 = vmatpush.msra.mxu0 0.0
  %2947 = vmatpush.msra.mxu0 0.0
  %2948 = vmatpush.msra.mxu0 %v1623
  %2949 = vmatpush.msra.mxu0 %v1621
  %2950 = vmatpush.msra.mxu0 %v1619
  %2951 = vmatpush.msra.mxu0 %v1617
  %2952 = vmatpush.msra.mxu0 %v1615
  %2953 = vmatpush.msra.mxu0 %v1613
  %2954 = vmatpush.msra.mxu0 %v1611
  %2955 = vmatpush.msra.mxu0 %v1609
  %2956 = vmatmul.f32.gmra.mxu0 %v2774
  %v2957 = vpop.f32.mrf.mxu0
  %v2958 = vadd.f32 %v2935, %v2957
  %2959 = vmatmul.f32.gmra.mxu0 %v2777
  %v2960 = vpop.f32.mrf.mxu0
  %v2961 = vadd.f32 %v2938, %v2960
  %2962 = vdwg.mxu0
  %v2963 = vld [vmem:[%s1495] sm:$0xfc]
  %v2964 = vld [vmem:[%s1495 + $0x8] sm:$0xfc]
  %v2965 = vld [vmem:[%s1495 + $0x10] sm:$0xfc]
  %v2966 = vld [vmem:[%s1495 + $0x18] sm:$0xfc]
  %v2967 = vld [vmem:[%s1495 + $0x20] sm:$0x3f]
  %v2968 = vld [vmem:[%s1495 + $0x28] sm:$0x3f]
  %v2969 = vld [vmem:[%s1495 + $0x30] sm:$0x3f]
  %v2970 = vld [vmem:[%s1495 + $0x38] sm:$0x3f]
  %v2979 = vrot.slane %v2963, 2
  %v2980 = vrot.slane %v2967, 2
  %v2981 = vsel %vm490, %v2979, %v2980
  %v2982 = vrot.slane %v2964, 2
  %v2983 = vrot.slane %v2968, 2
  %v2984 = vsel %vm490, %v2982, %v2983
  %v2985 = vrot.slane %v2965, 2
  %v2986 = vrot.slane %v2969, 2
  %v2987 = vsel %vm490, %v2985, %v2986
  %v2988 = vrot.slane %v2966, 2
  %v2989 = vrot.slane %v2970, 2
  %v2990 = vsel %vm490, %v2988, %v2989
  %v2997 = vsel %vm515, %v2990, 0
  %v2999 = vsel %vm515, %v2989, 0
  %3001 = vmatpush.msra.mxu0 %v2189
  %3002 = vmatpush.msra.mxu0 %v2187
  %3003 = vmatpush.msra.mxu0 %v2185
  %3004 = vmatpush.msra.mxu0 %v2183
  %3005 = vmatpush.msra.mxu0 %v2181
  %3006 = vmatpush.msra.mxu0 %v2179
  %3007 = vmatpush.msra.mxu0 %v2177
  %3008 = vmatpush.msra.mxu0 %v2175
  %3009 = vmatpush.msra.mxu0 %v2173
  %3010 = vmatpush.msra.mxu0 %v2171
  %3011 = vmatpush.msra.mxu0 %v2169
  %3012 = vmatpush.msra.mxu0 %v2167
  %3013 = vmatpush.msra.mxu0 %v2165
  %3014 = vmatpush.msra.mxu0 %v2163
  %3015 = vmatpush.msra.mxu0 %v2161
  %3016 = vmatpush.msra.mxu0 %v2159
  %3017 = vmatmul.f32.gmra.mxu0 %v2981
  %v3018 = vpop.f32.mrf.mxu0
  %v3019 = vadd.f32 0.0, %v3018
  %3020 = vmatmul.f32.gmra.mxu0 %v2980
  %v3021 = vpop.f32.mrf.mxu0
  %v3022 = vadd.f32 0.0, %v3021
  %3023 = vdwg.mxu0
  %3024 = vmatpush.msra.mxu0 %v2221
  %3025 = vmatpush.msra.mxu0 %v2219
  %3026 = vmatpush.msra.mxu0 %v2217
  %3027 = vmatpush.msra.mxu0 %v2215
  %3028 = vmatpush.msra.mxu0 %v2213
  %3029 = vmatpush.msra.mxu0 %v2211
  %3030 = vmatpush.msra.mxu0 %v2209
  %3031 = vmatpush.msra.mxu0 %v2207
  %3032 = vmatpush.msra.mxu0 %v2205
  %3033 = vmatpush.msra.mxu0 %v2203
  %3034 = vmatpush.msra.mxu0 %v2201
  %3035 = vmatpush.msra.mxu0 %v2199
  %3036 = vmatpush.msra.mxu0 %v2197
  %3037 = vmatpush.msra.mxu0 %v2195
  %3038 = vmatpush.msra.mxu0 %v2193
  %3039 = vmatpush.msra.mxu0 %v2191
  %3040 = vmatmul.f32.gmra.mxu0 %v2984
  %v3041 = vpop.f32.mrf.mxu0
  %v3042 = vadd.f32 %v3019, %v3041
  %3043 = vmatmul.f32.gmra.mxu0 %v2983
  %v3044 = vpop.f32.mrf.mxu0
  %v3045 = vadd.f32 %v3022, %v3044
  %3046 = vdwg.mxu0
  %3047 = vmatpush.msra.mxu0 %v2253
  %3048 = vmatpush.msra.mxu0 %v2251
  %3049 = vmatpush.msra.mxu0 %v2249
  %3050 = vmatpush.msra.mxu0 %v2247
  %3051 = vmatpush.msra.mxu0 %v2245
  %3052 = vmatpush.msra.mxu0 %v2243
  %3053 = vmatpush.msra.mxu0 %v2241
  %3054 = vmatpush.msra.mxu0 %v2239
  %3055 = vmatpush.msra.mxu0 %v2237
  %3056 = vmatpush.msra.mxu0 %v2235
  %3057 = vmatpush.msra.mxu0 %v2233
  %3058 = vmatpush.msra.mxu0 %v2231
  %3059 = vmatpush.msra.mxu0 %v2229
  %3060 = vmatpush.msra.mxu0 %v2227
  %3061 = vmatpush.msra.mxu0 %v2225
  %3062 = vmatpush.msra.mxu0 %v2223
  %3063 = vmatmul.f32.gmra.mxu0 %v2987
  %v3064 = vpop.f32.mrf.mxu0
  %v3065 = vadd.f32 %v3042, %v3064
  %3066 = vmatmul.f32.gmra.mxu0 %v2986
  %v3067 = vpop.f32.mrf.mxu0
  %v3068 = vadd.f32 %v3045, %v3067
  %3069 = vdwg.mxu0
  %3070 = vmatpush.msra.mxu0 0.0
  %3071 = vmatpush.msra.mxu0 0.0
  %3072 = vmatpush.msra.mxu0 0.0
  %3073 = vmatpush.msra.mxu0 0.0
  %3074 = vmatpush.msra.mxu0 0.0
  %3075 = vmatpush.msra.mxu0 0.0
  %3076 = vmatpush.msra.mxu0 0.0
  %3077 = vmatpush.msra.mxu0 0.0
  %3078 = vmatpush.msra.mxu0 %v2269
  %3079 = vmatpush.msra.mxu0 %v2267
  %3080 = vmatpush.msra.mxu0 %v2265
  %3081 = vmatpush.msra.mxu0 %v2263
  %3082 = vmatpush.msra.mxu0 %v2261
  %3083 = vmatpush.msra.mxu0 %v2259
  %3084 = vmatpush.msra.mxu0 %v2257
  %3085 = vmatpush.msra.mxu0 %v2255
  %3086 = vmatmul.f32.gmra.mxu0 %v2997
  %v3087 = vpop.f32.mrf.mxu0
  %v3088 = vadd.f32 %v3065, %v3087
  %3089 = vmatmul.f32.gmra.mxu0 %v2999
  %v3090 = vpop.f32.mrf.mxu0
  %v3091 = vadd.f32 %v3068, %v3090
  %3092 = vdwg.mxu0
  %3093 = vmatpush.msra.mxu0 %v2190
  %3094 = vmatpush.msra.mxu0 %v2188
  %3095 = vmatpush.msra.mxu0 %v2186
  %3096 = vmatpush.msra.mxu0 %v2184
  %3097 = vmatpush.msra.mxu0 %v2182
  %3098 = vmatpush.msra.mxu0 %v2180
  %3099 = vmatpush.msra.mxu0 %v2178
  %3100 = vmatpush.msra.mxu0 %v2176
  %3101 = vmatpush.msra.mxu0 %v2174
  %3102 = vmatpush.msra.mxu0 %v2172
  %3103 = vmatpush.msra.mxu0 %v2170
  %3104 = vmatpush.msra.mxu0 %v2168
  %3105 = vmatpush.msra.mxu0 %v2166
  %3106 = vmatpush.msra.mxu0 %v2164
  %3107 = vmatpush.msra.mxu0 %v2162
  %3108 = vmatpush.msra.mxu0 %v2160
  %3109 = vmatmul.f32.gmra.mxu0 %v2981
  %v3110 = vpop.f32.mrf.mxu0
  %v3111 = vadd.f32 0.0, %v3110
  %3112 = vmatmul.f32.gmra.mxu0 %v2980
  %v3113 = vpop.f32.mrf.mxu0
  %v3114 = vadd.f32 0.0, %v3113
  %3115 = vdwg.mxu0
  %3116 = vmatpush.msra.mxu0 %v2222
  %3117 = vmatpush.msra.mxu0 %v2220
  %3118 = vmatpush.msra.mxu0 %v2218
  %3119 = vmatpush.msra.mxu0 %v2216
  %3120 = vmatpush.msra.mxu0 %v2214
  %3121 = vmatpush.msra.mxu0 %v2212
  %3122 = vmatpush.msra.mxu0 %v2210
  %3123 = vmatpush.msra.mxu0 %v2208
  %3124 = vmatpush.msra.mxu0 %v2206
  %3125 = vmatpush.msra.mxu0 %v2204
  %3126 = vmatpush.msra.mxu0 %v2202
  %3127 = vmatpush.msra.mxu0 %v2200
  %3128 = vmatpush.msra.mxu0 %v2198
  %3129 = vmatpush.msra.mxu0 %v2196
  %3130 = vmatpush.msra.mxu0 %v2194
  %3131 = vmatpush.msra.mxu0 %v2192
  %3132 = vmatmul.f32.gmra.mxu0 %v2984
  %v3133 = vpop.f32.mrf.mxu0
  %v3134 = vadd.f32 %v3111, %v3133
  %3135 = vmatmul.f32.gmra.mxu0 %v2983
  %v3136 = vpop.f32.mrf.mxu0
  %v3137 = vadd.f32 %v3114, %v3136
  %3138 = vdwg.mxu0
  %3139 = vmatpush.msra.mxu0 %v2254
  %3140 = vmatpush.msra.mxu0 %v2252
  %3141 = vmatpush.msra.mxu0 %v2250
  %3142 = vmatpush.msra.mxu0 %v2248
  %3143 = vmatpush.msra.mxu0 %v2246
  %3144 = vmatpush.msra.mxu0 %v2244
  %3145 = vmatpush.msra.mxu0 %v2242
  %3146 = vmatpush.msra.mxu0 %v2240
  %3147 = vmatpush.msra.mxu0 %v2238
  %3148 = vmatpush.msra.mxu0 %v2236
  %3149 = vmatpush.msra.mxu0 %v2234
  %3150 = vmatpush.msra.mxu0 %v2232
  %3151 = vmatpush.msra.mxu0 %v2230
  %3152 = vmatpush.msra.mxu0 %v2228
  %3153 = vmatpush.msra.mxu0 %v2226
  %3154 = vmatpush.msra.mxu0 %v2224
  %3155 = vmatmul.f32.gmra.mxu0 %v2987
  %v3156 = vpop.f32.mrf.mxu0
  %v3157 = vadd.f32 %v3134, %v3156
  %3158 = vmatmul.f32.gmra.mxu0 %v2986
  %v3159 = vpop.f32.mrf.mxu0
  %v3160 = vadd.f32 %v3137, %v3159
  %3161 = vdwg.mxu0
  %3162 = vmatpush.msra.mxu0 0.0
  %3163 = vmatpush.msra.mxu0 0.0
  %3164 = vmatpush.msra.mxu0 0.0
  %3165 = vmatpush.msra.mxu0 0.0
  %3166 = vmatpush.msra.mxu0 0.0
  %3167 = vmatpush.msra.mxu0 0.0
  %3168 = vmatpush.msra.mxu0 0.0
  %3169 = vmatpush.msra.mxu0 0.0
  %3170 = vmatpush.msra.mxu0 %v2270
  %3171 = vmatpush.msra.mxu0 %v2268
  %3172 = vmatpush.msra.mxu0 %v2266
  %3173 = vmatpush.msra.mxu0 %v2264
  %3174 = vmatpush.msra.mxu0 %v2262
  %3175 = vmatpush.msra.mxu0 %v2260
  %3176 = vmatpush.msra.mxu0 %v2258
  %3177 = vmatpush.msra.mxu0 %v2256
  %3178 = vmatmul.f32.gmra.mxu0 %v2997
  %v3179 = vpop.f32.mrf.mxu0
  %v3180 = vadd.f32 %v3157, %v3179
  %3181 = vmatmul.f32.gmra.mxu0 %v2999
  %v3182 = vpop.f32.mrf.mxu0
  %v3183 = vadd.f32 %v3160, %v3182
  %3184 = vdwg.mxu0
  %v3185 = vadd.f32 %v2866, %v3088
  %v3186 = vadd.f32 %v2958, %v3180
  %v3187 = vadd.f32 %v2869, %v3091
  %v3188 = vadd.f32 %v2961, %v3183
  %v3189 = vadd.f32 %v3185, %v2491
  %v3190 = vadd.f32 %v3186, %v2492
  %v3191 = vadd.f32 %v3187, %v2491
  %v3192 = vadd.f32 %v3188, %v2492
  %v3193 = vsel %vm2499, %v3191, 0.0
  %v3194 = vadd.f32 %v3189, %v3193
  %v3195 = vrot.slane %v3194, 4
  %v3196 = vadd.f32 %v3194, %v3195
  %v3197 = vrot.slane %v3196, 2
  %v3198 = vadd.f32 %v3196, %v3197
  %v3199 = vrot.slane %v3198, 1
  %v3200 = vadd.f32 %v3198, %v3199
  %v3201 = vsel %vm515, %v3190, 0.0
  %v3202 = vsel %vm2509, %v3192, 0.0
  %v3203 = vadd.f32 %v3201, %v3202
  %v3204 = vrot.slane %v3203, 4
  %v3205 = vadd.f32 %v3203, %v3204
  %v3206 = vrot.slane %v3205, 2
  %v3207 = vadd.f32 %v3205, %v3206
  %v3208 = vrot.slane %v3207, 1
  %v3209 = vadd.f32 %v3207, %v3208
  %v3210 = vadd.f32 %v2518, %v3200
  %v3211 = vadd.f32 %v2519, %v3209
  %v3212 = vmul.f32 %v3189, %v3189
  %v3213 = vmul.f32 %v3190, %v3190
  %v3214 = vmul.f32 %v3191, %v3191
  %v3215 = vmul.f32 %v3192, %v3192
  %v3216 = vsel %vm2499, %v3214, 0.0
  %v3217 = vadd.f32 %v3212, %v3216
  %v3218 = vrot.slane %v3217, 4
  %v3219 = vadd.f32 %v3217, %v3218
  %v3220 = vrot.slane %v3219, 2
  %v3221 = vadd.f32 %v3219, %v3220
  %v3222 = vrot.slane %v3221, 1
  %v3223 = vadd.f32 %v3221, %v3222
  %v3224 = vsel %vm515, %v3213, 0.0
  %v3225 = vsel %vm2509, %v3215, 0.0
  %v3226 = vadd.f32 %v3224, %v3225
  %v3227 = vrot.slane %v3226, 4
  %v3228 = vadd.f32 %v3226, %v3227
  %v3229 = vrot.slane %v3228, 2
  %v3230 = vadd.f32 %v3228, %v3229
  %v3231 = vrot.slane %v3230, 1
  %v3232 = vadd.f32 %v3230, %v3231
  %v3233 = vadd.f32 %v2541, %v3223
  %v3234 = vadd.f32 %v2542, %v3232
  %v3235 = vld [vmem:[%s12] sm:$0xff]
  %v3236 = vld [vmem:[%s12 + $0x8] sm:$0xff]
  %v3237 = vld [vmem:[%s12 + $0x10] sm:$0xff]
  %v3238 = vld [vmem:[%s12 + $0x18] sm:$0xff]
  %v3239 = vld [vmem:[%s12 + $0x20] sm:$0xff]
  %v3240 = vld [vmem:[%s12 + $0x28] sm:$0xff]
  %v3241 = vld [vmem:[%s12 + $0x30] sm:$0xff]
  %v3242 = vld [vmem:[%s12 + $0x38] sm:$0xff]
  %v3243 = vld [vmem:[%s12 + $0x40] sm:$0xff]
  %v3244 = vld [vmem:[%s12 + $0x48] sm:$0xff]
  %v3245 = vld [vmem:[%s12 + $0x50] sm:$0xff]
  %v3246 = vld [vmem:[%s12 + $0x58] sm:$0xff]
  %v3247 = vld [vmem:[%s12 + $0x60] sm:$0xff]
  %v3248 = vld [vmem:[%s12 + $0x68] sm:$0xff]
  %v3249 = vld [vmem:[%s12 + $0x70] sm:$0xff]
  %v3250 = vld [vmem:[%s12 + $0x78] sm:$0xff]
  %v3251 = vld [vmem:[%s12 + $0x80] sm:$0xff]
  %v3252 = vld [vmem:[%s12 + $0x88] sm:$0xff]
  %v3253 = vld [vmem:[%s12 + $0x90] sm:$0xff]
  %v3254 = vld [vmem:[%s12 + $0x98] sm:$0xff]
  %v3255 = vld [vmem:[%s12 + $0xa0] sm:$0xff]
  %v3256 = vld [vmem:[%s12 + $0xa8] sm:$0xff]
  %v3257 = vld [vmem:[%s12 + $0xb0] sm:$0xff]
  %v3258 = vld [vmem:[%s12 + $0xb8] sm:$0xff]
  %v3260 = vsel %vm515, %v3211, 0
  %3262 = vmatpush.msra.mxu0 %v3250
  %3263 = vmatpush.msra.mxu0 %v3249
  %3264 = vmatpush.msra.mxu0 %v3248
  %3265 = vmatpush.msra.mxu0 %v3247
  %3266 = vmatpush.msra.mxu0 %v3246
  %3267 = vmatpush.msra.mxu0 %v3245
  %3268 = vmatpush.msra.mxu0 %v3244
  %3269 = vmatpush.msra.mxu0 %v3243
  %3270 = vmatpush.msra.mxu0 %v3242
  %3271 = vmatpush.msra.mxu0 %v3241
  %3272 = vmatpush.msra.mxu0 %v3240
  %3273 = vmatpush.msra.mxu0 %v3239
  %3274 = vmatpush.msra.mxu0 %v3238
  %3275 = vmatpush.msra.mxu0 %v3237
  %3276 = vmatpush.msra.mxu0 %v3236
  %3277 = vmatpush.msra.mxu0 %v3235
  %3278 = vmatmul.f32.gmra.mxu0 %v3210
  %v3279 = vpop.f32.mrf.mxu0
  %v3280 = vadd.f32 0.0, %v3279
  %3281 = vdwg.mxu0
  %3282 = vmatpush.msra.mxu0 0.0
  %3283 = vmatpush.msra.mxu0 0.0
  %3284 = vmatpush.msra.mxu0 0.0
  %3285 = vmatpush.msra.mxu0 0.0
  %3286 = vmatpush.msra.mxu0 0.0
  %3287 = vmatpush.msra.mxu0 0.0
  %3288 = vmatpush.msra.mxu0 0.0
  %3289 = vmatpush.msra.mxu0 0.0
  %3290 = vmatpush.msra.mxu0 %v3258
  %3291 = vmatpush.msra.mxu0 %v3257
  %3292 = vmatpush.msra.mxu0 %v3256
  %3293 = vmatpush.msra.mxu0 %v3255
  %3294 = vmatpush.msra.mxu0 %v3254
  %3295 = vmatpush.msra.mxu0 %v3253
  %3296 = vmatpush.msra.mxu0 %v3252
  %3297 = vmatpush.msra.mxu0 %v3251
  %3298 = vmatmul.f32.gmra.mxu0 %v3260
  %v3299 = vpop.f32.mrf.mxu0
  %v3300 = vadd.f32 %v3280, %v3299
  %3301 = vdwg.mxu0
  %v3303 = vsel %vm515, %v3234, 0
  %3305 = vmatpush.msra.mxu0 %v3250
  %3306 = vmatpush.msra.mxu0 %v3249
  %3307 = vmatpush.msra.mxu0 %v3248
  %3308 = vmatpush.msra.mxu0 %v3247
  %3309 = vmatpush.msra.mxu0 %v3246
  %3310 = vmatpush.msra.mxu0 %v3245
  %3311 = vmatpush.msra.mxu0 %v3244
  %3312 = vmatpush.msra.mxu0 %v3243
  %3313 = vmatpush.msra.mxu0 %v3242
  %3314 = vmatpush.msra.mxu0 %v3241
  %3315 = vmatpush.msra.mxu0 %v3240
  %3316 = vmatpush.msra.mxu0 %v3239
  %3317 = vmatpush.msra.mxu0 %v3238
  %3318 = vmatpush.msra.mxu0 %v3237
  %3319 = vmatpush.msra.mxu0 %v3236
  %3320 = vmatpush.msra.mxu0 %v3235
  %3321 = vmatmul.f32.gmra.mxu0 %v3233
  %v3322 = vpop.f32.mrf.mxu0
  %v3323 = vadd.f32 0.0, %v3322
  %3324 = vdwg.mxu0
  %3325 = vmatpush.msra.mxu0 0.0
  %3326 = vmatpush.msra.mxu0 0.0
  %3327 = vmatpush.msra.mxu0 0.0
  %3328 = vmatpush.msra.mxu0 0.0
  %3329 = vmatpush.msra.mxu0 0.0
  %3330 = vmatpush.msra.mxu0 0.0
  %3331 = vmatpush.msra.mxu0 0.0
  %3332 = vmatpush.msra.mxu0 0.0
  %3333 = vmatpush.msra.mxu0 %v3258
  %3334 = vmatpush.msra.mxu0 %v3257
  %3335 = vmatpush.msra.mxu0 %v3256
  %3336 = vmatpush.msra.mxu0 %v3255
  %3337 = vmatpush.msra.mxu0 %v3254
  %3338 = vmatpush.msra.mxu0 %v3253
  %3339 = vmatpush.msra.mxu0 %v3252
  %3340 = vmatpush.msra.mxu0 %v3251
  %3341 = vmatmul.f32.gmra.mxu0 %v3303
  %v3342 = vpop.f32.mrf.mxu0
  %v3343 = vadd.f32 %v3323, %v3342
  %3344 = vdwg.mxu0
  %v3345 = vmul.f32 %v3300, 0.0034722222
  %v3346 = vmul.f32 %v3343, 0.0034722222
  %v3347 = vmul.f32 %v3345, %v3345
  %v3348 = vsub.f32 %v3346, %v3347
  %v3349 = vld [vmem:[%s10] sm:$0x1]
  %v3350 = vadd.f32 %v3348, 1e-05
  %v3351 = vrsqrt.pop %v3350
  %v3352 = vmul.f32 %v3351, %v3350
  %v3353 = vmul.f32 %v3352, %v3351
  %v3354 = vmul.f32 0.5, %v3353
  %v3355 = vsub.f32 1.5, %v3354
  %v3356 = vmul.f32 %v3351, %v3355
  %vm3357 = vweird.f32 %v3350
  %vm3358 = vweird.f32 %v3351
  %vm3359 = vmor %vm3357, %vm3358
  %v3360 = vsel %vm3359, %v3351, %v3356
  %v3361 = vmul.f32 %v3349, %v3360
  %v3362 = vld [vmem:[%s11] sm:$0x1]
  %v3363 = vmul.f32 %v3345, %v3361
  %v3364 = vsub.f32 %v3362, %v3363
  %v3365 = vld [vmem:[%s13] sm:$0xff]
  %v3366 = vld [vmem:[%s13 + $0x8] sm:$0xff]
  %v3367 = vld [vmem:[%s13 + $0x10] sm:$0xff]
  %v3368 = vld [vmem:[%s13 + $0x18] sm:$0xff]
  %vm3369 = vcmask 130048
  %v3371 = vsel %vm3369, %v3361, 0
  %3373 = vmatpush.msra.mxu0 0.0
  %3374 = vmatpush.msra.mxu0 0.0
  %3375 = vmatpush.msra.mxu0 0.0
  %3376 = vmatpush.msra.mxu0 0.0
  %3377 = vmatpush.msra.mxu0 0.0
  %3378 = vmatpush.msra.mxu0 0.0
  %3379 = vmatpush.msra.mxu0 0.0
  %3380 = vmatpush.msra.mxu0 0.0
  %3381 = vmatpush.msra.mxu0 0.0
  %3382 = vmatpush.msra.mxu0 0.0
  %3383 = vmatpush.msra.mxu0 0.0
  %3384 = vmatpush.msra.mxu0 0.0
  %3385 = vmatpush.msra.mxu0 0.0
  %3386 = vmatpush.msra.mxu0 0.0
  %3387 = vmatpush.msra.mxu0 %v3367
  %3388 = vmatpush.msra.mxu0 %v3365
  %3389 = vmatmul.f32.gmra.mxu0 %v3371
  %v3390 = vpop.f32.mrf.mxu0
  %v3391 = vadd.f32 0.0, %v3390
  %3392 = vdwg.mxu0
  %3393 = vmatpush.msra.mxu0 0.0
  %3394 = vmatpush.msra.mxu0 0.0
  %3395 = vmatpush.msra.mxu0 0.0
  %3396 = vmatpush.msra.mxu0 0.0
  %3397 = vmatpush.msra.mxu0 0.0
  %3398 = vmatpush.msra.mxu0 0.0
  %3399 = vmatpush.msra.mxu0 0.0
  %3400 = vmatpush.msra.mxu0 0.0
  %3401 = vmatpush.msra.mxu0 0.0
  %3402 = vmatpush.msra.mxu0 0.0
  %3403 = vmatpush.msra.mxu0 0.0
  %3404 = vmatpush.msra.mxu0 0.0
  %3405 = vmatpush.msra.mxu0 0.0
  %3406 = vmatpush.msra.mxu0 0.0
  %3407 = vmatpush.msra.mxu0 %v3368
  %3408 = vmatpush.msra.mxu0 %v3366
  %3409 = vmatmul.f32.gmra.mxu0 %v3371
  %v3410 = vpop.f32.mrf.mxu0
  %v3411 = vadd.f32 0.0, %v3410
  %3412 = vdwg.mxu0
  %v3414 = vsel %vm3369, %v3364, 0
  %3416 = vmatpush.msra.mxu0 0.0
  %3417 = vmatpush.msra.mxu0 0.0
  %3418 = vmatpush.msra.mxu0 0.0
  %3419 = vmatpush.msra.mxu0 0.0
  %3420 = vmatpush.msra.mxu0 0.0
  %3421 = vmatpush.msra.mxu0 0.0
  %3422 = vmatpush.msra.mxu0 0.0
  %3423 = vmatpush.msra.mxu0 0.0
  %3424 = vmatpush.msra.mxu0 0.0
  %3425 = vmatpush.msra.mxu0 0.0
  %3426 = vmatpush.msra.mxu0 0.0
  %3427 = vmatpush.msra.mxu0 0.0
  %3428 = vmatpush.msra.mxu0 0.0
  %3429 = vmatpush.msra.mxu0 0.0
  %3430 = vmatpush.msra.mxu0 %v3367
  %3431 = vmatpush.msra.mxu0 %v3365
  %3432 = vmatmul.f32.gmra.mxu0 %v3414
  %v3433 = vpop.f32.mrf.mxu0
  %v3434 = vadd.f32 0.0, %v3433
  %3435 = vdwg.mxu0
  %3436 = vmatpush.msra.mxu0 0.0
  %3437 = vmatpush.msra.mxu0 0.0
  %3438 = vmatpush.msra.mxu0 0.0
  %3439 = vmatpush.msra.mxu0 0.0
  %3440 = vmatpush.msra.mxu0 0.0
  %3441 = vmatpush.msra.mxu0 0.0
  %3442 = vmatpush.msra.mxu0 0.0
  %3443 = vmatpush.msra.mxu0 0.0
  %3444 = vmatpush.msra.mxu0 0.0
  %3445 = vmatpush.msra.mxu0 0.0
  %3446 = vmatpush.msra.mxu0 0.0
  %3447 = vmatpush.msra.mxu0 0.0
  %3448 = vmatpush.msra.mxu0 0.0
  %3449 = vmatpush.msra.mxu0 0.0
  %3450 = vmatpush.msra.mxu0 %v3368
  %3451 = vmatpush.msra.mxu0 %v3366
  %3452 = vmatmul.f32.gmra.mxu0 %v3414
  %v3453 = vpop.f32.mrf.mxu0
  %v3454 = vadd.f32 0.0, %v3453
  %3455 = vdwg.mxu0
  %v3456 = vperm.slane %v3391, 0
  %v3457 = vperm.slane %v3411, 0
  %v3458 = vmul.f32 %v2495, %v3456
  %v3459 = vmul.f32 %v2496, %v3457
  %v3460 = vmul.f32 %v2497, %v3456
  %v3461 = vmul.f32 %v2498, %v3457
  %v3462 = vperm.slane %v3434, 0
  %v3463 = vperm.slane %v3454, 0
  %v3464 = vadd.f32 %v3458, %v3462
  %v3465 = vadd.f32 %v3459, %v3463
  %v3466 = vadd.f32 %v3460, %v3462
  %v3467 = vadd.f32 %v3461, %v3463
  %vm3468 = vcmp.ge.f32.partialorder %v3464, 0.0
  %vm3469 = vcmp.ge.f32.partialorder %v3465, 0.0
  %vm3470 = vcmp.ge.f32.partialorder %v3466, 0.0
  %vm3471 = vcmp.ge.f32.partialorder %v3467, 0.0
  %v3472 = vmul.f32 %v3464, 0.2
  %v3473 = vmul.f32 %v3465, 0.2
  %v3474 = vmul.f32 %v3466, 0.2
  %v3475 = vmul.f32 %v3467, 0.2
  %v3476 = vsel %vm3468, %v3464, %v3472
  %v3477 = vsel %vm3469, %v3465, %v3473
  %v3478 = vsel %vm3470, %v3466, %v3474
  %v3479 = vsel %vm3471, %v3467, %v3475
  %3480 = vst [vmem:[#allocation3] sm:$0xff] %v3476
  %3481 = vst.msk [vmem:[#allocation3 + $0x8] sm:$0xff] %vm515, %v3477
  %3482 = vst [vmem:[#allocation3 + $0x10] sm:$0xf] %v3478
  %3483 = vst.msk [vmem:[#allocation3 + $0x18] sm:$0xf] %vm2509, %v3479
  %v3484 = vmul.f32 %v3189, %v3456
  %v3485 = vmul.f32 %v3190, %v3457
  %v3486 = vmul.f32 %v3191, %v3456
  %v3487 = vmul.f32 %v3192, %v3457
  %v3488 = vadd.f32 %v3484, %v3462
  %v3489 = vadd.f32 %v3485, %v3463
  %v3490 = vadd.f32 %v3486, %v3462
  %v3491 = vadd.f32 %v3487, %v3463
  %vm3492 = vcmp.ge.f32.partialorder %v3488, 0.0
  %vm3493 = vcmp.ge.f32.partialorder %v3489, 0.0
  %vm3494 = vcmp.ge.f32.partialorder %v3490, 0.0
  %vm3495 = vcmp.ge.f32.partialorder %v3491, 0.0
  %v3496 = vmul.f32 %v3488, 0.2
  %v3497 = vmul.f32 %v3489, 0.2
  %v3498 = vmul.f32 %v3490, 0.2
  %v3499 = vmul.f32 %v3491, 0.2
  %v3500 = vsel %vm3492, %v3488, %v3496
  %v3501 = vsel %vm3493, %v3489, %v3497
  %v3502 = vsel %vm3494, %v3490, %v3498
  %v3503 = vsel %vm3495, %v3491, %v3499
  %s3504 = scalar_lea.vmem [#allocation3], 32
  %3505 = vst [vmem:[%s3504] sm:$0xff] %v3500
  %3506 = vst.msk [vmem:[%s3504 + $0x8] sm:$0xff] %vm515, %v3501
  %3507 = vst [vmem:[%s3504 + $0x10] sm:$0xf] %v3502
  %3508 = vst.msk [vmem:[%s3504 + $0x18] sm:$0xf] %vm2509, %v3503
  %v3509 = vld [vmem:[#allocation3] sm:$0xff]
  %v3510 = vld [vmem:[#allocation3 + $0x8] sm:$0xff]
  %v3511 = vld [vmem:[#allocation3 + $0x10] sm:$0x3]
  %v3512 = vld [vmem:[#allocation3 + $0x18] sm:$0x3]
  %v3513 = vld [vmem:[%s14] sm:$0xff]
  %v3514 = vld [vmem:[%s14 + $0x8] sm:$0xff]
  %v3515 = vld [vmem:[%s14 + $0x10] sm:$0xff]
  %v3516 = vld [vmem:[%s14 + $0x18] sm:$0xff]
  %v3517 = vld [vmem:[%s14 + $0x20] sm:$0xff]
  %v3518 = vld [vmem:[%s14 + $0x28] sm:$0xff]
  %v3519 = vld [vmem:[%s14 + $0x30] sm:$0xff]
  %v3520 = vld [vmem:[%s14 + $0x38] sm:$0xff]
  %v3521 = vld [vmem:[%s14 + $0x40] sm:$0xff]
  %v3522 = vld [vmem:[%s14 + $0x48] sm:$0xff]
  %v3523 = vld [vmem:[%s14 + $0x50] sm:$0xff]
  %v3524 = vld [vmem:[%s14 + $0x58] sm:$0xff]
  %v3525 = vld [vmem:[%s14 + $0x60] sm:$0xff]
  %v3526 = vld [vmem:[%s14 + $0x68] sm:$0xff]
  %v3527 = vld [vmem:[%s14 + $0x70] sm:$0xff]
  %v3528 = vld [vmem:[%s14 + $0x78] sm:$0xff]
  %v3529 = vld [vmem:[%s14 + $0x80] sm:$0xff]
  %v3530 = vld [vmem:[%s14 + $0x88] sm:$0xff]
  %v3531 = vld [vmem:[%s14 + $0x90] sm:$0xff]
  %v3532 = vld [vmem:[%s14 + $0x98] sm:$0xff]
  %v3533 = vld [vmem:[%s14 + $0xa0] sm:$0xff]
  %v3534 = vld [vmem:[%s14 + $0xa8] sm:$0xff]
  %v3535 = vld [vmem:[%s14 + $0xb0] sm:$0xff]
  %v3536 = vld [vmem:[%s14 + $0xb8] sm:$0xff]
  %v3537 = vld [vmem:[#allocation3] sm:$0xfe]
  %v3538 = vld [vmem:[#allocation3 + $0x8] sm:$0xfe]
  %v3539 = vld [vmem:[#allocation3 + $0x10] sm:$0x7]
  %v3540 = vld [vmem:[#allocation3 + $0x18] sm:$0x7]
  %s3541 = scalar_lea.vmem %s14, 192
  %v3542 = vld [vmem:[%s3541] sm:$0xff]
  %v3543 = vld [vmem:[%s3541 + $0x8] sm:$0xff]
  %v3544 = vld [vmem:[%s3541 + $0x10] sm:$0xff]
  %v3545 = vld [vmem:[%s3541 + $0x18] sm:$0xff]
  %v3546 = vld [vmem:[%s3541 + $0x20] sm:$0xff]
  %v3547 = vld [vmem:[%s3541 + $0x28] sm:$0xff]
  %v3548 = vld [vmem:[%s3541 + $0x30] sm:$0xff]
  %v3549 = vld [vmem:[%s3541 + $0x38] sm:$0xff]
  %v3550 = vld [vmem:[%s3541 + $0x40] sm:$0xff]
  %v3551 = vld [vmem:[%s3541 + $0x48] sm:$0xff]
  %v3552 = vld [vmem:[%s3541 + $0x50] sm:$0xff]
  %v3553 = vld [vmem:[%s3541 + $0x58] sm:$0xff]
  %v3554 = vld [vmem:[%s3541 + $0x60] sm:$0xff]
  %v3555 = vld [vmem:[%s3541 + $0x68] sm:$0xff]
  %v3556 = vld [vmem:[%s3541 + $0x70] sm:$0xff]
  %v3557 = vld [vmem:[%s3541 + $0x78] sm:$0xff]
  %v3558 = vld [vmem:[%s3541 + $0x80] sm:$0xff]
  %v3559 = vld [vmem:[%s3541 + $0x88] sm:$0xff]
  %v3560 = vld [vmem:[%s3541 + $0x90] sm:$0xff]
  %v3561 = vld [vmem:[%s3541 + $0x98] sm:$0xff]
  %v3562 = vld [vmem:[%s3541 + $0xa0] sm:$0xff]
  %v3563 = vld [vmem:[%s3541 + $0xa8] sm:$0xff]
  %v3564 = vld [vmem:[%s3541 + $0xb0] sm:$0xff]
  %v3565 = vld [vmem:[%s3541 + $0xb8] sm:$0xff]
  %v3570 = vrot.slane %v3537, 1
  %v3571 = vrot.slane %v3539, 1
  %v3572 = vsel %vm1753, %v3570, %v3571
  %v3573 = vrot.slane %v3538, 1
  %v3574 = vrot.slane %v3540, 1
  %v3575 = vsel %vm1753, %v3573, %v3574
  %v3578 = vsel %vm515, %v3575, 0
  %v3580 = vsel %vm515, %v3574, 0
  %3582 = vmatpush.msra.mxu0 %v3557
  %3583 = vmatpush.msra.mxu0 %v3556
  %3584 = vmatpush.msra.mxu0 %v3555
  %3585 = vmatpush.msra.mxu0 %v3554
  %3586 = vmatpush.msra.mxu0 %v3553
  %3587 = vmatpush.msra.mxu0 %v3552
  %3588 = vmatpush.msra.mxu0 %v3551
  %3589 = vmatpush.msra.mxu0 %v3550
  %3590 = vmatpush.msra.mxu0 %v3549
  %3591 = vmatpush.msra.mxu0 %v3548
  %3592 = vmatpush.msra.mxu0 %v3547
  %3593 = vmatpush.msra.mxu0 %v3546
  %3594 = vmatpush.msra.mxu0 %v3545
  %3595 = vmatpush.msra.mxu0 %v3544
  %3596 = vmatpush.msra.mxu0 %v3543
  %3597 = vmatpush.msra.mxu0 %v3542
  %3598 = vmatmul.f32.gmra.mxu0 %v3572
  %v3599 = vpop.f32.mrf.mxu0
  %v3600 = vadd.f32 0.0, %v3599
  %3601 = vmatmul.f32.gmra.mxu0 %v3571
  %v3602 = vpop.f32.mrf.mxu0
  %v3603 = vadd.f32 0.0, %v3602
  %3604 = vdwg.mxu0
  %3605 = vmatpush.msra.mxu0 0.0
  %3606 = vmatpush.msra.mxu0 0.0
  %3607 = vmatpush.msra.mxu0 0.0
  %3608 = vmatpush.msra.mxu0 0.0
  %3609 = vmatpush.msra.mxu0 0.0
  %3610 = vmatpush.msra.mxu0 0.0
  %3611 = vmatpush.msra.mxu0 0.0
  %3612 = vmatpush.msra.mxu0 0.0
  %3613 = vmatpush.msra.mxu0 %v3565
  %3614 = vmatpush.msra.mxu0 %v3564
  %3615 = vmatpush.msra.mxu0 %v3563
  %3616 = vmatpush.msra.mxu0 %v3562
  %3617 = vmatpush.msra.mxu0 %v3561
  %3618 = vmatpush.msra.mxu0 %v3560
  %3619 = vmatpush.msra.mxu0 %v3559
  %3620 = vmatpush.msra.mxu0 %v3558
  %3621 = vmatmul.f32.gmra.mxu0 %v3578
  %v3622 = vpop.f32.mrf.mxu0
  %v3623 = vadd.f32 %v3600, %v3622
  %3624 = vmatmul.f32.gmra.mxu0 %v3580
  %v3625 = vpop.f32.mrf.mxu0
  %v3626 = vadd.f32 %v3603, %v3625
  %3627 = vdwg.mxu0
  %v3629 = vsel %vm515, %v3510, 0
  %v3632 = vsel %vm515, %v3512, 0
  %3634 = vmatpush.msra.mxu0 %v3528
  %3635 = vmatpush.msra.mxu0 %v3527
  %3636 = vmatpush.msra.mxu0 %v3526
  %3637 = vmatpush.msra.mxu0 %v3525
  %3638 = vmatpush.msra.mxu0 %v3524
  %3639 = vmatpush.msra.mxu0 %v3523
  %3640 = vmatpush.msra.mxu0 %v3522
  %3641 = vmatpush.msra.mxu0 %v3521
  %3642 = vmatpush.msra.mxu0 %v3520
  %3643 = vmatpush.msra.mxu0 %v3519
  %3644 = vmatpush.msra.mxu0 %v3518
  %3645 = vmatpush.msra.mxu0 %v3517
  %3646 = vmatpush.msra.mxu0 %v3516
  %3647 = vmatpush.msra.mxu0 %v3515
  %3648 = vmatpush.msra.mxu0 %v3514
  %3649 = vmatpush.msra.mxu0 %v3513
  %3650 = vmatmul.f32.gmra.mxu0 %v3509
  %v3651 = vpop.f32.mrf.mxu0
  %v3652 = vadd.f32 %v3623, %v3651
  %3653 = vmatmul.f32.gmra.mxu0 %v3511
  %v3654 = vpop.f32.mrf.mxu0
  %v3655 = vadd.f32 %v3626, %v3654
  %3656 = vdwg.mxu0
  %3657 = vmatpush.msra.mxu0 0.0
  %3658 = vmatpush.msra.mxu0 0.0
  %3659 = vmatpush.msra.mxu0 0.0
  %3660 = vmatpush.msra.mxu0 0.0
  %3661 = vmatpush.msra.mxu0 0.0
  %3662 = vmatpush.msra.mxu0 0.0
  %3663 = vmatpush.msra.mxu0 0.0
  %3664 = vmatpush.msra.mxu0 0.0
  %3665 = vmatpush.msra.mxu0 %v3536
  %3666 = vmatpush.msra.mxu0 %v3535
  %3667 = vmatpush.msra.mxu0 %v3534
  %3668 = vmatpush.msra.mxu0 %v3533
  %3669 = vmatpush.msra.mxu0 %v3532
  %3670 = vmatpush.msra.mxu0 %v3531
  %3671 = vmatpush.msra.mxu0 %v3530
  %3672 = vmatpush.msra.mxu0 %v3529
  %3673 = vmatmul.f32.gmra.mxu0 %v3629
  %v3674 = vpop.f32.mrf.mxu0
  %v3675 = vadd.f32 %v3652, %v3674
  %3676 = vmatmul.f32.gmra.mxu0 %v3632
  %v3677 = vpop.f32.mrf.mxu0
  %v3678 = vadd.f32 %v3655, %v3677
  %3679 = vdwg.mxu0
  %v3680 = vld [vmem:[#allocation3] sm:$0xfc]
  %v3681 = vld [vmem:[#allocation3 + $0x8] sm:$0xfc]
  %v3682 = vld [vmem:[#allocation3 + $0x10] sm:$0xf]
  %v3683 = vld [vmem:[#allocation3 + $0x18] sm:$0xf]
  %s3684 = scalar_lea.vmem %s14, 384
  %v3685 = vld [vmem:[%s3684] sm:$0xff]
  %v3686 = vld [vmem:[%s3684 + $0x8] sm:$0xff]
  %v3687 = vld [vmem:[%s3684 + $0x10] sm:$0xff]
  %v3688 = vld [vmem:[%s3684 + $0x18] sm:$0xff]
  %v3689 = vld [vmem:[%s3684 + $0x20] sm:$0xff]
  %v3690 = vld [vmem:[%s3684 + $0x28] sm:$0xff]
  %v3691 = vld [vmem:[%s3684 + $0x30] sm:$0xff]
  %v3692 = vld [vmem:[%s3684 + $0x38] sm:$0xff]
  %v3693 = vld [vmem:[%s3684 + $0x40] sm:$0xff]
  %v3694 = vld [vmem:[%s3684 + $0x48] sm:$0xff]
  %v3695 = vld [vmem:[%s3684 + $0x50] sm:$0xff]
  %v3696 = vld [vmem:[%s3684 + $0x58] sm:$0xff]
  %v3697 = vld [vmem:[%s3684 + $0x60] sm:$0xff]
  %v3698 = vld [vmem:[%s3684 + $0x68] sm:$0xff]
  %v3699 = vld [vmem:[%s3684 + $0x70] sm:$0xff]
  %v3700 = vld [vmem:[%s3684 + $0x78] sm:$0xff]
  %v3701 = vld [vmem:[%s3684 + $0x80] sm:$0xff]
  %v3702 = vld [vmem:[%s3684 + $0x88] sm:$0xff]
  %v3703 = vld [vmem:[%s3684 + $0x90] sm:$0xff]
  %v3704 = vld [vmem:[%s3684 + $0x98] sm:$0xff]
  %v3705 = vld [vmem:[%s3684 + $0xa0] sm:$0xff]
  %v3706 = vld [vmem:[%s3684 + $0xa8] sm:$0xff]
  %v3707 = vld [vmem:[%s3684 + $0xb0] sm:$0xff]
  %v3708 = vld [vmem:[%s3684 + $0xb8] sm:$0xff]
  %v3713 = vrot.slane %v3680, 2
  %v3714 = vrot.slane %v3682, 2
  %v3715 = vsel %vm490, %v3713, %v3714
  %v3716 = vrot.slane %v3681, 2
  %v3717 = vrot.slane %v3683, 2
  %v3718 = vsel %vm490, %v3716, %v3717
  %v3721 = vsel %vm515, %v3718, 0
  %v3723 = vsel %vm515, %v3717, 0
  %3725 = vmatpush.msra.mxu0 %v3700
  %3726 = vmatpush.msra.mxu0 %v3699
  %3727 = vmatpush.msra.mxu0 %v3698
  %3728 = vmatpush.msra.mxu0 %v3697
  %3729 = vmatpush.msra.mxu0 %v3696
  %3730 = vmatpush.msra.mxu0 %v3695
  %3731 = vmatpush.msra.mxu0 %v3694
  %3732 = vmatpush.msra.mxu0 %v3693
  %3733 = vmatpush.msra.mxu0 %v3692
  %3734 = vmatpush.msra.mxu0 %v3691
  %3735 = vmatpush.msra.mxu0 %v3690
  %3736 = vmatpush.msra.mxu0 %v3689
  %3737 = vmatpush.msra.mxu0 %v3688
  %3738 = vmatpush.msra.mxu0 %v3687
  %3739 = vmatpush.msra.mxu0 %v3686
  %3740 = vmatpush.msra.mxu0 %v3685
  %3741 = vmatmul.f32.gmra.mxu0 %v3715
  %v3742 = vpop.f32.mrf.mxu0
  %v3743 = vadd.f32 0.0, %v3742
  %3744 = vmatmul.f32.gmra.mxu0 %v3714
  %v3745 = vpop.f32.mrf.mxu0
  %v3746 = vadd.f32 0.0, %v3745
  %3747 = vdwg.mxu0
  %3748 = vmatpush.msra.mxu0 0.0
  %3749 = vmatpush.msra.mxu0 0.0
  %3750 = vmatpush.msra.mxu0 0.0
  %3751 = vmatpush.msra.mxu0 0.0
  %3752 = vmatpush.msra.mxu0 0.0
  %3753 = vmatpush.msra.mxu0 0.0
  %3754 = vmatpush.msra.mxu0 0.0
  %3755 = vmatpush.msra.mxu0 0.0
  %3756 = vmatpush.msra.mxu0 %v3708
  %3757 = vmatpush.msra.mxu0 %v3707
  %3758 = vmatpush.msra.mxu0 %v3706
  %3759 = vmatpush.msra.mxu0 %v3705
  %3760 = vmatpush.msra.mxu0 %v3704
  %3761 = vmatpush.msra.mxu0 %v3703
  %3762 = vmatpush.msra.mxu0 %v3702
  %3763 = vmatpush.msra.mxu0 %v3701
  %3764 = vmatmul.f32.gmra.mxu0 %v3721
  %v3765 = vpop.f32.mrf.mxu0
  %v3766 = vadd.f32 %v3743, %v3765
  %3767 = vmatmul.f32.gmra.mxu0 %v3723
  %v3768 = vpop.f32.mrf.mxu0
  %v3769 = vadd.f32 %v3746, %v3768
  %3770 = vdwg.mxu0
  %v3771 = vadd.f32 %v3675, %v3766
  %v3772 = vadd.f32 %v3678, %v3769
  %v3773 = vld [vmem:[%s15] sm:$0x1]
  %v3775 = vperm.slane %v3773, 0
  %v3777 = vadd.f32 %v3771, %v3775
  %v3778 = vadd.f32 %v3772, %v3775
  %vm3779 = vcmask 654336
  %v3780 = vsel %vm3779, %v3777, 0.0
  %vm3781 = vcmask 648192
  %v3782 = vsel %vm3781, %v3778, 0.0
  %v3783 = vadd.f32 %v3780, %v3782
  %v3784 = vrot.slane %v3783, 4
  %v3785 = vadd.f32 %v3783, %v3784
  %v3786 = vrot.slane %v3785, 2
  %v3787 = vadd.f32 %v3785, %v3786
  %v3788 = vrot.slane %v3787, 1
  %v3789 = vadd.f32 %v3787, %v3788
  %v3790 = vadd.f32 %v3789, 0.0
  %v3791 = vmul.f32 %v3777, %v3777
  %v3792 = vmul.f32 %v3778, %v3778
  %v3793 = vsel %vm3779, %v3791, 0.0
  %v3794 = vsel %vm3781, %v3792, 0.0
  %v3795 = vadd.f32 %v3793, %v3794
  %v3796 = vrot.slane %v3795, 4
  %v3797 = vadd.f32 %v3795, %v3796
  %v3798 = vrot.slane %v3797, 2
  %v3799 = vadd.f32 %v3797, %v3798
  %v3800 = vrot.slane %v3799, 1
  %v3801 = vadd.f32 %v3799, %v3800
  %v3802 = vadd.f32 %v3801, 0.0
  %v3803 = vld [vmem:[%s3504] sm:$0xff]
  %v3804 = vld [vmem:[%s3504 + $0x8] sm:$0xff]
  %v3805 = vld [vmem:[%s3504 + $0x10] sm:$0x3]
  %v3806 = vld [vmem:[%s3504 + $0x18] sm:$0x3]
  %v3807 = vld [vmem:[%s3504] sm:$0xfe]
  %v3808 = vld [vmem:[%s3504 + $0x8] sm:$0xfe]
  %v3809 = vld [vmem:[%s3504 + $0x10] sm:$0x7]
  %v3810 = vld [vmem:[%s3504 + $0x18] sm:$0x7]
  %v3815 = vrot.slane %v3807, 1
  %v3816 = vrot.slane %v3809, 1
  %v3817 = vsel %vm1753, %v3815, %v3816
  %v3818 = vrot.slane %v3808, 1
  %v3819 = vrot.slane %v3810, 1
  %v3820 = vsel %vm1753, %v3818, %v3819
  %v3823 = vsel %vm515, %v3820, 0
  %v3825 = vsel %vm515, %v3819, 0
  %3827 = vmatpush.msra.mxu0 %v3557
  %3828 = vmatpush.msra.mxu0 %v3556
  %3829 = vmatpush.msra.mxu0 %v3555
  %3830 = vmatpush.msra.mxu0 %v3554
  %3831 = vmatpush.msra.mxu0 %v3553
  %3832 = vmatpush.msra.mxu0 %v3552
  %3833 = vmatpush.msra.mxu0 %v3551
  %3834 = vmatpush.msra.mxu0 %v3550
  %3835 = vmatpush.msra.mxu0 %v3549
  %3836 = vmatpush.msra.mxu0 %v3548
  %3837 = vmatpush.msra.mxu0 %v3547
  %3838 = vmatpush.msra.mxu0 %v3546
  %3839 = vmatpush.msra.mxu0 %v3545
  %3840 = vmatpush.msra.mxu0 %v3544
  %3841 = vmatpush.msra.mxu0 %v3543
  %3842 = vmatpush.msra.mxu0 %v3542
  %3843 = vmatmul.f32.gmra.mxu0 %v3817
  %v3844 = vpop.f32.mrf.mxu0
  %v3845 = vadd.f32 0.0, %v3844
  %3846 = vmatmul.f32.gmra.mxu0 %v3816
  %v3847 = vpop.f32.mrf.mxu0
  %v3848 = vadd.f32 0.0, %v3847
  %3849 = vdwg.mxu0
  %3850 = vmatpush.msra.mxu0 0.0
  %3851 = vmatpush.msra.mxu0 0.0
  %3852 = vmatpush.msra.mxu0 0.0
  %3853 = vmatpush.msra.mxu0 0.0
  %3854 = vmatpush.msra.mxu0 0.0
  %3855 = vmatpush.msra.mxu0 0.0
  %3856 = vmatpush.msra.mxu0 0.0
  %3857 = vmatpush.msra.mxu0 0.0
  %3858 = vmatpush.msra.mxu0 %v3565
  %3859 = vmatpush.msra.mxu0 %v3564
  %3860 = vmatpush.msra.mxu0 %v3563
  %3861 = vmatpush.msra.mxu0 %v3562
  %3862 = vmatpush.msra.mxu0 %v3561
  %3863 = vmatpush.msra.mxu0 %v3560
  %3864 = vmatpush.msra.mxu0 %v3559
  %3865 = vmatpush.msra.mxu0 %v3558
  %3866 = vmatmul.f32.gmra.mxu0 %v3823
  %v3867 = vpop.f32.mrf.mxu0
  %v3868 = vadd.f32 %v3845, %v3867
  %3869 = vmatmul.f32.gmra.mxu0 %v3825
  %v3870 = vpop.f32.mrf.mxu0
  %v3871 = vadd.f32 %v3848, %v3870
  %3872 = vdwg.mxu0
  %v3874 = vsel %vm515, %v3804, 0
  %v3877 = vsel %vm515, %v3806, 0
  %3879 = vmatpush.msra.mxu0 %v3528
  %3880 = vmatpush.msra.mxu0 %v3527
  %3881 = vmatpush.msra.mxu0 %v3526
  %3882 = vmatpush.msra.mxu0 %v3525
  %3883 = vmatpush.msra.mxu0 %v3524
  %3884 = vmatpush.msra.mxu0 %v3523
  %3885 = vmatpush.msra.mxu0 %v3522
  %3886 = vmatpush.msra.mxu0 %v3521
  %3887 = vmatpush.msra.mxu0 %v3520
  %3888 = vmatpush.msra.mxu0 %v3519
  %3889 = vmatpush.msra.mxu0 %v3518
  %3890 = vmatpush.msra.mxu0 %v3517
  %3891 = vmatpush.msra.mxu0 %v3516
  %3892 = vmatpush.msra.mxu0 %v3515
  %3893 = vmatpush.msra.mxu0 %v3514
  %3894 = vmatpush.msra.mxu0 %v3513
  %3895 = vmatmul.f32.gmra.mxu0 %v3803
  %v3896 = vpop.f32.mrf.mxu0
  %v3897 = vadd.f32 %v3868, %v3896
  %3898 = vmatmul.f32.gmra.mxu0 %v3805
  %v3899 = vpop.f32.mrf.mxu0
  %v3900 = vadd.f32 %v3871, %v3899
  %3901 = vdwg.mxu0
  %3902 = vmatpush.msra.mxu0 0.0
  %3903 = vmatpush.msra.mxu0 0.0
  %3904 = vmatpush.msra.mxu0 0.0
  %3905 = vmatpush.msra.mxu0 0.0
  %3906 = vmatpush.msra.mxu0 0.0
  %3907 = vmatpush.msra.mxu0 0.0
  %3908 = vmatpush.msra.mxu0 0.0
  %3909 = vmatpush.msra.mxu0 0.0
  %3910 = vmatpush.msra.mxu0 %v3536
  %3911 = vmatpush.msra.mxu0 %v3535
  %3912 = vmatpush.msra.mxu0 %v3534
  %3913 = vmatpush.msra.mxu0 %v3533
  %3914 = vmatpush.msra.mxu0 %v3532
  %3915 = vmatpush.msra.mxu0 %v3531
  %3916 = vmatpush.msra.mxu0 %v3530
  %3917 = vmatpush.msra.mxu0 %v3529
  %3918 = vmatmul.f32.gmra.mxu0 %v3874
  %v3919 = vpop.f32.mrf.mxu0
  %v3920 = vadd.f32 %v3897, %v3919
  %3921 = vmatmul.f32.gmra.mxu0 %v3877
  %v3922 = vpop.f32.mrf.mxu0
  %v3923 = vadd.f32 %v3900, %v3922
  %3924 = vdwg.mxu0
  %v3925 = vld [vmem:[%s3504] sm:$0xfc]
  %v3926 = vld [vmem:[%s3504 + $0x8] sm:$0xfc]
  %v3927 = vld [vmem:[%s3504 + $0x10] sm:$0xf]
  %v3928 = vld [vmem:[%s3504 + $0x18] sm:$0xf]
  %v3933 = vrot.slane %v3925, 2
  %v3934 = vrot.slane %v3927, 2
  %v3935 = vsel %vm490, %v3933, %v3934
  %v3936 = vrot.slane %v3926, 2
  %v3937 = vrot.slane %v3928, 2
  %v3938 = vsel %vm490, %v3936, %v3937
  %v3941 = vsel %vm515, %v3938, 0
  %v3943 = vsel %vm515, %v3937, 0
  %3945 = vmatpush.msra.mxu0 %v3700
  %3946 = vmatpush.msra.mxu0 %v3699
  %3947 = vmatpush.msra.mxu0 %v3698
  %3948 = vmatpush.msra.mxu0 %v3697
  %3949 = vmatpush.msra.mxu0 %v3696
  %3950 = vmatpush.msra.mxu0 %v3695
  %3951 = vmatpush.msra.mxu0 %v3694
  %3952 = vmatpush.msra.mxu0 %v3693
  %3953 = vmatpush.msra.mxu0 %v3692
  %3954 = vmatpush.msra.mxu0 %v3691
  %3955 = vmatpush.msra.mxu0 %v3690
  %3956 = vmatpush.msra.mxu0 %v3689
  %3957 = vmatpush.msra.mxu0 %v3688
  %3958 = vmatpush.msra.mxu0 %v3687
  %3959 = vmatpush.msra.mxu0 %v3686
  %3960 = vmatpush.msra.mxu0 %v3685
  %3961 = vmatmul.f32.gmra.mxu0 %v3935
  %v3962 = vpop.f32.mrf.mxu0
  %v3963 = vadd.f32 0.0, %v3962
  %3964 = vmatmul.f32.gmra.mxu0 %v3934
  %v3965 = vpop.f32.mrf.mxu0
  %v3966 = vadd.f32 0.0, %v3965
  %3967 = vdwg.mxu0
  %3968 = vmatpush.msra.mxu0 0.0
  %3969 = vmatpush.msra.mxu0 0.0
  %3970 = vmatpush.msra.mxu0 0.0
  %3971 = vmatpush.msra.mxu0 0.0
  %3972 = vmatpush.msra.mxu0 0.0
  %3973 = vmatpush.msra.mxu0 0.0
  %3974 = vmatpush.msra.mxu0 0.0
  %3975 = vmatpush.msra.mxu0 0.0
  %3976 = vmatpush.msra.mxu0 %v3708
  %3977 = vmatpush.msra.mxu0 %v3707
  %3978 = vmatpush.msra.mxu0 %v3706
  %3979 = vmatpush.msra.mxu0 %v3705
  %3980 = vmatpush.msra.mxu0 %v3704
  %3981 = vmatpush.msra.mxu0 %v3703
  %3982 = vmatpush.msra.mxu0 %v3702
  %3983 = vmatpush.msra.mxu0 %v3701
  %3984 = vmatmul.f32.gmra.mxu0 %v3941
  %v3985 = vpop.f32.mrf.mxu0
  %v3986 = vadd.f32 %v3963, %v3985
  %3987 = vmatmul.f32.gmra.mxu0 %v3943
  %v3988 = vpop.f32.mrf.mxu0
  %v3989 = vadd.f32 %v3966, %v3988
  %3990 = vdwg.mxu0
  %v3991 = vadd.f32 %v3920, %v3986
  %v3992 = vadd.f32 %v3923, %v3989
  %v3993 = vadd.f32 %v3991, %v3775
  %v3994 = vadd.f32 %v3992, %v3775
  %v3995 = vsel %vm3779, %v3993, 0.0
  %v3996 = vsel %vm3781, %v3994, 0.0
  %v3997 = vadd.f32 %v3995, %v3996
  %v3998 = vrot.slane %v3997, 4
  %v3999 = vadd.f32 %v3997, %v3998
  %v4000 = vrot.slane %v3999, 2
  %v4001 = vadd.f32 %v3999, %v4000
  %v4002 = vrot.slane %v4001, 1
  %v4003 = vadd.f32 %v4001, %v4002
  %v4004 = vadd.f32 %v3790, %v4003
  %v4005 = vmul.f32 %v3993, %v3993
  %v4006 = vmul.f32 %v3994, %v3994
  %v4007 = vsel %vm3779, %v4005, 0.0
  %v4008 = vsel %vm3781, %v4006, 0.0
  %v4009 = vadd.f32 %v4007, %v4008
  %v4010 = vrot.slane %v4009, 4
  %v4011 = vadd.f32 %v4009, %v4010
  %v4012 = vrot.slane %v4011, 2
  %v4013 = vadd.f32 %v4011, %v4012
  %v4014 = vrot.slane %v4013, 1
  %v4015 = vadd.f32 %v4013, %v4014
  %v4016 = vadd.f32 %v3802, %v4015
  %v4017 = vld [vmem:[%s18] sm:$0xff]
  %v4018 = vld [vmem:[%s18 + $0x8] sm:$0xff]
  %v4019 = vld [vmem:[%s18 + $0x10] sm:$0xff]
  %v4020 = vld [vmem:[%s18 + $0x18] sm:$0xff]
  %v4021 = vld [vmem:[%s18 + $0x20] sm:$0xff]
  %v4022 = vld [vmem:[%s18 + $0x28] sm:$0xff]
  %v4023 = vld [vmem:[%s18 + $0x30] sm:$0xff]
  %v4024 = vld [vmem:[%s18 + $0x38] sm:$0xff]
  %v4025 = vld [vmem:[%s18 + $0x40] sm:$0xff]
  %v4026 = vld [vmem:[%s18 + $0x48] sm:$0xff]
  %v4028 = vsel %vm3779, %v4004, 0
  %4030 = vmatpush.msra.mxu0 0.0
  %4031 = vmatpush.msra.mxu0 0.0
  %4032 = vmatpush.msra.mxu0 0.0
  %4033 = vmatpush.msra.mxu0 0.0
  %4034 = vmatpush.msra.mxu0 0.0
  %4035 = vmatpush.msra.mxu0 0.0
  %4036 = vmatpush.msra.mxu0 %v4026
  %4037 = vmatpush.msra.mxu0 %v4025
  %4038 = vmatpush.msra.mxu0 %v4024
  %4039 = vmatpush.msra.mxu0 %v4023
  %4040 = vmatpush.msra.mxu0 %v4022
  %4041 = vmatpush.msra.mxu0 %v4021
  %4042 = vmatpush.msra.mxu0 %v4020
  %4043 = vmatpush.msra.mxu0 %v4019
  %4044 = vmatpush.msra.mxu0 %v4018
  %4045 = vmatpush.msra.mxu0 %v4017
  %4046 = vmatmul.f32.gmra.mxu0 %v4028
  %v4047 = vpop.f32.mrf.mxu0
  %v4048 = vadd.f32 0.0, %v4047
  %4049 = vdwg.mxu0
  %v4051 = vsel %vm3779, %v4016, 0
  %4053 = vmatpush.msra.mxu0 0.0
  %4054 = vmatpush.msra.mxu0 0.0
  %4055 = vmatpush.msra.mxu0 0.0
  %4056 = vmatpush.msra.mxu0 0.0
  %4057 = vmatpush.msra.mxu0 0.0
  %4058 = vmatpush.msra.mxu0 0.0
  %4059 = vmatpush.msra.mxu0 %v4026
  %4060 = vmatpush.msra.mxu0 %v4025
  %4061 = vmatpush.msra.mxu0 %v4024
  %4062 = vmatpush.msra.mxu0 %v4023
  %4063 = vmatpush.msra.mxu0 %v4022
  %4064 = vmatpush.msra.mxu0 %v4021
  %4065 = vmatpush.msra.mxu0 %v4020
  %4066 = vmatpush.msra.mxu0 %v4019
  %4067 = vmatpush.msra.mxu0 %v4018
  %4068 = vmatpush.msra.mxu0 %v4017
  %4069 = vmatmul.f32.gmra.mxu0 %v4051
  %v4070 = vpop.f32.mrf.mxu0
  %v4071 = vadd.f32 0.0, %v4070
  %4072 = vdwg.mxu0
  %v4073 = vmul.f32 %v4048, 0.005
  %v4074 = vmul.f32 %v4071, 0.005
  %v4075 = vmul.f32 %v4073, %v4073
  %v4076 = vsub.f32 %v4074, %v4075
  %v4077 = vld [vmem:[%s16] sm:$0x1]
  %v4078 = vadd.f32 %v4076, 1e-05
  %v4079 = vrsqrt.pop %v4078
  %v4080 = vmul.f32 %v4079, %v4078
  %v4081 = vmul.f32 %v4080, %v4079
  %v4082 = vmul.f32 0.5, %v4081
  %v4083 = vsub.f32 1.5, %v4082
  %v4084 = vmul.f32 %v4079, %v4083
  %vm4085 = vweird.f32 %v4078
  %vm4086 = vweird.f32 %v4079
  %vm4087 = vmor %vm4085, %vm4086
  %v4088 = vsel %vm4087, %v4079, %v4084
  %v4089 = vmul.f32 %v4077, %v4088
  %v4090 = vld [vmem:[%s17] sm:$0x1]
  %v4091 = vmul.f32 %v4073, %v4089
  %v4092 = vsub.f32 %v4090, %v4091
  %v4093 = vld [vmem:[%s19] sm:$0xff]
  %vm4094 = vcmask 64512
  %v4096 = vsel %vm4094, %v4089, 0
  %4098 = vmatpush.msra.mxu0 0.0
  %4099 = vmatpush.msra.mxu0 0.0
  %4100 = vmatpush.msra.mxu0 0.0
  %4101 = vmatpush.msra.mxu0 0.0
  %4102 = vmatpush.msra.mxu0 0.0
  %4103 = vmatpush.msra.mxu0 0.0
  %4104 = vmatpush.msra.mxu0 0.0
  %4105 = vmatpush.msra.mxu0 0.0
  %4106 = vmatpush.msra.mxu0 0.0
  %4107 = vmatpush.msra.mxu0 0.0
  %4108 = vmatpush.msra.mxu0 0.0
  %4109 = vmatpush.msra.mxu0 0.0
  %4110 = vmatpush.msra.mxu0 0.0
  %4111 = vmatpush.msra.mxu0 0.0
  %4112 = vmatpush.msra.mxu0 0.0
  %4113 = vmatpush.msra.mxu0 %v4093
  %4114 = vmatmul.f32.gmra.mxu0 %v4096
  %v4115 = vpop.f32.mrf.mxu0
  %v4116 = vadd.f32 0.0, %v4115
  %4117 = vdwg.mxu0
  %v4119 = vsel %vm4094, %v4092, 0
  %4121 = vmatpush.msra.mxu0 0.0
  %4122 = vmatpush.msra.mxu0 0.0
  %4123 = vmatpush.msra.mxu0 0.0
  %4124 = vmatpush.msra.mxu0 0.0
  %4125 = vmatpush.msra.mxu0 0.0
  %4126 = vmatpush.msra.mxu0 0.0
  %4127 = vmatpush.msra.mxu0 0.0
  %4128 = vmatpush.msra.mxu0 0.0
  %4129 = vmatpush.msra.mxu0 0.0
  %4130 = vmatpush.msra.mxu0 0.0
  %4131 = vmatpush.msra.mxu0 0.0
  %4132 = vmatpush.msra.mxu0 0.0
  %4133 = vmatpush.msra.mxu0 0.0
  %4134 = vmatpush.msra.mxu0 0.0
  %4135 = vmatpush.msra.mxu0 0.0
  %4136 = vmatpush.msra.mxu0 %v4093
  %4137 = vmatmul.f32.gmra.mxu0 %v4119
  %v4138 = vpop.f32.mrf.mxu0
  %v4139 = vadd.f32 0.0, %v4138
  %4140 = vdwg.mxu0
  %v4141 = vperm.slane %v4116, 0
  %v4142 = vmul.f32 %v3777, %v4141
  %v4143 = vmul.f32 %v3778, %v4141
  %v4144 = vperm.slane %v4139, 0
  %v4145 = vadd.f32 %v4142, %v4144
  %v4146 = vadd.f32 %v4143, %v4144
  %vm4147 = vcmp.ge.f32.partialorder %v4145, 0.0
  %vm4148 = vcmp.ge.f32.partialorder %v4146, 0.0
  %v4149 = vmul.f32 %v4145, 0.2
  %v4150 = vmul.f32 %v4146, 0.2
  %v4151 = vsel %vm4147, %v4145, %v4149
  %v4152 = vsel %vm4148, %v4146, %v4150
  %4153 = vst.msk [vmem:[#allocation4] sm:$0xff] %vm3779, %v4151
  %4154 = vst.msk [vmem:[#allocation4 + $0x8] sm:$0x3] %vm3781, %v4152
  %v4155 = vmul.f32 %v3993, %v4141
  %v4156 = vmul.f32 %v3994, %v4141
  %v4157 = vadd.f32 %v4155, %v4144
  %v4158 = vadd.f32 %v4156, %v4144
  %vm4159 = vcmp.ge.f32.partialorder %v4157, 0.0
  %vm4160 = vcmp.ge.f32.partialorder %v4158, 0.0
  %v4161 = vmul.f32 %v4157, 0.2
  %v4162 = vmul.f32 %v4158, 0.2
  %v4163 = vsel %vm4159, %v4157, %v4161
  %v4164 = vsel %vm4160, %v4158, %v4162
  %s4165 = scalar_lea.vmem [#allocation4], 16
  %4166 = vst.msk [vmem:[%s4165] sm:$0xff] %vm3779, %v4163
  %4167 = vst.msk [vmem:[%s4165 + $0x8] sm:$0x3] %vm3781, %v4164
  %v4168 = vld [vmem:[#allocation4] sm:$0xff]
  %v4169 = vld [vmem:[%s20] sm:$0xff]
  %v4170 = vld [vmem:[%s20 + $0x8] sm:$0xff]
  %v4171 = vld [vmem:[%s20 + $0x10] sm:$0xff]
  %v4172 = vld [vmem:[%s20 + $0x18] sm:$0xff]
  %v4173 = vld [vmem:[%s20 + $0x20] sm:$0xff]
  %v4174 = vld [vmem:[%s20 + $0x28] sm:$0xff]
  %v4175 = vld [vmem:[%s20 + $0x30] sm:$0xff]
  %v4176 = vld [vmem:[%s20 + $0x38] sm:$0xff]
  %v4177 = vld [vmem:[%s20 + $0x40] sm:$0xff]
  %v4178 = vld [vmem:[%s20 + $0x48] sm:$0xff]
  %v4179 = vld [vmem:[#allocation4 + $0x1] sm:$0xff]
  %s4180 = scalar_lea.vmem %s20, 80
  %v4181 = vld [vmem:[%s4180] sm:$0xff]
  %v4182 = vld [vmem:[%s4180 + $0x8] sm:$0xff]
  %v4183 = vld [vmem:[%s4180 + $0x10] sm:$0xff]
  %v4184 = vld [vmem:[%s4180 + $0x18] sm:$0xff]
  %v4185 = vld [vmem:[%s4180 + $0x20] sm:$0xff]
  %v4186 = vld [vmem:[%s4180 + $0x28] sm:$0xff]
  %v4187 = vld [vmem:[%s4180 + $0x30] sm:$0xff]
  %v4188 = vld [vmem:[%s4180 + $0x38] sm:$0xff]
  %v4189 = vld [vmem:[%s4180 + $0x40] sm:$0xff]
  %v4190 = vld [vmem:[%s4180 + $0x48] sm:$0xff]
  %v4192 = vsel %vm3779, %v4179, 0
  %4194 = vmatpush.msra.mxu0 0.0
  %4195 = vmatpush.msra.mxu0 0.0
  %4196 = vmatpush.msra.mxu0 0.0
  %4197 = vmatpush.msra.mxu0 0.0
  %4198 = vmatpush.msra.mxu0 0.0
  %4199 = vmatpush.msra.mxu0 0.0
  %4200 = vmatpush.msra.mxu0 %v4190
  %4201 = vmatpush.msra.mxu0 %v4189
  %4202 = vmatpush.msra.mxu0 %v4188
  %4203 = vmatpush.msra.mxu0 %v4187
  %4204 = vmatpush.msra.mxu0 %v4186
  %4205 = vmatpush.msra.mxu0 %v4185
  %4206 = vmatpush.msra.mxu0 %v4184
  %4207 = vmatpush.msra.mxu0 %v4183
  %4208 = vmatpush.msra.mxu0 %v4182
  %4209 = vmatpush.msra.mxu0 %v4181
  %4210 = vmatmul.f32.gmra.mxu0 %v4192
  %v4211 = vpop.f32.mrf.mxu0
  %v4212 = vadd.f32 0.0, %v4211
  %4213 = vdwg.mxu0
  %v4215 = vsel %vm3779, %v4168, 0
  %4217 = vmatpush.msra.mxu0 0.0
  %4218 = vmatpush.msra.mxu0 0.0
  %4219 = vmatpush.msra.mxu0 0.0
  %4220 = vmatpush.msra.mxu0 0.0
  %4221 = vmatpush.msra.mxu0 0.0
  %4222 = vmatpush.msra.mxu0 0.0
  %4223 = vmatpush.msra.mxu0 %v4178
  %4224 = vmatpush.msra.mxu0 %v4177
  %4225 = vmatpush.msra.mxu0 %v4176
  %4226 = vmatpush.msra.mxu0 %v4175
  %4227 = vmatpush.msra.mxu0 %v4174
  %4228 = vmatpush.msra.mxu0 %v4173
  %4229 = vmatpush.msra.mxu0 %v4172
  %4230 = vmatpush.msra.mxu0 %v4171
  %4231 = vmatpush.msra.mxu0 %v4170
  %4232 = vmatpush.msra.mxu0 %v4169
  %4233 = vmatmul.f32.gmra.mxu0 %v4215
  %v4234 = vpop.f32.mrf.mxu0
  %v4235 = vadd.f32 %v4212, %v4234
  %4236 = vdwg.mxu0
  %v4237 = vld [vmem:[#allocation4 + $0x2] sm:$0xff]
  %s4238 = scalar_lea.vmem %s20, 160
  %v4239 = vld [vmem:[%s4238] sm:$0xff]
  %v4240 = vld [vmem:[%s4238 + $0x8] sm:$0xff]
  %v4241 = vld [vmem:[%s4238 + $0x10] sm:$0xff]
  %v4242 = vld [vmem:[%s4238 + $0x18] sm:$0xff]
  %v4243 = vld [vmem:[%s4238 + $0x20] sm:$0xff]
  %v4244 = vld [vmem:[%s4238 + $0x28] sm:$0xff]
  %v4245 = vld [vmem:[%s4238 + $0x30] sm:$0xff]
  %v4246 = vld [vmem:[%s4238 + $0x38] sm:$0xff]
  %v4247 = vld [vmem:[%s4238 + $0x40] sm:$0xff]
  %v4248 = vld [vmem:[%s4238 + $0x48] sm:$0xff]
  %v4250 = vsel %vm3779, %v4237, 0
  %4252 = vmatpush.msra.mxu0 0.0
  %4253 = vmatpush.msra.mxu0 0.0
  %4254 = vmatpush.msra.mxu0 0.0
  %4255 = vmatpush.msra.mxu0 0.0
  %4256 = vmatpush.msra.mxu0 0.0
  %4257 = vmatpush.msra.mxu0 0.0
  %4258 = vmatpush.msra.mxu0 %v4248
  %4259 = vmatpush.msra.mxu0 %v4247
  %4260 = vmatpush.msra.mxu0 %v4246
  %4261 = vmatpush.msra.mxu0 %v4245
  %4262 = vmatpush.msra.mxu0 %v4244
  %4263 = vmatpush.msra.mxu0 %v4243
  %4264 = vmatpush.msra.mxu0 %v4242
  %4265 = vmatpush.msra.mxu0 %v4241
  %4266 = vmatpush.msra.mxu0 %v4240
  %4267 = vmatpush.msra.mxu0 %v4239
  %4268 = vmatmul.f32.gmra.mxu0 %v4250
  %v4269 = vpop.f32.mrf.mxu0
  %v4270 = vadd.f32 0.0, %v4269
  %4271 = vdwg.mxu0
  %v4272 = vadd.f32 %v4235, %v4270
  %v4273 = vld [vmem:[%s21] sm:$0x1]
  %v4275 = vperm.slane %v4273, 0
  %v4277 = vadd.f32 %v4272, %v4275
  %v4278 = vsel %vm515, %v4277, 0.0
  %v4279 = vrot.slane %v4278, 4
  %v4280 = vadd.f32 %v4278, %v4279
  %v4281 = vrot.slane %v4280, 2
  %v4282 = vadd.f32 %v4280, %v4281
  %v4283 = vrot.slane %v4282, 1
  %v4284 = vadd.f32 %v4282, %v4283
  %v4285 = vadd.f32 %v4284, 0.0
  %v4286 = vmul.f32 %v4277, %v4277
  %v4287 = vsel %vm515, %v4286, 0.0
  %v4288 = vrot.slane %v4287, 4
  %v4289 = vadd.f32 %v4287, %v4288
  %v4290 = vrot.slane %v4289, 2
  %v4291 = vadd.f32 %v4289, %v4290
  %v4292 = vrot.slane %v4291, 1
  %v4293 = vadd.f32 %v4291, %v4292
  %v4294 = vadd.f32 %v4293, 0.0
  %v4295 = vld [vmem:[%s4165] sm:$0xff]
  %v4296 = vld [vmem:[%s4165 + $0x1] sm:$0xff]
  %v4298 = vsel %vm3779, %v4296, 0
  %4300 = vmatpush.msra.mxu0 0.0
  %4301 = vmatpush.msra.mxu0 0.0
  %4302 = vmatpush.msra.mxu0 0.0
  %4303 = vmatpush.msra.mxu0 0.0
  %4304 = vmatpush.msra.mxu0 0.0
  %4305 = vmatpush.msra.mxu0 0.0
  %4306 = vmatpush.msra.mxu0 %v4190
  %4307 = vmatpush.msra.mxu0 %v4189
  %4308 = vmatpush.msra.mxu0 %v4188
  %4309 = vmatpush.msra.mxu0 %v4187
  %4310 = vmatpush.msra.mxu0 %v4186
  %4311 = vmatpush.msra.mxu0 %v4185
  %4312 = vmatpush.msra.mxu0 %v4184
  %4313 = vmatpush.msra.mxu0 %v4183
  %4314 = vmatpush.msra.mxu0 %v4182
  %4315 = vmatpush.msra.mxu0 %v4181
  %4316 = vmatmul.f32.gmra.mxu0 %v4298
  %v4317 = vpop.f32.mrf.mxu0
  %v4318 = vadd.f32 0.0, %v4317
  %4319 = vdwg.mxu0
  %v4321 = vsel %vm3779, %v4295, 0
  %4323 = vmatpush.msra.mxu0 0.0
  %4324 = vmatpush.msra.mxu0 0.0
  %4325 = vmatpush.msra.mxu0 0.0
  %4326 = vmatpush.msra.mxu0 0.0
  %4327 = vmatpush.msra.mxu0 0.0
  %4328 = vmatpush.msra.mxu0 0.0
  %4329 = vmatpush.msra.mxu0 %v4178
  %4330 = vmatpush.msra.mxu0 %v4177
  %4331 = vmatpush.msra.mxu0 %v4176
  %4332 = vmatpush.msra.mxu0 %v4175
  %4333 = vmatpush.msra.mxu0 %v4174
  %4334 = vmatpush.msra.mxu0 %v4173
  %4335 = vmatpush.msra.mxu0 %v4172
  %4336 = vmatpush.msra.mxu0 %v4171
  %4337 = vmatpush.msra.mxu0 %v4170
  %4338 = vmatpush.msra.mxu0 %v4169
  %4339 = vmatmul.f32.gmra.mxu0 %v4321
  %v4340 = vpop.f32.mrf.mxu0
  %v4341 = vadd.f32 %v4318, %v4340
  %4342 = vdwg.mxu0
  %v4343 = vld [vmem:[%s4165 + $0x2] sm:$0xff]
  %v4345 = vsel %vm3779, %v4343, 0
  %4347 = vmatpush.msra.mxu0 0.0
  %4348 = vmatpush.msra.mxu0 0.0
  %4349 = vmatpush.msra.mxu0 0.0
  %4350 = vmatpush.msra.mxu0 0.0
  %4351 = vmatpush.msra.mxu0 0.0
  %4352 = vmatpush.msra.mxu0 0.0
  %4353 = vmatpush.msra.mxu0 %v4248
  %4354 = vmatpush.msra.mxu0 %v4247
  %4355 = vmatpush.msra.mxu0 %v4246
  %4356 = vmatpush.msra.mxu0 %v4245
  %4357 = vmatpush.msra.mxu0 %v4244
  %4358 = vmatpush.msra.mxu0 %v4243
  %4359 = vmatpush.msra.mxu0 %v4242
  %4360 = vmatpush.msra.mxu0 %v4241
  %4361 = vmatpush.msra.mxu0 %v4240
  %4362 = vmatpush.msra.mxu0 %v4239
  %4363 = vmatmul.f32.gmra.mxu0 %v4345
  %v4364 = vpop.f32.mrf.mxu0
  %v4365 = vadd.f32 0.0, %v4364
  %4366 = vdwg.mxu0
  %v4367 = vadd.f32 %v4341, %v4365
  %v4368 = vadd.f32 %v4367, %v4275
  %v4369 = vsel %vm515, %v4368, 0.0
  %v4370 = vrot.slane %v4369, 4
  %v4371 = vadd.f32 %v4369, %v4370
  %v4372 = vrot.slane %v4371, 2
  %v4373 = vadd.f32 %v4371, %v4372
  %v4374 = vrot.slane %v4373, 1
  %v4375 = vadd.f32 %v4373, %v4374
  %v4376 = vadd.f32 %v4285, %v4375
  %v4377 = vmul.f32 %v4368, %v4368
  %v4378 = vsel %vm515, %v4377, 0.0
  %v4379 = vrot.slane %v4378, 4
  %v4380 = vadd.f32 %v4378, %v4379
  %v4381 = vrot.slane %v4380, 2
  %v4382 = vadd.f32 %v4380, %v4381
  %v4383 = vrot.slane %v4382, 1
  %v4384 = vadd.f32 %v4382, %v4383
  %v4385 = vadd.f32 %v4294, %v4384
  %v4386 = vld [vmem:[%s24] sm:$0xff]
  %v4387 = vld [vmem:[%s24 + $0x8] sm:$0xff]
  %v4388 = vld [vmem:[%s24 + $0x10] sm:$0xff]
  %v4389 = vld [vmem:[%s24 + $0x18] sm:$0xff]
  %v4390 = vld [vmem:[%s24 + $0x20] sm:$0xff]
  %v4391 = vld [vmem:[%s24 + $0x28] sm:$0xff]
  %v4392 = vld [vmem:[%s24 + $0x30] sm:$0xff]
  %v4393 = vld [vmem:[%s24 + $0x38] sm:$0xff]
  %v4395 = vsel %vm515, %v4376, 0
  %4397 = vmatpush.msra.mxu0 0.0
  %4398 = vmatpush.msra.mxu0 0.0
  %4399 = vmatpush.msra.mxu0 0.0
  %4400 = vmatpush.msra.mxu0 0.0
  %4401 = vmatpush.msra.mxu0 0.0
  %4402 = vmatpush.msra.mxu0 0.0
  %4403 = vmatpush.msra.mxu0 0.0
  %4404 = vmatpush.msra.mxu0 0.0
  %4405 = vmatpush.msra.mxu0 %v4393
  %4406 = vmatpush.msra.mxu0 %v4392
  %4407 = vmatpush.msra.mxu0 %v4391
  %4408 = vmatpush.msra.mxu0 %v4390
  %4409 = vmatpush.msra.mxu0 %v4389
  %4410 = vmatpush.msra.mxu0 %v4388
  %4411 = vmatpush.msra.mxu0 %v4387
  %4412 = vmatpush.msra.mxu0 %v4386
  %4413 = vmatmul.f32.gmra.mxu0 %v4395
  %v4414 = vpop.f32.mrf.mxu0
  %v4415 = vadd.f32 0.0, %v4414
  %4416 = vdwg.mxu0
  %v4418 = vsel %vm515, %v4385, 0
  %4420 = vmatpush.msra.mxu0 0.0
  %4421 = vmatpush.msra.mxu0 0.0
  %4422 = vmatpush.msra.mxu0 0.0
  %4423 = vmatpush.msra.mxu0 0.0
  %4424 = vmatpush.msra.mxu0 0.0
  %4425 = vmatpush.msra.mxu0 0.0
  %4426 = vmatpush.msra.mxu0 0.0
  %4427 = vmatpush.msra.mxu0 0.0
  %4428 = vmatpush.msra.mxu0 %v4393
  %4429 = vmatpush.msra.mxu0 %v4392
  %4430 = vmatpush.msra.mxu0 %v4391
  %4431 = vmatpush.msra.mxu0 %v4390
  %4432 = vmatpush.msra.mxu0 %v4389
  %4433 = vmatpush.msra.mxu0 %v4388
  %4434 = vmatpush.msra.mxu0 %v4387
  %4435 = vmatpush.msra.mxu0 %v4386
  %4436 = vmatmul.f32.gmra.mxu0 %v4418
  %v4437 = vpop.f32.mrf.mxu0
  %v4438 = vadd.f32 0.0, %v4437
  %4439 = vdwg.mxu0
  %v4440 = vmul.f32 %v4415, 0.0078125
  %v4441 = vmul.f32 %v4438, 0.0078125
  %v4442 = vmul.f32 %v4440, %v4440
  %v4443 = vsub.f32 %v4441, %v4442
  %v4444 = vld [vmem:[%s22] sm:$0x1]
  %v4445 = vadd.f32 %v4443, 1e-05
  %v4446 = vrsqrt.pop %v4445
  %v4447 = vmul.f32 %v4446, %v4445
  %v4448 = vmul.f32 %v4447, %v4446
  %v4449 = vmul.f32 0.5, %v4448
  %v4450 = vsub.f32 1.5, %v4449
  %v4451 = vmul.f32 %v4446, %v4450
  %vm4452 = vweird.f32 %v4445
  %vm4453 = vweird.f32 %v4446
  %vm4454 = vmor %vm4452, %vm4453
  %v4455 = vsel %vm4454, %v4446, %v4451
  %v4456 = vmul.f32 %v4444, %v4455
  %v4457 = vld [vmem:[%s23] sm:$0x1]
  %v4458 = vmul.f32 %v4440, %v4456
  %v4459 = vsub.f32 %v4457, %v4458
  %v4460 = vld [vmem:[%s25] sm:$0xff]
  %v4462 = vsel %vm4094, %v4456, 0
  %4464 = vmatpush.msra.mxu0 0.0
  %4465 = vmatpush.msra.mxu0 0.0
  %4466 = vmatpush.msra.mxu0 0.0
  %4467 = vmatpush.msra.mxu0 0.0
  %4468 = vmatpush.msra.mxu0 0.0
  %4469 = vmatpush.msra.mxu0 0.0
  %4470 = vmatpush.msra.mxu0 0.0
  %4471 = vmatpush.msra.mxu0 0.0
  %4472 = vmatpush.msra.mxu0 0.0
  %4473 = vmatpush.msra.mxu0 0.0
  %4474 = vmatpush.msra.mxu0 0.0
  %4475 = vmatpush.msra.mxu0 0.0
  %4476 = vmatpush.msra.mxu0 0.0
  %4477 = vmatpush.msra.mxu0 0.0
  %4478 = vmatpush.msra.mxu0 0.0
  %4479 = vmatpush.msra.mxu0 %v4460
  %4480 = vmatmul.f32.gmra.mxu0 %v4462
  %v4481 = vpop.f32.mrf.mxu0
  %v4482 = vadd.f32 0.0, %v4481
  %4483 = vdwg.mxu0
  %v4485 = vsel %vm4094, %v4459, 0
  %4487 = vmatpush.msra.mxu0 0.0
  %4488 = vmatpush.msra.mxu0 0.0
  %4489 = vmatpush.msra.mxu0 0.0
  %4490 = vmatpush.msra.mxu0 0.0
  %4491 = vmatpush.msra.mxu0 0.0
  %4492 = vmatpush.msra.mxu0 0.0
  %4493 = vmatpush.msra.mxu0 0.0
  %4494 = vmatpush.msra.mxu0 0.0
  %4495 = vmatpush.msra.mxu0 0.0
  %4496 = vmatpush.msra.mxu0 0.0
  %4497 = vmatpush.msra.mxu0 0.0
  %4498 = vmatpush.msra.mxu0 0.0
  %4499 = vmatpush.msra.mxu0 0.0
  %4500 = vmatpush.msra.mxu0 0.0
  %4501 = vmatpush.msra.mxu0 0.0
  %4502 = vmatpush.msra.mxu0 %v4460
  %4503 = vmatmul.f32.gmra.mxu0 %v4485
  %v4504 = vpop.f32.mrf.mxu0
  %v4505 = vadd.f32 0.0, %v4504
  %4506 = vdwg.mxu0
  %v4507 = vperm.slane %v4482, 0
  %v4508 = vmul.f32 %v4277, %v4507
  %v4509 = vperm.slane %v4505, 0
  %v4510 = vadd.f32 %v4508, %v4509
  %vm4511 = vcmp.ge.f32.partialorder %v4510, 0.0
  %v4512 = vmul.f32 %v4510, 0.2
  %v4513 = vsel %vm4511, %v4510, %v4512
  %4514 = vst.msk [vmem:[#allocation5] sm:$0xff] %vm515, %v4513
  %v4515 = vmul.f32 %v4368, %v4507
  %v4516 = vadd.f32 %v4515, %v4509
  %vm4517 = vcmp.ge.f32.partialorder %v4516, 0.0
  %v4518 = vmul.f32 %v4516, 0.2
  %v4519 = vsel %vm4517, %v4516, %v4518
  %s4520 = scalar_lea.vmem [#allocation5], 8
  %4521 = vst.msk [vmem:[%s4520] sm:$0xff] %vm515, %v4519
  %v4522 = vld [vmem:[#allocation5] sm:$0x3f]
  %v4523 = vld [vmem:[%s26] sm:$0xff]
  %v4524 = vld [vmem:[%s26 + $0x8] sm:$0xff]
  %v4525 = vld [vmem:[%s26 + $0x10] sm:$0xff]
  %v4526 = vld [vmem:[%s26 + $0x18] sm:$0xff]
  %v4527 = vld [vmem:[%s26 + $0x20] sm:$0xff]
  %v4528 = vld [vmem:[%s26 + $0x28] sm:$0xff]
  %v4529 = vld [vmem:[%s26 + $0x30] sm:$0xff]
  %v4530 = vld [vmem:[%s26 + $0x38] sm:$0xff]
  %v4531 = vld [vmem:[#allocation5 + $0x1] sm:$0x3f]
  %s4532 = scalar_lea.vmem %s26, 64
  %v4533 = vld [vmem:[%s4532] sm:$0xff]
  %v4534 = vld [vmem:[%s4532 + $0x8] sm:$0xff]
  %v4535 = vld [vmem:[%s4532 + $0x10] sm:$0xff]
  %v4536 = vld [vmem:[%s4532 + $0x18] sm:$0xff]
  %v4537 = vld [vmem:[%s4532 + $0x20] sm:$0xff]
  %v4538 = vld [vmem:[%s4532 + $0x28] sm:$0xff]
  %v4539 = vld [vmem:[%s4532 + $0x30] sm:$0xff]
  %v4540 = vld [vmem:[%s4532 + $0x38] sm:$0xff]
  %v4542 = vsel %vm515, %v4531, 0
  %4544 = vmatpush.msra.mxu0 0.0
  %4545 = vmatpush.msra.mxu0 0.0
  %4546 = vmatpush.msra.mxu0 0.0
  %4547 = vmatpush.msra.mxu0 0.0
  %4548 = vmatpush.msra.mxu0 0.0
  %4549 = vmatpush.msra.mxu0 0.0
  %4550 = vmatpush.msra.mxu0 0.0
  %4551 = vmatpush.msra.mxu0 0.0
  %4552 = vmatpush.msra.mxu0 %v4540
  %4553 = vmatpush.msra.mxu0 %v4539
  %4554 = vmatpush.msra.mxu0 %v4538
  %4555 = vmatpush.msra.mxu0 %v4537
  %4556 = vmatpush.msra.mxu0 %v4536
  %4557 = vmatpush.msra.mxu0 %v4535
  %4558 = vmatpush.msra.mxu0 %v4534
  %4559 = vmatpush.msra.mxu0 %v4533
  %4560 = vmatmul.f32.gmra.mxu0 %v4542
  %v4561 = vpop.f32.mrf.mxu0
  %v4562 = vadd.f32 0.0, %v4561
  %4563 = vdwg.mxu0
  %v4565 = vsel %vm515, %v4522, 0
  %4567 = vmatpush.msra.mxu0 0.0
  %4568 = vmatpush.msra.mxu0 0.0
  %4569 = vmatpush.msra.mxu0 0.0
  %4570 = vmatpush.msra.mxu0 0.0
  %4571 = vmatpush.msra.mxu0 0.0
  %4572 = vmatpush.msra.mxu0 0.0
  %4573 = vmatpush.msra.mxu0 0.0
  %4574 = vmatpush.msra.mxu0 0.0
  %4575 = vmatpush.msra.mxu0 %v4530
  %4576 = vmatpush.msra.mxu0 %v4529
  %4577 = vmatpush.msra.mxu0 %v4528
  %4578 = vmatpush.msra.mxu0 %v4527
  %4579 = vmatpush.msra.mxu0 %v4526
  %4580 = vmatpush.msra.mxu0 %v4525
  %4581 = vmatpush.msra.mxu0 %v4524
  %4582 = vmatpush.msra.mxu0 %v4523
  %4583 = vmatmul.f32.gmra.mxu0 %v4565
  %v4584 = vpop.f32.mrf.mxu0
  %v4585 = vadd.f32 %v4562, %v4584
  %4586 = vdwg.mxu0
  %v4587 = vld [vmem:[#allocation5 + $0x2] sm:$0x3f]
  %s4588 = scalar_lea.vmem %s26, 128
  %v4589 = vld [vmem:[%s4588] sm:$0xff]
  %v4590 = vld [vmem:[%s4588 + $0x8] sm:$0xff]
  %v4591 = vld [vmem:[%s4588 + $0x10] sm:$0xff]
  %v4592 = vld [vmem:[%s4588 + $0x18] sm:$0xff]
  %v4593 = vld [vmem:[%s4588 + $0x20] sm:$0xff]
  %v4594 = vld [vmem:[%s4588 + $0x28] sm:$0xff]
  %v4595 = vld [vmem:[%s4588 + $0x30] sm:$0xff]
  %v4596 = vld [vmem:[%s4588 + $0x38] sm:$0xff]
  %v4598 = vsel %vm515, %v4587, 0
  %4600 = vmatpush.msra.mxu0 0.0
  %4601 = vmatpush.msra.mxu0 0.0
  %4602 = vmatpush.msra.mxu0 0.0
  %4603 = vmatpush.msra.mxu0 0.0
  %4604 = vmatpush.msra.mxu0 0.0
  %4605 = vmatpush.msra.mxu0 0.0
  %4606 = vmatpush.msra.mxu0 0.0
  %4607 = vmatpush.msra.mxu0 0.0
  %4608 = vmatpush.msra.mxu0 %v4596
  %4609 = vmatpush.msra.mxu0 %v4595
  %4610 = vmatpush.msra.mxu0 %v4594
  %4611 = vmatpush.msra.mxu0 %v4593
  %4612 = vmatpush.msra.mxu0 %v4592
  %4613 = vmatpush.msra.mxu0 %v4591
  %4614 = vmatpush.msra.mxu0 %v4590
  %4615 = vmatpush.msra.mxu0 %v4589
  %4616 = vmatmul.f32.gmra.mxu0 %v4598
  %v4617 = vpop.f32.mrf.mxu0
  %v4618 = vadd.f32 0.0, %v4617
  %4619 = vdwg.mxu0
  %v4620 = vadd.f32 %v4585, %v4618
  %v4621 = vld [vmem:[%s27] sm:$0x1]
  %v4623 = vperm.slane %v4621, 0
  %v4625 = vadd.f32 %v4620, %v4623
  %v4626 = vtanh.pop %v4625
  %v4627 = vld [vmem:[%s1] sm:$0x3f]
  %v4628 = vadd.f32 %v4626, %v4627
  %vm4629 = vcmask 144384
  %4630 = vst.msk [vmem:[%s28] sm:$0x3f] %vm4629, %v4628
  %v4631 = vld [vmem:[%s4520] sm:$0x3f]
  %v4632 = vld [vmem:[%s26] sm:$0xff]
  %v4633 = vld [vmem:[%s26 + $0x8] sm:$0xff]
  %v4634 = vld [vmem:[%s26 + $0x10] sm:$0xff]
  %v4635 = vld [vmem:[%s26 + $0x18] sm:$0xff]
  %v4636 = vld [vmem:[%s26 + $0x20] sm:$0xff]
  %v4637 = vld [vmem:[%s26 + $0x28] sm:$0xff]
  %v4638 = vld [vmem:[%s26 + $0x30] sm:$0xff]
  %v4639 = vld [vmem:[%s26 + $0x38] sm:$0xff]
  %v4640 = vld [vmem:[%s4520 + $0x1] sm:$0x3f]
  %v4641 = vld [vmem:[%s4532] sm:$0xff]
  %v4642 = vld [vmem:[%s4532 + $0x8] sm:$0xff]
  %v4643 = vld [vmem:[%s4532 + $0x10] sm:$0xff]
  %v4644 = vld [vmem:[%s4532 + $0x18] sm:$0xff]
  %v4645 = vld [vmem:[%s4532 + $0x20] sm:$0xff]
  %v4646 = vld [vmem:[%s4532 + $0x28] sm:$0xff]
  %v4647 = vld [vmem:[%s4532 + $0x30] sm:$0xff]
  %v4648 = vld [vmem:[%s4532 + $0x38] sm:$0xff]
  %v4650 = vsel %vm515, %v4640, 0
  %4652 = vmatpush.msra.mxu0 0.0
  %4653 = vmatpush.msra.mxu0 0.0
  %4654 = vmatpush.msra.mxu0 0.0
  %4655 = vmatpush.msra.mxu0 0.0
  %4656 = vmatpush.msra.mxu0 0.0
  %4657 = vmatpush.msra.mxu0 0.0
  %4658 = vmatpush.msra.mxu0 0.0
  %4659 = vmatpush.msra.mxu0 0.0
  %4660 = vmatpush.msra.mxu0 %v4648
  %4661 = vmatpush.msra.mxu0 %v4647
  %4662 = vmatpush.msra.mxu0 %v4646
  %4663 = vmatpush.msra.mxu0 %v4645
  %4664 = vmatpush.msra.mxu0 %v4644
  %4665 = vmatpush.msra.mxu0 %v4643
  %4666 = vmatpush.msra.mxu0 %v4642
  %4667 = vmatpush.msra.mxu0 %v4641
  %4668 = vmatmul.f32.gmra.mxu0 %v4650
  %v4669 = vpop.f32.mrf.mxu0
  %v4670 = vadd.f32 0.0, %v4669
  %4671 = vdwg.mxu0
  %v4673 = vsel %vm515, %v4631, 0
  %4675 = vmatpush.msra.mxu0 0.0
  %4676 = vmatpush.msra.mxu0 0.0
  %4677 = vmatpush.msra.mxu0 0.0
  %4678 = vmatpush.msra.mxu0 0.0
  %4679 = vmatpush.msra.mxu0 0.0
  %4680 = vmatpush.msra.mxu0 0.0
  %4681 = vmatpush.msra.mxu0 0.0
  %4682 = vmatpush.msra.mxu0 0.0
  %4683 = vmatpush.msra.mxu0 %v4639
  %4684 = vmatpush.msra.mxu0 %v4638
  %4685 = vmatpush.msra.mxu0 %v4637
  %4686 = vmatpush.msra.mxu0 %v4636
  %4687 = vmatpush.msra.mxu0 %v4635
  %4688 = vmatpush.msra.mxu0 %v4634
  %4689 = vmatpush.msra.mxu0 %v4633
  %4690 = vmatpush.msra.mxu0 %v4632
  %4691 = vmatmul.f32.gmra.mxu0 %v4673
  %v4692 = vpop.f32.mrf.mxu0
  %v4693 = vadd.f32 %v4670, %v4692
  %4694 = vdwg.mxu0
  %v4695 = vld [vmem:[%s4520 + $0x2] sm:$0x3f]
  %v4696 = vld [vmem:[%s4588] sm:$0xff]
  %v4697 = vld [vmem:[%s4588 + $0x8] sm:$0xff]
  %v4698 = vld [vmem:[%s4588 + $0x10] sm:$0xff]
  %v4699 = vld [vmem:[%s4588 + $0x18] sm:$0xff]
  %v4700 = vld [vmem:[%s4588 + $0x20] sm:$0xff]
  %v4701 = vld [vmem:[%s4588 + $0x28] sm:$0xff]
  %v4702 = vld [vmem:[%s4588 + $0x30] sm:$0xff]
  %v4703 = vld [vmem:[%s4588 + $0x38] sm:$0xff]
  %v4705 = vsel %vm515, %v4695, 0
  %4707 = vmatpush.msra.mxu0 0.0
  %4708 = vmatpush.msra.mxu0 0.0
  %4709 = vmatpush.msra.mxu0 0.0
  %4710 = vmatpush.msra.mxu0 0.0
  %4711 = vmatpush.msra.mxu0 0.0
  %4712 = vmatpush.msra.mxu0 0.0
  %4713 = vmatpush.msra.mxu0 0.0
  %4714 = vmatpush.msra.mxu0 0.0
  %4715 = vmatpush.msra.mxu0 %v4703
  %4716 = vmatpush.msra.mxu0 %v4702
  %4717 = vmatpush.msra.mxu0 %v4701
  %4718 = vmatpush.msra.mxu0 %v4700
  %4719 = vmatpush.msra.mxu0 %v4699
  %4720 = vmatpush.msra.mxu0 %v4698
  %4721 = vmatpush.msra.mxu0 %v4697
  %4722 = vmatpush.msra.mxu0 %v4696
  %4723 = vmatmul.f32.gmra.mxu0 %v4705
  %v4724 = vpop.f32.mrf.mxu0
  %v4725 = vadd.f32 0.0, %v4724
  %4726 = vdwg.mxu0
  %v4727 = vadd.f32 %v4693, %v4725
  %v4728 = vld [vmem:[%s27] sm:$0x1]
  %v4730 = vperm.slane %v4728, 0
  %v4732 = vadd.f32 %v4727, %v4730
  %v4733 = vtanh.pop %v4732
  %s4734 = scalar_lea.vmem %s1, 8
  %v4735 = vld [vmem:[%s4734] sm:$0x3f]
  %v4736 = vadd.f32 %v4733, %v4735
  %s4737 = scalar_lea.vmem %s28, 8
  %4738 = vst.msk [vmem:[%s4737] sm:$0x3f] %vm4629, %v4736
  // Predicated region
  $region114: #{generator_forward.1} parent=0 // pred_check
    _
  $region115: #{generator_forward.1} parent=0 // pred_check_branch
    %4740 = sbr.rel (0) target = $region117
  $region116: #{generator_forward.1} parent=0 // pred_region
    _
  $region117: #{generator_forward.1} parent=0 // pred_fallthru
    _
  // Predicated region
  $region118: #{generator_forward.1} parent=0 // pred_check
    _
  $region119: #{generator_forward.1} parent=0 // pred_check_branch
    %4742 = sbr.rel (0) target = $region121
  $region120: #{generator_forward.1} parent=0 // pred_region
    _
  $region121: #{generator_forward.1} parent=0 // pred_fallthru
    _

</llo_original>
